<compile_context>
chip_gen: v5e
topology: v5e:2x2
jax: 0.10.0
libtpu: 0.0.40
codegen_flags: <defaults>
</compile_context>

<pallas_src>
import functools

import jax
import jax.numpy as jnp
import numpy as np
from jax.experimental import pallas as pl
from jax.experimental.pallas import tpu as pltpu


# ------------------------------ kernels ------------------------------------

def _stage_kernel(p_ref, w_ref, b_ref, o_ref, *, wo, cout, pool_k):
    """conv (im2col matmul) + 2-unit maxout + pool_k x pool_k sliding max.

    p_ref: (1, Ho*Wo, K)   bf16 patches for this image
    w_ref: (K, 2*cout)     bf16 concatenated maxout-unit weights
    b_ref: (1, 2*cout)     f32  concatenated biases
    o_ref: (1, R, cout)    bf16, R = (Ho-pool_k+1)*Wo - (pool_k-1)
    """
    p = p_ref[0]
    y = jnp.dot(p, w_ref[...], preferred_element_type=jnp.float32) + b_ref[...]
    z = jnp.maximum(y[:, :cout], y[:, cout:])          # maxout over the 2 units
    # sliding max over the pool window, H direction (flat row stride = wo)
    for _ in range(pool_k - 1):
        z = jnp.maximum(z[:-wo], z[wo:])
    # sliding max, W direction (row stride = 1). Rows that wrap across image
    # rows are garbage but are never selected by the downstream stride-2
    # subsample (done in the next stage's XLA glue).
    for _ in range(pool_k - 1):
        z = jnp.maximum(z[:-1], z[1:])
    o_ref[0] = z.astype(o_ref.dtype)


def _stage3_fc_kernel(p_ref, w_ref, b_ref, wfc_ref, bfc_ref, o_ref, *, wo, cout):
    """conv3 + maxout + 2x2/2 max pool + fc(96->10), one image per step."""
    p = p_ref[0]                                        # (16, 1200) bf16
    y = jnp.dot(p, w_ref[...], preferred_element_type=jnp.float32) + b_ref[...]
    z = jnp.maximum(y[:, :cout], y[:, cout:])           # (16, 24)
    z = jnp.maximum(z[:-wo], z[wo:])                    # pool, H direction
    z = jnp.maximum(z[:-1], z[1:])                      # pool, W direction
    # valid pooled positions (ph, pw) in {0,1}^2 sit at flat rows 2*ph*wo+2*pw
    rows = [2 * ph * wo + 2 * pw for ph in range(2) for pw in range(2)]
    feat = jnp.concatenate([z[r:r + 1, :] for r in rows], axis=1)   # (1, 96)
    o_ref[0] = jnp.dot(feat, wfc_ref[...],
                       preferred_element_type=jnp.float32) + bfc_ref[...]


# ------------------------------ wrappers ------------------------------------

def _im2col(x_nhwc, kh, kw, pad):
    """NHWC -> (N, Ho*Wo, Kh*Kw*Cin) bf16 patches (column order kh, kw, cin)."""
    n, h, w, c = x_nhwc.shape
    ho = h + 2 * pad - kh + 1
    wo = w + 2 * pad - kw + 1
    xp = jnp.pad(x_nhwc, ((0, 0), (pad, pad), (pad, pad), (0, 0)))
    cols = [xp[:, i:i + ho, j:j + wo, :] for i in range(kh) for j in range(kw)]
    patches = jnp.concatenate(cols, axis=-1).reshape(n, ho * wo, kh * kw * c)
    return patches.astype(jnp.bfloat16), ho, wo


def _subsample_pooled(o_flat, ho, wo, c, pool_k, stride):
    """Pick the stride-`stride` pooled positions out of the sliding-max map."""
    n = o_flat.shape[0]
    hs = ho - pool_k + 1
    ph = (ho - pool_k) // stride + 1
    pw = (wo - pool_k) // stride + 1
    o = jnp.pad(o_flat, ((0, 0), (0, pool_k - 1), (0, 0)))
    o = o.reshape(n, hs, wo, c)
    return o[:, :stride * (ph - 1) + 1:stride, :stride * (pw - 1) + 1:stride, :]


def _conv_maxout_pool(patches, wcat, bcat, *, ho, wo, cout, pool_k):
    n, m, k = patches.shape
    r = (ho - pool_k + 1) * wo - (pool_k - 1)
    kern = functools.partial(_stage_kernel, wo=wo, cout=cout, pool_k=pool_k)
    flops = 2 * n * m * k * 2 * cout
    bytes_accessed = (patches.size * 2 + wcat.size * 2 + bcat.size * 4
                      + n * r * cout * 2)
    return pl.pallas_call(
        kern,
        out_shape=jax.ShapeDtypeStruct((n, r, cout), jnp.bfloat16),
        grid=(n,),
        in_specs=[
            pl.BlockSpec((1, m, k), lambda i: (i, 0, 0)),
            pl.BlockSpec((k, 2 * cout), lambda i: (0, 0)),
            pl.BlockSpec((1, 2 * cout), lambda i: (0, 0)),
        ],
        out_specs=pl.BlockSpec((1, r, cout), lambda i: (i, 0, 0)),
        compiler_params=pltpu.CompilerParams(
            dimension_semantics=("parallel",)),
        cost_estimate=pl.CostEstimate(flops=flops, transcendentals=0,
                                      bytes_accessed=bytes_accessed),
    )(patches, wcat, bcat)


def _conv_maxout_pool_fc(patches, wcat, bcat, wfc, bfc, *, ho, wo, cout):
    n, m, k = patches.shape
    nout = wfc.shape[1]
    kern = functools.partial(_stage3_fc_kernel, wo=wo, cout=cout)
    out = pl.pallas_call(
        kern,
        out_shape=jax.ShapeDtypeStruct((n, 1, nout), jnp.float32),
        grid=(n,),
        in_specs=[
            pl.BlockSpec((1, m, k), lambda i: (i, 0, 0)),
            pl.BlockSpec((k, 2 * cout), lambda i: (0, 0)),
            pl.BlockSpec((1, 2 * cout), lambda i: (0, 0)),
            pl.BlockSpec(wfc.shape, lambda i: (0, 0)),
            pl.BlockSpec(bfc.shape, lambda i: (0, 0)),
        ],
        out_specs=pl.BlockSpec((1, 1, nout), lambda i: (i, 0, 0)),
        compiler_params=pltpu.CompilerParams(
            dimension_semantics=("parallel",)),
    )(patches, wcat, bcat, wfc, bfc)
    return out.reshape(n, nout)


# --------------------------- parameter prep --------------------------------

def init_params(key):
    """Raw PyTorch-layout parameters (OIHW conv weights, (out,in) fc)."""
    ks = jax.random.split(key, 14)

    def wn(k, shape, scale=0.05):
        return scale * jax.random.normal(k, shape, dtype=jnp.float32)

    return {
        "conv1_w": [wn(ks[0], (48, 1, 7, 7)), wn(ks[1], (48, 1, 7, 7))],
        "conv1_b": [wn(ks[2], (48,)), wn(ks[3], (48,))],
        "conv2_w": [wn(ks[4], (48, 48, 7, 7)), wn(ks[5], (48, 48, 7, 7))],
        "conv2_b": [wn(ks[6], (48,)), wn(ks[7], (48,))],
        "conv3_w": [wn(ks[8], (24, 48, 5, 5)), wn(ks[9], (24, 48, 5, 5))],
        "conv3_b": [wn(ks[10], (24,)), wn(ks[11], (24,))],
        "fc_w": wn(ks[12], (10, 96)),
        "fc_b": wn(ks[13], (10,)),
    }


def prepare_params(raw):
    """One-time transform of torch-layout params into kernel-ready arrays."""

    def wmat(w_oihw):  # OIHW -> (Kh*Kw*Cin, Cout), matching im2col column order
        co, ci, kh, kw = w_oihw.shape
        return jnp.transpose(w_oihw, (2, 3, 1, 0)).reshape(kh * kw * ci, co)

    def cat_units(ws, bs):
        w = jnp.concatenate([wmat(ws[0]), wmat(ws[1])], axis=1)
        b = jnp.concatenate([bs[0], bs[1]]).reshape(1, -1)
        return w.astype(jnp.bfloat16), b.astype(jnp.float32)

    w1, b1 = cat_units(raw["conv1_w"], raw["conv1_b"])
    w2, b2 = cat_units(raw["conv2_w"], raw["conv2_b"])
    w3, b3 = cat_units(raw["conv3_w"], raw["conv3_b"])

    # fc weight: reorder columns so the in-kernel feature order
    # ((ph,pw)-major, channel-minor) matches torch's NCHW .view(-1, 96),
    # then transpose once to (96, 10).
    c3, sp = 24, 2 * 2
    perm = np.array([(j % c3) * sp + (j // c3) for j in range(c3 * sp)])
    wfc = jnp.asarray(raw["fc_w"])[:, perm].T.astype(jnp.float32)
    bfc = jnp.asarray(raw["fc_b"]).reshape(1, -1).astype(jnp.float32)

    return {"w1": w1, "b1": b1, "w2": w2, "b2": b2, "w3": w3, "b3": b3,
            "wfc": wfc, "bfc": bfc}


# ------------------------------ forward -------------------------------------

def maxout_conv_mnist_forward(x_nchw, p):
    x = jnp.transpose(x_nchw, (0, 2, 3, 1))                        # NHWC

    # stage 1: conv(1->48, 7x7, pad 3) + maxout + maxpool(4, stride 2)
    pat, ho, wo = _im2col(x, 7, 7, 3)                              # (N, 784, 49)
    o1 = _conv_maxout_pool(pat, p["w1"], p["b1"],
                           ho=ho, wo=wo, cout=48, pool_k=4)
    x = _subsample_pooled(o1, ho, wo, 48, pool_k=4, stride=2)      # (N,13,13,48)

    # stage 2: conv(48->48, 7x7, pad 2) + maxout + maxpool(4, stride 2)
    pat, ho, wo = _im2col(x, 7, 7, 2)                              # (N, 121, 2352)
    o2 = _conv_maxout_pool(pat, p["w2"], p["b2"],
                           ho=ho, wo=wo, cout=48, pool_k=4)
    x = _subsample_pooled(o2, ho, wo, 48, pool_k=4, stride=2)      # (N, 4, 4, 48)

    # stage 3: conv(48->24, 5x5, pad 2) + maxout + maxpool(2,2) + fc(96->10)
    pat, ho, wo = _im2col(x, 5, 5, 2)                              # (N, 16, 1200)
    out = _conv_maxout_pool_fc(pat, p["w3"], p["b3"], p["wfc"], p["bfc"],
                               ho=ho, wo=wo, cout=24)
    # TODO(synk): F.dropout left as identity (inference mode); a training
    # version would use pltpu.prng_seed / prng_random_bits inside the kernel.
    return out


if __name__ == "__main__":
    key = jax.random.PRNGKey(0)
    k_param, k_input = jax.random.split(key)
    params = prepare_params(init_params(k_param))
    # MNIST-style input: 28x28 is required so that x.view(-1, 96) is valid.
    x = jax.random.normal(k_input, (2, 1, 28, 28), dtype=jnp.float32)

    fwd = jax.jit(maxout_conv_mnist_forward)
    out = jax.block_until_ready(fwd(x, params))
    assert out.shape == (2, 10), out.shape
    assert bool(jnp.all(jnp.isfinite(out)))
    print("KERNEL_OK")
</pallas_src>

<mosaic_0001>
module attributes {stable_mosaic.version = 11 : i64} {
  func.func @_stage_kernel(%arg0: i32, %arg1: memref<1x784x49xbf16, #tpu.memory_space<vmem>>, %arg2: memref<49x96xbf16, #tpu.memory_space<vmem>>, %arg3: memref<1x96xf32, #tpu.memory_space<vmem>>, %arg4: memref<1x697x48xbf16, #tpu.memory_space<vmem>>) attributes {dimension_semantics = [#tpu.dimension_semantics<parallel>], iteration_bounds = array<i64: 2>, scalar_prefetch = 0 : i64, scratch_operands = 0 : i64, tpu.core_type = #tpu.core_type<tc>, window_params = [{transform_indices = @transform_0, window_bounds = array<i64: 1, 784, 49>}, {pipeline_mode = #tpu.pipeline_mode<synchronous>, transform_indices = @transform_1, window_bounds = array<i64: 49, 96>}, {pipeline_mode = #tpu.pipeline_mode<synchronous>, transform_indices = @transform_2, window_bounds = array<i64: 1, 96>}, {transform_indices = @transform_3, window_bounds = array<i64: 1, 697, 48>}]} {
    %c0 = arith.constant 0 : index
    %c0_0 = arith.constant 0 : index
    %c0_1 = arith.constant 0 : index
    %0 = vector.load %arg1[%c0, %c0_0, %c0_1] : memref<1x784x49xbf16, #tpu.memory_space<vmem>>, vector<1x784x49xbf16>
    %1 = vector.shape_cast %0 : vector<1x784x49xbf16> to vector<784x49xbf16>
    %c0_2 = arith.constant 0 : index
    %c0_3 = arith.constant 0 : index
    %2 = vector.load %arg2[%c0_2, %c0_3] : memref<49x96xbf16, #tpu.memory_space<vmem>>, vector<49x96xbf16>
    %cst = arith.constant dense<0.000000e+00> : vector<784x96xf32>
    %3 = tpu.matmul %1, %2, %cst {dimension_numbers = #tpu.dot_dimension_numbers<[1], [0], [0], [1], [0, 0, 1, 1], [], []>} : vector<784x49xbf16>, vector<49x96xbf16>, vector<784x96xf32> -> vector<784x96xf32>
    %c0_4 = arith.constant 0 : index
    %c0_5 = arith.constant 0 : index
    %4 = vector.load %arg3[%c0_4, %c0_5] : memref<1x96xf32, #tpu.memory_space<vmem>>, vector<1x96xf32>
    %5 = vector.broadcast %4 : vector<1x96xf32> to vector<784x96xf32>
    %6 = arith.addf %3, %5 : vector<784x96xf32>
    %7 = vector.extract_strided_slice %6 {offsets = [0, 0], sizes = [784, 48], strides = [1, 1]} : vector<784x96xf32> to vector<784x48xf32>
    %8 = vector.extract_strided_slice %6 {offsets = [0, 48], sizes = [784, 48], strides = [1, 1]} : vector<784x96xf32> to vector<784x48xf32>
    %9 = arith.maximumf %7, %8 : vector<784x48xf32>
    %10 = vector.extract_strided_slice %9 {offsets = [0, 0], sizes = [756, 48], strides = [1, 1]} : vector<784x48xf32> to vector<756x48xf32>
    %11 = vector.extract_strided_slice %9 {offsets = [28, 0], sizes = [756, 48], strides = [1, 1]} : vector<784x48xf32> to vector<756x48xf32>
    %12 = arith.maximumf %10, %11 : vector<756x48xf32>
    %13 = vector.extract_strided_slice %12 {offsets = [0, 0], sizes = [728, 48], strides = [1, 1]} : vector<756x48xf32> to vector<728x48xf32>
    %14 = vector.extract_strided_slice %12 {offsets = [28, 0], sizes = [728, 48], strides = [1, 1]} : vector<756x48xf32> to vector<728x48xf32>
    %15 = arith.maximumf %13, %14 : vector<728x48xf32>
    %16 = vector.extract_strided_slice %15 {offsets = [0, 0], sizes = [700, 48], strides = [1, 1]} : vector<728x48xf32> to vector<700x48xf32>
    %17 = vector.extract_strided_slice %15 {offsets = [28, 0], sizes = [700, 48], strides = [1, 1]} : vector<728x48xf32> to vector<700x48xf32>
    %18 = arith.maximumf %16, %17 : vector<700x48xf32>
    %19 = vector.extract_strided_slice %18 {offsets = [0, 0], sizes = [699, 48], strides = [1, 1]} : vector<700x48xf32> to vector<699x48xf32>
    %20 = vector.extract_strided_slice %18 {offsets = [1, 0], sizes = [699, 48], strides = [1, 1]} : vector<700x48xf32> to vector<699x48xf32>
    %21 = arith.maximumf %19, %20 : vector<699x48xf32>
    %22 = vector.extract_strided_slice %21 {offsets = [0, 0], sizes = [698, 48], strides = [1, 1]} : vector<699x48xf32> to vector<698x48xf32>
    %23 = vector.extract_strided_slice %21 {offsets = [1, 0], sizes = [698, 48], strides = [1, 1]} : vector<699x48xf32> to vector<698x48xf32>
    %24 = arith.maximumf %22, %23 : vector<698x48xf32>
    %25 = vector.extract_strided_slice %24 {offsets = [0, 0], sizes = [697, 48], strides = [1, 1]} : vector<698x48xf32> to vector<697x48xf32>
    %26 = vector.extract_strided_slice %24 {offsets = [1, 0], sizes = [697, 48], strides = [1, 1]} : vector<698x48xf32> to vector<697x48xf32>
    %27 = arith.maximumf %25, %26 : vector<697x48xf32>
    %28 = arith.truncf %27 : vector<697x48xf32> to vector<697x48xbf16>
    %c0_6 = arith.constant 0 : index
    %c0_7 = arith.constant 0 : index
    %c0_8 = arith.constant 0 : index
    %29 = vector.load %arg4[%c0_6, %c0_7, %c0_8] : memref<1x697x48xbf16, #tpu.memory_space<vmem>>, vector<1x697x48xbf16>
    %30 = vector.shape_cast %29 : vector<1x697x48xbf16> to vector<697x48xbf16>
    %31 = vector.shape_cast %28 : vector<697x48xbf16> to vector<1x697x48xbf16>
    tpu.vector_store %arg4[%c0_6, %c0_7, %c0_8], %31 {strides = array<i32>} : memref<1x697x48xbf16, #tpu.memory_space<vmem>>, vector<1x697x48xbf16>,
    return
  }
  func.func @transform_0(%arg0: i32) -> (i32, i32, i32) {
    %c0_i32 = arith.constant 0 : i32
    %c0_i32_0 = arith.constant 0 : i32
    %c0_i32_1 = arith.constant 0 : i32
    return %arg0, %c0_i32, %c0_i32_0 : i32, i32, i32
  }
  func.func @transform_1(%arg0: i32) -> (i32, i32) {
    %c0_i32 = arith.constant 0 : i32
    %c0_i32_0 = arith.constant 0 : i32
    %c0_i32_1 = arith.constant 0 : i32
    return %c0_i32, %c0_i32_0 : i32, i32
  }
  func.func @transform_2(%arg0: i32) -> (i32, i32) {
    %c0_i32 = arith.constant 0 : i32
    %c0_i32_0 = arith.constant 0 : i32
    %c0_i32_1 = arith.constant 0 : i32
    return %c0_i32, %c0_i32_0 : i32, i32
  }
  func.func @transform_3(%arg0: i32) -> (i32, i32, i32) {
    %c0_i32 = arith.constant 0 : i32
    %c0_i32_0 = arith.constant 0 : i32
    %c0_i32_1 = arith.constant 0 : i32
    return %arg0, %c0_i32, %c0_i32_0 : i32, i32, i32
  }
}

module attributes {stable_mosaic.version = 11 : i64} {
  func.func @_stage_kernel(%arg0: i32, %arg1: memref<1x121x2352xbf16, #tpu.memory_space<vmem>>, %arg2: memref<2352x96xbf16, #tpu.memory_space<vmem>>, %arg3: memref<1x96xf32, #tpu.memory_space<vmem>>, %arg4: memref<1x85x48xbf16, #tpu.memory_space<vmem>>) attributes {dimension_semantics = [#tpu.dimension_semantics<parallel>], iteration_bounds = array<i64: 2>, scalar_prefetch = 0 : i64, scratch_operands = 0 : i64, tpu.core_type = #tpu.core_type<tc>, window_params = [{transform_indices = @transform_0, window_bounds = array<i64: 1, 121, 2352>}, {pipeline_mode = #tpu.pipeline_mode<synchronous>, transform_indices = @transform_1, window_bounds = array<i64: 2352, 96>}, {pipeline_mode = #tpu.pipeline_mode<synchronous>, transform_indices = @transform_2, window_bounds = array<i64: 1, 96>}, {transform_indices = @transform_3, window_bounds = array<i64: 1, 85, 48>}]} {
    %c0 = arith.constant 0 : index
    %c0_0 = arith.constant 0 : index
    %c0_1 = arith.constant 0 : index
    %0 = vector.load %arg1[%c0, %c0_0, %c0_1] : memref<1x121x2352xbf16, #tpu.memory_space<vmem>>, vector<1x121x2352xbf16>
    %1 = vector.shape_cast %0 : vector<1x121x2352xbf16> to vector<121x2352xbf16>
    %c0_2 = arith.constant 0 : index
    %c0_3 = arith.constant 0 : index
    %2 = vector.load %arg2[%c0_2, %c0_3] : memref<2352x96xbf16, #tpu.memory_space<vmem>>, vector<2352x96xbf16>
    %cst = arith.constant dense<0.000000e+00> : vector<121x96xf32>
    %3 = tpu.matmul %1, %2, %cst {dimension_numbers = #tpu.dot_dimension_numbers<[1], [0], [0], [1], [0, 0, 1, 1], [], []>} : vector<121x2352xbf16>, vector<2352x96xbf16>, vector<121x96xf32> -> vector<121x96xf32>
    %c0_4 = arith.constant 0 : index
    %c0_5 = arith.constant 0 : index
    %4 = vector.load %arg3[%c0_4, %c0_5] : memref<1x96xf32, #tpu.memory_space<vmem>>, vector<1x96xf32>
    %5 = vector.broadcast %4 : vector<1x96xf32> to vector<121x96xf32>
    %6 = arith.addf %3, %5 : vector<121x96xf32>
    %7 = vector.extract_strided_slice %6 {offsets = [0, 0], sizes = [121, 48], strides = [1, 1]} : vector<121x96xf32> to vector<121x48xf32>
    %8 = vector.extract_strided_slice %6 {offsets = [0, 48], sizes = [121, 48], strides = [1, 1]} : vector<121x96xf32> to vector<121x48xf32>
    %9 = arith.maximumf %7, %8 : vector<121x48xf32>
    %10 = vector.extract_strided_slice %9 {offsets = [0, 0], sizes = [110, 48], strides = [1, 1]} : vector<121x48xf32> to vector<110x48xf32>
    %11 = vector.extract_strided_slice %9 {offsets = [11, 0], sizes = [110, 48], strides = [1, 1]} : vector<121x48xf32> to vector<110x48xf32>
    %12 = arith.maximumf %10, %11 : vector<110x48xf32>
    %13 = vector.extract_strided_slice %12 {offsets = [0, 0], sizes = [99, 48], strides = [1, 1]} : vector<110x48xf32> to vector<99x48xf32>
    %14 = vector.extract_strided_slice %12 {offsets = [11, 0], sizes = [99, 48], strides = [1, 1]} : vector<110x48xf32> to vector<99x48xf32>
    %15 = arith.maximumf %13, %14 : vector<99x48xf32>
    %16 = vector.extract_strided_slice %15 {offsets = [0, 0], sizes = [88, 48], strides = [1, 1]} : vector<99x48xf32> to vector<88x48xf32>
    %17 = vector.extract_strided_slice %15 {offsets = [11, 0], sizes = [88, 48], strides = [1, 1]} : vector<99x48xf32> to vector<88x48xf32>
    %18 = arith.maximumf %16, %17 : vector<88x48xf32>
    %19 = vector.extract_strided_slice %18 {offsets = [0, 0], sizes = [87, 48], strides = [1, 1]} : vector<88x48xf32> to vector<87x48xf32>
    %20 = vector.extract_strided_slice %18 {offsets = [1, 0], sizes = [87, 48], strides = [1, 1]} : vector<88x48xf32> to vector<87x48xf32>
    %21 = arith.maximumf %19, %20 : vector<87x48xf32>
    %22 = vector.extract_strided_slice %21 {offsets = [0, 0], sizes = [86, 48], strides = [1, 1]} : vector<87x48xf32> to vector<86x48xf32>
    %23 = vector.extract_strided_slice %21 {offsets = [1, 0], sizes = [86, 48], strides = [1, 1]} : vector<87x48xf32> to vector<86x48xf32>
    %24 = arith.maximumf %22, %23 : vector<86x48xf32>
    %25 = vector.extract_strided_slice %24 {offsets = [0, 0], sizes = [85, 48], strides = [1, 1]} : vector<86x48xf32> to vector<85x48xf32>
    %26 = vector.extract_strided_slice %24 {offsets = [1, 0], sizes = [85, 48], strides = [1, 1]} : vector<86x48xf32> to vector<85x48xf32>
    %27 = arith.maximumf %25, %26 : vector<85x48xf32>
    %28 = arith.truncf %27 : vector<85x48xf32> to vector<85x48xbf16>
    %c0_6 = arith.constant 0 : index
    %c0_7 = arith.constant 0 : index
    %c0_8 = arith.constant 0 : index
    %29 = vector.load %arg4[%c0_6, %c0_7, %c0_8] : memref<1x85x48xbf16, #tpu.memory_space<vmem>>, vector<1x85x48xbf16>
    %30 = vector.shape_cast %29 : vector<1x85x48xbf16> to vector<85x48xbf16>
    %31 = vector.shape_cast %28 : vector<85x48xbf16> to vector<1x85x48xbf16>
    tpu.vector_store %arg4[%c0_6, %c0_7, %c0_8], %31 {strides = array<i32>} : memref<1x85x48xbf16, #tpu.memory_space<vmem>>, vector<1x85x48xbf16>,
    return
  }
  func.func @transform_0(%arg0: i32) -> (i32, i32, i32) {
    %c0_i32 = arith.constant 0 : i32
    %c0_i32_0 = arith.constant 0 : i32
    %c0_i32_1 = arith.constant 0 : i32
    return %arg0, %c0_i32, %c0_i32_0 : i32, i32, i32
  }
  func.func @transform_1(%arg0: i32) -> (i32, i32) {
    %c0_i32 = arith.constant 0 : i32
    %c0_i32_0 = arith.constant 0 : i32
    %c0_i32_1 = arith.constant 0 : i32
    return %c0_i32, %c0_i32_0 : i32, i32
  }
  func.func @transform_2(%arg0: i32) -> (i32, i32) {
    %c0_i32 = arith.constant 0 : i32
    %c0_i32_0 = arith.constant 0 : i32
    %c0_i32_1 = arith.constant 0 : i32
    return %c0_i32, %c0_i32_0 : i32, i32
  }
  func.func @transform_3(%arg0: i32) -> (i32, i32, i32) {
    %c0_i32 = arith.constant 0 : i32
    %c0_i32_0 = arith.constant 0 : i32
    %c0_i32_1 = arith.constant 0 : i32
    return %arg0, %c0_i32, %c0_i32_0 : i32, i32, i32
  }
}

module attributes {stable_mosaic.version = 11 : i64} {
  func.func @_stage3_fc_kernel(%arg0: i32, %arg1: memref<1x16x1200xbf16, #tpu.memory_space<vmem>>, %arg2: memref<1200x48xbf16, #tpu.memory_space<vmem>>, %arg3: memref<1x48xf32, #tpu.memory_space<vmem>>, %arg4: memref<96x10xf32, #tpu.memory_space<vmem>>, %arg5: memref<1x10xf32, #tpu.memory_space<vmem>>, %arg6: memref<1x1x10xf32, #tpu.memory_space<vmem>>) attributes {dimension_semantics = [#tpu.dimension_semantics<parallel>], iteration_bounds = array<i64: 2>, scalar_prefetch = 0 : i64, scratch_operands = 0 : i64, tpu.core_type = #tpu.core_type<tc>, window_params = [{transform_indices = @transform_0, window_bounds = array<i64: 1, 16, 1200>}, {pipeline_mode = #tpu.pipeline_mode<synchronous>, transform_indices = @transform_1, window_bounds = array<i64: 1200, 48>}, {pipeline_mode = #tpu.pipeline_mode<synchronous>, transform_indices = @transform_2, window_bounds = array<i64: 1, 48>}, {pipeline_mode = #tpu.pipeline_mode<synchronous>, transform_indices = @transform_3, window_bounds = array<i64: 96, 10>}, {pipeline_mode = #tpu.pipeline_mode<synchronous>, transform_indices = @transform_4, window_bounds = array<i64: 1, 10>}, {transform_indices = @transform_5, window_bounds = array<i64: 1, 1, 10>}]} {
    %c0 = arith.constant 0 : index
    %c0_0 = arith.constant 0 : index
    %c0_1 = arith.constant 0 : index
    %0 = vector.load %arg1[%c0, %c0_0, %c0_1] : memref<1x16x1200xbf16, #tpu.memory_space<vmem>>, vector<1x16x1200xbf16>
    %1 = vector.shape_cast %0 : vector<1x16x1200xbf16> to vector<16x1200xbf16>
    %c0_2 = arith.constant 0 : index
    %c0_3 = arith.constant 0 : index
    %2 = vector.load %arg2[%c0_2, %c0_3] : memref<1200x48xbf16, #tpu.memory_space<vmem>>, vector<1200x48xbf16>
    %cst = arith.constant dense<0.000000e+00> : vector<16x48xf32>
    %3 = tpu.matmul %1, %2, %cst {dimension_numbers = #tpu.dot_dimension_numbers<[1], [0], [0], [1], [0, 0, 1, 1], [], []>} : vector<16x1200xbf16>, vector<1200x48xbf16>, vector<16x48xf32> -> vector<16x48xf32>
    %c0_4 = arith.constant 0 : index
    %c0_5 = arith.constant 0 : index
    %4 = vector.load %arg3[%c0_4, %c0_5] : memref<1x48xf32, #tpu.memory_space<vmem>>, vector<1x48xf32>
    %5 = vector.broadcast %4 : vector<1x48xf32> to vector<16x48xf32>
    %6 = arith.addf %3, %5 : vector<16x48xf32>
    %7 = vector.extract_strided_slice %6 {offsets = [0, 0], sizes = [16, 24], strides = [1, 1]} : vector<16x48xf32> to vector<16x24xf32>
    %8 = vector.extract_strided_slice %6 {offsets = [0, 24], sizes = [16, 24], strides = [1, 1]} : vector<16x48xf32> to vector<16x24xf32>
    %9 = arith.maximumf %7, %8 : vector<16x24xf32>
    %10 = vector.extract_strided_slice %9 {offsets = [0, 0], sizes = [12, 24], strides = [1, 1]} : vector<16x24xf32> to vector<12x24xf32>
    %11 = vector.extract_strided_slice %9 {offsets = [4, 0], sizes = [12, 24], strides = [1, 1]} : vector<16x24xf32> to vector<12x24xf32>
    %12 = arith.maximumf %10, %11 : vector<12x24xf32>
    %13 = vector.extract_strided_slice %12 {offsets = [0, 0], sizes = [11, 24], strides = [1, 1]} : vector<12x24xf32> to vector<11x24xf32>
    %14 = vector.extract_strided_slice %12 {offsets = [1, 0], sizes = [11, 24], strides = [1, 1]} : vector<12x24xf32> to vector<11x24xf32>
    %15 = arith.maximumf %13, %14 : vector<11x24xf32>
    %16 = vector.extract_strided_slice %15 {offsets = [0, 0], sizes = [1, 24], strides = [1, 1]} : vector<11x24xf32> to vector<1x24xf32>
    %17 = vector.extract_strided_slice %15 {offsets = [2, 0], sizes = [1, 24], strides = [1, 1]} : vector<11x24xf32> to vector<1x24xf32>
    %18 = vector.extract_strided_slice %15 {offsets = [8, 0], sizes = [1, 24], strides = [1, 1]} : vector<11x24xf32> to vector<1x24xf32>
    %19 = vector.extract_strided_slice %15 {offsets = [10, 0], sizes = [1, 24], strides = [1, 1]} : vector<11x24xf32> to vector<1x24xf32>
    %20 = tpu.concatenate %16, %17, %18, %19 in 1 : vector<1x24xf32>, vector<1x24xf32>, vector<1x24xf32>, vector<1x24xf32> -> vector<1x96xf32>
    %c0_6 = arith.constant 0 : index
    %c0_7 = arith.constant 0 : index
    %21 = vector.load %arg4[%c0_6, %c0_7] : memref<96x10xf32, #tpu.memory_space<vmem>>, vector<96x10xf32>
    %cst_8 = arith.constant dense<0.000000e+00> : vector<1x10xf32>
    %22 = tpu.matmul %20, %21, %cst_8 {dimension_numbers = #tpu.dot_dimension_numbers<[1], [0], [0], [1], [0, 0, 1, 1], [], []>} : vector<1x96xf32>, vector<96x10xf32>, vector<1x10xf32> -> vector<1x10xf32>
    %c0_9 = arith.constant 0 : index
    %c0_10 = arith.constant 0 : index
    %23 = vector.load %arg5[%c0_9, %c0_10] : memref<1x10xf32, #tpu.memory_space<vmem>>, vector<1x10xf32>
    %24 = arith.addf %22, %23 : vector<1x10xf32>
    %c0_11 = arith.constant 0 : index
    %c0_12 = arith.constant 0 : index
    %c0_13 = arith.constant 0 : index
    %25 = vector.load %arg6[%c0_11, %c0_12, %c0_13] : memref<1x1x10xf32, #tpu.memory_space<vmem>>, vector<1x1x10xf32>
    %26 = vector.shape_cast %25 : vector<1x1x10xf32> to vector<1x10xf32>
    %27 = vector.shape_cast %24 : vector<1x10xf32> to vector<1x1x10xf32>
    tpu.vector_store %arg6[%c0_11, %c0_12, %c0_13], %27 {strides = array<i32>} : memref<1x1x10xf32, #tpu.memory_space<vmem>>, vector<1x1x10xf32>,
    return
  }
  func.func @transform_0(%arg0: i32) -> (i32, i32, i32) {
    %c0_i32 = arith.constant 0 : i32
    %c0_i32_0 = arith.constant 0 : i32
    %c0_i32_1 = arith.constant 0 : i32
    return %arg0, %c0_i32, %c0_i32_0 : i32, i32, i32
  }
  func.func @transform_1(%arg0: i32) -> (i32, i32) {
    %c0_i32 = arith.constant 0 : i32
    %c0_i32_0 = arith.constant 0 : i32
    %c0_i32_1 = arith.constant 0 : i32
    return %c0_i32, %c0_i32_0 : i32, i32
  }
  func.func @transform_2(%arg0: i32) -> (i32, i32) {
    %c0_i32 = arith.constant 0 : i32
    %c0_i32_0 = arith.constant 0 : i32
    %c0_i32_1 = arith.constant 0 : i32
    return %c0_i32, %c0_i32_0 : i32, i32
  }
  func.func @transform_3(%arg0: i32) -> (i32, i32) {
    %c0_i32 = arith.constant 0 : i32
    %c0_i32_0 = arith.constant 0 : i32
    %c0_i32_1 = arith.constant 0 : i32
    return %c0_i32, %c0_i32_0 : i32, i32
  }
  func.func @transform_4(%arg0: i32) -> (i32, i32) {
    %c0_i32 = arith.constant 0 : i32
    %c0_i32_0 = arith.constant 0 : i32
    %c0_i32_1 = arith.constant 0 : i32
    return %c0_i32, %c0_i32_0 : i32, i32
  }
  func.func @transform_5(%arg0: i32) -> (i32, i32, i32) {
    %c0_i32 = arith.constant 0 : i32
    %c0_i32_0 = arith.constant 0 : i32
    %c0_i32_1 = arith.constant 0 : i32
    return %arg0, %c0_i32, %c0_i32_0 : i32, i32, i32
  }
}

</mosaic_0001>

<llo_original>
// kernel: maxout_conv_mnist_forward.3
$region0: #{maxout_conv_mnist_forward.3}
  #allocation0 [shape = 'u32[]', space=smem, size = 0x4, offset = 0x4, fixed_abs, tag = 'smem constant byte address 0x4 - core index']
  #allocation1 [shape = 'u32[72,128]{1,0:T(1,128)}', space=vmem, size = 0x9000, scoped, tag = 'internal scratch']
  %s0 = inlined_call_operand.vmem [shape: bf16[2,784,49], index: 0, kind: input, shape index: {}]
  %s1 = inlined_call_operand.vmem [shape: bf16[49,96], index: 1, kind: input, shape index: {}]
  %s2 = inlined_call_operand.vmem [shape: f32[1,96], index: 2, kind: input, shape index: {}]
  %s3 = inlined_call_operand.vmem [shape: bf16[2,697,48], index: 3, kind: output, shape index: {}]
  %s4 = sld [smem:[#allocation0]]
  $region45: #{maxout_conv_mnist_forward.3} parent=0
    _
  %s6 = ssub.s32 1, %s4
  %s7 = scalar_select 0, %s6, %s4
  loop: start=0, step=1, limit=4
  $region2: #{maxout_conv_mnist_forward.3} parent=0 // loop_pre_header
    _
  $region3: #{maxout_conv_mnist_forward.3} parent=0 // loop_header
    %s9 = sphi 0, %s13
    %p10 = scmp.ge.s32.totalorder %s9, 4
    %s19 = sphi 0, %s21
    %s22 = sphi 0, %s19
    %s23 = sphi 0, %s22
    %s39 = sphi 0, %s23
    %s43 = sphi 0, %s43
    %s45 = sphi 0, %s43
    %s46 = sphi 0, %s45
    %s60 = sphi 0, %s46
    %s64 = sphi 0, %s64
    %s66 = sphi 0, %s64
    %s67 = sphi 0, %s66
    %s81 = sphi 0, %s67
    %s87 = sphi 0, %s89
    %s90 = sphi 0, %s87
    %s91 = sphi 0, %s90
    %s107 = sphi 0, %s91
  $region4: #{maxout_conv_mnist_forward.3} parent=0 // loop_header_branch
    %12 = sbr.rel (%p10) target = $region8
  $region5: #{maxout_conv_mnist_forward.3} parent=0 // loop_body
    %s14 = ssub.s32 %s9, 1
    %s15 = ssub.s32 %s9, 2
    %s16 = sadd.s32 %s9, 1
    %s17 = ssub.s32 %s9, %s16
    %p18 = scmp.eq.s32.totalorder %s17, 0
    %s20 = sadd.s32 %s19, 1
    %s21 = scalar_select %p18, %s19, %s20
    %p24 = pneg %p18
    %p25 = scmp.eq.s32.totalorder %s9, 1
    %p26 = por %p24, %p25
    %p27 = scmp.ne.s32.totalorder %s19, %s22
    %p28 = scmp.eq.s32.totalorder %s9, 0
    %p29 = por %p27, %p28
    %p30 = scmp.ne.s32.totalorder %s19, %s22
    %p31 = scmp.eq.s32.totalorder %s14, 1
    %p32 = por %p30, %p31
    %p33 = scmp.ne.s32.totalorder %s22, %s23
    %p34 = scmp.eq.s32.totalorder %s14, 0
    %p35 = por %p33, %p34
    %p36 = scmp.ne.s32.totalorder %s22, %s23
    %p37 = scmp.eq.s32.totalorder %s15, 1
    %p38 = por %p36, %p37
    %p40 = scmp.ne.s32.totalorder %s23, %s39
    %p41 = scmp.eq.s32.totalorder %s15, 0
    %p42 = por %p40, %p41
    %s44 = sadd.s32 %s43, 1
    %p47 = scmp.eq.s32.totalorder %s9, 1
    %p48 = scmp.ne.s32.totalorder %s43, %s45
    %p49 = scmp.eq.s32.totalorder %s9, 0
    %p50 = por %p48, %p49
    %p51 = scmp.ne.s32.totalorder %s43, %s45
    %p52 = scmp.eq.s32.totalorder %s14, 1
    %p53 = por %p51, %p52
    %p54 = scmp.ne.s32.totalorder %s45, %s46
    %p55 = scmp.eq.s32.totalorder %s14, 0
    %p56 = por %p54, %p55
    %p57 = scmp.ne.s32.totalorder %s45, %s46
    %p58 = scmp.eq.s32.totalorder %s15, 1
    %p59 = por %p57, %p58
    %p61 = scmp.ne.s32.totalorder %s46, %s60
    %p62 = scmp.eq.s32.totalorder %s15, 0
    %p63 = por %p61, %p62
    %s65 = sadd.s32 %s64, 1
    %p68 = scmp.eq.s32.totalorder %s9, 1
    %p69 = scmp.ne.s32.totalorder %s64, %s66
    %p70 = scmp.eq.s32.totalorder %s9, 0
    %p71 = por %p69, %p70
    %p72 = scmp.ne.s32.totalorder %s64, %s66
    %p73 = scmp.eq.s32.totalorder %s14, 1
    %p74 = por %p72, %p73
    %p75 = scmp.ne.s32.totalorder %s66, %s67
    %p76 = scmp.eq.s32.totalorder %s14, 0
    %p77 = por %p75, %p76
    %p78 = scmp.ne.s32.totalorder %s66, %s67
    %p79 = scmp.eq.s32.totalorder %s15, 1
    %p80 = por %p78, %p79
    %p82 = scmp.ne.s32.totalorder %s67, %s81
    %p83 = scmp.eq.s32.totalorder %s15, 0
    %p84 = por %p82, %p83
    %s85 = ssub.s32 %s9, %s16
    %p86 = scmp.eq.s32.totalorder %s85, 0
    %s88 = sadd.s32 %s87, 1
    %s89 = scalar_select %p86, %s87, %s88
    %p92 = pneg %p86
    %p93 = scmp.eq.s32.totalorder %s9, 1
    %p94 = por %p92, %p93
    %p95 = scmp.ne.s32.totalorder %s87, %s90
    %p96 = scmp.eq.s32.totalorder %s9, 0
    %p97 = por %p95, %p96
    %p98 = scmp.ne.s32.totalorder %s87, %s90
    %p99 = scmp.eq.s32.totalorder %s14, 1
    %p100 = por %p98, %p99
    %p101 = scmp.ne.s32.totalorder %s90, %s91
    %p102 = scmp.eq.s32.totalorder %s14, 0
    %p103 = por %p101, %p102
    %p104 = scmp.ne.s32.totalorder %s90, %s91
    %p105 = scmp.eq.s32.totalorder %s15, 1
    %p106 = por %p104, %p105
    %p108 = scmp.ne.s32.totalorder %s91, %s107
    %p109 = scmp.eq.s32.totalorder %s15, 0
    %p110 = por %p108, %p109
    %p111 = scmp.le.s32.totalorder 1, %s9
    %p112 = scmp.lt.s32.totalorder %s9, 3
    %p113 = pnand %p111, %p112
    %p114 = pneg %p113
    // Predicated region
    $region9: #{maxout_conv_mnist_forward.3} parent=5 // pred_check
      _
    $region10: #{maxout_conv_mnist_forward.3} parent=5 // pred_check_branch
      %116 = sbr.rel (%p113) target = $region12
    $region11: #{maxout_conv_mnist_forward.3} parent=5 // pred_region
      %s117 = ssub.s32 %s9, 1
      // Predicated region
      $region13: #{maxout_conv_mnist_forward.3} parent=11 // pred_check
        %p118 = pneg %p56
      $region14: #{maxout_conv_mnist_forward.3} parent=11 // pred_check_branch
        %120 = sbr.rel (%p118) target = $region16
      $region15: #{maxout_conv_mnist_forward.3} parent=11 // pred_region
        _
      $region16: #{maxout_conv_mnist_forward.3} parent=11 // pred_fallthru
        _
      // Predicated region
      $region17: #{maxout_conv_mnist_forward.3} parent=11 // pred_check
        %p121 = pneg %p77
      $region18: #{maxout_conv_mnist_forward.3} parent=11 // pred_check_branch
        %123 = sbr.rel (%p121) target = $region20
      $region19: #{maxout_conv_mnist_forward.3} parent=11 // pred_region
        _
      $region20: #{maxout_conv_mnist_forward.3} parent=11 // pred_fallthru
        _
    $region12: #{maxout_conv_mnist_forward.3} parent=5 // pred_fallthru
      _
    %p124 = scmp.lt.s32.totalorder %s9, 2
    // Predicated region
    $region21: #{maxout_conv_mnist_forward.3} parent=5 // pred_check
      %p125 = pneg %p124
    $region22: #{maxout_conv_mnist_forward.3} parent=5 // pred_check_branch
      %127 = sbr.rel (%p125) target = $region24
    $region23: #{maxout_conv_mnist_forward.3} parent=5 // pred_region
      // Predicated region
      $region25: #{maxout_conv_mnist_forward.3} parent=23 // pred_check
        %p128 = pneg %p29
      $region26: #{maxout_conv_mnist_forward.3} parent=23 // pred_check_branch
        %130 = sbr.rel (%p128) target = $region28
      $region27: #{maxout_conv_mnist_forward.3} parent=23 // pred_region
        %p131 = scmp.lt.s32.totalorder %s9, 1
        %s132 = scalar_select %p131, %s9, 1
        %s133 = smul.addr %s132, 98
        %s134 = smul.addr %s133, 4
        %s135 = scalar_lea.vmem %s0, %s134
      $region28: #{maxout_conv_mnist_forward.3} parent=23 // pred_fallthru
        _
    $region24: #{maxout_conv_mnist_forward.3} parent=5 // pred_fallthru
      _
    %p136 = scmp.le.s32.totalorder 1, %s9
    %p137 = scmp.lt.s32.totalorder %s9, 3
    %p138 = pnand %p136, %p137
    %p139 = pneg %p138
    // Predicated region
    $region29: #{maxout_conv_mnist_forward.3} parent=5 // pred_check
      _
    $region30: #{maxout_conv_mnist_forward.3} parent=5 // pred_check_branch
      %141 = sbr.rel (%p138) target = $region32
    $region31: #{maxout_conv_mnist_forward.3} parent=5 // pred_region
      %s142 = ssub.s32 %s9, 1
      %p143 = scmp.lt.s32.totalorder %s14, 1
      %s144 = scalar_select %p143, %s14, 1
      %s145 = smul.addr %s144, 98
      %s146 = smul.addr %s145, 4
      %s147 = scalar_lea.vmem %s0, %s146
      %p148 = pneg %p35
      %p149 = pneg %p32
      %p150 = pneg %p56
      %p151 = pneg %p53
      %p152 = pneg %p77
      %p153 = pneg %p74
      %p154 = pneg %p103
      %p155 = pneg %p100
      %p156 = scmp.lt.s32.totalorder %s14, 1
      %s157 = scalar_select %p156, %s14, 1
      %s158 = smul.addr %s157, 88
      %s159 = smul.addr %s158, 4
      %s160 = scalar_lea.vmem %s3, %s159
      %p161 = scmp.lt.s32.totalorder %s14, 1
      %s162 = scalar_select %p161, %s14, 1
      %s163 = smul.addr %s162, 98
      %s164 = smul.addr %s163, 4
      %s165 = scalar_lea.vmem %s0, %s164
      %p166 = scmp.lt.s32.totalorder %s14, 1
      %s167 = scalar_select %p166, %s14, 1
      %s168 = smul.addr %s167, 88
      %s169 = smul.addr %s168, 4
      %s170 = scalar_lea.vmem %s3, %s169
      %v172 = vld [vmem:[%s165] sm:$0xf]
      %v173 = vld [vmem:[%s165 + $0x4] sm:$0xf]
      %v174 = vld [vmem:[%s165 + $0x8] sm:$0xf]
      %v175 = vld [vmem:[%s165 + $0xc] sm:$0xf]
      %v176 = vld [vmem:[%s165 + $0x10] sm:$0xf]
      %v177 = vld [vmem:[%s165 + $0x14] sm:$0xf]
      %v178 = vld [vmem:[%s165 + $0x18] sm:$0xf]
      %v179 = vld [vmem:[%s165 + $0x1c] sm:$0xf]
      %v180 = vld [vmem:[%s165 + $0x20] sm:$0xf]
      %v181 = vld [vmem:[%s165 + $0x24] sm:$0xf]
      %v182 = vld [vmem:[%s165 + $0x28] sm:$0xf]
      %v183 = vld [vmem:[%s165 + $0x2c] sm:$0xf]
      %v184 = vld [vmem:[%s165 + $0x30] sm:$0xf]
      %v185 = vld [vmem:[%s165 + $0x34] sm:$0xf]
      %v186 = vld [vmem:[%s165 + $0x38] sm:$0xf]
      %v187 = vld [vmem:[%s165 + $0x3c] sm:$0xf]
      %v188 = vld [vmem:[%s165 + $0x40] sm:$0xf]
      %v189 = vld [vmem:[%s165 + $0x44] sm:$0xf]
      %v190 = vld [vmem:[%s165 + $0x48] sm:$0xf]
      %v191 = vld [vmem:[%s165 + $0x4c] sm:$0xf]
      %v192 = vld [vmem:[%s165 + $0x50] sm:$0xf]
      %v193 = vld [vmem:[%s165 + $0x54] sm:$0xf]
      %v194 = vld [vmem:[%s165 + $0x58] sm:$0xf]
      %v195 = vld [vmem:[%s165 + $0x5c] sm:$0xf]
      %v196 = vld [vmem:[%s165 + $0x60] sm:$0xf]
      %v197 = vld [vmem:[%s165 + $0x64] sm:$0xf]
      %v198 = vld [vmem:[%s165 + $0x68] sm:$0xf]
      %v199 = vld [vmem:[%s165 + $0x6c] sm:$0xf]
      %v200 = vld [vmem:[%s165 + $0x70] sm:$0xf]
      %v201 = vld [vmem:[%s165 + $0x74] sm:$0xf]
      %v202 = vld [vmem:[%s165 + $0x78] sm:$0xf]
      %v203 = vld [vmem:[%s165 + $0x7c] sm:$0xf]
      %v204 = vld [vmem:[%s165 + $0x80] sm:$0xf]
      %v205 = vld [vmem:[%s165 + $0x84] sm:$0xf]
      %v206 = vld [vmem:[%s165 + $0x88] sm:$0xf]
      %v207 = vld [vmem:[%s165 + $0x8c] sm:$0xf]
      %v208 = vld [vmem:[%s165 + $0x90] sm:$0xf]
      %v209 = vld [vmem:[%s165 + $0x94] sm:$0xf]
      %v210 = vld [vmem:[%s165 + $0x98] sm:$0xf]
      %v211 = vld [vmem:[%s165 + $0x9c] sm:$0xf]
      %v212 = vld [vmem:[%s165 + $0xa0] sm:$0xf]
      %v213 = vld [vmem:[%s165 + $0xa4] sm:$0xf]
      %v214 = vld [vmem:[%s165 + $0xa8] sm:$0xf]
      %v215 = vld [vmem:[%s165 + $0xac] sm:$0xf]
      %v216 = vld [vmem:[%s165 + $0xb0] sm:$0xf]
      %v217 = vld [vmem:[%s165 + $0xb4] sm:$0xf]
      %v218 = vld [vmem:[%s165 + $0xb8] sm:$0xf]
      %v219 = vld [vmem:[%s165 + $0xbc] sm:$0xf]
      %v220 = vld [vmem:[%s165 + $0xc0] sm:$0xf]
      %v221 = vld [vmem:[%s165 + $0xc4] sm:$0xf]
      %v222 = vld [vmem:[%s165 + $0xc8] sm:$0xf]
      %v223 = vld [vmem:[%s165 + $0xcc] sm:$0xf]
      %v224 = vld [vmem:[%s165 + $0xd0] sm:$0xf]
      %v225 = vld [vmem:[%s165 + $0xd4] sm:$0xf]
      %v226 = vld [vmem:[%s165 + $0xd8] sm:$0xf]
      %v227 = vld [vmem:[%s165 + $0xdc] sm:$0xf]
      %v228 = vld [vmem:[%s165 + $0xe0] sm:$0xf]
      %v229 = vld [vmem:[%s165 + $0xe4] sm:$0xf]
      %v230 = vld [vmem:[%s165 + $0xe8] sm:$0xf]
      %v231 = vld [vmem:[%s165 + $0xec] sm:$0xf]
      %v232 = vld [vmem:[%s165 + $0xf0] sm:$0xf]
      %v233 = vld [vmem:[%s165 + $0xf4] sm:$0xf]
      %v234 = vld [vmem:[%s165 + $0xf8] sm:$0xf]
      %v235 = vld [vmem:[%s165 + $0xfc] sm:$0xf]
      %v236 = vld [vmem:[%s165 + $0x100] sm:$0xf]
      %v237 = vld [vmem:[%s165 + $0x104] sm:$0xf]
      %v238 = vld [vmem:[%s165 + $0x108] sm:$0xf]
      %v239 = vld [vmem:[%s165 + $0x10c] sm:$0xf]
      %v240 = vld [vmem:[%s165 + $0x110] sm:$0xf]
      %v241 = vld [vmem:[%s165 + $0x114] sm:$0xf]
      %v242 = vld [vmem:[%s165 + $0x118] sm:$0xf]
      %v243 = vld [vmem:[%s165 + $0x11c] sm:$0xf]
      %v244 = vld [vmem:[%s165 + $0x120] sm:$0xf]
      %v245 = vld [vmem:[%s165 + $0x124] sm:$0xf]
      %v246 = vld [vmem:[%s165 + $0x128] sm:$0xf]
      %v247 = vld [vmem:[%s165 + $0x12c] sm:$0xf]
      %v248 = vld [vmem:[%s165 + $0x130] sm:$0xf]
      %v249 = vld [vmem:[%s165 + $0x134] sm:$0xf]
      %v250 = vld [vmem:[%s165 + $0x138] sm:$0xf]
      %v251 = vld [vmem:[%s165 + $0x13c] sm:$0xf]
      %v252 = vld [vmem:[%s165 + $0x140] sm:$0xf]
      %v253 = vld [vmem:[%s165 + $0x144] sm:$0xf]
      %v254 = vld [vmem:[%s165 + $0x148] sm:$0xf]
      %v255 = vld [vmem:[%s165 + $0x14c] sm:$0xf]
      %v256 = vld [vmem:[%s165 + $0x150] sm:$0xf]
      %v257 = vld [vmem:[%s165 + $0x154] sm:$0xf]
      %v258 = vld [vmem:[%s165 + $0x158] sm:$0xf]
      %v259 = vld [vmem:[%s165 + $0x15c] sm:$0xf]
      %v260 = vld [vmem:[%s165 + $0x160] sm:$0xf]
      %v261 = vld [vmem:[%s165 + $0x164] sm:$0xf]
      %v262 = vld [vmem:[%s165 + $0x168] sm:$0xf]
      %v263 = vld [vmem:[%s165 + $0x16c] sm:$0xf]
      %v264 = vld [vmem:[%s165 + $0x170] sm:$0xf]
      %v265 = vld [vmem:[%s165 + $0x174] sm:$0xf]
      %v266 = vld [vmem:[%s165 + $0x178] sm:$0xf]
      %v267 = vld [vmem:[%s165 + $0x17c] sm:$0xf]
      %v268 = vld [vmem:[%s165 + $0x180] sm:$0xf]
      %v269 = vld [vmem:[%s165 + $0x184] sm:$0xf]
      %v270 = vld [vmem:[%s1] sm:$0xf]
      %v271 = vld [vmem:[%s1 + $0x4] sm:$0xf]
      %v272 = vld [vmem:[%s1 + $0x8] sm:$0xf]
      %v273 = vld [vmem:[%s1 + $0xc] sm:$0xf]
      %v274 = vld [vmem:[%s1 + $0x10] sm:$0xf]
      %v275 = vld [vmem:[%s1 + $0x14] sm:$0xf]
      %v276 = vld [vmem:[%s1 + $0x18] sm:$0x1]
      %v277 = vld [vmem:[%s2] sm:$0x1]
      %v279 = vperm.slane %v277, 0
      %v379 = vunpack.c.l.b16 %v172
      %v380 = vunpack.c.l.b16 %v173
      %v381 = vunpack.c.l.b16 %v174
      %v382 = vunpack.c.l.b16 %v175
      %v383 = vunpack.c.l.b16 %v176
      %v384 = vunpack.c.l.b16 %v177
      %v385 = vunpack.c.l.b16 %v178
      %v386 = vunpack.c.l.b16 %v179
      %v387 = vunpack.c.l.b16 %v180
      %v388 = vunpack.c.l.b16 %v181
      %v389 = vunpack.c.l.b16 %v182
      %v390 = vunpack.c.l.b16 %v183
      %v391 = vunpack.c.l.b16 %v184
      %v392 = vunpack.c.l.b16 %v185
      %v393 = vunpack.c.l.b16 %v186
      %v394 = vunpack.c.l.b16 %v187
      %v395 = vunpack.c.l.b16 %v188
      %v396 = vunpack.c.l.b16 %v189
      %v397 = vunpack.c.l.b16 %v190
      %v398 = vunpack.c.l.b16 %v191
      %v399 = vunpack.c.l.b16 %v192
      %v400 = vunpack.c.l.b16 %v193
      %v401 = vunpack.c.l.b16 %v194
      %v402 = vunpack.c.l.b16 %v195
      %v403 = vunpack.c.l.b16 %v196
      %v404 = vunpack.c.l.b16 %v197
      %v405 = vunpack.c.l.b16 %v198
      %v406 = vunpack.c.l.b16 %v199
      %v407 = vunpack.c.l.b16 %v200
      %v408 = vunpack.c.l.b16 %v201
      %v409 = vunpack.c.l.b16 %v202
      %v410 = vunpack.c.l.b16 %v203
      %v411 = vunpack.c.l.b16 %v204
      %v412 = vunpack.c.l.b16 %v205
      %v413 = vunpack.c.l.b16 %v206
      %v414 = vunpack.c.l.b16 %v207
      %v415 = vunpack.c.l.b16 %v208
      %v416 = vunpack.c.l.b16 %v209
      %v417 = vunpack.c.l.b16 %v210
      %v418 = vunpack.c.l.b16 %v211
      %v419 = vunpack.c.l.b16 %v212
      %v420 = vunpack.c.l.b16 %v213
      %v421 = vunpack.c.l.b16 %v214
      %v422 = vunpack.c.l.b16 %v215
      %v423 = vunpack.c.l.b16 %v216
      %v424 = vunpack.c.l.b16 %v217
      %v425 = vunpack.c.l.b16 %v218
      %v426 = vunpack.c.l.b16 %v219
      %v427 = vunpack.c.l.b16 %v220
      %v428 = vunpack.c.l.b16 %v221
      %v429 = vunpack.c.l.b16 %v222
      %v430 = vunpack.c.l.b16 %v223
      %v431 = vunpack.c.l.b16 %v224
      %v432 = vunpack.c.l.b16 %v225
      %v433 = vunpack.c.l.b16 %v226
      %v434 = vunpack.c.l.b16 %v227
      %v435 = vunpack.c.l.b16 %v228
      %v436 = vunpack.c.l.b16 %v229
      %v437 = vunpack.c.l.b16 %v230
      %v438 = vunpack.c.l.b16 %v231
      %v439 = vunpack.c.l.b16 %v232
      %v440 = vunpack.c.l.b16 %v233
      %v441 = vunpack.c.l.b16 %v234
      %v442 = vunpack.c.l.b16 %v235
      %v443 = vunpack.c.l.b16 %v236
      %v444 = vunpack.c.l.b16 %v237
      %v445 = vunpack.c.l.b16 %v238
      %v446 = vunpack.c.l.b16 %v239
      %v447 = vunpack.c.l.b16 %v240
      %v448 = vunpack.c.l.b16 %v241
      %v449 = vunpack.c.l.b16 %v242
      %v450 = vunpack.c.l.b16 %v243
      %v451 = vunpack.c.l.b16 %v244
      %v452 = vunpack.c.l.b16 %v245
      %v453 = vunpack.c.l.b16 %v246
      %v454 = vunpack.c.l.b16 %v247
      %v455 = vunpack.c.l.b16 %v248
      %v456 = vunpack.c.l.b16 %v249
      %v457 = vunpack.c.l.b16 %v250
      %v458 = vunpack.c.l.b16 %v251
      %v459 = vunpack.c.l.b16 %v252
      %v460 = vunpack.c.l.b16 %v253
      %v461 = vunpack.c.l.b16 %v254
      %v462 = vunpack.c.l.b16 %v255
      %v463 = vunpack.c.l.b16 %v256
      %v464 = vunpack.c.l.b16 %v257
      %v465 = vunpack.c.l.b16 %v258
      %v466 = vunpack.c.l.b16 %v259
      %v467 = vunpack.c.l.b16 %v260
      %v468 = vunpack.c.l.b16 %v261
      %v469 = vunpack.c.l.b16 %v262
      %v470 = vunpack.c.l.b16 %v263
      %v471 = vunpack.c.l.b16 %v264
      %v472 = vunpack.c.l.b16 %v265
      %v473 = vunpack.c.l.b16 %v266
      %v474 = vunpack.c.l.b16 %v267
      %v475 = vunpack.c.l.b16 %v268
      %v476 = vunpack.c.l.b16 %v269
      %v477 = vpack.c.b16 %v380, %v379
      %v478 = vpack.c.b16 %v382, %v381
      %v479 = vpack.c.b16 %v384, %v383
      %v480 = vpack.c.b16 %v386, %v385
      %v481 = vpack.c.b16 %v388, %v387
      %v482 = vpack.c.b16 %v390, %v389
      %v483 = vpack.c.b16 %v392, %v391
      %v484 = vpack.c.b16 %v394, %v393
      %v485 = vpack.c.b16 %v396, %v395
      %v486 = vpack.c.b16 %v398, %v397
      %v487 = vpack.c.b16 %v400, %v399
      %v488 = vpack.c.b16 %v402, %v401
      %v489 = vpack.c.b16 %v404, %v403
      %v490 = vpack.c.b16 %v406, %v405
      %v491 = vpack.c.b16 %v408, %v407
      %v492 = vpack.c.b16 %v410, %v409
      %v493 = vpack.c.b16 %v412, %v411
      %v494 = vpack.c.b16 %v414, %v413
      %v495 = vpack.c.b16 %v416, %v415
      %v496 = vpack.c.b16 %v418, %v417
      %v497 = vpack.c.b16 %v420, %v419
      %v498 = vpack.c.b16 %v422, %v421
      %v499 = vpack.c.b16 %v424, %v423
      %v500 = vpack.c.b16 %v426, %v425
      %v501 = vpack.c.b16 %v428, %v427
      %v502 = vpack.c.b16 %v430, %v429
      %v503 = vpack.c.b16 %v432, %v431
      %v504 = vpack.c.b16 %v434, %v433
      %v505 = vpack.c.b16 %v436, %v435
      %v506 = vpack.c.b16 %v438, %v437
      %v507 = vpack.c.b16 %v440, %v439
      %v508 = vpack.c.b16 %v442, %v441
      %v509 = vpack.c.b16 %v444, %v443
      %v510 = vpack.c.b16 %v446, %v445
      %v511 = vpack.c.b16 %v448, %v447
      %v512 = vpack.c.b16 %v450, %v449
      %v513 = vpack.c.b16 %v452, %v451
      %v514 = vpack.c.b16 %v454, %v453
      %v515 = vpack.c.b16 %v456, %v455
      %v516 = vpack.c.b16 %v458, %v457
      %v517 = vpack.c.b16 %v460, %v459
      %v518 = vpack.c.b16 %v462, %v461
      %v519 = vpack.c.b16 %v464, %v463
      %v520 = vpack.c.b16 %v466, %v465
      %v521 = vpack.c.b16 %v468, %v467
      %v522 = vpack.c.b16 %v470, %v469
      %v523 = vpack.c.b16 %v472, %v471
      %v524 = vpack.c.b16 %v474, %v473
      %v525 = vpack.c.b16 %v476, %v475
      %v533 = vunpack.c.l.b16 %v270
      %v534 = vunpack.c.l.b16 %v271
      %v535 = vunpack.c.l.b16 %v272
      %v536 = vunpack.c.l.b16 %v273
      %v537 = vunpack.c.l.b16 %v274
      %v538 = vunpack.c.l.b16 %v275
      %v539 = vunpack.c.l.b16 %v276
      %v540 = vpack.c.b16 %v534, %v533
      %v541 = vpack.c.b16 %v536, %v535
      %v542 = vpack.c.b16 %v538, %v537
      %v543 = vpack.c.b16 %v539, %v539
      %vm547 = vcmask 400384
      %v549 = vsel %vm547, %v477, 0
      %v552 = vsel %vm547, %v478, 0
      %v555 = vsel %vm547, %v479, 0
      %v558 = vsel %vm547, %v480, 0
      %v561 = vsel %vm547, %v481, 0
      %v564 = vsel %vm547, %v482, 0
      %v567 = vsel %vm547, %v483, 0
      %v570 = vsel %vm547, %v484, 0
      %v573 = vsel %vm547, %v485, 0
      %v576 = vsel %vm547, %v486, 0
      %v579 = vsel %vm547, %v487, 0
      %v582 = vsel %vm547, %v488, 0
      %v585 = vsel %vm547, %v489, 0
      %v588 = vsel %vm547, %v490, 0
      %v591 = vsel %vm547, %v491, 0
      %v594 = vsel %vm547, %v492, 0
      %v597 = vsel %vm547, %v493, 0
      %v600 = vsel %vm547, %v494, 0
      %v603 = vsel %vm547, %v495, 0
      %v606 = vsel %vm547, %v496, 0
      %v609 = vsel %vm547, %v497, 0
      %v612 = vsel %vm547, %v498, 0
      %v615 = vsel %vm547, %v499, 0
      %v618 = vsel %vm547, %v500, 0
      %v621 = vsel %vm547, %v501, 0
      %v624 = vsel %vm547, %v502, 0
      %v627 = vsel %vm547, %v503, 0
      %v630 = vsel %vm547, %v504, 0
      %v633 = vsel %vm547, %v505, 0
      %v636 = vsel %vm547, %v506, 0
      %v639 = vsel %vm547, %v507, 0
      %v642 = vsel %vm547, %v508, 0
      %v645 = vsel %vm547, %v509, 0
      %v648 = vsel %vm547, %v510, 0
      %v651 = vsel %vm547, %v511, 0
      %v654 = vsel %vm547, %v512, 0
      %v657 = vsel %vm547, %v513, 0
      %v660 = vsel %vm547, %v514, 0
      %v663 = vsel %vm547, %v515, 0
      %v666 = vsel %vm547, %v516, 0
      %v669 = vsel %vm547, %v517, 0
      %v672 = vsel %vm547, %v518, 0
      %v675 = vsel %vm547, %v519, 0
      %v678 = vsel %vm547, %v520, 0
      %v681 = vsel %vm547, %v521, 0
      %v684 = vsel %vm547, %v522, 0
      %v687 = vsel %vm547, %v523, 0
      %v690 = vsel %vm547, %v524, 0
      %v693 = vsel %vm547, %v525, 0
      %vm695 = vcmask 1040384
      %v696 = vsel 0, 4294967295, 65535
      %v697 = vsel %vm695, %v696, 0
      %v699 = vand.u32 %v543, %v697
      %701 = vmatpush.bf16.msra.mxu0 0
      %702 = vmatpush.bf16.msra.mxu0 0
      %703 = vmatpush.bf16.msra.mxu0 0
      %704 = vmatpush.bf16.msra.mxu0 0
      %705 = vmatpush.bf16.msra.mxu0 %v699
      %706 = vmatpush.bf16.msra.mxu0 %v542
      %707 = vmatpush.bf16.msra.mxu0 %v541
      %708 = vmatpush.bf16.msra.mxu0 %v540
      %709 = vmatmul.bf16.gmra.mxu0 %v549
      %v710 = vpop.f32.mrf.mxu0
      %v711 = vadd.f32 %v279, %v710
      %v712 = vpop.f32.mrf.mxu0
      %v713 = vadd.f32 %v279, %v712
      %714 = vmatmul.bf16.gmra.mxu0 %v552
      %v715 = vpop.f32.mrf.mxu0
      %v716 = vadd.f32 %v279, %v715
      %v717 = vpop.f32.mrf.mxu0
      %v718 = vadd.f32 %v279, %v717
      %719 = vmatmul.bf16.gmra.mxu0 %v555
      %v720 = vpop.f32.mrf.mxu0
      %v721 = vadd.f32 %v279, %v720
      %v722 = vpop.f32.mrf.mxu0
      %v723 = vadd.f32 %v279, %v722
      %724 = vmatmul.bf16.gmra.mxu0 %v558
      %v725 = vpop.f32.mrf.mxu0
      %v726 = vadd.f32 %v279, %v725
      %v727 = vpop.f32.mrf.mxu0
      %v728 = vadd.f32 %v279, %v727
      %729 = vmatmul.bf16.gmra.mxu0 %v561
      %v730 = vpop.f32.mrf.mxu0
      %v731 = vadd.f32 %v279, %v730
      %v732 = vpop.f32.mrf.mxu0
      %v733 = vadd.f32 %v279, %v732
      %734 = vmatmul.bf16.gmra.mxu0 %v564
      %v735 = vpop.f32.mrf.mxu0
      %v736 = vadd.f32 %v279, %v735
      %v737 = vpop.f32.mrf.mxu0
      %v738 = vadd.f32 %v279, %v737
      %739 = vmatmul.bf16.gmra.mxu0 %v567
      %v740 = vpop.f32.mrf.mxu0
      %v741 = vadd.f32 %v279, %v740
      %v742 = vpop.f32.mrf.mxu0
      %v743 = vadd.f32 %v279, %v742
      %744 = vmatmul.bf16.gmra.mxu0 %v570
      %v745 = vpop.f32.mrf.mxu0
      %v746 = vadd.f32 %v279, %v745
      %v747 = vpop.f32.mrf.mxu0
      %v748 = vadd.f32 %v279, %v747
      %749 = vmatmul.bf16.gmra.mxu0 %v573
      %v750 = vpop.f32.mrf.mxu0
      %v751 = vadd.f32 %v279, %v750
      %v752 = vpop.f32.mrf.mxu0
      %v753 = vadd.f32 %v279, %v752
      %754 = vmatmul.bf16.gmra.mxu0 %v576
      %v755 = vpop.f32.mrf.mxu0
      %v756 = vadd.f32 %v279, %v755
      %v757 = vpop.f32.mrf.mxu0
      %v758 = vadd.f32 %v279, %v757
      %759 = vmatmul.bf16.gmra.mxu0 %v579
      %v760 = vpop.f32.mrf.mxu0
      %v761 = vadd.f32 %v279, %v760
      %v762 = vpop.f32.mrf.mxu0
      %v763 = vadd.f32 %v279, %v762
      %764 = vmatmul.bf16.gmra.mxu0 %v582
      %v765 = vpop.f32.mrf.mxu0
      %v766 = vadd.f32 %v279, %v765
      %v767 = vpop.f32.mrf.mxu0
      %v768 = vadd.f32 %v279, %v767
      %769 = vmatmul.bf16.gmra.mxu0 %v585
      %v770 = vpop.f32.mrf.mxu0
      %v771 = vadd.f32 %v279, %v770
      %v772 = vpop.f32.mrf.mxu0
      %v773 = vadd.f32 %v279, %v772
      %774 = vmatmul.bf16.gmra.mxu0 %v588
      %v775 = vpop.f32.mrf.mxu0
      %v776 = vadd.f32 %v279, %v775
      %v777 = vpop.f32.mrf.mxu0
      %v778 = vadd.f32 %v279, %v777
      %779 = vmatmul.bf16.gmra.mxu0 %v591
      %v780 = vpop.f32.mrf.mxu0
      %v781 = vadd.f32 %v279, %v780
      %v782 = vpop.f32.mrf.mxu0
      %v783 = vadd.f32 %v279, %v782
      %784 = vmatmul.bf16.gmra.mxu0 %v594
      %v785 = vpop.f32.mrf.mxu0
      %v786 = vadd.f32 %v279, %v785
      %v787 = vpop.f32.mrf.mxu0
      %v788 = vadd.f32 %v279, %v787
      %789 = vmatmul.bf16.gmra.mxu0 %v597
      %v790 = vpop.f32.mrf.mxu0
      %v791 = vadd.f32 %v279, %v790
      %v792 = vpop.f32.mrf.mxu0
      %v793 = vadd.f32 %v279, %v792
      %794 = vmatmul.bf16.gmra.mxu0 %v600
      %v795 = vpop.f32.mrf.mxu0
      %v796 = vadd.f32 %v279, %v795
      %v797 = vpop.f32.mrf.mxu0
      %v798 = vadd.f32 %v279, %v797
      %799 = vmatmul.bf16.gmra.mxu0 %v603
      %v800 = vpop.f32.mrf.mxu0
      %v801 = vadd.f32 %v279, %v800
      %v802 = vpop.f32.mrf.mxu0
      %v803 = vadd.f32 %v279, %v802
      %804 = vmatmul.bf16.gmra.mxu0 %v606
      %v805 = vpop.f32.mrf.mxu0
      %v806 = vadd.f32 %v279, %v805
      %v807 = vpop.f32.mrf.mxu0
      %v808 = vadd.f32 %v279, %v807
      %809 = vmatmul.bf16.gmra.mxu0 %v609
      %v810 = vpop.f32.mrf.mxu0
      %v811 = vadd.f32 %v279, %v810
      %v812 = vpop.f32.mrf.mxu0
      %v813 = vadd.f32 %v279, %v812
      %814 = vmatmul.bf16.gmra.mxu0 %v612
      %v815 = vpop.f32.mrf.mxu0
      %v816 = vadd.f32 %v279, %v815
      %v817 = vpop.f32.mrf.mxu0
      %v818 = vadd.f32 %v279, %v817
      %819 = vmatmul.bf16.gmra.mxu0 %v615
      %v820 = vpop.f32.mrf.mxu0
      %v821 = vadd.f32 %v279, %v820
      %v822 = vpop.f32.mrf.mxu0
      %v823 = vadd.f32 %v279, %v822
      %824 = vmatmul.bf16.gmra.mxu0 %v618
      %v825 = vpop.f32.mrf.mxu0
      %v826 = vadd.f32 %v279, %v825
      %v827 = vpop.f32.mrf.mxu0
      %v828 = vadd.f32 %v279, %v827
      %829 = vmatmul.bf16.gmra.mxu0 %v621
      %v830 = vpop.f32.mrf.mxu0
      %v831 = vadd.f32 %v279, %v830
      %v832 = vpop.f32.mrf.mxu0
      %v833 = vadd.f32 %v279, %v832
      %834 = vmatmul.bf16.gmra.mxu0 %v624
      %v835 = vpop.f32.mrf.mxu0
      %v836 = vadd.f32 %v279, %v835
      %v837 = vpop.f32.mrf.mxu0
      %v838 = vadd.f32 %v279, %v837
      %839 = vmatmul.bf16.gmra.mxu0 %v627
      %v840 = vpop.f32.mrf.mxu0
      %v841 = vadd.f32 %v279, %v840
      %v842 = vpop.f32.mrf.mxu0
      %v843 = vadd.f32 %v279, %v842
      %844 = vmatmul.bf16.gmra.mxu0 %v630
      %v845 = vpop.f32.mrf.mxu0
      %v846 = vadd.f32 %v279, %v845
      %v847 = vpop.f32.mrf.mxu0
      %v848 = vadd.f32 %v279, %v847
      %849 = vmatmul.bf16.gmra.mxu0 %v633
      %v850 = vpop.f32.mrf.mxu0
      %v851 = vadd.f32 %v279, %v850
      %v852 = vpop.f32.mrf.mxu0
      %v853 = vadd.f32 %v279, %v852
      %854 = vmatmul.bf16.gmra.mxu0 %v636
      %v855 = vpop.f32.mrf.mxu0
      %v856 = vadd.f32 %v279, %v855
      %v857 = vpop.f32.mrf.mxu0
      %v858 = vadd.f32 %v279, %v857
      %859 = vmatmul.bf16.gmra.mxu0 %v639
      %v860 = vpop.f32.mrf.mxu0
      %v861 = vadd.f32 %v279, %v860
      %v862 = vpop.f32.mrf.mxu0
      %v863 = vadd.f32 %v279, %v862
      %864 = vmatmul.bf16.gmra.mxu0 %v642
      %v865 = vpop.f32.mrf.mxu0
      %v866 = vadd.f32 %v279, %v865
      %v867 = vpop.f32.mrf.mxu0
      %v868 = vadd.f32 %v279, %v867
      %869 = vmatmul.bf16.gmra.mxu0 %v645
      %v870 = vpop.f32.mrf.mxu0
      %v871 = vadd.f32 %v279, %v870
      %v872 = vpop.f32.mrf.mxu0
      %v873 = vadd.f32 %v279, %v872
      %874 = vmatmul.bf16.gmra.mxu0 %v648
      %v875 = vpop.f32.mrf.mxu0
      %v876 = vadd.f32 %v279, %v875
      %v877 = vpop.f32.mrf.mxu0
      %v878 = vadd.f32 %v279, %v877
      %879 = vmatmul.bf16.gmra.mxu0 %v651
      %v880 = vpop.f32.mrf.mxu0
      %v881 = vadd.f32 %v279, %v880
      %v882 = vpop.f32.mrf.mxu0
      %v883 = vadd.f32 %v279, %v882
      %884 = vmatmul.bf16.gmra.mxu0 %v654
      %v885 = vpop.f32.mrf.mxu0
      %v886 = vadd.f32 %v279, %v885
      %v887 = vpop.f32.mrf.mxu0
      %v888 = vadd.f32 %v279, %v887
      %889 = vmatmul.bf16.gmra.mxu0 %v657
      %v890 = vpop.f32.mrf.mxu0
      %v891 = vadd.f32 %v279, %v890
      %v892 = vpop.f32.mrf.mxu0
      %v893 = vadd.f32 %v279, %v892
      %894 = vmatmul.bf16.gmra.mxu0 %v660
      %v895 = vpop.f32.mrf.mxu0
      %v896 = vadd.f32 %v279, %v895
      %v897 = vpop.f32.mrf.mxu0
      %v898 = vadd.f32 %v279, %v897
      %899 = vmatmul.bf16.gmra.mxu0 %v663
      %v900 = vpop.f32.mrf.mxu0
      %v901 = vadd.f32 %v279, %v900
      %v902 = vpop.f32.mrf.mxu0
      %v903 = vadd.f32 %v279, %v902
      %904 = vmatmul.bf16.gmra.mxu0 %v666
      %v905 = vpop.f32.mrf.mxu0
      %v906 = vadd.f32 %v279, %v905
      %v907 = vpop.f32.mrf.mxu0
      %v908 = vadd.f32 %v279, %v907
      %909 = vmatmul.bf16.gmra.mxu0 %v669
      %v910 = vpop.f32.mrf.mxu0
      %v911 = vadd.f32 %v279, %v910
      %v912 = vpop.f32.mrf.mxu0
      %v913 = vadd.f32 %v279, %v912
      %914 = vmatmul.bf16.gmra.mxu0 %v672
      %v915 = vpop.f32.mrf.mxu0
      %v916 = vadd.f32 %v279, %v915
      %v917 = vpop.f32.mrf.mxu0
      %v918 = vadd.f32 %v279, %v917
      %919 = vmatmul.bf16.gmra.mxu0 %v675
      %v920 = vpop.f32.mrf.mxu0
      %v921 = vadd.f32 %v279, %v920
      %v922 = vpop.f32.mrf.mxu0
      %v923 = vadd.f32 %v279, %v922
      %924 = vmatmul.bf16.gmra.mxu0 %v678
      %v925 = vpop.f32.mrf.mxu0
      %v926 = vadd.f32 %v279, %v925
      %v927 = vpop.f32.mrf.mxu0
      %v928 = vadd.f32 %v279, %v927
      %929 = vmatmul.bf16.gmra.mxu0 %v681
      %v930 = vpop.f32.mrf.mxu0
      %v931 = vadd.f32 %v279, %v930
      %v932 = vpop.f32.mrf.mxu0
      %v933 = vadd.f32 %v279, %v932
      %934 = vmatmul.bf16.gmra.mxu0 %v684
      %v935 = vpop.f32.mrf.mxu0
      %v936 = vadd.f32 %v279, %v935
      %v937 = vpop.f32.mrf.mxu0
      %v938 = vadd.f32 %v279, %v937
      %939 = vmatmul.bf16.gmra.mxu0 %v687
      %v940 = vpop.f32.mrf.mxu0
      %v941 = vadd.f32 %v279, %v940
      %v942 = vpop.f32.mrf.mxu0
      %v943 = vadd.f32 %v279, %v942
      %944 = vmatmul.bf16.gmra.mxu0 %v690
      %v945 = vpop.f32.mrf.mxu0
      %v946 = vadd.f32 %v279, %v945
      %v947 = vpop.f32.mrf.mxu0
      %v948 = vadd.f32 %v279, %v947
      %949 = vmatmul.bf16.gmra.mxu0 %v693
      %v950 = vpop.f32.mrf.mxu0
      %v951 = vadd.f32 %v279, %v950
      %v952 = vpop.f32.mrf.mxu0
      %v953 = vadd.f32 %v279, %v952
      %954 = vdwg.mxu0
      %1053 = vrot.lane.b32.xlu0 %v711, 80
      %v1054 = vpop.permute.xlu0 %1053
      %1055 = vrot.lane.b32.xlu0 %v713, 80
      %v1056 = vpop.permute.xlu0 %1055
      %1057 = vrot.lane.b32.xlu0 %v716, 80
      %v1058 = vpop.permute.xlu0 %1057
      %1059 = vrot.lane.b32.xlu0 %v718, 80
      %v1060 = vpop.permute.xlu0 %1059
      %1061 = vrot.lane.b32.xlu0 %v721, 80
      %v1062 = vpop.permute.xlu0 %1061
      %1063 = vrot.lane.b32.xlu0 %v723, 80
      %v1064 = vpop.permute.xlu0 %1063
      %1065 = vrot.lane.b32.xlu0 %v726, 80
      %v1066 = vpop.permute.xlu0 %1065
      %1067 = vrot.lane.b32.xlu0 %v728, 80
      %v1068 = vpop.permute.xlu0 %1067
      %1069 = vrot.lane.b32.xlu0 %v731, 80
      %v1070 = vpop.permute.xlu0 %1069
      %1071 = vrot.lane.b32.xlu0 %v733, 80
      %v1072 = vpop.permute.xlu0 %1071
      %1073 = vrot.lane.b32.xlu0 %v736, 80
      %v1074 = vpop.permute.xlu0 %1073
      %1075 = vrot.lane.b32.xlu0 %v738, 80
      %v1076 = vpop.permute.xlu0 %1075
      %1077 = vrot.lane.b32.xlu0 %v741, 80
      %v1078 = vpop.permute.xlu0 %1077
      %1079 = vrot.lane.b32.xlu0 %v743, 80
      %v1080 = vpop.permute.xlu0 %1079
      %1081 = vrot.lane.b32.xlu0 %v746, 80
      %v1082 = vpop.permute.xlu0 %1081
      %1083 = vrot.lane.b32.xlu0 %v748, 80
      %v1084 = vpop.permute.xlu0 %1083
      %1085 = vrot.lane.b32.xlu0 %v751, 80
      %v1086 = vpop.permute.xlu0 %1085
      %1087 = vrot.lane.b32.xlu0 %v753, 80
      %v1088 = vpop.permute.xlu0 %1087
      %1089 = vrot.lane.b32.xlu0 %v756, 80
      %v1090 = vpop.permute.xlu0 %1089
      %1091 = vrot.lane.b32.xlu0 %v758, 80
      %v1092 = vpop.permute.xlu0 %1091
      %1093 = vrot.lane.b32.xlu0 %v761, 80
      %v1094 = vpop.permute.xlu0 %1093
      %1095 = vrot.lane.b32.xlu0 %v763, 80
      %v1096 = vpop.permute.xlu0 %1095
      %1097 = vrot.lane.b32.xlu0 %v766, 80
      %v1098 = vpop.permute.xlu0 %1097
      %1099 = vrot.lane.b32.xlu0 %v768, 80
      %v1100 = vpop.permute.xlu0 %1099
      %1101 = vrot.lane.b32.xlu0 %v771, 80
      %v1102 = vpop.permute.xlu0 %1101
      %1103 = vrot.lane.b32.xlu0 %v773, 80
      %v1104 = vpop.permute.xlu0 %1103
      %1105 = vrot.lane.b32.xlu0 %v776, 80
      %v1106 = vpop.permute.xlu0 %1105
      %1107 = vrot.lane.b32.xlu0 %v778, 80
      %v1108 = vpop.permute.xlu0 %1107
      %1109 = vrot.lane.b32.xlu0 %v781, 80
      %v1110 = vpop.permute.xlu0 %1109
      %1111 = vrot.lane.b32.xlu0 %v783, 80
      %v1112 = vpop.permute.xlu0 %1111
      %1113 = vrot.lane.b32.xlu0 %v786, 80
      %v1114 = vpop.permute.xlu0 %1113
      %1115 = vrot.lane.b32.xlu0 %v788, 80
      %v1116 = vpop.permute.xlu0 %1115
      %1117 = vrot.lane.b32.xlu0 %v791, 80
      %v1118 = vpop.permute.xlu0 %1117
      %1119 = vrot.lane.b32.xlu0 %v793, 80
      %v1120 = vpop.permute.xlu0 %1119
      %1121 = vrot.lane.b32.xlu0 %v796, 80
      %v1122 = vpop.permute.xlu0 %1121
      %1123 = vrot.lane.b32.xlu0 %v798, 80
      %v1124 = vpop.permute.xlu0 %1123
      %1125 = vrot.lane.b32.xlu0 %v801, 80
      %v1126 = vpop.permute.xlu0 %1125
      %1127 = vrot.lane.b32.xlu0 %v803, 80
      %v1128 = vpop.permute.xlu0 %1127
      %1129 = vrot.lane.b32.xlu0 %v806, 80
      %v1130 = vpop.permute.xlu0 %1129
      %1131 = vrot.lane.b32.xlu0 %v808, 80
      %v1132 = vpop.permute.xlu0 %1131
      %1133 = vrot.lane.b32.xlu0 %v811, 80
      %v1134 = vpop.permute.xlu0 %1133
      %1135 = vrot.lane.b32.xlu0 %v813, 80
      %v1136 = vpop.permute.xlu0 %1135
      %1137 = vrot.lane.b32.xlu0 %v816, 80
      %v1138 = vpop.permute.xlu0 %1137
      %1139 = vrot.lane.b32.xlu0 %v818, 80
      %v1140 = vpop.permute.xlu0 %1139
      %1141 = vrot.lane.b32.xlu0 %v821, 80
      %v1142 = vpop.permute.xlu0 %1141
      %1143 = vrot.lane.b32.xlu0 %v823, 80
      %v1144 = vpop.permute.xlu0 %1143
      %1145 = vrot.lane.b32.xlu0 %v826, 80
      %v1146 = vpop.permute.xlu0 %1145
      %1147 = vrot.lane.b32.xlu0 %v828, 80
      %v1148 = vpop.permute.xlu0 %1147
      %1149 = vrot.lane.b32.xlu0 %v831, 80
      %v1150 = vpop.permute.xlu0 %1149
      %1151 = vrot.lane.b32.xlu0 %v833, 80
      %v1152 = vpop.permute.xlu0 %1151
      %1153 = vrot.lane.b32.xlu0 %v836, 80
      %v1154 = vpop.permute.xlu0 %1153
      %1155 = vrot.lane.b32.xlu0 %v838, 80
      %v1156 = vpop.permute.xlu0 %1155
      %1157 = vrot.lane.b32.xlu0 %v841, 80
      %v1158 = vpop.permute.xlu0 %1157
      %1159 = vrot.lane.b32.xlu0 %v843, 80
      %v1160 = vpop.permute.xlu0 %1159
      %1161 = vrot.lane.b32.xlu0 %v846, 80
      %v1162 = vpop.permute.xlu0 %1161
      %1163 = vrot.lane.b32.xlu0 %v848, 80
      %v1164 = vpop.permute.xlu0 %1163
      %1165 = vrot.lane.b32.xlu0 %v851, 80
      %v1166 = vpop.permute.xlu0 %1165
      %1167 = vrot.lane.b32.xlu0 %v853, 80
      %v1168 = vpop.permute.xlu0 %1167
      %1169 = vrot.lane.b32.xlu0 %v856, 80
      %v1170 = vpop.permute.xlu0 %1169
      %1171 = vrot.lane.b32.xlu0 %v858, 80
      %v1172 = vpop.permute.xlu0 %1171
      %1173 = vrot.lane.b32.xlu0 %v861, 80
      %v1174 = vpop.permute.xlu0 %1173
      %1175 = vrot.lane.b32.xlu0 %v863, 80
      %v1176 = vpop.permute.xlu0 %1175
      %1177 = vrot.lane.b32.xlu0 %v866, 80
      %v1178 = vpop.permute.xlu0 %1177
      %1179 = vrot.lane.b32.xlu0 %v868, 80
      %v1180 = vpop.permute.xlu0 %1179
      %1181 = vrot.lane.b32.xlu0 %v871, 80
      %v1182 = vpop.permute.xlu0 %1181
      %1183 = vrot.lane.b32.xlu0 %v873, 80
      %v1184 = vpop.permute.xlu0 %1183
      %1185 = vrot.lane.b32.xlu0 %v876, 80
      %v1186 = vpop.permute.xlu0 %1185
      %1187 = vrot.lane.b32.xlu0 %v878, 80
      %v1188 = vpop.permute.xlu0 %1187
      %1189 = vrot.lane.b32.xlu0 %v881, 80
      %v1190 = vpop.permute.xlu0 %1189
      %1191 = vrot.lane.b32.xlu0 %v883, 80
      %v1192 = vpop.permute.xlu0 %1191
      %1193 = vrot.lane.b32.xlu0 %v886, 80
      %v1194 = vpop.permute.xlu0 %1193
      %1195 = vrot.lane.b32.xlu0 %v888, 80
      %v1196 = vpop.permute.xlu0 %1195
      %1197 = vrot.lane.b32.xlu0 %v891, 80
      %v1198 = vpop.permute.xlu0 %1197
      %1199 = vrot.lane.b32.xlu0 %v893, 80
      %v1200 = vpop.permute.xlu0 %1199
      %1201 = vrot.lane.b32.xlu0 %v896, 80
      %v1202 = vpop.permute.xlu0 %1201
      %1203 = vrot.lane.b32.xlu0 %v898, 80
      %v1204 = vpop.permute.xlu0 %1203
      %1205 = vrot.lane.b32.xlu0 %v901, 80
      %v1206 = vpop.permute.xlu0 %1205
      %1207 = vrot.lane.b32.xlu0 %v903, 80
      %v1208 = vpop.permute.xlu0 %1207
      %1209 = vrot.lane.b32.xlu0 %v906, 80
      %v1210 = vpop.permute.xlu0 %1209
      %1211 = vrot.lane.b32.xlu0 %v908, 80
      %v1212 = vpop.permute.xlu0 %1211
      %1213 = vrot.lane.b32.xlu0 %v911, 80
      %v1214 = vpop.permute.xlu0 %1213
      %1215 = vrot.lane.b32.xlu0 %v913, 80
      %v1216 = vpop.permute.xlu0 %1215
      %1217 = vrot.lane.b32.xlu0 %v916, 80
      %v1218 = vpop.permute.xlu0 %1217
      %1219 = vrot.lane.b32.xlu0 %v918, 80
      %v1220 = vpop.permute.xlu0 %1219
      %1221 = vrot.lane.b32.xlu0 %v921, 80
      %v1222 = vpop.permute.xlu0 %1221
      %1223 = vrot.lane.b32.xlu0 %v923, 80
      %v1224 = vpop.permute.xlu0 %1223
      %1225 = vrot.lane.b32.xlu0 %v926, 80
      %v1226 = vpop.permute.xlu0 %1225
      %1227 = vrot.lane.b32.xlu0 %v928, 80
      %v1228 = vpop.permute.xlu0 %1227
      %1229 = vrot.lane.b32.xlu0 %v931, 80
      %v1230 = vpop.permute.xlu0 %1229
      %1231 = vrot.lane.b32.xlu0 %v933, 80
      %v1232 = vpop.permute.xlu0 %1231
      %1233 = vrot.lane.b32.xlu0 %v936, 80
      %v1234 = vpop.permute.xlu0 %1233
      %1235 = vrot.lane.b32.xlu0 %v938, 80
      %v1236 = vpop.permute.xlu0 %1235
      %1237 = vrot.lane.b32.xlu0 %v941, 80
      %v1238 = vpop.permute.xlu0 %1237
      %1239 = vrot.lane.b32.xlu0 %v943, 80
      %v1240 = vpop.permute.xlu0 %1239
      %1241 = vrot.lane.b32.xlu0 %v946, 80
      %v1242 = vpop.permute.xlu0 %1241
      %1243 = vrot.lane.b32.xlu0 %v948, 80
      %v1244 = vpop.permute.xlu0 %1243
      %1245 = vrot.lane.b32.xlu0 %v951, 80
      %v1246 = vpop.permute.xlu0 %1245
      %1247 = vrot.lane.b32.xlu0 %v953, 80
      %v1248 = vpop.permute.xlu0 %1247
      %v1347 = vmax.f32 %v711, %v1054
      %v1348 = vmax.f32 %v713, %v1056
      %v1349 = vmax.f32 %v716, %v1058
      %v1350 = vmax.f32 %v718, %v1060
      %v1351 = vmax.f32 %v721, %v1062
      %v1352 = vmax.f32 %v723, %v1064
      %v1353 = vmax.f32 %v726, %v1066
      %v1354 = vmax.f32 %v728, %v1068
      %v1355 = vmax.f32 %v731, %v1070
      %v1356 = vmax.f32 %v733, %v1072
      %v1357 = vmax.f32 %v736, %v1074
      %v1358 = vmax.f32 %v738, %v1076
      %v1359 = vmax.f32 %v741, %v1078
      %v1360 = vmax.f32 %v743, %v1080
      %v1361 = vmax.f32 %v746, %v1082
      %v1362 = vmax.f32 %v748, %v1084
      %v1363 = vmax.f32 %v751, %v1086
      %v1364 = vmax.f32 %v753, %v1088
      %v1365 = vmax.f32 %v756, %v1090
      %v1366 = vmax.f32 %v758, %v1092
      %v1367 = vmax.f32 %v761, %v1094
      %v1368 = vmax.f32 %v763, %v1096
      %v1369 = vmax.f32 %v766, %v1098
      %v1370 = vmax.f32 %v768, %v1100
      %v1371 = vmax.f32 %v771, %v1102
      %v1372 = vmax.f32 %v773, %v1104
      %v1373 = vmax.f32 %v776, %v1106
      %v1374 = vmax.f32 %v778, %v1108
      %v1375 = vmax.f32 %v781, %v1110
      %v1376 = vmax.f32 %v783, %v1112
      %v1377 = vmax.f32 %v786, %v1114
      %v1378 = vmax.f32 %v788, %v1116
      %v1379 = vmax.f32 %v791, %v1118
      %v1380 = vmax.f32 %v793, %v1120
      %v1381 = vmax.f32 %v796, %v1122
      %v1382 = vmax.f32 %v798, %v1124
      %v1383 = vmax.f32 %v801, %v1126
      %v1384 = vmax.f32 %v803, %v1128
      %v1385 = vmax.f32 %v806, %v1130
      %v1386 = vmax.f32 %v808, %v1132
      %v1387 = vmax.f32 %v811, %v1134
      %v1388 = vmax.f32 %v813, %v1136
      %v1389 = vmax.f32 %v816, %v1138
      %v1390 = vmax.f32 %v818, %v1140
      %v1391 = vmax.f32 %v821, %v1142
      %v1392 = vmax.f32 %v823, %v1144
      %v1393 = vmax.f32 %v826, %v1146
      %v1394 = vmax.f32 %v828, %v1148
      %v1395 = vmax.f32 %v831, %v1150
      %v1396 = vmax.f32 %v833, %v1152
      %v1397 = vmax.f32 %v836, %v1154
      %v1398 = vmax.f32 %v838, %v1156
      %v1399 = vmax.f32 %v841, %v1158
      %v1400 = vmax.f32 %v843, %v1160
      %v1401 = vmax.f32 %v846, %v1162
      %v1402 = vmax.f32 %v848, %v1164
      %v1403 = vmax.f32 %v851, %v1166
      %v1404 = vmax.f32 %v853, %v1168
      %v1405 = vmax.f32 %v856, %v1170
      %v1406 = vmax.f32 %v858, %v1172
      %v1407 = vmax.f32 %v861, %v1174
      %v1408 = vmax.f32 %v863, %v1176
      %v1409 = vmax.f32 %v866, %v1178
      %v1410 = vmax.f32 %v868, %v1180
      %v1411 = vmax.f32 %v871, %v1182
      %v1412 = vmax.f32 %v873, %v1184
      %v1413 = vmax.f32 %v876, %v1186
      %v1414 = vmax.f32 %v878, %v1188
      %v1415 = vmax.f32 %v881, %v1190
      %v1416 = vmax.f32 %v883, %v1192
      %v1417 = vmax.f32 %v886, %v1194
      %v1418 = vmax.f32 %v888, %v1196
      %v1419 = vmax.f32 %v891, %v1198
      %v1420 = vmax.f32 %v893, %v1200
      %v1421 = vmax.f32 %v896, %v1202
      %v1422 = vmax.f32 %v898, %v1204
      %v1423 = vmax.f32 %v901, %v1206
      %v1424 = vmax.f32 %v903, %v1208
      %v1425 = vmax.f32 %v906, %v1210
      %v1426 = vmax.f32 %v908, %v1212
      %v1427 = vmax.f32 %v911, %v1214
      %v1428 = vmax.f32 %v913, %v1216
      %v1429 = vmax.f32 %v916, %v1218
      %v1430 = vmax.f32 %v918, %v1220
      %v1431 = vmax.f32 %v921, %v1222
      %v1432 = vmax.f32 %v923, %v1224
      %v1433 = vmax.f32 %v926, %v1226
      %v1434 = vmax.f32 %v928, %v1228
      %v1435 = vmax.f32 %v931, %v1230
      %v1436 = vmax.f32 %v933, %v1232
      %v1437 = vmax.f32 %v936, %v1234
      %v1438 = vmax.f32 %v938, %v1236
      %v1439 = vmax.f32 %v941, %v1238
      %v1440 = vmax.f32 %v943, %v1240
      %v1441 = vmax.f32 %v946, %v1242
      %v1442 = vmax.f32 %v948, %v1244
      %v1443 = vmax.f32 %v951, %v1246
      %v1444 = vmax.f32 %v953, %v1248
      %vm1540 = vcmask 1043456
      %v1541 = vrot.slane %v1350, 4
      %v1542 = vrot.slane %v1351, 4
      %v1543 = vsel %vm1540, %v1541, %v1542
      %v1544 = vrot.slane %v1352, 4
      %v1545 = vsel %vm1540, %v1542, %v1544
      %v1546 = vrot.slane %v1353, 4
      %v1547 = vsel %vm1540, %v1544, %v1546
      %v1548 = vrot.slane %v1354, 4
      %v1549 = vsel %vm1540, %v1546, %v1548
      %v1550 = vrot.slane %v1355, 4
      %v1551 = vsel %vm1540, %v1548, %v1550
      %v1552 = vrot.slane %v1356, 4
      %v1553 = vsel %vm1540, %v1550, %v1552
      %v1554 = vrot.slane %v1357, 4
      %v1555 = vsel %vm1540, %v1552, %v1554
      %v1556 = vrot.slane %v1358, 4
      %v1557 = vsel %vm1540, %v1554, %v1556
      %v1558 = vrot.slane %v1359, 4
      %v1559 = vsel %vm1540, %v1556, %v1558
      %v1560 = vrot.slane %v1360, 4
      %v1561 = vsel %vm1540, %v1558, %v1560
      %v1562 = vrot.slane %v1361, 4
      %v1563 = vsel %vm1540, %v1560, %v1562
      %v1564 = vrot.slane %v1362, 4
      %v1565 = vsel %vm1540, %v1562, %v1564
      %v1566 = vrot.slane %v1363, 4
      %v1567 = vsel %vm1540, %v1564, %v1566
      %v1568 = vrot.slane %v1364, 4
      %v1569 = vsel %vm1540, %v1566, %v1568
      %v1570 = vrot.slane %v1365, 4
      %v1571 = vsel %vm1540, %v1568, %v1570
      %v1572 = vrot.slane %v1366, 4
      %v1573 = vsel %vm1540, %v1570, %v1572
      %v1574 = vrot.slane %v1367, 4
      %v1575 = vsel %vm1540, %v1572, %v1574
      %v1576 = vrot.slane %v1368, 4
      %v1577 = vsel %vm1540, %v1574, %v1576
      %v1578 = vrot.slane %v1369, 4
      %v1579 = vsel %vm1540, %v1576, %v1578
      %v1580 = vrot.slane %v1370, 4
      %v1581 = vsel %vm1540, %v1578, %v1580
      %v1582 = vrot.slane %v1371, 4
      %v1583 = vsel %vm1540, %v1580, %v1582
      %v1584 = vrot.slane %v1372, 4
      %v1585 = vsel %vm1540, %v1582, %v1584
      %v1586 = vrot.slane %v1373, 4
      %v1587 = vsel %vm1540, %v1584, %v1586
      %v1588 = vrot.slane %v1374, 4
      %v1589 = vsel %vm1540, %v1586, %v1588
      %v1590 = vrot.slane %v1375, 4
      %v1591 = vsel %vm1540, %v1588, %v1590
      %v1592 = vrot.slane %v1376, 4
      %v1593 = vsel %vm1540, %v1590, %v1592
      %v1594 = vrot.slane %v1377, 4
      %v1595 = vsel %vm1540, %v1592, %v1594
      %v1596 = vrot.slane %v1378, 4
      %v1597 = vsel %vm1540, %v1594, %v1596
      %v1598 = vrot.slane %v1379, 4
      %v1599 = vsel %vm1540, %v1596, %v1598
      %v1600 = vrot.slane %v1380, 4
      %v1601 = vsel %vm1540, %v1598, %v1600
      %v1602 = vrot.slane %v1381, 4
      %v1603 = vsel %vm1540, %v1600, %v1602
      %v1604 = vrot.slane %v1382, 4
      %v1605 = vsel %vm1540, %v1602, %v1604
      %v1606 = vrot.slane %v1383, 4
      %v1607 = vsel %vm1540, %v1604, %v1606
      %v1608 = vrot.slane %v1384, 4
      %v1609 = vsel %vm1540, %v1606, %v1608
      %v1610 = vrot.slane %v1385, 4
      %v1611 = vsel %vm1540, %v1608, %v1610
      %v1612 = vrot.slane %v1386, 4
      %v1613 = vsel %vm1540, %v1610, %v1612
      %v1614 = vrot.slane %v1387, 4
      %v1615 = vsel %vm1540, %v1612, %v1614
      %v1616 = vrot.slane %v1388, 4
      %v1617 = vsel %vm1540, %v1614, %v1616
      %v1618 = vrot.slane %v1389, 4
      %v1619 = vsel %vm1540, %v1616, %v1618
      %v1620 = vrot.slane %v1390, 4
      %v1621 = vsel %vm1540, %v1618, %v1620
      %v1622 = vrot.slane %v1391, 4
      %v1623 = vsel %vm1540, %v1620, %v1622
      %v1624 = vrot.slane %v1392, 4
      %v1625 = vsel %vm1540, %v1622, %v1624
      %v1626 = vrot.slane %v1393, 4
      %v1627 = vsel %vm1540, %v1624, %v1626
      %v1628 = vrot.slane %v1394, 4
      %v1629 = vsel %vm1540, %v1626, %v1628
      %v1630 = vrot.slane %v1395, 4
      %v1631 = vsel %vm1540, %v1628, %v1630
      %v1632 = vrot.slane %v1396, 4
      %v1633 = vsel %vm1540, %v1630, %v1632
      %v1634 = vrot.slane %v1397, 4
      %v1635 = vsel %vm1540, %v1632, %v1634
      %v1636 = vrot.slane %v1398, 4
      %v1637 = vsel %vm1540, %v1634, %v1636
      %v1638 = vrot.slane %v1399, 4
      %v1639 = vsel %vm1540, %v1636, %v1638
      %v1640 = vrot.slane %v1400, 4
      %v1641 = vsel %vm1540, %v1638, %v1640
      %v1642 = vrot.slane %v1401, 4
      %v1643 = vsel %vm1540, %v1640, %v1642
      %v1644 = vrot.slane %v1402, 4
      %v1645 = vsel %vm1540, %v1642, %v1644
      %v1646 = vrot.slane %v1403, 4
      %v1647 = vsel %vm1540, %v1644, %v1646
      %v1648 = vrot.slane %v1404, 4
      %v1649 = vsel %vm1540, %v1646, %v1648
      %v1650 = vrot.slane %v1405, 4
      %v1651 = vsel %vm1540, %v1648, %v1650
      %v1652 = vrot.slane %v1406, 4
      %v1653 = vsel %vm1540, %v1650, %v1652
      %v1654 = vrot.slane %v1407, 4
      %v1655 = vsel %vm1540, %v1652, %v1654
      %v1656 = vrot.slane %v1408, 4
      %v1657 = vsel %vm1540, %v1654, %v1656
      %v1658 = vrot.slane %v1409, 4
      %v1659 = vsel %vm1540, %v1656, %v1658
      %v1660 = vrot.slane %v1410, 4
      %v1661 = vsel %vm1540, %v1658, %v1660
      %v1662 = vrot.slane %v1411, 4
      %v1663 = vsel %vm1540, %v1660, %v1662
      %v1664 = vrot.slane %v1412, 4
      %v1665 = vsel %vm1540, %v1662, %v1664
      %v1666 = vrot.slane %v1413, 4
      %v1667 = vsel %vm1540, %v1664, %v1666
      %v1668 = vrot.slane %v1414, 4
      %v1669 = vsel %vm1540, %v1666, %v1668
      %v1670 = vrot.slane %v1415, 4
      %v1671 = vsel %vm1540, %v1668, %v1670
      %v1672 = vrot.slane %v1416, 4
      %v1673 = vsel %vm1540, %v1670, %v1672
      %v1674 = vrot.slane %v1417, 4
      %v1675 = vsel %vm1540, %v1672, %v1674
      %v1676 = vrot.slane %v1418, 4
      %v1677 = vsel %vm1540, %v1674, %v1676
      %v1678 = vrot.slane %v1419, 4
      %v1679 = vsel %vm1540, %v1676, %v1678
      %v1680 = vrot.slane %v1420, 4
      %v1681 = vsel %vm1540, %v1678, %v1680
      %v1682 = vrot.slane %v1421, 4
      %v1683 = vsel %vm1540, %v1680, %v1682
      %v1684 = vrot.slane %v1422, 4
      %v1685 = vsel %vm1540, %v1682, %v1684
      %v1686 = vrot.slane %v1423, 4
      %v1687 = vsel %vm1540, %v1684, %v1686
      %v1688 = vrot.slane %v1424, 4
      %v1689 = vsel %vm1540, %v1686, %v1688
      %v1690 = vrot.slane %v1425, 4
      %v1691 = vsel %vm1540, %v1688, %v1690
      %v1692 = vrot.slane %v1426, 4
      %v1693 = vsel %vm1540, %v1690, %v1692
      %v1694 = vrot.slane %v1427, 4
      %v1695 = vsel %vm1540, %v1692, %v1694
      %v1696 = vrot.slane %v1428, 4
      %v1697 = vsel %vm1540, %v1694, %v1696
      %v1698 = vrot.slane %v1429, 4
      %v1699 = vsel %vm1540, %v1696, %v1698
      %v1700 = vrot.slane %v1430, 4
      %v1701 = vsel %vm1540, %v1698, %v1700
      %v1702 = vrot.slane %v1431, 4
      %v1703 = vsel %vm1540, %v1700, %v1702
      %v1704 = vrot.slane %v1432, 4
      %v1705 = vsel %vm1540, %v1702, %v1704
      %v1706 = vrot.slane %v1433, 4
      %v1707 = vsel %vm1540, %v1704, %v1706
      %v1708 = vrot.slane %v1434, 4
      %v1709 = vsel %vm1540, %v1706, %v1708
      %v1710 = vrot.slane %v1435, 4
      %v1711 = vsel %vm1540, %v1708, %v1710
      %v1712 = vrot.slane %v1436, 4
      %v1713 = vsel %vm1540, %v1710, %v1712
      %v1714 = vrot.slane %v1437, 4
      %v1715 = vsel %vm1540, %v1712, %v1714
      %v1716 = vrot.slane %v1438, 4
      %v1717 = vsel %vm1540, %v1714, %v1716
      %v1718 = vrot.slane %v1439, 4
      %v1719 = vsel %vm1540, %v1716, %v1718
      %v1720 = vrot.slane %v1440, 4
      %v1721 = vsel %vm1540, %v1718, %v1720
      %v1722 = vrot.slane %v1441, 4
      %v1723 = vsel %vm1540, %v1720, %v1722
      %v1724 = vrot.slane %v1442, 4
      %v1725 = vsel %vm1540, %v1722, %v1724
      %v1726 = vrot.slane %v1443, 4
      %v1727 = vsel %vm1540, %v1724, %v1726
      %v1728 = vrot.slane %v1444, 4
      %v1729 = vsel %vm1540, %v1726, %v1728
      %v1825 = vmax.f32 %v1347, %v1543
      %v1826 = vmax.f32 %v1348, %v1545
      %v1827 = vmax.f32 %v1349, %v1547
      %v1828 = vmax.f32 %v1350, %v1549
      %v1829 = vmax.f32 %v1351, %v1551
      %v1830 = vmax.f32 %v1352, %v1553
      %v1831 = vmax.f32 %v1353, %v1555
      %v1832 = vmax.f32 %v1354, %v1557
      %v1833 = vmax.f32 %v1355, %v1559
      %v1834 = vmax.f32 %v1356, %v1561
      %v1835 = vmax.f32 %v1357, %v1563
      %v1836 = vmax.f32 %v1358, %v1565
      %v1837 = vmax.f32 %v1359, %v1567
      %v1838 = vmax.f32 %v1360, %v1569
      %v1839 = vmax.f32 %v1361, %v1571
      %v1840 = vmax.f32 %v1362, %v1573
      %v1841 = vmax.f32 %v1363, %v1575
      %v1842 = vmax.f32 %v1364, %v1577
      %v1843 = vmax.f32 %v1365, %v1579
      %v1844 = vmax.f32 %v1366, %v1581
      %v1845 = vmax.f32 %v1367, %v1583
      %v1846 = vmax.f32 %v1368, %v1585
      %v1847 = vmax.f32 %v1369, %v1587
      %v1848 = vmax.f32 %v1370, %v1589
      %v1849 = vmax.f32 %v1371, %v1591
      %v1850 = vmax.f32 %v1372, %v1593
      %v1851 = vmax.f32 %v1373, %v1595
      %v1852 = vmax.f32 %v1374, %v1597
      %v1853 = vmax.f32 %v1375, %v1599
      %v1854 = vmax.f32 %v1376, %v1601
      %v1855 = vmax.f32 %v1377, %v1603
      %v1856 = vmax.f32 %v1378, %v1605
      %v1857 = vmax.f32 %v1379, %v1607
      %v1858 = vmax.f32 %v1380, %v1609
      %v1859 = vmax.f32 %v1381, %v1611
      %v1860 = vmax.f32 %v1382, %v1613
      %v1861 = vmax.f32 %v1383, %v1615
      %v1862 = vmax.f32 %v1384, %v1617
      %v1863 = vmax.f32 %v1385, %v1619
      %v1864 = vmax.f32 %v1386, %v1621
      %v1865 = vmax.f32 %v1387, %v1623
      %v1866 = vmax.f32 %v1388, %v1625
      %v1867 = vmax.f32 %v1389, %v1627
      %v1868 = vmax.f32 %v1390, %v1629
      %v1869 = vmax.f32 %v1391, %v1631
      %v1870 = vmax.f32 %v1392, %v1633
      %v1871 = vmax.f32 %v1393, %v1635
      %v1872 = vmax.f32 %v1394, %v1637
      %v1873 = vmax.f32 %v1395, %v1639
      %v1874 = vmax.f32 %v1396, %v1641
      %v1875 = vmax.f32 %v1397, %v1643
      %v1876 = vmax.f32 %v1398, %v1645
      %v1877 = vmax.f32 %v1399, %v1647
      %v1878 = vmax.f32 %v1400, %v1649
      %v1879 = vmax.f32 %v1401, %v1651
      %v1880 = vmax.f32 %v1402, %v1653
      %v1881 = vmax.f32 %v1403, %v1655
      %v1882 = vmax.f32 %v1404, %v1657
      %v1883 = vmax.f32 %v1405, %v1659
      %v1884 = vmax.f32 %v1406, %v1661
      %v1885 = vmax.f32 %v1407, %v1663
      %v1886 = vmax.f32 %v1408, %v1665
      %v1887 = vmax.f32 %v1409, %v1667
      %v1888 = vmax.f32 %v1410, %v1669
      %v1889 = vmax.f32 %v1411, %v1671
      %v1890 = vmax.f32 %v1412, %v1673
      %v1891 = vmax.f32 %v1413, %v1675
      %v1892 = vmax.f32 %v1414, %v1677
      %v1893 = vmax.f32 %v1415, %v1679
      %v1894 = vmax.f32 %v1416, %v1681
      %v1895 = vmax.f32 %v1417, %v1683
      %v1896 = vmax.f32 %v1418, %v1685
      %v1897 = vmax.f32 %v1419, %v1687
      %v1898 = vmax.f32 %v1420, %v1689
      %v1899 = vmax.f32 %v1421, %v1691
      %v1900 = vmax.f32 %v1422, %v1693
      %v1901 = vmax.f32 %v1423, %v1695
      %v1902 = vmax.f32 %v1424, %v1697
      %v1903 = vmax.f32 %v1425, %v1699
      %v1904 = vmax.f32 %v1426, %v1701
      %v1905 = vmax.f32 %v1427, %v1703
      %v1906 = vmax.f32 %v1428, %v1705
      %v1907 = vmax.f32 %v1429, %v1707
      %v1908 = vmax.f32 %v1430, %v1709
      %v1909 = vmax.f32 %v1431, %v1711
      %v1910 = vmax.f32 %v1432, %v1713
      %v1911 = vmax.f32 %v1433, %v1715
      %v1912 = vmax.f32 %v1434, %v1717
      %v1913 = vmax.f32 %v1435, %v1719
      %v1914 = vmax.f32 %v1436, %v1721
      %v1915 = vmax.f32 %v1437, %v1723
      %v1916 = vmax.f32 %v1438, %v1725
      %v1917 = vmax.f32 %v1439, %v1727
      %v1918 = vmax.f32 %v1440, %v1729
      %v1919 = vmax.f32 %v1441, %v1728
      %v2012 = vrot.slane %v1828, 4
      %v2013 = vrot.slane %v1829, 4
      %v2014 = vsel %vm1540, %v2012, %v2013
      %v2015 = vrot.slane %v1830, 4
      %v2016 = vsel %vm1540, %v2013, %v2015
      %v2017 = vrot.slane %v1831, 4
      %v2018 = vsel %vm1540, %v2015, %v2017
      %v2019 = vrot.slane %v1832, 4
      %v2020 = vsel %vm1540, %v2017, %v2019
      %v2021 = vrot.slane %v1833, 4
      %v2022 = vsel %vm1540, %v2019, %v2021
      %v2023 = vrot.slane %v1834, 4
      %v2024 = vsel %vm1540, %v2021, %v2023
      %v2025 = vrot.slane %v1835, 4
      %v2026 = vsel %vm1540, %v2023, %v2025
      %v2027 = vrot.slane %v1836, 4
      %v2028 = vsel %vm1540, %v2025, %v2027
      %v2029 = vrot.slane %v1837, 4
      %v2030 = vsel %vm1540, %v2027, %v2029
      %v2031 = vrot.slane %v1838, 4
      %v2032 = vsel %vm1540, %v2029, %v2031
      %v2033 = vrot.slane %v1839, 4
      %v2034 = vsel %vm1540, %v2031, %v2033
      %v2035 = vrot.slane %v1840, 4
      %v2036 = vsel %vm1540, %v2033, %v2035
      %v2037 = vrot.slane %v1841, 4
      %v2038 = vsel %vm1540, %v2035, %v2037
      %v2039 = vrot.slane %v1842, 4
      %v2040 = vsel %vm1540, %v2037, %v2039
      %v2041 = vrot.slane %v1843, 4
      %v2042 = vsel %vm1540, %v2039, %v2041
      %v2043 = vrot.slane %v1844, 4
      %v2044 = vsel %vm1540, %v2041, %v2043
      %v2045 = vrot.slane %v1845, 4
      %v2046 = vsel %vm1540, %v2043, %v2045
      %v2047 = vrot.slane %v1846, 4
      %v2048 = vsel %vm1540, %v2045, %v2047
      %v2049 = vrot.slane %v1847, 4
      %v2050 = vsel %vm1540, %v2047, %v2049
      %v2051 = vrot.slane %v1848, 4
      %v2052 = vsel %vm1540, %v2049, %v2051
      %v2053 = vrot.slane %v1849, 4
      %v2054 = vsel %vm1540, %v2051, %v2053
      %v2055 = vrot.slane %v1850, 4
      %v2056 = vsel %vm1540, %v2053, %v2055
      %v2057 = vrot.slane %v1851, 4
      %v2058 = vsel %vm1540, %v2055, %v2057
      %v2059 = vrot.slane %v1852, 4
      %v2060 = vsel %vm1540, %v2057, %v2059
      %v2061 = vrot.slane %v1853, 4
      %v2062 = vsel %vm1540, %v2059, %v2061
      %v2063 = vrot.slane %v1854, 4
      %v2064 = vsel %vm1540, %v2061, %v2063
      %v2065 = vrot.slane %v1855, 4
      %v2066 = vsel %vm1540, %v2063, %v2065
      %v2067 = vrot.slane %v1856, 4
      %v2068 = vsel %vm1540, %v2065, %v2067
      %v2069 = vrot.slane %v1857, 4
      %v2070 = vsel %vm1540, %v2067, %v2069
      %v2071 = vrot.slane %v1858, 4
      %v2072 = vsel %vm1540, %v2069, %v2071
      %v2073 = vrot.slane %v1859, 4
      %v2074 = vsel %vm1540, %v2071, %v2073
      %v2075 = vrot.slane %v1860, 4
      %v2076 = vsel %vm1540, %v2073, %v2075
      %v2077 = vrot.slane %v1861, 4
      %v2078 = vsel %vm1540, %v2075, %v2077
      %v2079 = vrot.slane %v1862, 4
      %v2080 = vsel %vm1540, %v2077, %v2079
      %v2081 = vrot.slane %v1863, 4
      %v2082 = vsel %vm1540, %v2079, %v2081
      %v2083 = vrot.slane %v1864, 4
      %v2084 = vsel %vm1540, %v2081, %v2083
      %v2085 = vrot.slane %v1865, 4
      %v2086 = vsel %vm1540, %v2083, %v2085
      %v2087 = vrot.slane %v1866, 4
      %v2088 = vsel %vm1540, %v2085, %v2087
      %v2089 = vrot.slane %v1867, 4
      %v2090 = vsel %vm1540, %v2087, %v2089
      %v2091 = vrot.slane %v1868, 4
      %v2092 = vsel %vm1540, %v2089, %v2091
      %v2093 = vrot.slane %v1869, 4
      %v2094 = vsel %vm1540, %v2091, %v2093
      %v2095 = vrot.slane %v1870, 4
      %v2096 = vsel %vm1540, %v2093, %v2095
      %v2097 = vrot.slane %v1871, 4
      %v2098 = vsel %vm1540, %v2095, %v2097
      %v2099 = vrot.slane %v1872, 4
      %v2100 = vsel %vm1540, %v2097, %v2099
      %v2101 = vrot.slane %v1873, 4
      %v2102 = vsel %vm1540, %v2099, %v2101
      %v2103 = vrot.slane %v1874, 4
      %v2104 = vsel %vm1540, %v2101, %v2103
      %v2105 = vrot.slane %v1875, 4
      %v2106 = vsel %vm1540, %v2103, %v2105
      %v2107 = vrot.slane %v1876, 4
      %v2108 = vsel %vm1540, %v2105, %v2107
      %v2109 = vrot.slane %v1877, 4
      %v2110 = vsel %vm1540, %v2107, %v2109
      %v2111 = vrot.slane %v1878, 4
      %v2112 = vsel %vm1540, %v2109, %v2111
      %v2113 = vrot.slane %v1879, 4
      %v2114 = vsel %vm1540, %v2111, %v2113
      %v2115 = vrot.slane %v1880, 4
      %v2116 = vsel %vm1540, %v2113, %v2115
      %v2117 = vrot.slane %v1881, 4
      %v2118 = vsel %vm1540, %v2115, %v2117
      %v2119 = vrot.slane %v1882, 4
      %v2120 = vsel %vm1540, %v2117, %v2119
      %v2121 = vrot.slane %v1883, 4
      %v2122 = vsel %vm1540, %v2119, %v2121
      %v2123 = vrot.slane %v1884, 4
      %v2124 = vsel %vm1540, %v2121, %v2123
      %v2125 = vrot.slane %v1885, 4
      %v2126 = vsel %vm1540, %v2123, %v2125
      %v2127 = vrot.slane %v1886, 4
      %v2128 = vsel %vm1540, %v2125, %v2127
      %v2129 = vrot.slane %v1887, 4
      %v2130 = vsel %vm1540, %v2127, %v2129
      %v2131 = vrot.slane %v1888, 4
      %v2132 = vsel %vm1540, %v2129, %v2131
      %v2133 = vrot.slane %v1889, 4
      %v2134 = vsel %vm1540, %v2131, %v2133
      %v2135 = vrot.slane %v1890, 4
      %v2136 = vsel %vm1540, %v2133, %v2135
      %v2137 = vrot.slane %v1891, 4
      %v2138 = vsel %vm1540, %v2135, %v2137
      %v2139 = vrot.slane %v1892, 4
      %v2140 = vsel %vm1540, %v2137, %v2139
      %v2141 = vrot.slane %v1893, 4
      %v2142 = vsel %vm1540, %v2139, %v2141
      %v2143 = vrot.slane %v1894, 4
      %v2144 = vsel %vm1540, %v2141, %v2143
      %v2145 = vrot.slane %v1895, 4
      %v2146 = vsel %vm1540, %v2143, %v2145
      %v2147 = vrot.slane %v1896, 4
      %v2148 = vsel %vm1540, %v2145, %v2147
      %v2149 = vrot.slane %v1897, 4
      %v2150 = vsel %vm1540, %v2147, %v2149
      %v2151 = vrot.slane %v1898, 4
      %v2152 = vsel %vm1540, %v2149, %v2151
      %v2153 = vrot.slane %v1899, 4
      %v2154 = vsel %vm1540, %v2151, %v2153
      %v2155 = vrot.slane %v1900, 4
      %v2156 = vsel %vm1540, %v2153, %v2155
      %v2157 = vrot.slane %v1901, 4
      %v2158 = vsel %vm1540, %v2155, %v2157
      %v2159 = vrot.slane %v1902, 4
      %v2160 = vsel %vm1540, %v2157, %v2159
      %v2161 = vrot.slane %v1903, 4
      %v2162 = vsel %vm1540, %v2159, %v2161
      %v2163 = vrot.slane %v1904, 4
      %v2164 = vsel %vm1540, %v2161, %v2163
      %v2165 = vrot.slane %v1905, 4
      %v2166 = vsel %vm1540, %v2163, %v2165
      %v2167 = vrot.slane %v1906, 4
      %v2168 = vsel %vm1540, %v2165, %v2167
      %v2169 = vrot.slane %v1907, 4
      %v2170 = vsel %vm1540, %v2167, %v2169
      %v2171 = vrot.slane %v1908, 4
      %v2172 = vsel %vm1540, %v2169, %v2171
      %v2173 = vrot.slane %v1909, 4
      %v2174 = vsel %vm1540, %v2171, %v2173
      %v2175 = vrot.slane %v1910, 4
      %v2176 = vsel %vm1540, %v2173, %v2175
      %v2177 = vrot.slane %v1911, 4
      %v2178 = vsel %vm1540, %v2175, %v2177
      %v2179 = vrot.slane %v1912, 4
      %v2180 = vsel %vm1540, %v2177, %v2179
      %v2181 = vrot.slane %v1913, 4
      %v2182 = vsel %vm1540, %v2179, %v2181
      %v2183 = vrot.slane %v1914, 4
      %v2184 = vsel %vm1540, %v2181, %v2183
      %v2185 = vrot.slane %v1915, 4
      %v2186 = vsel %vm1540, %v2183, %v2185
      %v2187 = vrot.slane %v1916, 4
      %v2188 = vsel %vm1540, %v2185, %v2187
      %v2189 = vrot.slane %v1917, 4
      %v2190 = vsel %vm1540, %v2187, %v2189
      %v2191 = vrot.slane %v1918, 4
      %v2192 = vsel %vm1540, %v2189, %v2191
      %v2193 = vrot.slane %v1919, 4
      %v2194 = vsel %vm1540, %v2191, %v2193
      %v2286 = vmax.f32 %v1825, %v2014
      %v2287 = vmax.f32 %v1826, %v2016
      %v2288 = vmax.f32 %v1827, %v2018
      %v2289 = vmax.f32 %v1828, %v2020
      %v2290 = vmax.f32 %v1829, %v2022
      %v2291 = vmax.f32 %v1830, %v2024
      %v2292 = vmax.f32 %v1831, %v2026
      %v2293 = vmax.f32 %v1832, %v2028
      %v2294 = vmax.f32 %v1833, %v2030
      %v2295 = vmax.f32 %v1834, %v2032
      %v2296 = vmax.f32 %v1835, %v2034
      %v2297 = vmax.f32 %v1836, %v2036
      %v2298 = vmax.f32 %v1837, %v2038
      %v2299 = vmax.f32 %v1838, %v2040
      %v2300 = vmax.f32 %v1839, %v2042
      %v2301 = vmax.f32 %v1840, %v2044
      %v2302 = vmax.f32 %v1841, %v2046
      %v2303 = vmax.f32 %v1842, %v2048
      %v2304 = vmax.f32 %v1843, %v2050
      %v2305 = vmax.f32 %v1844, %v2052
      %v2306 = vmax.f32 %v1845, %v2054
      %v2307 = vmax.f32 %v1846, %v2056
      %v2308 = vmax.f32 %v1847, %v2058
      %v2309 = vmax.f32 %v1848, %v2060
      %v2310 = vmax.f32 %v1849, %v2062
      %v2311 = vmax.f32 %v1850, %v2064
      %v2312 = vmax.f32 %v1851, %v2066
      %v2313 = vmax.f32 %v1852, %v2068
      %v2314 = vmax.f32 %v1853, %v2070
      %v2315 = vmax.f32 %v1854, %v2072
      %v2316 = vmax.f32 %v1855, %v2074
      %v2317 = vmax.f32 %v1856, %v2076
      %v2318 = vmax.f32 %v1857, %v2078
      %v2319 = vmax.f32 %v1858, %v2080
      %v2320 = vmax.f32 %v1859, %v2082
      %v2321 = vmax.f32 %v1860, %v2084
      %v2322 = vmax.f32 %v1861, %v2086
      %v2323 = vmax.f32 %v1862, %v2088
      %v2324 = vmax.f32 %v1863, %v2090
      %v2325 = vmax.f32 %v1864, %v2092
      %v2326 = vmax.f32 %v1865, %v2094
      %v2327 = vmax.f32 %v1866, %v2096
      %v2328 = vmax.f32 %v1867, %v2098
      %v2329 = vmax.f32 %v1868, %v2100
      %v2330 = vmax.f32 %v1869, %v2102
      %v2331 = vmax.f32 %v1870, %v2104
      %v2332 = vmax.f32 %v1871, %v2106
      %v2333 = vmax.f32 %v1872, %v2108
      %v2334 = vmax.f32 %v1873, %v2110
      %v2335 = vmax.f32 %v1874, %v2112
      %v2336 = vmax.f32 %v1875, %v2114
      %v2337 = vmax.f32 %v1876, %v2116
      %v2338 = vmax.f32 %v1877, %v2118
      %v2339 = vmax.f32 %v1878, %v2120
      %v2340 = vmax.f32 %v1879, %v2122
      %v2341 = vmax.f32 %v1880, %v2124
      %v2342 = vmax.f32 %v1881, %v2126
      %v2343 = vmax.f32 %v1882, %v2128
      %v2344 = vmax.f32 %v1883, %v2130
      %v2345 = vmax.f32 %v1884, %v2132
      %v2346 = vmax.f32 %v1885, %v2134
      %v2347 = vmax.f32 %v1886, %v2136
      %v2348 = vmax.f32 %v1887, %v2138
      %v2349 = vmax.f32 %v1888, %v2140
      %v2350 = vmax.f32 %v1889, %v2142
      %v2351 = vmax.f32 %v1890, %v2144
      %v2352 = vmax.f32 %v1891, %v2146
      %v2353 = vmax.f32 %v1892, %v2148
      %v2354 = vmax.f32 %v1893, %v2150
      %v2355 = vmax.f32 %v1894, %v2152
      %v2356 = vmax.f32 %v1895, %v2154
      %v2357 = vmax.f32 %v1896, %v2156
      %v2358 = vmax.f32 %v1897, %v2158
      %v2359 = vmax.f32 %v1898, %v2160
      %v2360 = vmax.f32 %v1899, %v2162
      %v2361 = vmax.f32 %v1900, %v2164
      %v2362 = vmax.f32 %v1901, %v2166
      %v2363 = vmax.f32 %v1902, %v2168
      %v2364 = vmax.f32 %v1903, %v2170
      %v2365 = vmax.f32 %v1904, %v2172
      %v2366 = vmax.f32 %v1905, %v2174
      %v2367 = vmax.f32 %v1906, %v2176
      %v2368 = vmax.f32 %v1907, %v2178
      %v2369 = vmax.f32 %v1908, %v2180
      %v2370 = vmax.f32 %v1909, %v2182
      %v2371 = vmax.f32 %v1910, %v2184
      %v2372 = vmax.f32 %v1911, %v2186
      %v2373 = vmax.f32 %v1912, %v2188
      %v2374 = vmax.f32 %v1913, %v2190
      %v2375 = vmax.f32 %v1914, %v2192
      %v2376 = vmax.f32 %v1915, %v2194
      %v2465 = vrot.slane %v2289, 4
      %v2466 = vrot.slane %v2290, 4
      %v2467 = vsel %vm1540, %v2465, %v2466
      %v2468 = vrot.slane %v2291, 4
      %v2469 = vsel %vm1540, %v2466, %v2468
      %v2470 = vrot.slane %v2292, 4
      %v2471 = vsel %vm1540, %v2468, %v2470
      %v2472 = vrot.slane %v2293, 4
      %v2473 = vsel %vm1540, %v2470, %v2472
      %v2474 = vrot.slane %v2294, 4
      %v2475 = vsel %vm1540, %v2472, %v2474
      %v2476 = vrot.slane %v2295, 4
      %v2477 = vsel %vm1540, %v2474, %v2476
      %v2478 = vrot.slane %v2296, 4
      %v2479 = vsel %vm1540, %v2476, %v2478
      %v2480 = vrot.slane %v2297, 4
      %v2481 = vsel %vm1540, %v2478, %v2480
      %v2482 = vrot.slane %v2298, 4
      %v2483 = vsel %vm1540, %v2480, %v2482
      %v2484 = vrot.slane %v2299, 4
      %v2485 = vsel %vm1540, %v2482, %v2484
      %v2486 = vrot.slane %v2300, 4
      %v2487 = vsel %vm1540, %v2484, %v2486
      %v2488 = vrot.slane %v2301, 4
      %v2489 = vsel %vm1540, %v2486, %v2488
      %v2490 = vrot.slane %v2302, 4
      %v2491 = vsel %vm1540, %v2488, %v2490
      %v2492 = vrot.slane %v2303, 4
      %v2493 = vsel %vm1540, %v2490, %v2492
      %v2494 = vrot.slane %v2304, 4
      %v2495 = vsel %vm1540, %v2492, %v2494
      %v2496 = vrot.slane %v2305, 4
      %v2497 = vsel %vm1540, %v2494, %v2496
      %v2498 = vrot.slane %v2306, 4
      %v2499 = vsel %vm1540, %v2496, %v2498
      %v2500 = vrot.slane %v2307, 4
      %v2501 = vsel %vm1540, %v2498, %v2500
      %v2502 = vrot.slane %v2308, 4
      %v2503 = vsel %vm1540, %v2500, %v2502
      %v2504 = vrot.slane %v2309, 4
      %v2505 = vsel %vm1540, %v2502, %v2504
      %v2506 = vrot.slane %v2310, 4
      %v2507 = vsel %vm1540, %v2504, %v2506
      %v2508 = vrot.slane %v2311, 4
      %v2509 = vsel %vm1540, %v2506, %v2508
      %v2510 = vrot.slane %v2312, 4
      %v2511 = vsel %vm1540, %v2508, %v2510
      %v2512 = vrot.slane %v2313, 4
      %v2513 = vsel %vm1540, %v2510, %v2512
      %v2514 = vrot.slane %v2314, 4
      %v2515 = vsel %vm1540, %v2512, %v2514
      %v2516 = vrot.slane %v2315, 4
      %v2517 = vsel %vm1540, %v2514, %v2516
      %v2518 = vrot.slane %v2316, 4
      %v2519 = vsel %vm1540, %v2516, %v2518
      %v2520 = vrot.slane %v2317, 4
      %v2521 = vsel %vm1540, %v2518, %v2520
      %v2522 = vrot.slane %v2318, 4
      %v2523 = vsel %vm1540, %v2520, %v2522
      %v2524 = vrot.slane %v2319, 4
      %v2525 = vsel %vm1540, %v2522, %v2524
      %v2526 = vrot.slane %v2320, 4
      %v2527 = vsel %vm1540, %v2524, %v2526
      %v2528 = vrot.slane %v2321, 4
      %v2529 = vsel %vm1540, %v2526, %v2528
      %v2530 = vrot.slane %v2322, 4
      %v2531 = vsel %vm1540, %v2528, %v2530
      %v2532 = vrot.slane %v2323, 4
      %v2533 = vsel %vm1540, %v2530, %v2532
      %v2534 = vrot.slane %v2324, 4
      %v2535 = vsel %vm1540, %v2532, %v2534
      %v2536 = vrot.slane %v2325, 4
      %v2537 = vsel %vm1540, %v2534, %v2536
      %v2538 = vrot.slane %v2326, 4
      %v2539 = vsel %vm1540, %v2536, %v2538
      %v2540 = vrot.slane %v2327, 4
      %v2541 = vsel %vm1540, %v2538, %v2540
      %v2542 = vrot.slane %v2328, 4
      %v2543 = vsel %vm1540, %v2540, %v2542
      %v2544 = vrot.slane %v2329, 4
      %v2545 = vsel %vm1540, %v2542, %v2544
      %v2546 = vrot.slane %v2330, 4
      %v2547 = vsel %vm1540, %v2544, %v2546
      %v2548 = vrot.slane %v2331, 4
      %v2549 = vsel %vm1540, %v2546, %v2548
      %v2550 = vrot.slane %v2332, 4
      %v2551 = vsel %vm1540, %v2548, %v2550
      %v2552 = vrot.slane %v2333, 4
      %v2553 = vsel %vm1540, %v2550, %v2552
      %v2554 = vrot.slane %v2334, 4
      %v2555 = vsel %vm1540, %v2552, %v2554
      %v2556 = vrot.slane %v2335, 4
      %v2557 = vsel %vm1540, %v2554, %v2556
      %v2558 = vrot.slane %v2336, 4
      %v2559 = vsel %vm1540, %v2556, %v2558
      %v2560 = vrot.slane %v2337, 4
      %v2561 = vsel %vm1540, %v2558, %v2560
      %v2562 = vrot.slane %v2338, 4
      %v2563 = vsel %vm1540, %v2560, %v2562
      %v2564 = vrot.slane %v2339, 4
      %v2565 = vsel %vm1540, %v2562, %v2564
      %v2566 = vrot.slane %v2340, 4
      %v2567 = vsel %vm1540, %v2564, %v2566
      %v2568 = vrot.slane %v2341, 4
      %v2569 = vsel %vm1540, %v2566, %v2568
      %v2570 = vrot.slane %v2342, 4
      %v2571 = vsel %vm1540, %v2568, %v2570
      %v2572 = vrot.slane %v2343, 4
      %v2573 = vsel %vm1540, %v2570, %v2572
      %v2574 = vrot.slane %v2344, 4
      %v2575 = vsel %vm1540, %v2572, %v2574
      %v2576 = vrot.slane %v2345, 4
      %v2577 = vsel %vm1540, %v2574, %v2576
      %v2578 = vrot.slane %v2346, 4
      %v2579 = vsel %vm1540, %v2576, %v2578
      %v2580 = vrot.slane %v2347, 4
      %v2581 = vsel %vm1540, %v2578, %v2580
      %v2582 = vrot.slane %v2348, 4
      %v2583 = vsel %vm1540, %v2580, %v2582
      %v2584 = vrot.slane %v2349, 4
      %v2585 = vsel %vm1540, %v2582, %v2584
      %v2586 = vrot.slane %v2350, 4
      %v2587 = vsel %vm1540, %v2584, %v2586
      %v2588 = vrot.slane %v2351, 4
      %v2589 = vsel %vm1540, %v2586, %v2588
      %v2590 = vrot.slane %v2352, 4
      %v2591 = vsel %vm1540, %v2588, %v2590
      %v2592 = vrot.slane %v2353, 4
      %v2593 = vsel %vm1540, %v2590, %v2592
      %v2594 = vrot.slane %v2354, 4
      %v2595 = vsel %vm1540, %v2592, %v2594
      %v2596 = vrot.slane %v2355, 4
      %v2597 = vsel %vm1540, %v2594, %v2596
      %v2598 = vrot.slane %v2356, 4
      %v2599 = vsel %vm1540, %v2596, %v2598
      %v2600 = vrot.slane %v2357, 4
      %v2601 = vsel %vm1540, %v2598, %v2600
      %v2602 = vrot.slane %v2358, 4
      %v2603 = vsel %vm1540, %v2600, %v2602
      %v2604 = vrot.slane %v2359, 4
      %v2605 = vsel %vm1540, %v2602, %v2604
      %v2606 = vrot.slane %v2360, 4
      %v2607 = vsel %vm1540, %v2604, %v2606
      %v2608 = vrot.slane %v2361, 4
      %v2609 = vsel %vm1540, %v2606, %v2608
      %v2610 = vrot.slane %v2362, 4
      %v2611 = vsel %vm1540, %v2608, %v2610
      %v2612 = vrot.slane %v2363, 4
      %v2613 = vsel %vm1540, %v2610, %v2612
      %v2614 = vrot.slane %v2364, 4
      %v2615 = vsel %vm1540, %v2612, %v2614
      %v2616 = vrot.slane %v2365, 4
      %v2617 = vsel %vm1540, %v2614, %v2616
      %v2618 = vrot.slane %v2366, 4
      %v2619 = vsel %vm1540, %v2616, %v2618
      %v2620 = vrot.slane %v2367, 4
      %v2621 = vsel %vm1540, %v2618, %v2620
      %v2622 = vrot.slane %v2368, 4
      %v2623 = vsel %vm1540, %v2620, %v2622
      %v2624 = vrot.slane %v2369, 4
      %v2625 = vsel %vm1540, %v2622, %v2624
      %v2626 = vrot.slane %v2370, 4
      %v2627 = vsel %vm1540, %v2624, %v2626
      %v2628 = vrot.slane %v2371, 4
      %v2629 = vsel %vm1540, %v2626, %v2628
      %v2630 = vrot.slane %v2372, 4
      %v2631 = vsel %vm1540, %v2628, %v2630
      %v2632 = vrot.slane %v2373, 4
      %v2633 = vsel %vm1540, %v2630, %v2632
      %v2634 = vrot.slane %v2374, 4
      %v2635 = vsel %vm1540, %v2632, %v2634
      %v2636 = vrot.slane %v2375, 4
      %v2637 = vsel %vm1540, %v2634, %v2636
      %v2638 = vrot.slane %v2376, 4
      %v2639 = vsel %vm1540, %v2636, %v2638
      %v2728 = vmax.f32 %v2286, %v2467
      %v2729 = vmax.f32 %v2287, %v2469
      %v2730 = vmax.f32 %v2288, %v2471
      %v2731 = vmax.f32 %v2289, %v2473
      %v2732 = vmax.f32 %v2290, %v2475
      %v2733 = vmax.f32 %v2291, %v2477
      %v2734 = vmax.f32 %v2292, %v2479
      %v2735 = vmax.f32 %v2293, %v2481
      %v2736 = vmax.f32 %v2294, %v2483
      %v2737 = vmax.f32 %v2295, %v2485
      %v2738 = vmax.f32 %v2296, %v2487
      %v2739 = vmax.f32 %v2297, %v2489
      %v2740 = vmax.f32 %v2298, %v2491
      %v2741 = vmax.f32 %v2299, %v2493
      %v2742 = vmax.f32 %v2300, %v2495
      %v2743 = vmax.f32 %v2301, %v2497
      %v2744 = vmax.f32 %v2302, %v2499
      %v2745 = vmax.f32 %v2303, %v2501
      %v2746 = vmax.f32 %v2304, %v2503
      %v2747 = vmax.f32 %v2305, %v2505
      %v2748 = vmax.f32 %v2306, %v2507
      %v2749 = vmax.f32 %v2307, %v2509
      %v2750 = vmax.f32 %v2308, %v2511
      %v2751 = vmax.f32 %v2309, %v2513
      %v2752 = vmax.f32 %v2310, %v2515
      %v2753 = vmax.f32 %v2311, %v2517
      %v2754 = vmax.f32 %v2312, %v2519
      %v2755 = vmax.f32 %v2313, %v2521
      %v2756 = vmax.f32 %v2314, %v2523
      %v2757 = vmax.f32 %v2315, %v2525
      %v2758 = vmax.f32 %v2316, %v2527
      %v2759 = vmax.f32 %v2317, %v2529
      %v2760 = vmax.f32 %v2318, %v2531
      %v2761 = vmax.f32 %v2319, %v2533
      %v2762 = vmax.f32 %v2320, %v2535
      %v2763 = vmax.f32 %v2321, %v2537
      %v2764 = vmax.f32 %v2322, %v2539
      %v2765 = vmax.f32 %v2323, %v2541
      %v2766 = vmax.f32 %v2324, %v2543
      %v2767 = vmax.f32 %v2325, %v2545
      %v2768 = vmax.f32 %v2326, %v2547
      %v2769 = vmax.f32 %v2327, %v2549
      %v2770 = vmax.f32 %v2328, %v2551
      %v2771 = vmax.f32 %v2329, %v2553
      %v2772 = vmax.f32 %v2330, %v2555
      %v2773 = vmax.f32 %v2331, %v2557
      %v2774 = vmax.f32 %v2332, %v2559
      %v2775 = vmax.f32 %v2333, %v2561
      %v2776 = vmax.f32 %v2334, %v2563
      %v2777 = vmax.f32 %v2335, %v2565
      %v2778 = vmax.f32 %v2336, %v2567
      %v2779 = vmax.f32 %v2337, %v2569
      %v2780 = vmax.f32 %v2338, %v2571
      %v2781 = vmax.f32 %v2339, %v2573
      %v2782 = vmax.f32 %v2340, %v2575
      %v2783 = vmax.f32 %v2341, %v2577
      %v2784 = vmax.f32 %v2342, %v2579
      %v2785 = vmax.f32 %v2343, %v2581
      %v2786 = vmax.f32 %v2344, %v2583
      %v2787 = vmax.f32 %v2345, %v2585
      %v2788 = vmax.f32 %v2346, %v2587
      %v2789 = vmax.f32 %v2347, %v2589
      %v2790 = vmax.f32 %v2348, %v2591
      %v2791 = vmax.f32 %v2349, %v2593
      %v2792 = vmax.f32 %v2350, %v2595
      %v2793 = vmax.f32 %v2351, %v2597
      %v2794 = vmax.f32 %v2352, %v2599
      %v2795 = vmax.f32 %v2353, %v2601
      %v2796 = vmax.f32 %v2354, %v2603
      %v2797 = vmax.f32 %v2355, %v2605
      %v2798 = vmax.f32 %v2356, %v2607
      %v2799 = vmax.f32 %v2357, %v2609
      %v2800 = vmax.f32 %v2358, %v2611
      %v2801 = vmax.f32 %v2359, %v2613
      %v2802 = vmax.f32 %v2360, %v2615
      %v2803 = vmax.f32 %v2361, %v2617
      %v2804 = vmax.f32 %v2362, %v2619
      %v2805 = vmax.f32 %v2363, %v2621
      %v2806 = vmax.f32 %v2364, %v2623
      %v2807 = vmax.f32 %v2365, %v2625
      %v2808 = vmax.f32 %v2366, %v2627
      %v2809 = vmax.f32 %v2367, %v2629
      %v2810 = vmax.f32 %v2368, %v2631
      %v2811 = vmax.f32 %v2369, %v2633
      %v2812 = vmax.f32 %v2370, %v2635
      %v2813 = vmax.f32 %v2371, %v2637
      %v2814 = vmax.f32 %v2372, %v2639
      %v2815 = vmax.f32 %v2373, %v2638
      %vm2904 = vcmask 1046528
      %v2905 = vrot.slane %v2728, 1
      %v2906 = vrot.slane %v2729, 1
      %v2907 = vsel %vm2904, %v2905, %v2906
      %v2908 = vrot.slane %v2730, 1
      %v2909 = vsel %vm2904, %v2906, %v2908
      %v2910 = vrot.slane %v2731, 1
      %v2911 = vsel %vm2904, %v2908, %v2910
      %v2912 = vrot.slane %v2732, 1
      %v2913 = vsel %vm2904, %v2910, %v2912
      %v2914 = vrot.slane %v2733, 1
      %v2915 = vsel %vm2904, %v2912, %v2914
      %v2916 = vrot.slane %v2734, 1
      %v2917 = vsel %vm2904, %v2914, %v2916
      %v2918 = vrot.slane %v2735, 1
      %v2919 = vsel %vm2904, %v2916, %v2918
      %v2920 = vrot.slane %v2736, 1
      %v2921 = vsel %vm2904, %v2918, %v2920
      %v2922 = vrot.slane %v2737, 1
      %v2923 = vsel %vm2904, %v2920, %v2922
      %v2924 = vrot.slane %v2738, 1
      %v2925 = vsel %vm2904, %v2922, %v2924
      %v2926 = vrot.slane %v2739, 1
      %v2927 = vsel %vm2904, %v2924, %v2926
      %v2928 = vrot.slane %v2740, 1
      %v2929 = vsel %vm2904, %v2926, %v2928
      %v2930 = vrot.slane %v2741, 1
      %v2931 = vsel %vm2904, %v2928, %v2930
      %v2932 = vrot.slane %v2742, 1
      %v2933 = vsel %vm2904, %v2930, %v2932
      %v2934 = vrot.slane %v2743, 1
      %v2935 = vsel %vm2904, %v2932, %v2934
      %v2936 = vrot.slane %v2744, 1
      %v2937 = vsel %vm2904, %v2934, %v2936
      %v2938 = vrot.slane %v2745, 1
      %v2939 = vsel %vm2904, %v2936, %v2938
      %v2940 = vrot.slane %v2746, 1
      %v2941 = vsel %vm2904, %v2938, %v2940
      %v2942 = vrot.slane %v2747, 1
      %v2943 = vsel %vm2904, %v2940, %v2942
      %v2944 = vrot.slane %v2748, 1
      %v2945 = vsel %vm2904, %v2942, %v2944
      %v2946 = vrot.slane %v2749, 1
      %v2947 = vsel %vm2904, %v2944, %v2946
      %v2948 = vrot.slane %v2750, 1
      %v2949 = vsel %vm2904, %v2946, %v2948
      %v2950 = vrot.slane %v2751, 1
      %v2951 = vsel %vm2904, %v2948, %v2950
      %v2952 = vrot.slane %v2752, 1
      %v2953 = vsel %vm2904, %v2950, %v2952
      %v2954 = vrot.slane %v2753, 1
      %v2955 = vsel %vm2904, %v2952, %v2954
      %v2956 = vrot.slane %v2754, 1
      %v2957 = vsel %vm2904, %v2954, %v2956
      %v2958 = vrot.slane %v2755, 1
      %v2959 = vsel %vm2904, %v2956, %v2958
      %v2960 = vrot.slane %v2756, 1
      %v2961 = vsel %vm2904, %v2958, %v2960
      %v2962 = vrot.slane %v2757, 1
      %v2963 = vsel %vm2904, %v2960, %v2962
      %v2964 = vrot.slane %v2758, 1
      %v2965 = vsel %vm2904, %v2962, %v2964
      %v2966 = vrot.slane %v2759, 1
      %v2967 = vsel %vm2904, %v2964, %v2966
      %v2968 = vrot.slane %v2760, 1
      %v2969 = vsel %vm2904, %v2966, %v2968
      %v2970 = vrot.slane %v2761, 1
      %v2971 = vsel %vm2904, %v2968, %v2970
      %v2972 = vrot.slane %v2762, 1
      %v2973 = vsel %vm2904, %v2970, %v2972
      %v2974 = vrot.slane %v2763, 1
      %v2975 = vsel %vm2904, %v2972, %v2974
      %v2976 = vrot.slane %v2764, 1
      %v2977 = vsel %vm2904, %v2974, %v2976
      %v2978 = vrot.slane %v2765, 1
      %v2979 = vsel %vm2904, %v2976, %v2978
      %v2980 = vrot.slane %v2766, 1
      %v2981 = vsel %vm2904, %v2978, %v2980
      %v2982 = vrot.slane %v2767, 1
      %v2983 = vsel %vm2904, %v2980, %v2982
      %v2984 = vrot.slane %v2768, 1
      %v2985 = vsel %vm2904, %v2982, %v2984
      %v2986 = vrot.slane %v2769, 1
      %v2987 = vsel %vm2904, %v2984, %v2986
      %v2988 = vrot.slane %v2770, 1
      %v2989 = vsel %vm2904, %v2986, %v2988
      %v2990 = vrot.slane %v2771, 1
      %v2991 = vsel %vm2904, %v2988, %v2990
      %v2992 = vrot.slane %v2772, 1
      %v2993 = vsel %vm2904, %v2990, %v2992
      %v2994 = vrot.slane %v2773, 1
      %v2995 = vsel %vm2904, %v2992, %v2994
      %v2996 = vrot.slane %v2774, 1
      %v2997 = vsel %vm2904, %v2994, %v2996
      %v2998 = vrot.slane %v2775, 1
      %v2999 = vsel %vm2904, %v2996, %v2998
      %v3000 = vrot.slane %v2776, 1
      %v3001 = vsel %vm2904, %v2998, %v3000
      %v3002 = vrot.slane %v2777, 1
      %v3003 = vsel %vm2904, %v3000, %v3002
      %v3004 = vrot.slane %v2778, 1
      %v3005 = vsel %vm2904, %v3002, %v3004
      %v3006 = vrot.slane %v2779, 1
      %v3007 = vsel %vm2904, %v3004, %v3006
      %v3008 = vrot.slane %v2780, 1
      %v3009 = vsel %vm2904, %v3006, %v3008
      %v3010 = vrot.slane %v2781, 1
      %v3011 = vsel %vm2904, %v3008, %v3010
      %v3012 = vrot.slane %v2782, 1
      %v3013 = vsel %vm2904, %v3010, %v3012
      %v3014 = vrot.slane %v2783, 1
      %v3015 = vsel %vm2904, %v3012, %v3014
      %v3016 = vrot.slane %v2784, 1
      %v3017 = vsel %vm2904, %v3014, %v3016
      %v3018 = vrot.slane %v2785, 1
      %v3019 = vsel %vm2904, %v3016, %v3018
      %v3020 = vrot.slane %v2786, 1
      %v3021 = vsel %vm2904, %v3018, %v3020
      %v3022 = vrot.slane %v2787, 1
      %v3023 = vsel %vm2904, %v3020, %v3022
      %v3024 = vrot.slane %v2788, 1
      %v3025 = vsel %vm2904, %v3022, %v3024
      %v3026 = vrot.slane %v2789, 1
      %v3027 = vsel %vm2904, %v3024, %v3026
      %v3028 = vrot.slane %v2790, 1
      %v3029 = vsel %vm2904, %v3026, %v3028
      %v3030 = vrot.slane %v2791, 1
      %v3031 = vsel %vm2904, %v3028, %v3030
      %v3032 = vrot.slane %v2792, 1
      %v3033 = vsel %vm2904, %v3030, %v3032
      %v3034 = vrot.slane %v2793, 1
      %v3035 = vsel %vm2904, %v3032, %v3034
      %v3036 = vrot.slane %v2794, 1
      %v3037 = vsel %vm2904, %v3034, %v3036
      %v3038 = vrot.slane %v2795, 1
      %v3039 = vsel %vm2904, %v3036, %v3038
      %v3040 = vrot.slane %v2796, 1
      %v3041 = vsel %vm2904, %v3038, %v3040
      %v3042 = vrot.slane %v2797, 1
      %v3043 = vsel %vm2904, %v3040, %v3042
      %v3044 = vrot.slane %v2798, 1
      %v3045 = vsel %vm2904, %v3042, %v3044
      %v3046 = vrot.slane %v2799, 1
      %v3047 = vsel %vm2904, %v3044, %v3046
      %v3048 = vrot.slane %v2800, 1
      %v3049 = vsel %vm2904, %v3046, %v3048
      %v3050 = vrot.slane %v2801, 1
      %v3051 = vsel %vm2904, %v3048, %v3050
      %v3052 = vrot.slane %v2802, 1
      %v3053 = vsel %vm2904, %v3050, %v3052
      %v3054 = vrot.slane %v2803, 1
      %v3055 = vsel %vm2904, %v3052, %v3054
      %v3056 = vrot.slane %v2804, 1
      %v3057 = vsel %vm2904, %v3054, %v3056
      %v3058 = vrot.slane %v2805, 1
      %v3059 = vsel %vm2904, %v3056, %v3058
      %v3060 = vrot.slane %v2806, 1
      %v3061 = vsel %vm2904, %v3058, %v3060
      %v3062 = vrot.slane %v2807, 1
      %v3063 = vsel %vm2904, %v3060, %v3062
      %v3064 = vrot.slane %v2808, 1
      %v3065 = vsel %vm2904, %v3062, %v3064
      %v3066 = vrot.slane %v2809, 1
      %v3067 = vsel %vm2904, %v3064, %v3066
      %v3068 = vrot.slane %v2810, 1
      %v3069 = vsel %vm2904, %v3066, %v3068
      %v3070 = vrot.slane %v2811, 1
      %v3071 = vsel %vm2904, %v3068, %v3070
      %v3072 = vrot.slane %v2812, 1
      %v3073 = vsel %vm2904, %v3070, %v3072
      %v3074 = vrot.slane %v2813, 1
      %v3075 = vsel %vm2904, %v3072, %v3074
      %v3076 = vrot.slane %v2814, 1
      %v3077 = vsel %vm2904, %v3074, %v3076
      %v3078 = vrot.slane %v2815, 1
      %v3079 = vsel %vm2904, %v3076, %v3078
      %v3168 = vmax.f32 %v2728, %v2907
      %v3169 = vmax.f32 %v2729, %v2909
      %v3170 = vmax.f32 %v2730, %v2911
      %v3171 = vmax.f32 %v2731, %v2913
      %v3172 = vmax.f32 %v2732, %v2915
      %v3173 = vmax.f32 %v2733, %v2917
      %v3174 = vmax.f32 %v2734, %v2919
      %v3175 = vmax.f32 %v2735, %v2921
      %v3176 = vmax.f32 %v2736, %v2923
      %v3177 = vmax.f32 %v2737, %v2925
      %v3178 = vmax.f32 %v2738, %v2927
      %v3179 = vmax.f32 %v2739, %v2929
      %v3180 = vmax.f32 %v2740, %v2931
      %v3181 = vmax.f32 %v2741, %v2933
      %v3182 = vmax.f32 %v2742, %v2935
      %v3183 = vmax.f32 %v2743, %v2937
      %v3184 = vmax.f32 %v2744, %v2939
      %v3185 = vmax.f32 %v2745, %v2941
      %v3186 = vmax.f32 %v2746, %v2943
      %v3187 = vmax.f32 %v2747, %v2945
      %v3188 = vmax.f32 %v2748, %v2947
      %v3189 = vmax.f32 %v2749, %v2949
      %v3190 = vmax.f32 %v2750, %v2951
      %v3191 = vmax.f32 %v2751, %v2953
      %v3192 = vmax.f32 %v2752, %v2955
      %v3193 = vmax.f32 %v2753, %v2957
      %v3194 = vmax.f32 %v2754, %v2959
      %v3195 = vmax.f32 %v2755, %v2961
      %v3196 = vmax.f32 %v2756, %v2963
      %v3197 = vmax.f32 %v2757, %v2965
      %v3198 = vmax.f32 %v2758, %v2967
      %v3199 = vmax.f32 %v2759, %v2969
      %v3200 = vmax.f32 %v2760, %v2971
      %v3201 = vmax.f32 %v2761, %v2973
      %v3202 = vmax.f32 %v2762, %v2975
      %v3203 = vmax.f32 %v2763, %v2977
      %v3204 = vmax.f32 %v2764, %v2979
      %v3205 = vmax.f32 %v2765, %v2981
      %v3206 = vmax.f32 %v2766, %v2983
      %v3207 = vmax.f32 %v2767, %v2985
      %v3208 = vmax.f32 %v2768, %v2987
      %v3209 = vmax.f32 %v2769, %v2989
      %v3210 = vmax.f32 %v2770, %v2991
      %v3211 = vmax.f32 %v2771, %v2993
      %v3212 = vmax.f32 %v2772, %v2995
      %v3213 = vmax.f32 %v2773, %v2997
      %v3214 = vmax.f32 %v2774, %v2999
      %v3215 = vmax.f32 %v2775, %v3001
      %v3216 = vmax.f32 %v2776, %v3003
      %v3217 = vmax.f32 %v2777, %v3005
      %v3218 = vmax.f32 %v2778, %v3007
      %v3219 = vmax.f32 %v2779, %v3009
      %v3220 = vmax.f32 %v2780, %v3011
      %v3221 = vmax.f32 %v2781, %v3013
      %v3222 = vmax.f32 %v2782, %v3015
      %v3223 = vmax.f32 %v2783, %v3017
      %v3224 = vmax.f32 %v2784, %v3019
      %v3225 = vmax.f32 %v2785, %v3021
      %v3226 = vmax.f32 %v2786, %v3023
      %v3227 = vmax.f32 %v2787, %v3025
      %v3228 = vmax.f32 %v2788, %v3027
      %v3229 = vmax.f32 %v2789, %v3029
      %v3230 = vmax.f32 %v2790, %v3031
      %v3231 = vmax.f32 %v2791, %v3033
      %v3232 = vmax.f32 %v2792, %v3035
      %v3233 = vmax.f32 %v2793, %v3037
      %v3234 = vmax.f32 %v2794, %v3039
      %v3235 = vmax.f32 %v2795, %v3041
      %v3236 = vmax.f32 %v2796, %v3043
      %v3237 = vmax.f32 %v2797, %v3045
      %v3238 = vmax.f32 %v2798, %v3047
      %v3239 = vmax.f32 %v2799, %v3049
      %v3240 = vmax.f32 %v2800, %v3051
      %v3241 = vmax.f32 %v2801, %v3053
      %v3242 = vmax.f32 %v2802, %v3055
      %v3243 = vmax.f32 %v2803, %v3057
      %v3244 = vmax.f32 %v2804, %v3059
      %v3245 = vmax.f32 %v2805, %v3061
      %v3246 = vmax.f32 %v2806, %v3063
      %v3247 = vmax.f32 %v2807, %v3065
      %v3248 = vmax.f32 %v2808, %v3067
      %v3249 = vmax.f32 %v2809, %v3069
      %v3250 = vmax.f32 %v2810, %v3071
      %v3251 = vmax.f32 %v2811, %v3073
      %v3252 = vmax.f32 %v2812, %v3075
      %v3253 = vmax.f32 %v2813, %v3077
      %v3254 = vmax.f32 %v2814, %v3079
      %v3255 = vmax.f32 %v2815, %v3078
      %v3344 = vrot.slane %v3168, 1
      %v3345 = vrot.slane %v3169, 1
      %v3346 = vsel %vm2904, %v3344, %v3345
      %v3347 = vrot.slane %v3170, 1
      %v3348 = vsel %vm2904, %v3345, %v3347
      %v3349 = vrot.slane %v3171, 1
      %v3350 = vsel %vm2904, %v3347, %v3349
      %v3351 = vrot.slane %v3172, 1
      %v3352 = vsel %vm2904, %v3349, %v3351
      %v3353 = vrot.slane %v3173, 1
      %v3354 = vsel %vm2904, %v3351, %v3353
      %v3355 = vrot.slane %v3174, 1
      %v3356 = vsel %vm2904, %v3353, %v3355
      %v3357 = vrot.slane %v3175, 1
      %v3358 = vsel %vm2904, %v3355, %v3357
      %v3359 = vrot.slane %v3176, 1
      %v3360 = vsel %vm2904, %v3357, %v3359
      %v3361 = vrot.slane %v3177, 1
      %v3362 = vsel %vm2904, %v3359, %v3361
      %v3363 = vrot.slane %v3178, 1
      %v3364 = vsel %vm2904, %v3361, %v3363
      %v3365 = vrot.slane %v3179, 1
      %v3366 = vsel %vm2904, %v3363, %v3365
      %v3367 = vrot.slane %v3180, 1
      %v3368 = vsel %vm2904, %v3365, %v3367
      %v3369 = vrot.slane %v3181, 1
      %v3370 = vsel %vm2904, %v3367, %v3369
      %v3371 = vrot.slane %v3182, 1
      %v3372 = vsel %vm2904, %v3369, %v3371
      %v3373 = vrot.slane %v3183, 1
      %v3374 = vsel %vm2904, %v3371, %v3373
      %v3375 = vrot.slane %v3184, 1
      %v3376 = vsel %vm2904, %v3373, %v3375
      %v3377 = vrot.slane %v3185, 1
      %v3378 = vsel %vm2904, %v3375, %v3377
      %v3379 = vrot.slane %v3186, 1
      %v3380 = vsel %vm2904, %v3377, %v3379
      %v3381 = vrot.slane %v3187, 1
      %v3382 = vsel %vm2904, %v3379, %v3381
      %v3383 = vrot.slane %v3188, 1
      %v3384 = vsel %vm2904, %v3381, %v3383
      %v3385 = vrot.slane %v3189, 1
      %v3386 = vsel %vm2904, %v3383, %v3385
      %v3387 = vrot.slane %v3190, 1
      %v3388 = vsel %vm2904, %v3385, %v3387
      %v3389 = vrot.slane %v3191, 1
      %v3390 = vsel %vm2904, %v3387, %v3389
      %v3391 = vrot.slane %v3192, 1
      %v3392 = vsel %vm2904, %v3389, %v3391
      %v3393 = vrot.slane %v3193, 1
      %v3394 = vsel %vm2904, %v3391, %v3393
      %v3395 = vrot.slane %v3194, 1
      %v3396 = vsel %vm2904, %v3393, %v3395
      %v3397 = vrot.slane %v3195, 1
      %v3398 = vsel %vm2904, %v3395, %v3397
      %v3399 = vrot.slane %v3196, 1
      %v3400 = vsel %vm2904, %v3397, %v3399
      %v3401 = vrot.slane %v3197, 1
      %v3402 = vsel %vm2904, %v3399, %v3401
      %v3403 = vrot.slane %v3198, 1
      %v3404 = vsel %vm2904, %v3401, %v3403
      %v3405 = vrot.slane %v3199, 1
      %v3406 = vsel %vm2904, %v3403, %v3405
      %v3407 = vrot.slane %v3200, 1
      %v3408 = vsel %vm2904, %v3405, %v3407
      %v3409 = vrot.slane %v3201, 1
      %v3410 = vsel %vm2904, %v3407, %v3409
      %v3411 = vrot.slane %v3202, 1
      %v3412 = vsel %vm2904, %v3409, %v3411
      %v3413 = vrot.slane %v3203, 1
      %v3414 = vsel %vm2904, %v3411, %v3413
      %v3415 = vrot.slane %v3204, 1
      %v3416 = vsel %vm2904, %v3413, %v3415
      %v3417 = vrot.slane %v3205, 1
      %v3418 = vsel %vm2904, %v3415, %v3417
      %v3419 = vrot.slane %v3206, 1
      %v3420 = vsel %vm2904, %v3417, %v3419
      %v3421 = vrot.slane %v3207, 1
      %v3422 = vsel %vm2904, %v3419, %v3421
      %v3423 = vrot.slane %v3208, 1
      %v3424 = vsel %vm2904, %v3421, %v3423
      %v3425 = vrot.slane %v3209, 1
      %v3426 = vsel %vm2904, %v3423, %v3425
      %v3427 = vrot.slane %v3210, 1
      %v3428 = vsel %vm2904, %v3425, %v3427
      %v3429 = vrot.slane %v3211, 1
      %v3430 = vsel %vm2904, %v3427, %v3429
      %v3431 = vrot.slane %v3212, 1
      %v3432 = vsel %vm2904, %v3429, %v3431
      %v3433 = vrot.slane %v3213, 1
      %v3434 = vsel %vm2904, %v3431, %v3433
      %v3435 = vrot.slane %v3214, 1
      %v3436 = vsel %vm2904, %v3433, %v3435
      %v3437 = vrot.slane %v3215, 1
      %v3438 = vsel %vm2904, %v3435, %v3437
      %v3439 = vrot.slane %v3216, 1
      %v3440 = vsel %vm2904, %v3437, %v3439
      %v3441 = vrot.slane %v3217, 1
      %v3442 = vsel %vm2904, %v3439, %v3441
      %v3443 = vrot.slane %v3218, 1
      %v3444 = vsel %vm2904, %v3441, %v3443
      %v3445 = vrot.slane %v3219, 1
      %v3446 = vsel %vm2904, %v3443, %v3445
      %v3447 = vrot.slane %v3220, 1
      %v3448 = vsel %vm2904, %v3445, %v3447
      %v3449 = vrot.slane %v3221, 1
      %v3450 = vsel %vm2904, %v3447, %v3449
      %v3451 = vrot.slane %v3222, 1
      %v3452 = vsel %vm2904, %v3449, %v3451
      %v3453 = vrot.slane %v3223, 1
      %v3454 = vsel %vm2904, %v3451, %v3453
      %v3455 = vrot.slane %v3224, 1
      %v3456 = vsel %vm2904, %v3453, %v3455
      %v3457 = vrot.slane %v3225, 1
      %v3458 = vsel %vm2904, %v3455, %v3457
      %v3459 = vrot.slane %v3226, 1
      %v3460 = vsel %vm2904, %v3457, %v3459
      %v3461 = vrot.slane %v3227, 1
      %v3462 = vsel %vm2904, %v3459, %v3461
      %v3463 = vrot.slane %v3228, 1
      %v3464 = vsel %vm2904, %v3461, %v3463
      %v3465 = vrot.slane %v3229, 1
      %v3466 = vsel %vm2904, %v3463, %v3465
      %v3467 = vrot.slane %v3230, 1
      %v3468 = vsel %vm2904, %v3465, %v3467
      %v3469 = vrot.slane %v3231, 1
      %v3470 = vsel %vm2904, %v3467, %v3469
      %v3471 = vrot.slane %v3232, 1
      %v3472 = vsel %vm2904, %v3469, %v3471
      %v3473 = vrot.slane %v3233, 1
      %v3474 = vsel %vm2904, %v3471, %v3473
      %v3475 = vrot.slane %v3234, 1
      %v3476 = vsel %vm2904, %v3473, %v3475
      %v3477 = vrot.slane %v3235, 1
      %v3478 = vsel %vm2904, %v3475, %v3477
      %v3479 = vrot.slane %v3236, 1
      %v3480 = vsel %vm2904, %v3477, %v3479
      %v3481 = vrot.slane %v3237, 1
      %v3482 = vsel %vm2904, %v3479, %v3481
      %v3483 = vrot.slane %v3238, 1
      %v3484 = vsel %vm2904, %v3481, %v3483
      %v3485 = vrot.slane %v3239, 1
      %v3486 = vsel %vm2904, %v3483, %v3485
      %v3487 = vrot.slane %v3240, 1
      %v3488 = vsel %vm2904, %v3485, %v3487
      %v3489 = vrot.slane %v3241, 1
      %v3490 = vsel %vm2904, %v3487, %v3489
      %v3491 = vrot.slane %v3242, 1
      %v3492 = vsel %vm2904, %v3489, %v3491
      %v3493 = vrot.slane %v3243, 1
      %v3494 = vsel %vm2904, %v3491, %v3493
      %v3495 = vrot.slane %v3244, 1
      %v3496 = vsel %vm2904, %v3493, %v3495
      %v3497 = vrot.slane %v3245, 1
      %v3498 = vsel %vm2904, %v3495, %v3497
      %v3499 = vrot.slane %v3246, 1
      %v3500 = vsel %vm2904, %v3497, %v3499
      %v3501 = vrot.slane %v3247, 1
      %v3502 = vsel %vm2904, %v3499, %v3501
      %v3503 = vrot.slane %v3248, 1
      %v3504 = vsel %vm2904, %v3501, %v3503
      %v3505 = vrot.slane %v3249, 1
      %v3506 = vsel %vm2904, %v3503, %v3505
      %v3507 = vrot.slane %v3250, 1
      %v3508 = vsel %vm2904, %v3505, %v3507
      %v3509 = vrot.slane %v3251, 1
      %v3510 = vsel %vm2904, %v3507, %v3509
      %v3511 = vrot.slane %v3252, 1
      %v3512 = vsel %vm2904, %v3509, %v3511
      %v3513 = vrot.slane %v3253, 1
      %v3514 = vsel %vm2904, %v3511, %v3513
      %v3515 = vrot.slane %v3254, 1
      %v3516 = vsel %vm2904, %v3513, %v3515
      %v3517 = vrot.slane %v3255, 1
      %v3518 = vsel %vm2904, %v3515, %v3517
      %v3607 = vmax.f32 %v3168, %v3346
      %v3608 = vmax.f32 %v3169, %v3348
      %v3609 = vmax.f32 %v3170, %v3350
      %v3610 = vmax.f32 %v3171, %v3352
      %v3611 = vmax.f32 %v3172, %v3354
      %v3612 = vmax.f32 %v3173, %v3356
      %v3613 = vmax.f32 %v3174, %v3358
      %v3614 = vmax.f32 %v3175, %v3360
      %v3615 = vmax.f32 %v3176, %v3362
      %v3616 = vmax.f32 %v3177, %v3364
      %v3617 = vmax.f32 %v3178, %v3366
      %v3618 = vmax.f32 %v3179, %v3368
      %v3619 = vmax.f32 %v3180, %v3370
      %v3620 = vmax.f32 %v3181, %v3372
      %v3621 = vmax.f32 %v3182, %v3374
      %v3622 = vmax.f32 %v3183, %v3376
      %v3623 = vmax.f32 %v3184, %v3378
      %v3624 = vmax.f32 %v3185, %v3380
      %v3625 = vmax.f32 %v3186, %v3382
      %v3626 = vmax.f32 %v3187, %v3384
      %v3627 = vmax.f32 %v3188, %v3386
      %v3628 = vmax.f32 %v3189, %v3388
      %v3629 = vmax.f32 %v3190, %v3390
      %v3630 = vmax.f32 %v3191, %v3392
      %v3631 = vmax.f32 %v3192, %v3394
      %v3632 = vmax.f32 %v3193, %v3396
      %v3633 = vmax.f32 %v3194, %v3398
      %v3634 = vmax.f32 %v3195, %v3400
      %v3635 = vmax.f32 %v3196, %v3402
      %v3636 = vmax.f32 %v3197, %v3404
      %v3637 = vmax.f32 %v3198, %v3406
      %v3638 = vmax.f32 %v3199, %v3408
      %v3639 = vmax.f32 %v3200, %v3410
      %v3640 = vmax.f32 %v3201, %v3412
      %v3641 = vmax.f32 %v3202, %v3414
      %v3642 = vmax.f32 %v3203, %v3416
      %v3643 = vmax.f32 %v3204, %v3418
      %v3644 = vmax.f32 %v3205, %v3420
      %v3645 = vmax.f32 %v3206, %v3422
      %v3646 = vmax.f32 %v3207, %v3424
      %v3647 = vmax.f32 %v3208, %v3426
      %v3648 = vmax.f32 %v3209, %v3428
      %v3649 = vmax.f32 %v3210, %v3430
      %v3650 = vmax.f32 %v3211, %v3432
      %v3651 = vmax.f32 %v3212, %v3434
      %v3652 = vmax.f32 %v3213, %v3436
      %v3653 = vmax.f32 %v3214, %v3438
      %v3654 = vmax.f32 %v3215, %v3440
      %v3655 = vmax.f32 %v3216, %v3442
      %v3656 = vmax.f32 %v3217, %v3444
      %v3657 = vmax.f32 %v3218, %v3446
      %v3658 = vmax.f32 %v3219, %v3448
      %v3659 = vmax.f32 %v3220, %v3450
      %v3660 = vmax.f32 %v3221, %v3452
      %v3661 = vmax.f32 %v3222, %v3454
      %v3662 = vmax.f32 %v3223, %v3456
      %v3663 = vmax.f32 %v3224, %v3458
      %v3664 = vmax.f32 %v3225, %v3460
      %v3665 = vmax.f32 %v3226, %v3462
      %v3666 = vmax.f32 %v3227, %v3464
      %v3667 = vmax.f32 %v3228, %v3466
      %v3668 = vmax.f32 %v3229, %v3468
      %v3669 = vmax.f32 %v3230, %v3470
      %v3670 = vmax.f32 %v3231, %v3472
      %v3671 = vmax.f32 %v3232, %v3474
      %v3672 = vmax.f32 %v3233, %v3476
      %v3673 = vmax.f32 %v3234, %v3478
      %v3674 = vmax.f32 %v3235, %v3480
      %v3675 = vmax.f32 %v3236, %v3482
      %v3676 = vmax.f32 %v3237, %v3484
      %v3677 = vmax.f32 %v3238, %v3486
      %v3678 = vmax.f32 %v3239, %v3488
      %v3679 = vmax.f32 %v3240, %v3490
      %v3680 = vmax.f32 %v3241, %v3492
      %v3681 = vmax.f32 %v3242, %v3494
      %v3682 = vmax.f32 %v3243, %v3496
      %v3683 = vmax.f32 %v3244, %v3498
      %v3684 = vmax.f32 %v3245, %v3500
      %v3685 = vmax.f32 %v3246, %v3502
      %v3686 = vmax.f32 %v3247, %v3504
      %v3687 = vmax.f32 %v3248, %v3506
      %v3688 = vmax.f32 %v3249, %v3508
      %v3689 = vmax.f32 %v3250, %v3510
      %v3690 = vmax.f32 %v3251, %v3512
      %v3691 = vmax.f32 %v3252, %v3514
      %v3692 = vmax.f32 %v3253, %v3516
      %v3693 = vmax.f32 %v3254, %v3518
      %v3694 = vmax.f32 %v3255, %v3517
      %v3783 = vrot.slane %v3607, 1
      %v3784 = vrot.slane %v3608, 1
      %v3785 = vsel %vm2904, %v3783, %v3784
      %v3786 = vrot.slane %v3609, 1
      %v3787 = vsel %vm2904, %v3784, %v3786
      %v3788 = vrot.slane %v3610, 1
      %v3789 = vsel %vm2904, %v3786, %v3788
      %v3790 = vrot.slane %v3611, 1
      %v3791 = vsel %vm2904, %v3788, %v3790
      %v3792 = vrot.slane %v3612, 1
      %v3793 = vsel %vm2904, %v3790, %v3792
      %v3794 = vrot.slane %v3613, 1
      %v3795 = vsel %vm2904, %v3792, %v3794
      %v3796 = vrot.slane %v3614, 1
      %v3797 = vsel %vm2904, %v3794, %v3796
      %v3798 = vrot.slane %v3615, 1
      %v3799 = vsel %vm2904, %v3796, %v3798
      %v3800 = vrot.slane %v3616, 1
      %v3801 = vsel %vm2904, %v3798, %v3800
      %v3802 = vrot.slane %v3617, 1
      %v3803 = vsel %vm2904, %v3800, %v3802
      %v3804 = vrot.slane %v3618, 1
      %v3805 = vsel %vm2904, %v3802, %v3804
      %v3806 = vrot.slane %v3619, 1
      %v3807 = vsel %vm2904, %v3804, %v3806
      %v3808 = vrot.slane %v3620, 1
      %v3809 = vsel %vm2904, %v3806, %v3808
      %v3810 = vrot.slane %v3621, 1
      %v3811 = vsel %vm2904, %v3808, %v3810
      %v3812 = vrot.slane %v3622, 1
      %v3813 = vsel %vm2904, %v3810, %v3812
      %v3814 = vrot.slane %v3623, 1
      %v3815 = vsel %vm2904, %v3812, %v3814
      %v3816 = vrot.slane %v3624, 1
      %v3817 = vsel %vm2904, %v3814, %v3816
      %v3818 = vrot.slane %v3625, 1
      %v3819 = vsel %vm2904, %v3816, %v3818
      %v3820 = vrot.slane %v3626, 1
      %v3821 = vsel %vm2904, %v3818, %v3820
      %v3822 = vrot.slane %v3627, 1
      %v3823 = vsel %vm2904, %v3820, %v3822
      %v3824 = vrot.slane %v3628, 1
      %v3825 = vsel %vm2904, %v3822, %v3824
      %v3826 = vrot.slane %v3629, 1
      %v3827 = vsel %vm2904, %v3824, %v3826
      %v3828 = vrot.slane %v3630, 1
      %v3829 = vsel %vm2904, %v3826, %v3828
      %v3830 = vrot.slane %v3631, 1
      %v3831 = vsel %vm2904, %v3828, %v3830
      %v3832 = vrot.slane %v3632, 1
      %v3833 = vsel %vm2904, %v3830, %v3832
      %v3834 = vrot.slane %v3633, 1
      %v3835 = vsel %vm2904, %v3832, %v3834
      %v3836 = vrot.slane %v3634, 1
      %v3837 = vsel %vm2904, %v3834, %v3836
      %v3838 = vrot.slane %v3635, 1
      %v3839 = vsel %vm2904, %v3836, %v3838
      %v3840 = vrot.slane %v3636, 1
      %v3841 = vsel %vm2904, %v3838, %v3840
      %v3842 = vrot.slane %v3637, 1
      %v3843 = vsel %vm2904, %v3840, %v3842
      %v3844 = vrot.slane %v3638, 1
      %v3845 = vsel %vm2904, %v3842, %v3844
      %v3846 = vrot.slane %v3639, 1
      %v3847 = vsel %vm2904, %v3844, %v3846
      %v3848 = vrot.slane %v3640, 1
      %v3849 = vsel %vm2904, %v3846, %v3848
      %v3850 = vrot.slane %v3641, 1
      %v3851 = vsel %vm2904, %v3848, %v3850
      %v3852 = vrot.slane %v3642, 1
      %v3853 = vsel %vm2904, %v3850, %v3852
      %v3854 = vrot.slane %v3643, 1
      %v3855 = vsel %vm2904, %v3852, %v3854
      %v3856 = vrot.slane %v3644, 1
      %v3857 = vsel %vm2904, %v3854, %v3856
      %v3858 = vrot.slane %v3645, 1
      %v3859 = vsel %vm2904, %v3856, %v3858
      %v3860 = vrot.slane %v3646, 1
      %v3861 = vsel %vm2904, %v3858, %v3860
      %v3862 = vrot.slane %v3647, 1
      %v3863 = vsel %vm2904, %v3860, %v3862
      %v3864 = vrot.slane %v3648, 1
      %v3865 = vsel %vm2904, %v3862, %v3864
      %v3866 = vrot.slane %v3649, 1
      %v3867 = vsel %vm2904, %v3864, %v3866
      %v3868 = vrot.slane %v3650, 1
      %v3869 = vsel %vm2904, %v3866, %v3868
      %v3870 = vrot.slane %v3651, 1
      %v3871 = vsel %vm2904, %v3868, %v3870
      %v3872 = vrot.slane %v3652, 1
      %v3873 = vsel %vm2904, %v3870, %v3872
      %v3874 = vrot.slane %v3653, 1
      %v3875 = vsel %vm2904, %v3872, %v3874
      %v3876 = vrot.slane %v3654, 1
      %v3877 = vsel %vm2904, %v3874, %v3876
      %v3878 = vrot.slane %v3655, 1
      %v3879 = vsel %vm2904, %v3876, %v3878
      %v3880 = vrot.slane %v3656, 1
      %v3881 = vsel %vm2904, %v3878, %v3880
      %v3882 = vrot.slane %v3657, 1
      %v3883 = vsel %vm2904, %v3880, %v3882
      %v3884 = vrot.slane %v3658, 1
      %v3885 = vsel %vm2904, %v3882, %v3884
      %v3886 = vrot.slane %v3659, 1
      %v3887 = vsel %vm2904, %v3884, %v3886
      %v3888 = vrot.slane %v3660, 1
      %v3889 = vsel %vm2904, %v3886, %v3888
      %v3890 = vrot.slane %v3661, 1
      %v3891 = vsel %vm2904, %v3888, %v3890
      %v3892 = vrot.slane %v3662, 1
      %v3893 = vsel %vm2904, %v3890, %v3892
      %v3894 = vrot.slane %v3663, 1
      %v3895 = vsel %vm2904, %v3892, %v3894
      %v3896 = vrot.slane %v3664, 1
      %v3897 = vsel %vm2904, %v3894, %v3896
      %v3898 = vrot.slane %v3665, 1
      %v3899 = vsel %vm2904, %v3896, %v3898
      %v3900 = vrot.slane %v3666, 1
      %v3901 = vsel %vm2904, %v3898, %v3900
      %v3902 = vrot.slane %v3667, 1
      %v3903 = vsel %vm2904, %v3900, %v3902
      %v3904 = vrot.slane %v3668, 1
      %v3905 = vsel %vm2904, %v3902, %v3904
      %v3906 = vrot.slane %v3669, 1
      %v3907 = vsel %vm2904, %v3904, %v3906
      %v3908 = vrot.slane %v3670, 1
      %v3909 = vsel %vm2904, %v3906, %v3908
      %v3910 = vrot.slane %v3671, 1
      %v3911 = vsel %vm2904, %v3908, %v3910
      %v3912 = vrot.slane %v3672, 1
      %v3913 = vsel %vm2904, %v3910, %v3912
      %v3914 = vrot.slane %v3673, 1
      %v3915 = vsel %vm2904, %v3912, %v3914
      %v3916 = vrot.slane %v3674, 1
      %v3917 = vsel %vm2904, %v3914, %v3916
      %v3918 = vrot.slane %v3675, 1
      %v3919 = vsel %vm2904, %v3916, %v3918
      %v3920 = vrot.slane %v3676, 1
      %v3921 = vsel %vm2904, %v3918, %v3920
      %v3922 = vrot.slane %v3677, 1
      %v3923 = vsel %vm2904, %v3920, %v3922
      %v3924 = vrot.slane %v3678, 1
      %v3925 = vsel %vm2904, %v3922, %v3924
      %v3926 = vrot.slane %v3679, 1
      %v3927 = vsel %vm2904, %v3924, %v3926
      %v3928 = vrot.slane %v3680, 1
      %v3929 = vsel %vm2904, %v3926, %v3928
      %v3930 = vrot.slane %v3681, 1
      %v3931 = vsel %vm2904, %v3928, %v3930
      %v3932 = vrot.slane %v3682, 1
      %v3933 = vsel %vm2904, %v3930, %v3932
      %v3934 = vrot.slane %v3683, 1
      %v3935 = vsel %vm2904, %v3932, %v3934
      %v3936 = vrot.slane %v3684, 1
      %v3937 = vsel %vm2904, %v3934, %v3936
      %v3938 = vrot.slane %v3685, 1
      %v3939 = vsel %vm2904, %v3936, %v3938
      %v3940 = vrot.slane %v3686, 1
      %v3941 = vsel %vm2904, %v3938, %v3940
      %v3942 = vrot.slane %v3687, 1
      %v3943 = vsel %vm2904, %v3940, %v3942
      %v3944 = vrot.slane %v3688, 1
      %v3945 = vsel %vm2904, %v3942, %v3944
      %v3946 = vrot.slane %v3689, 1
      %v3947 = vsel %vm2904, %v3944, %v3946
      %v3948 = vrot.slane %v3690, 1
      %v3949 = vsel %vm2904, %v3946, %v3948
      %v3950 = vrot.slane %v3691, 1
      %v3951 = vsel %vm2904, %v3948, %v3950
      %v3952 = vrot.slane %v3692, 1
      %v3953 = vsel %vm2904, %v3950, %v3952
      %v3954 = vrot.slane %v3693, 1
      %v3955 = vsel %vm2904, %v3952, %v3954
      %v3956 = vrot.slane %v3694, 1
      %v3957 = vsel %vm2904, %v3954, %v3956
      %v4046 = vmax.f32 %v3607, %v3785
      %v4047 = vmax.f32 %v3608, %v3787
      %v4048 = vmax.f32 %v3609, %v3789
      %v4049 = vmax.f32 %v3610, %v3791
      %v4050 = vmax.f32 %v3611, %v3793
      %v4051 = vmax.f32 %v3612, %v3795
      %v4052 = vmax.f32 %v3613, %v3797
      %v4053 = vmax.f32 %v3614, %v3799
      %v4054 = vmax.f32 %v3615, %v3801
      %v4055 = vmax.f32 %v3616, %v3803
      %v4056 = vmax.f32 %v3617, %v3805
      %v4057 = vmax.f32 %v3618, %v3807
      %v4058 = vmax.f32 %v3619, %v3809
      %v4059 = vmax.f32 %v3620, %v3811
      %v4060 = vmax.f32 %v3621, %v3813
      %v4061 = vmax.f32 %v3622, %v3815
      %v4062 = vmax.f32 %v3623, %v3817
      %v4063 = vmax.f32 %v3624, %v3819
      %v4064 = vmax.f32 %v3625, %v3821
      %v4065 = vmax.f32 %v3626, %v3823
      %v4066 = vmax.f32 %v3627, %v3825
      %v4067 = vmax.f32 %v3628, %v3827
      %v4068 = vmax.f32 %v3629, %v3829
      %v4069 = vmax.f32 %v3630, %v3831
      %v4070 = vmax.f32 %v3631, %v3833
      %v4071 = vmax.f32 %v3632, %v3835
      %v4072 = vmax.f32 %v3633, %v3837
      %v4073 = vmax.f32 %v3634, %v3839
      %v4074 = vmax.f32 %v3635, %v3841
      %v4075 = vmax.f32 %v3636, %v3843
      %v4076 = vmax.f32 %v3637, %v3845
      %v4077 = vmax.f32 %v3638, %v3847
      %v4078 = vmax.f32 %v3639, %v3849
      %v4079 = vmax.f32 %v3640, %v3851
      %v4080 = vmax.f32 %v3641, %v3853
      %v4081 = vmax.f32 %v3642, %v3855
      %v4082 = vmax.f32 %v3643, %v3857
      %v4083 = vmax.f32 %v3644, %v3859
      %v4084 = vmax.f32 %v3645, %v3861
      %v4085 = vmax.f32 %v3646, %v3863
      %v4086 = vmax.f32 %v3647, %v3865
      %v4087 = vmax.f32 %v3648, %v3867
      %v4088 = vmax.f32 %v3649, %v3869
      %v4089 = vmax.f32 %v3650, %v3871
      %v4090 = vmax.f32 %v3651, %v3873
      %v4091 = vmax.f32 %v3652, %v3875
      %v4092 = vmax.f32 %v3653, %v3877
      %v4093 = vmax.f32 %v3654, %v3879
      %v4094 = vmax.f32 %v3655, %v3881
      %v4095 = vmax.f32 %v3656, %v3883
      %v4096 = vmax.f32 %v3657, %v3885
      %v4097 = vmax.f32 %v3658, %v3887
      %v4098 = vmax.f32 %v3659, %v3889
      %v4099 = vmax.f32 %v3660, %v3891
      %v4100 = vmax.f32 %v3661, %v3893
      %v4101 = vmax.f32 %v3662, %v3895
      %v4102 = vmax.f32 %v3663, %v3897
      %v4103 = vmax.f32 %v3664, %v3899
      %v4104 = vmax.f32 %v3665, %v3901
      %v4105 = vmax.f32 %v3666, %v3903
      %v4106 = vmax.f32 %v3667, %v3905
      %v4107 = vmax.f32 %v3668, %v3907
      %v4108 = vmax.f32 %v3669, %v3909
      %v4109 = vmax.f32 %v3670, %v3911
      %v4110 = vmax.f32 %v3671, %v3913
      %v4111 = vmax.f32 %v3672, %v3915
      %v4112 = vmax.f32 %v3673, %v3917
      %v4113 = vmax.f32 %v3674, %v3919
      %v4114 = vmax.f32 %v3675, %v3921
      %v4115 = vmax.f32 %v3676, %v3923
      %v4116 = vmax.f32 %v3677, %v3925
      %v4117 = vmax.f32 %v3678, %v3927
      %v4118 = vmax.f32 %v3679, %v3929
      %v4119 = vmax.f32 %v3680, %v3931
      %v4120 = vmax.f32 %v3681, %v3933
      %v4121 = vmax.f32 %v3682, %v3935
      %v4122 = vmax.f32 %v3683, %v3937
      %v4123 = vmax.f32 %v3684, %v3939
      %v4124 = vmax.f32 %v3685, %v3941
      %v4125 = vmax.f32 %v3686, %v3943
      %v4126 = vmax.f32 %v3687, %v3945
      %v4127 = vmax.f32 %v3688, %v3947
      %v4128 = vmax.f32 %v3689, %v3949
      %v4129 = vmax.f32 %v3690, %v3951
      %v4130 = vmax.f32 %v3691, %v3953
      %v4131 = vmax.f32 %v3692, %v3955
      %v4132 = vmax.f32 %v3693, %v3957
      %v4133 = vmax.f32 %v3694, %v3956
      %v4134 = vpack.c.bf16 %v4046, %v4046
      %v4135 = vpack.c.bf16 %v4047, %v4047
      %v4136 = vpack.c.bf16 %v4048, %v4048
      %v4137 = vpack.c.bf16 %v4049, %v4049
      %v4138 = vpack.c.bf16 %v4050, %v4050
      %v4139 = vpack.c.bf16 %v4051, %v4051
      %v4140 = vpack.c.bf16 %v4052, %v4052
      %v4141 = vpack.c.bf16 %v4053, %v4053
      %v4142 = vpack.c.bf16 %v4054, %v4054
      %v4143 = vpack.c.bf16 %v4055, %v4055
      %v4144 = vpack.c.bf16 %v4056, %v4056
      %v4145 = vpack.c.bf16 %v4057, %v4057
      %v4146 = vpack.c.bf16 %v4058, %v4058
      %v4147 = vpack.c.bf16 %v4059, %v4059
      %v4148 = vpack.c.bf16 %v4060, %v4060
      %v4149 = vpack.c.bf16 %v4061, %v4061
      %v4150 = vpack.c.bf16 %v4062, %v4062
      %v4151 = vpack.c.bf16 %v4063, %v4063
      %v4152 = vpack.c.bf16 %v4064, %v4064
      %v4153 = vpack.c.bf16 %v4065, %v4065
      %v4154 = vpack.c.bf16 %v4066, %v4066
      %v4155 = vpack.c.bf16 %v4067, %v4067
      %v4156 = vpack.c.bf16 %v4068, %v4068
      %v4157 = vpack.c.bf16 %v4069, %v4069
      %v4158 = vpack.c.bf16 %v4070, %v4070
      %v4159 = vpack.c.bf16 %v4071, %v4071
      %v4160 = vpack.c.bf16 %v4072, %v4072
      %v4161 = vpack.c.bf16 %v4073, %v4073
      %v4162 = vpack.c.bf16 %v4074, %v4074
      %v4163 = vpack.c.bf16 %v4075, %v4075
      %v4164 = vpack.c.bf16 %v4076, %v4076
      %v4165 = vpack.c.bf16 %v4077, %v4077
      %v4166 = vpack.c.bf16 %v4078, %v4078
      %v4167 = vpack.c.bf16 %v4079, %v4079
      %v4168 = vpack.c.bf16 %v4080, %v4080
      %v4169 = vpack.c.bf16 %v4081, %v4081
      %v4170 = vpack.c.bf16 %v4082, %v4082
      %v4171 = vpack.c.bf16 %v4083, %v4083
      %v4172 = vpack.c.bf16 %v4084, %v4084
      %v4173 = vpack.c.bf16 %v4085, %v4085
      %v4174 = vpack.c.bf16 %v4086, %v4086
      %v4175 = vpack.c.bf16 %v4087, %v4087
      %v4176 = vpack.c.bf16 %v4088, %v4088
      %v4177 = vpack.c.bf16 %v4089, %v4089
      %v4178 = vpack.c.bf16 %v4090, %v4090
      %v4179 = vpack.c.bf16 %v4091, %v4091
      %v4180 = vpack.c.bf16 %v4092, %v4092
      %v4181 = vpack.c.bf16 %v4093, %v4093
      %v4182 = vpack.c.bf16 %v4094, %v4094
      %v4183 = vpack.c.bf16 %v4095, %v4095
      %v4184 = vpack.c.bf16 %v4096, %v4096
      %v4185 = vpack.c.bf16 %v4097, %v4097
      %v4186 = vpack.c.bf16 %v4098, %v4098
      %v4187 = vpack.c.bf16 %v4099, %v4099
      %v4188 = vpack.c.bf16 %v4100, %v4100
      %v4189 = vpack.c.bf16 %v4101, %v4101
      %v4190 = vpack.c.bf16 %v4102, %v4102
      %v4191 = vpack.c.bf16 %v4103, %v4103
      %v4192 = vpack.c.bf16 %v4104, %v4104
      %v4193 = vpack.c.bf16 %v4105, %v4105
      %v4194 = vpack.c.bf16 %v4106, %v4106
      %v4195 = vpack.c.bf16 %v4107, %v4107
      %v4196 = vpack.c.bf16 %v4108, %v4108
      %v4197 = vpack.c.bf16 %v4109, %v4109
      %v4198 = vpack.c.bf16 %v4110, %v4110
      %v4199 = vpack.c.bf16 %v4111, %v4111
      %v4200 = vpack.c.bf16 %v4112, %v4112
      %v4201 = vpack.c.bf16 %v4113, %v4113
      %v4202 = vpack.c.bf16 %v4114, %v4114
      %v4203 = vpack.c.bf16 %v4115, %v4115
      %v4204 = vpack.c.bf16 %v4116, %v4116
      %v4205 = vpack.c.bf16 %v4117, %v4117
      %v4206 = vpack.c.bf16 %v4118, %v4118
      %v4207 = vpack.c.bf16 %v4119, %v4119
      %v4208 = vpack.c.bf16 %v4120, %v4120
      %v4209 = vpack.c.bf16 %v4121, %v4121
      %v4210 = vpack.c.bf16 %v4122, %v4122
      %v4211 = vpack.c.bf16 %v4123, %v4123
      %v4212 = vpack.c.bf16 %v4124, %v4124
      %v4213 = vpack.c.bf16 %v4125, %v4125
      %v4214 = vpack.c.bf16 %v4126, %v4126
      %v4215 = vpack.c.bf16 %v4127, %v4127
      %v4216 = vpack.c.bf16 %v4128, %v4128
      %v4217 = vpack.c.bf16 %v4129, %v4129
      %v4218 = vpack.c.bf16 %v4130, %v4130
      %v4219 = vpack.c.bf16 %v4131, %v4131
      %v4220 = vpack.c.bf16 %v4132, %v4132
      %v4221 = vpack.c.bf16 %v4133, %v4133
      %vm4222 = vcmask 388096
      %4223 = vst.msk [vmem:[%s170] sm:$0xf] %vm4222, %v4134
      %4224 = vst.msk [vmem:[%s170 + $0x4] sm:$0xf] %vm4222, %v4135
      %4225 = vst.msk [vmem:[%s170 + $0x8] sm:$0xf] %vm4222, %v4136
      %4226 = vst.msk [vmem:[%s170 + $0xc] sm:$0xf] %vm4222, %v4137
      %4227 = vst.msk [vmem:[%s170 + $0x10] sm:$0xf] %vm4222, %v4138
      %4228 = vst.msk [vmem:[%s170 + $0x14] sm:$0xf] %vm4222, %v4139
      %4229 = vst.msk [vmem:[%s170 + $0x18] sm:$0xf] %vm4222, %v4140
      %4230 = vst.msk [vmem:[%s170 + $0x1c] sm:$0xf] %vm4222, %v4141
      %4231 = vst.msk [vmem:[%s170 + $0x20] sm:$0xf] %vm4222, %v4142
      %4232 = vst.msk [vmem:[%s170 + $0x24] sm:$0xf] %vm4222, %v4143
      %4233 = vst.msk [vmem:[%s170 + $0x28] sm:$0xf] %vm4222, %v4144
      %4234 = vst.msk [vmem:[%s170 + $0x2c] sm:$0xf] %vm4222, %v4145
      %4235 = vst.msk [vmem:[%s170 + $0x30] sm:$0xf] %vm4222, %v4146
      %4236 = vst.msk [vmem:[%s170 + $0x34] sm:$0xf] %vm4222, %v4147
      %4237 = vst.msk [vmem:[%s170 + $0x38] sm:$0xf] %vm4222, %v4148
      %4238 = vst.msk [vmem:[%s170 + $0x3c] sm:$0xf] %vm4222, %v4149
      %4239 = vst.msk [vmem:[%s170 + $0x40] sm:$0xf] %vm4222, %v4150
      %4240 = vst.msk [vmem:[%s170 + $0x44] sm:$0xf] %vm4222, %v4151
      %4241 = vst.msk [vmem:[%s170 + $0x48] sm:$0xf] %vm4222, %v4152
      %4242 = vst.msk [vmem:[%s170 + $0x4c] sm:$0xf] %vm4222, %v4153
      %4243 = vst.msk [vmem:[%s170 + $0x50] sm:$0xf] %vm4222, %v4154
      %4244 = vst.msk [vmem:[%s170 + $0x54] sm:$0xf] %vm4222, %v4155
      %4245 = vst.msk [vmem:[%s170 + $0x58] sm:$0xf] %vm4222, %v4156
      %4246 = vst.msk [vmem:[%s170 + $0x5c] sm:$0xf] %vm4222, %v4157
      %4247 = vst.msk [vmem:[%s170 + $0x60] sm:$0xf] %vm4222, %v4158
      %4248 = vst.msk [vmem:[%s170 + $0x64] sm:$0xf] %vm4222, %v4159
      %4249 = vst.msk [vmem:[%s170 + $0x68] sm:$0xf] %vm4222, %v4160
      %4250 = vst.msk [vmem:[%s170 + $0x6c] sm:$0xf] %vm4222, %v4161
      %4251 = vst.msk [vmem:[%s170 + $0x70] sm:$0xf] %vm4222, %v4162
      %4252 = vst.msk [vmem:[%s170 + $0x74] sm:$0xf] %vm4222, %v4163
      %4253 = vst.msk [vmem:[%s170 + $0x78] sm:$0xf] %vm4222, %v4164
      %4254 = vst.msk [vmem:[%s170 + $0x7c] sm:$0xf] %vm4222, %v4165
      %4255 = vst.msk [vmem:[%s170 + $0x80] sm:$0xf] %vm4222, %v4166
      %4256 = vst.msk [vmem:[%s170 + $0x84] sm:$0xf] %vm4222, %v4167
      %4257 = vst.msk [vmem:[%s170 + $0x88] sm:$0xf] %vm4222, %v4168
      %4258 = vst.msk [vmem:[%s170 + $0x8c] sm:$0xf] %vm4222, %v4169
      %4259 = vst.msk [vmem:[%s170 + $0x90] sm:$0xf] %vm4222, %v4170
      %4260 = vst.msk [vmem:[%s170 + $0x94] sm:$0xf] %vm4222, %v4171
      %4261 = vst.msk [vmem:[%s170 + $0x98] sm:$0xf] %vm4222, %v4172
      %4262 = vst.msk [vmem:[%s170 + $0x9c] sm:$0xf] %vm4222, %v4173
      %4263 = vst.msk [vmem:[%s170 + $0xa0] sm:$0xf] %vm4222, %v4174
      %4264 = vst.msk [vmem:[%s170 + $0xa4] sm:$0xf] %vm4222, %v4175
      %4265 = vst.msk [vmem:[%s170 + $0xa8] sm:$0xf] %vm4222, %v4176
      %4266 = vst.msk [vmem:[%s170 + $0xac] sm:$0xf] %vm4222, %v4177
      %4267 = vst.msk [vmem:[%s170 + $0xb0] sm:$0xf] %vm4222, %v4178
      %4268 = vst.msk [vmem:[%s170 + $0xb4] sm:$0xf] %vm4222, %v4179
      %4269 = vst.msk [vmem:[%s170 + $0xb8] sm:$0xf] %vm4222, %v4180
      %4270 = vst.msk [vmem:[%s170 + $0xbc] sm:$0xf] %vm4222, %v4181
      %4271 = vst.msk [vmem:[%s170 + $0xc0] sm:$0xf] %vm4222, %v4182
      %4272 = vst.msk [vmem:[%s170 + $0xc4] sm:$0xf] %vm4222, %v4183
      %4273 = vst.msk [vmem:[%s170 + $0xc8] sm:$0xf] %vm4222, %v4184
      %4274 = vst.msk [vmem:[%s170 + $0xcc] sm:$0xf] %vm4222, %v4185
      %4275 = vst.msk [vmem:[%s170 + $0xd0] sm:$0xf] %vm4222, %v4186
      %4276 = vst.msk [vmem:[%s170 + $0xd4] sm:$0xf] %vm4222, %v4187
      %4277 = vst.msk [vmem:[%s170 + $0xd8] sm:$0xf] %vm4222, %v4188
      %4278 = vst.msk [vmem:[%s170 + $0xdc] sm:$0xf] %vm4222, %v4189
      %4279 = vst.msk [vmem:[%s170 + $0xe0] sm:$0xf] %vm4222, %v4190
      %4280 = vst.msk [vmem:[%s170 + $0xe4] sm:$0xf] %vm4222, %v4191
      %4281 = vst.msk [vmem:[%s170 + $0xe8] sm:$0xf] %vm4222, %v4192
      %4282 = vst.msk [vmem:[%s170 + $0xec] sm:$0xf] %vm4222, %v4193
      %4283 = vst.msk [vmem:[%s170 + $0xf0] sm:$0xf] %vm4222, %v4194
      %4284 = vst.msk [vmem:[%s170 + $0xf4] sm:$0xf] %vm4222, %v4195
      %4285 = vst.msk [vmem:[%s170 + $0xf8] sm:$0xf] %vm4222, %v4196
      %4286 = vst.msk [vmem:[%s170 + $0xfc] sm:$0xf] %vm4222, %v4197
      %4287 = vst.msk [vmem:[%s170 + $0x100] sm:$0xf] %vm4222, %v4198
      %4288 = vst.msk [vmem:[%s170 + $0x104] sm:$0xf] %vm4222, %v4199
      %4289 = vst.msk [vmem:[%s170 + $0x108] sm:$0xf] %vm4222, %v4200
      %4290 = vst.msk [vmem:[%s170 + $0x10c] sm:$0xf] %vm4222, %v4201
      %4291 = vst.msk [vmem:[%s170 + $0x110] sm:$0xf] %vm4222, %v4202
      %4292 = vst.msk [vmem:[%s170 + $0x114] sm:$0xf] %vm4222, %v4203
      %4293 = vst.msk [vmem:[%s170 + $0x118] sm:$0xf] %vm4222, %v4204
      %4294 = vst.msk [vmem:[%s170 + $0x11c] sm:$0xf] %vm4222, %v4205
      %4295 = vst.msk [vmem:[%s170 + $0x120] sm:$0xf] %vm4222, %v4206
      %4296 = vst.msk [vmem:[%s170 + $0x124] sm:$0xf] %vm4222, %v4207
      %4297 = vst.msk [vmem:[%s170 + $0x128] sm:$0xf] %vm4222, %v4208
      %4298 = vst.msk [vmem:[%s170 + $0x12c] sm:$0xf] %vm4222, %v4209
      %4299 = vst.msk [vmem:[%s170 + $0x130] sm:$0xf] %vm4222, %v4210
      %4300 = vst.msk [vmem:[%s170 + $0x134] sm:$0xf] %vm4222, %v4211
      %4301 = vst.msk [vmem:[%s170 + $0x138] sm:$0xf] %vm4222, %v4212
      %4302 = vst.msk [vmem:[%s170 + $0x13c] sm:$0xf] %vm4222, %v4213
      %4303 = vst.msk [vmem:[%s170 + $0x140] sm:$0xf] %vm4222, %v4214
      %4304 = vst.msk [vmem:[%s170 + $0x144] sm:$0xf] %vm4222, %v4215
      %4305 = vst.msk [vmem:[%s170 + $0x148] sm:$0xf] %vm4222, %v4216
      %4306 = vst.msk [vmem:[%s170 + $0x14c] sm:$0xf] %vm4222, %v4217
      %4307 = vst.msk [vmem:[%s170 + $0x150] sm:$0xf] %vm4222, %v4218
      %4308 = vst.msk [vmem:[%s170 + $0x154] sm:$0xf] %vm4222, %v4219
      %4309 = vst.msk [vmem:[%s170 + $0x158] sm:$0xf] %vm4222, %v4220
      %vm4310 = vcmask 385024
      %vm4311 = vsmask.f32 256
      %vm4312 = vmand %vm4310, %vm4311
      %v4313 = vld [vmem:[%s170 + $0x15c] sm:$0x1]
      %v4314 = vsel %vm4312, %v4221, %v4313
      %4315 = vst [vmem:[%s170 + $0x15c] sm:$0x1] %v4314
      %p4316 = scmp.lt.s32.totalorder %s14, 1
      %s4317 = scalar_select %p4316, %s14, 1
      %s4318 = smul.addr %s4317, 88
      %s4319 = smul.addr %s4318, 4
      %s4320 = scalar_lea.vmem %s3, %s4319
      // Predicated region
      $region33: #{maxout_conv_mnist_forward.3} parent=31 // pred_check
        %p4321 = pneg %p100
      $region34: #{maxout_conv_mnist_forward.3} parent=31 // pred_check_branch
        %4323 = sbr.rel (%p4321) target = $region36
      $region35: #{maxout_conv_mnist_forward.3} parent=31 // pred_region
        _
      $region36: #{maxout_conv_mnist_forward.3} parent=31 // pred_fallthru
        _
    $region32: #{maxout_conv_mnist_forward.3} parent=5 // pred_fallthru
      _
    %p4324 = scmp.le.s32.totalorder 2, %s9
    // Predicated region
    $region37: #{maxout_conv_mnist_forward.3} parent=5 // pred_check
      %p4325 = pneg %p4324
    $region38: #{maxout_conv_mnist_forward.3} parent=5 // pred_check_branch
      %4327 = sbr.rel (%p4325) target = $region40
    $region39: #{maxout_conv_mnist_forward.3} parent=5 // pred_region
      %s4328 = ssub.s32 %s9, 2
      // Predicated region
      $region41: #{maxout_conv_mnist_forward.3} parent=39 // pred_check
        %p4329 = pneg %p106
      $region42: #{maxout_conv_mnist_forward.3} parent=39 // pred_check_branch
        %4331 = sbr.rel (%p4329) target = $region44
      $region43: #{maxout_conv_mnist_forward.3} parent=39 // pred_region
        %p4332 = scmp.lt.s32.totalorder %s15, 1
        %s4333 = scalar_select %p4332, %s15, 1
        %s4334 = smul.addr %s4333, 88
        %s4335 = smul.addr %s4334, 4
        %s4336 = scalar_lea.vmem %s3, %s4335
      $region44: #{maxout_conv_mnist_forward.3} parent=39 // pred_fallthru
        _
    $region40: #{maxout_conv_mnist_forward.3} parent=5 // pred_fallthru
      _
  $region6: #{maxout_conv_mnist_forward.3} parent=0 // loop_footer
    %s13 = sadd.s32 1, %s9
  $region7: #{maxout_conv_mnist_forward.3} parent=0 // loop_footer_branch
    %8 = sbr.rel target = $region3
  $region8: #{maxout_conv_mnist_forward.3} parent=0 // loop_exit
    _

// kernel: maxout_conv_mnist_forward.4
$region0: #{maxout_conv_mnist_forward.4}
  #allocation0 [shape = 'u32[]', space=smem, size = 0x4, offset = 0x4, fixed_abs, tag = 'smem constant byte address 0x4 - core index']
  #allocation1 [shape = 'u32[72,128]{1,0:T(1,128)}', space=vmem, size = 0x9000, scoped, tag = 'internal scratch']
  %s0 = inlined_call_operand.vmem [shape: bf16[2,121,2352], index: 0, kind: input, shape index: {}]
  %s1 = inlined_call_operand.vmem [shape: bf16[2352,96], index: 1, kind: input, shape index: {}]
  %s2 = inlined_call_operand.vmem [shape: f32[1,96], index: 2, kind: input, shape index: {}]
  %s3 = inlined_call_operand.vmem [shape: bf16[2,85,48], index: 3, kind: output, shape index: {}]
  %s4 = sld [smem:[#allocation0]]
  $region45: #{maxout_conv_mnist_forward.4} parent=0
    _
  %s6 = ssub.s32 1, %s4
  %s7 = scalar_select 0, %s6, %s4
  loop: start=0, step=1, limit=4
  $region2: #{maxout_conv_mnist_forward.4} parent=0 // loop_pre_header
    _
  $region3: #{maxout_conv_mnist_forward.4} parent=0 // loop_header
    %s9 = sphi 0, %s13
    %p10 = scmp.ge.s32.totalorder %s9, 4
    %s19 = sphi 0, %s21
    %s22 = sphi 0, %s19
    %s23 = sphi 0, %s22
    %s39 = sphi 0, %s23
    %s43 = sphi 0, %s43
    %s45 = sphi 0, %s43
    %s46 = sphi 0, %s45
    %s60 = sphi 0, %s46
    %s64 = sphi 0, %s64
    %s66 = sphi 0, %s64
    %s67 = sphi 0, %s66
    %s81 = sphi 0, %s67
    %s87 = sphi 0, %s89
    %s90 = sphi 0, %s87
    %s91 = sphi 0, %s90
    %s107 = sphi 0, %s91
  $region4: #{maxout_conv_mnist_forward.4} parent=0 // loop_header_branch
    %12 = sbr.rel (%p10) target = $region8
  $region5: #{maxout_conv_mnist_forward.4} parent=0 // loop_body
    %s14 = ssub.s32 %s9, 1
    %s15 = ssub.s32 %s9, 2
    %s16 = sadd.s32 %s9, 1
    %s17 = ssub.s32 %s9, %s16
    %p18 = scmp.eq.s32.totalorder %s17, 0
    %s20 = sadd.s32 %s19, 1
    %s21 = scalar_select %p18, %s19, %s20
    %p24 = pneg %p18
    %p25 = scmp.eq.s32.totalorder %s9, 1
    %p26 = por %p24, %p25
    %p27 = scmp.ne.s32.totalorder %s19, %s22
    %p28 = scmp.eq.s32.totalorder %s9, 0
    %p29 = por %p27, %p28
    %p30 = scmp.ne.s32.totalorder %s19, %s22
    %p31 = scmp.eq.s32.totalorder %s14, 1
    %p32 = por %p30, %p31
    %p33 = scmp.ne.s32.totalorder %s22, %s23
    %p34 = scmp.eq.s32.totalorder %s14, 0
    %p35 = por %p33, %p34
    %p36 = scmp.ne.s32.totalorder %s22, %s23
    %p37 = scmp.eq.s32.totalorder %s15, 1
    %p38 = por %p36, %p37
    %p40 = scmp.ne.s32.totalorder %s23, %s39
    %p41 = scmp.eq.s32.totalorder %s15, 0
    %p42 = por %p40, %p41
    %s44 = sadd.s32 %s43, 1
    %p47 = scmp.eq.s32.totalorder %s9, 1
    %p48 = scmp.ne.s32.totalorder %s43, %s45
    %p49 = scmp.eq.s32.totalorder %s9, 0
    %p50 = por %p48, %p49
    %p51 = scmp.ne.s32.totalorder %s43, %s45
    %p52 = scmp.eq.s32.totalorder %s14, 1
    %p53 = por %p51, %p52
    %p54 = scmp.ne.s32.totalorder %s45, %s46
    %p55 = scmp.eq.s32.totalorder %s14, 0
    %p56 = por %p54, %p55
    %p57 = scmp.ne.s32.totalorder %s45, %s46
    %p58 = scmp.eq.s32.totalorder %s15, 1
    %p59 = por %p57, %p58
    %p61 = scmp.ne.s32.totalorder %s46, %s60
    %p62 = scmp.eq.s32.totalorder %s15, 0
    %p63 = por %p61, %p62
    %s65 = sadd.s32 %s64, 1
    %p68 = scmp.eq.s32.totalorder %s9, 1
    %p69 = scmp.ne.s32.totalorder %s64, %s66
    %p70 = scmp.eq.s32.totalorder %s9, 0
    %p71 = por %p69, %p70
    %p72 = scmp.ne.s32.totalorder %s64, %s66
    %p73 = scmp.eq.s32.totalorder %s14, 1
    %p74 = por %p72, %p73
    %p75 = scmp.ne.s32.totalorder %s66, %s67
    %p76 = scmp.eq.s32.totalorder %s14, 0
    %p77 = por %p75, %p76
    %p78 = scmp.ne.s32.totalorder %s66, %s67
    %p79 = scmp.eq.s32.totalorder %s15, 1
    %p80 = por %p78, %p79
    %p82 = scmp.ne.s32.totalorder %s67, %s81
    %p83 = scmp.eq.s32.totalorder %s15, 0
    %p84 = por %p82, %p83
    %s85 = ssub.s32 %s9, %s16
    %p86 = scmp.eq.s32.totalorder %s85, 0
    %s88 = sadd.s32 %s87, 1
    %s89 = scalar_select %p86, %s87, %s88
    %p92 = pneg %p86
    %p93 = scmp.eq.s32.totalorder %s9, 1
    %p94 = por %p92, %p93
    %p95 = scmp.ne.s32.totalorder %s87, %s90
    %p96 = scmp.eq.s32.totalorder %s9, 0
    %p97 = por %p95, %p96
    %p98 = scmp.ne.s32.totalorder %s87, %s90
    %p99 = scmp.eq.s32.totalorder %s14, 1
    %p100 = por %p98, %p99
    %p101 = scmp.ne.s32.totalorder %s90, %s91
    %p102 = scmp.eq.s32.totalorder %s14, 0
    %p103 = por %p101, %p102
    %p104 = scmp.ne.s32.totalorder %s90, %s91
    %p105 = scmp.eq.s32.totalorder %s15, 1
    %p106 = por %p104, %p105
    %p108 = scmp.ne.s32.totalorder %s91, %s107
    %p109 = scmp.eq.s32.totalorder %s15, 0
    %p110 = por %p108, %p109
    %p111 = scmp.le.s32.totalorder 1, %s9
    %p112 = scmp.lt.s32.totalorder %s9, 3
    %p113 = pnand %p111, %p112
    %p114 = pneg %p113
    // Predicated region
    $region9: #{maxout_conv_mnist_forward.4} parent=5 // pred_check
      _
    $region10: #{maxout_conv_mnist_forward.4} parent=5 // pred_check_branch
      %116 = sbr.rel (%p113) target = $region12
    $region11: #{maxout_conv_mnist_forward.4} parent=5 // pred_region
      %s117 = ssub.s32 %s9, 1
      // Predicated region
      $region13: #{maxout_conv_mnist_forward.4} parent=11 // pred_check
        %p118 = pneg %p56
      $region14: #{maxout_conv_mnist_forward.4} parent=11 // pred_check_branch
        %120 = sbr.rel (%p118) target = $region16
      $region15: #{maxout_conv_mnist_forward.4} parent=11 // pred_region
        _
      $region16: #{maxout_conv_mnist_forward.4} parent=11 // pred_fallthru
        _
      // Predicated region
      $region17: #{maxout_conv_mnist_forward.4} parent=11 // pred_check
        %p121 = pneg %p77
      $region18: #{maxout_conv_mnist_forward.4} parent=11 // pred_check_branch
        %123 = sbr.rel (%p121) target = $region20
      $region19: #{maxout_conv_mnist_forward.4} parent=11 // pred_region
        _
      $region20: #{maxout_conv_mnist_forward.4} parent=11 // pred_fallthru
        _
    $region12: #{maxout_conv_mnist_forward.4} parent=5 // pred_fallthru
      _
    %p124 = scmp.lt.s32.totalorder %s9, 2
    // Predicated region
    $region21: #{maxout_conv_mnist_forward.4} parent=5 // pred_check
      %p125 = pneg %p124
    $region22: #{maxout_conv_mnist_forward.4} parent=5 // pred_check_branch
      %127 = sbr.rel (%p125) target = $region24
    $region23: #{maxout_conv_mnist_forward.4} parent=5 // pred_region
      // Predicated region
      $region25: #{maxout_conv_mnist_forward.4} parent=23 // pred_check
        %p128 = pneg %p29
      $region26: #{maxout_conv_mnist_forward.4} parent=23 // pred_check_branch
        %130 = sbr.rel (%p128) target = $region28
      $region27: #{maxout_conv_mnist_forward.4} parent=23 // pred_region
        %p131 = scmp.lt.s32.totalorder %s9, 1
        %s132 = scalar_select %p131, %s9, 1
        %s133 = smul.addr %s132, 304
        %s134 = smul.addr %s133, 4
        %s135 = scalar_lea.vmem %s0, %s134
      $region28: #{maxout_conv_mnist_forward.4} parent=23 // pred_fallthru
        _
    $region24: #{maxout_conv_mnist_forward.4} parent=5 // pred_fallthru
      _
    %p136 = scmp.le.s32.totalorder 1, %s9
    %p137 = scmp.lt.s32.totalorder %s9, 3
    %p138 = pnand %p136, %p137
    %p139 = pneg %p138
    // Predicated region
    $region29: #{maxout_conv_mnist_forward.4} parent=5 // pred_check
      _
    $region30: #{maxout_conv_mnist_forward.4} parent=5 // pred_check_branch
      %141 = sbr.rel (%p138) target = $region32
    $region31: #{maxout_conv_mnist_forward.4} parent=5 // pred_region
      %s142 = ssub.s32 %s9, 1
      %p143 = scmp.lt.s32.totalorder %s14, 1
      %s144 = scalar_select %p143, %s14, 1
      %s145 = smul.addr %s144, 304
      %s146 = smul.addr %s145, 4
      %s147 = scalar_lea.vmem %s0, %s146
      %p148 = pneg %p35
      %p149 = pneg %p32
      %p150 = pneg %p56
      %p151 = pneg %p53
      %p152 = pneg %p77
      %p153 = pneg %p74
      %p154 = pneg %p103
      %p155 = pneg %p100
      %p156 = scmp.lt.s32.totalorder %s14, 1
      %s157 = scalar_select %p156, %s14, 1
      %s158 = smul.addr %s157, 11
      %s159 = smul.addr %s158, 4
      %s160 = scalar_lea.vmem %s3, %s159
      %p161 = scmp.lt.s32.totalorder %s14, 1
      %s162 = scalar_select %p161, %s14, 1
      %s163 = smul.addr %s162, 304
      %s164 = smul.addr %s163, 4
      %s165 = scalar_lea.vmem %s0, %s164
      %p166 = scmp.lt.s32.totalorder %s14, 1
      %s167 = scalar_select %p166, %s14, 1
      %s168 = smul.addr %s167, 11
      %s169 = smul.addr %s168, 4
      %s170 = scalar_lea.vmem %s3, %s169
      %v172 = vld [vmem:[%s165] sm:$0xff]
      %v173 = vld [vmem:[%s165 + $0x8] sm:$0xff]
      %v174 = vld [vmem:[%s165 + $0x10] sm:$0xff]
      %v175 = vld [vmem:[%s165 + $0x18] sm:$0xff]
      %v176 = vld [vmem:[%s165 + $0x20] sm:$0xff]
      %v177 = vld [vmem:[%s165 + $0x28] sm:$0xff]
      %v178 = vld [vmem:[%s165 + $0x30] sm:$0xff]
      %v179 = vld [vmem:[%s165 + $0x38] sm:$0xff]
      %v180 = vld [vmem:[%s165 + $0x40] sm:$0xff]
      %v181 = vld [vmem:[%s165 + $0x48] sm:$0xf]
      %v182 = vld [vmem:[%s165 + $0x4c] sm:$0xff]
      %v183 = vld [vmem:[%s165 + $0x54] sm:$0xff]
      %v184 = vld [vmem:[%s165 + $0x5c] sm:$0xff]
      %v185 = vld [vmem:[%s165 + $0x64] sm:$0xff]
      %v186 = vld [vmem:[%s165 + $0x6c] sm:$0xff]
      %v187 = vld [vmem:[%s165 + $0x74] sm:$0xff]
      %v188 = vld [vmem:[%s165 + $0x7c] sm:$0xff]
      %v189 = vld [vmem:[%s165 + $0x84] sm:$0xff]
      %v190 = vld [vmem:[%s165 + $0x8c] sm:$0xff]
      %v191 = vld [vmem:[%s165 + $0x94] sm:$0xf]
      %v192 = vld [vmem:[%s165 + $0x98] sm:$0xff]
      %v193 = vld [vmem:[%s165 + $0xa0] sm:$0xff]
      %v194 = vld [vmem:[%s165 + $0xa8] sm:$0xff]
      %v195 = vld [vmem:[%s165 + $0xb0] sm:$0xff]
      %v196 = vld [vmem:[%s165 + $0xb8] sm:$0xff]
      %v197 = vld [vmem:[%s165 + $0xc0] sm:$0xff]
      %v198 = vld [vmem:[%s165 + $0xc8] sm:$0xff]
      %v199 = vld [vmem:[%s165 + $0xd0] sm:$0xff]
      %v200 = vld [vmem:[%s165 + $0xd8] sm:$0xff]
      %v201 = vld [vmem:[%s165 + $0xe0] sm:$0xf]
      %v202 = vld [vmem:[%s165 + $0xe4] sm:$0xff]
      %v203 = vld [vmem:[%s165 + $0xec] sm:$0xff]
      %v204 = vld [vmem:[%s165 + $0xf4] sm:$0xff]
      %v205 = vld [vmem:[%s165 + $0xfc] sm:$0xff]
      %v206 = vld [vmem:[%s165 + $0x104] sm:$0xff]
      %v207 = vld [vmem:[%s165 + $0x10c] sm:$0xff]
      %v208 = vld [vmem:[%s165 + $0x114] sm:$0xff]
      %v209 = vld [vmem:[%s165 + $0x11c] sm:$0xff]
      %v210 = vld [vmem:[%s165 + $0x124] sm:$0xff]
      %v211 = vld [vmem:[%s165 + $0x12c] sm:$0xf]
      %v212 = vld [vmem:[%s165 + $0x130] sm:$0xff]
      %v213 = vld [vmem:[%s165 + $0x138] sm:$0xff]
      %v214 = vld [vmem:[%s165 + $0x140] sm:$0xff]
      %v215 = vld [vmem:[%s165 + $0x148] sm:$0xff]
      %v216 = vld [vmem:[%s165 + $0x150] sm:$0xff]
      %v217 = vld [vmem:[%s165 + $0x158] sm:$0xff]
      %v218 = vld [vmem:[%s165 + $0x160] sm:$0xff]
      %v219 = vld [vmem:[%s165 + $0x168] sm:$0xff]
      %v220 = vld [vmem:[%s165 + $0x170] sm:$0xff]
      %v221 = vld [vmem:[%s165 + $0x178] sm:$0xf]
      %v222 = vld [vmem:[%s165 + $0x17c] sm:$0xff]
      %v223 = vld [vmem:[%s165 + $0x184] sm:$0xff]
      %v224 = vld [vmem:[%s165 + $0x18c] sm:$0xff]
      %v225 = vld [vmem:[%s165 + $0x194] sm:$0xff]
      %v226 = vld [vmem:[%s165 + $0x19c] sm:$0xff]
      %v227 = vld [vmem:[%s165 + $0x1a4] sm:$0xff]
      %v228 = vld [vmem:[%s165 + $0x1ac] sm:$0xff]
      %v229 = vld [vmem:[%s165 + $0x1b4] sm:$0xff]
      %v230 = vld [vmem:[%s165 + $0x1bc] sm:$0xff]
      %v231 = vld [vmem:[%s165 + $0x1c4] sm:$0xf]
      %v232 = vld [vmem:[%s165 + $0x1c8] sm:$0xff]
      %v233 = vld [vmem:[%s165 + $0x1d0] sm:$0xff]
      %v234 = vld [vmem:[%s165 + $0x1d8] sm:$0xff]
      %v235 = vld [vmem:[%s165 + $0x1e0] sm:$0xff]
      %v236 = vld [vmem:[%s165 + $0x1e8] sm:$0xff]
      %v237 = vld [vmem:[%s165 + $0x1f0] sm:$0xff]
      %v238 = vld [vmem:[%s165 + $0x1f8] sm:$0xff]
      %v239 = vld [vmem:[%s165 + $0x200] sm:$0xff]
      %v240 = vld [vmem:[%s165 + $0x208] sm:$0xff]
      %v241 = vld [vmem:[%s165 + $0x210] sm:$0xf]
      %v242 = vld [vmem:[%s165 + $0x214] sm:$0xff]
      %v243 = vld [vmem:[%s165 + $0x21c] sm:$0xff]
      %v244 = vld [vmem:[%s165 + $0x224] sm:$0xff]
      %v245 = vld [vmem:[%s165 + $0x22c] sm:$0xff]
      %v246 = vld [vmem:[%s165 + $0x234] sm:$0xff]
      %v247 = vld [vmem:[%s165 + $0x23c] sm:$0xff]
      %v248 = vld [vmem:[%s165 + $0x244] sm:$0xff]
      %v249 = vld [vmem:[%s165 + $0x24c] sm:$0xff]
      %v250 = vld [vmem:[%s165 + $0x254] sm:$0xff]
      %v251 = vld [vmem:[%s165 + $0x25c] sm:$0xf]
      %v252 = vld [vmem:[%s165 + $0x260] sm:$0xff]
      %v253 = vld [vmem:[%s165 + $0x268] sm:$0xff]
      %v254 = vld [vmem:[%s165 + $0x270] sm:$0xff]
      %v255 = vld [vmem:[%s165 + $0x278] sm:$0xff]
      %v256 = vld [vmem:[%s165 + $0x280] sm:$0xff]
      %v257 = vld [vmem:[%s165 + $0x288] sm:$0xff]
      %v258 = vld [vmem:[%s165 + $0x290] sm:$0xff]
      %v259 = vld [vmem:[%s165 + $0x298] sm:$0xff]
      %v260 = vld [vmem:[%s165 + $0x2a0] sm:$0xff]
      %v261 = vld [vmem:[%s165 + $0x2a8] sm:$0xf]
      %v262 = vld [vmem:[%s165 + $0x2ac] sm:$0xff]
      %v263 = vld [vmem:[%s165 + $0x2b4] sm:$0xff]
      %v264 = vld [vmem:[%s165 + $0x2bc] sm:$0xff]
      %v265 = vld [vmem:[%s165 + $0x2c4] sm:$0xff]
      %v266 = vld [vmem:[%s165 + $0x2cc] sm:$0xff]
      %v267 = vld [vmem:[%s165 + $0x2d4] sm:$0xff]
      %v268 = vld [vmem:[%s165 + $0x2dc] sm:$0xff]
      %v269 = vld [vmem:[%s165 + $0x2e4] sm:$0xff]
      %v270 = vld [vmem:[%s165 + $0x2ec] sm:$0xff]
      %v271 = vld [vmem:[%s165 + $0x2f4] sm:$0xf]
      %v272 = vld [vmem:[%s165 + $0x2f8] sm:$0xff]
      %v273 = vld [vmem:[%s165 + $0x300] sm:$0xff]
      %v274 = vld [vmem:[%s165 + $0x308] sm:$0xff]
      %v275 = vld [vmem:[%s165 + $0x310] sm:$0xff]
      %v276 = vld [vmem:[%s165 + $0x318] sm:$0xff]
      %v277 = vld [vmem:[%s165 + $0x320] sm:$0xff]
      %v278 = vld [vmem:[%s165 + $0x328] sm:$0xff]
      %v279 = vld [vmem:[%s165 + $0x330] sm:$0xff]
      %v280 = vld [vmem:[%s165 + $0x338] sm:$0xff]
      %v281 = vld [vmem:[%s165 + $0x340] sm:$0xf]
      %v282 = vld [vmem:[%s165 + $0x344] sm:$0xff]
      %v283 = vld [vmem:[%s165 + $0x34c] sm:$0xff]
      %v284 = vld [vmem:[%s165 + $0x354] sm:$0xff]
      %v285 = vld [vmem:[%s165 + $0x35c] sm:$0xff]
      %v286 = vld [vmem:[%s165 + $0x364] sm:$0xff]
      %v287 = vld [vmem:[%s165 + $0x36c] sm:$0xff]
      %v288 = vld [vmem:[%s165 + $0x374] sm:$0xff]
      %v289 = vld [vmem:[%s165 + $0x37c] sm:$0xff]
      %v290 = vld [vmem:[%s165 + $0x384] sm:$0xff]
      %v291 = vld [vmem:[%s165 + $0x38c] sm:$0xf]
      %v292 = vld [vmem:[%s165 + $0x390] sm:$0xff]
      %v293 = vld [vmem:[%s165 + $0x398] sm:$0xff]
      %v294 = vld [vmem:[%s165 + $0x3a0] sm:$0xff]
      %v295 = vld [vmem:[%s165 + $0x3a8] sm:$0xff]
      %v296 = vld [vmem:[%s165 + $0x3b0] sm:$0xff]
      %v297 = vld [vmem:[%s165 + $0x3b8] sm:$0xff]
      %v298 = vld [vmem:[%s165 + $0x3c0] sm:$0xff]
      %v299 = vld [vmem:[%s165 + $0x3c8] sm:$0xff]
      %v300 = vld [vmem:[%s165 + $0x3d0] sm:$0xff]
      %v301 = vld [vmem:[%s165 + $0x3d8] sm:$0xf]
      %v302 = vld [vmem:[%s165 + $0x3dc] sm:$0xff]
      %v303 = vld [vmem:[%s165 + $0x3e4] sm:$0xff]
      %v304 = vld [vmem:[%s165 + $0x3ec] sm:$0xff]
      %v305 = vld [vmem:[%s165 + $0x3f4] sm:$0xff]
      %v306 = vld [vmem:[%s165 + $0x3fc] sm:$0xff]
      %v307 = vld [vmem:[%s165 + $0x404] sm:$0xff]
      %v308 = vld [vmem:[%s165 + $0x40c] sm:$0xff]
      %v309 = vld [vmem:[%s165 + $0x414] sm:$0xff]
      %v310 = vld [vmem:[%s165 + $0x41c] sm:$0xff]
      %v311 = vld [vmem:[%s165 + $0x424] sm:$0xf]
      %v312 = vld [vmem:[%s165 + $0x428] sm:$0xff]
      %v313 = vld [vmem:[%s165 + $0x430] sm:$0xff]
      %v314 = vld [vmem:[%s165 + $0x438] sm:$0xff]
      %v315 = vld [vmem:[%s165 + $0x440] sm:$0xff]
      %v316 = vld [vmem:[%s165 + $0x448] sm:$0xff]
      %v317 = vld [vmem:[%s165 + $0x450] sm:$0xff]
      %v318 = vld [vmem:[%s165 + $0x458] sm:$0xff]
      %v319 = vld [vmem:[%s165 + $0x460] sm:$0xff]
      %v320 = vld [vmem:[%s165 + $0x468] sm:$0xff]
      %v321 = vld [vmem:[%s165 + $0x470] sm:$0xf]
      %v322 = vld [vmem:[%s165 + $0x474] sm:$0x11]
      %v323 = vld [vmem:[%s165 + $0x47c] sm:$0x11]
      %v324 = vld [vmem:[%s165 + $0x484] sm:$0x11]
      %v325 = vld [vmem:[%s165 + $0x48c] sm:$0x11]
      %v326 = vld [vmem:[%s165 + $0x494] sm:$0x11]
      %v327 = vld [vmem:[%s165 + $0x49c] sm:$0x11]
      %v328 = vld [vmem:[%s165 + $0x4a4] sm:$0x11]
      %v329 = vld [vmem:[%s165 + $0x4ac] sm:$0x11]
      %v330 = vld [vmem:[%s165 + $0x4b4] sm:$0x11]
      %v331 = vld [vmem:[%s165 + $0x4bc] sm:$0x1]
      %v332 = vld [vmem:[%s1] sm:$0xf]
      %v333 = vld [vmem:[%s1 + $0x4] sm:$0xf]
      %v334 = vld [vmem:[%s1 + $0x8] sm:$0xf]
      %v335 = vld [vmem:[%s1 + $0xc] sm:$0xf]
      %v336 = vld [vmem:[%s1 + $0x10] sm:$0xf]
      %v337 = vld [vmem:[%s1 + $0x14] sm:$0xf]
      %v338 = vld [vmem:[%s1 + $0x18] sm:$0xf]
      %v339 = vld [vmem:[%s1 + $0x1c] sm:$0xf]
      %v340 = vld [vmem:[%s1 + $0x20] sm:$0xf]
      %v341 = vld [vmem:[%s1 + $0x24] sm:$0xf]
      %v342 = vld [vmem:[%s1 + $0x28] sm:$0xf]
      %v343 = vld [vmem:[%s1 + $0x2c] sm:$0xf]
      %v344 = vld [vmem:[%s1 + $0x30] sm:$0xf]
      %v345 = vld [vmem:[%s1 + $0x34] sm:$0xf]
      %v346 = vld [vmem:[%s1 + $0x38] sm:$0xf]
      %v347 = vld [vmem:[%s1 + $0x3c] sm:$0xf]
      %v348 = vld [vmem:[%s1 + $0x40] sm:$0xf]
      %v349 = vld [vmem:[%s1 + $0x44] sm:$0xf]
      %v350 = vld [vmem:[%s1 + $0x48] sm:$0xf]
      %v351 = vld [vmem:[%s1 + $0x4c] sm:$0xf]
      %v352 = vld [vmem:[%s1 + $0x50] sm:$0xf]
      %v353 = vld [vmem:[%s1 + $0x54] sm:$0xf]
      %v354 = vld [vmem:[%s1 + $0x58] sm:$0xf]
      %v355 = vld [vmem:[%s1 + $0x5c] sm:$0xf]
      %v356 = vld [vmem:[%s1 + $0x60] sm:$0xf]
      %v357 = vld [vmem:[%s1 + $0x64] sm:$0xf]
      %v358 = vld [vmem:[%s1 + $0x68] sm:$0xf]
      %v359 = vld [vmem:[%s1 + $0x6c] sm:$0xf]
      %v360 = vld [vmem:[%s1 + $0x70] sm:$0xf]
      %v361 = vld [vmem:[%s1 + $0x74] sm:$0xf]
      %v362 = vld [vmem:[%s1 + $0x78] sm:$0xf]
      %v363 = vld [vmem:[%s1 + $0x7c] sm:$0xf]
      %v364 = vld [vmem:[%s1 + $0x80] sm:$0xf]
      %v365 = vld [vmem:[%s1 + $0x84] sm:$0xf]
      %v366 = vld [vmem:[%s1 + $0x88] sm:$0xf]
      %v367 = vld [vmem:[%s1 + $0x8c] sm:$0xf]
      %v368 = vld [vmem:[%s1 + $0x90] sm:$0xf]
      %v369 = vld [vmem:[%s1 + $0x94] sm:$0xf]
      %v370 = vld [vmem:[%s1 + $0x98] sm:$0xf]
      %v371 = vld [vmem:[%s1 + $0x9c] sm:$0xf]
      %v372 = vld [vmem:[%s1 + $0xa0] sm:$0xf]
      %v373 = vld [vmem:[%s1 + $0xa4] sm:$0xf]
      %v374 = vld [vmem:[%s1 + $0xa8] sm:$0xf]
      %v375 = vld [vmem:[%s1 + $0xac] sm:$0xf]
      %v376 = vld [vmem:[%s1 + $0xb0] sm:$0xf]
      %v377 = vld [vmem:[%s1 + $0xb4] sm:$0xf]
      %v378 = vld [vmem:[%s1 + $0xb8] sm:$0xf]
      %v379 = vld [vmem:[%s1 + $0xbc] sm:$0xf]
      %v380 = vld [vmem:[%s1 + $0xc0] sm:$0xf]
      %v381 = vld [vmem:[%s1 + $0xc4] sm:$0xf]
      %v382 = vld [vmem:[%s1 + $0xc8] sm:$0xf]
      %v383 = vld [vmem:[%s1 + $0xcc] sm:$0xf]
      %v384 = vld [vmem:[%s1 + $0xd0] sm:$0xf]
      %v385 = vld [vmem:[%s1 + $0xd4] sm:$0xf]
      %v386 = vld [vmem:[%s1 + $0xd8] sm:$0xf]
      %v387 = vld [vmem:[%s1 + $0xdc] sm:$0xf]
      %v388 = vld [vmem:[%s1 + $0xe0] sm:$0xf]
      %v389 = vld [vmem:[%s1 + $0xe4] sm:$0xf]
      %v390 = vld [vmem:[%s1 + $0xe8] sm:$0xf]
      %v391 = vld [vmem:[%s1 + $0xec] sm:$0xf]
      %v392 = vld [vmem:[%s1 + $0xf0] sm:$0xf]
      %v393 = vld [vmem:[%s1 + $0xf4] sm:$0xf]
      %v394 = vld [vmem:[%s1 + $0xf8] sm:$0xf]
      %v395 = vld [vmem:[%s1 + $0xfc] sm:$0xf]
      %v396 = vld [vmem:[%s1 + $0x100] sm:$0xf]
      %v397 = vld [vmem:[%s1 + $0x104] sm:$0xf]
      %v398 = vld [vmem:[%s1 + $0x108] sm:$0xf]
      %v399 = vld [vmem:[%s1 + $0x10c] sm:$0xf]
      %v400 = vld [vmem:[%s1 + $0x110] sm:$0xf]
      %v401 = vld [vmem:[%s1 + $0x114] sm:$0xf]
      %v402 = vld [vmem:[%s1 + $0x118] sm:$0xf]
      %v403 = vld [vmem:[%s1 + $0x11c] sm:$0xf]
      %v404 = vld [vmem:[%s1 + $0x120] sm:$0xf]
      %v405 = vld [vmem:[%s1 + $0x124] sm:$0xf]
      %v406 = vld [vmem:[%s1 + $0x128] sm:$0xf]
      %v407 = vld [vmem:[%s1 + $0x12c] sm:$0xf]
      %v408 = vld [vmem:[%s1 + $0x130] sm:$0xf]
      %v409 = vld [vmem:[%s1 + $0x134] sm:$0xf]
      %v410 = vld [vmem:[%s1 + $0x138] sm:$0xf]
      %v411 = vld [vmem:[%s1 + $0x13c] sm:$0xf]
      %v412 = vld [vmem:[%s1 + $0x140] sm:$0xf]
      %v413 = vld [vmem:[%s1 + $0x144] sm:$0xf]
      %v414 = vld [vmem:[%s1 + $0x148] sm:$0xf]
      %v415 = vld [vmem:[%s1 + $0x14c] sm:$0xf]
      %v416 = vld [vmem:[%s1 + $0x150] sm:$0xf]
      %v417 = vld [vmem:[%s1 + $0x154] sm:$0xf]
      %v418 = vld [vmem:[%s1 + $0x158] sm:$0xf]
      %v419 = vld [vmem:[%s1 + $0x15c] sm:$0xf]
      %v420 = vld [vmem:[%s1 + $0x160] sm:$0xf]
      %v421 = vld [vmem:[%s1 + $0x164] sm:$0xf]
      %v422 = vld [vmem:[%s1 + $0x168] sm:$0xf]
      %v423 = vld [vmem:[%s1 + $0x16c] sm:$0xf]
      %v424 = vld [vmem:[%s1 + $0x170] sm:$0xf]
      %v425 = vld [vmem:[%s1 + $0x174] sm:$0xf]
      %v426 = vld [vmem:[%s1 + $0x178] sm:$0xf]
      %v427 = vld [vmem:[%s1 + $0x17c] sm:$0xf]
      %v428 = vld [vmem:[%s1 + $0x180] sm:$0xf]
      %v429 = vld [vmem:[%s1 + $0x184] sm:$0xf]
      %v430 = vld [vmem:[%s1 + $0x188] sm:$0xf]
      %v431 = vld [vmem:[%s1 + $0x18c] sm:$0xf]
      %v432 = vld [vmem:[%s1 + $0x190] sm:$0xf]
      %v433 = vld [vmem:[%s1 + $0x194] sm:$0xf]
      %v434 = vld [vmem:[%s1 + $0x198] sm:$0xf]
      %v435 = vld [vmem:[%s1 + $0x19c] sm:$0xf]
      %v436 = vld [vmem:[%s1 + $0x1a0] sm:$0xf]
      %v437 = vld [vmem:[%s1 + $0x1a4] sm:$0xf]
      %v438 = vld [vmem:[%s1 + $0x1a8] sm:$0xf]
      %v439 = vld [vmem:[%s1 + $0x1ac] sm:$0xf]
      %v440 = vld [vmem:[%s1 + $0x1b0] sm:$0xf]
      %v441 = vld [vmem:[%s1 + $0x1b4] sm:$0xf]
      %v442 = vld [vmem:[%s1 + $0x1b8] sm:$0xf]
      %v443 = vld [vmem:[%s1 + $0x1bc] sm:$0xf]
      %v444 = vld [vmem:[%s1 + $0x1c0] sm:$0xf]
      %v445 = vld [vmem:[%s1 + $0x1c4] sm:$0xf]
      %v446 = vld [vmem:[%s1 + $0x1c8] sm:$0xf]
      %v447 = vld [vmem:[%s1 + $0x1cc] sm:$0xf]
      %v448 = vld [vmem:[%s1 + $0x1d0] sm:$0xf]
      %v449 = vld [vmem:[%s1 + $0x1d4] sm:$0xf]
      %v450 = vld [vmem:[%s1 + $0x1d8] sm:$0xf]
      %v451 = vld [vmem:[%s1 + $0x1dc] sm:$0xf]
      %v452 = vld [vmem:[%s1 + $0x1e0] sm:$0xf]
      %v453 = vld [vmem:[%s1 + $0x1e4] sm:$0xf]
      %v454 = vld [vmem:[%s1 + $0x1e8] sm:$0xf]
      %v455 = vld [vmem:[%s1 + $0x1ec] sm:$0xf]
      %v456 = vld [vmem:[%s1 + $0x1f0] sm:$0xf]
      %v457 = vld [vmem:[%s1 + $0x1f4] sm:$0xf]
      %v458 = vld [vmem:[%s1 + $0x1f8] sm:$0xf]
      %v459 = vld [vmem:[%s1 + $0x1fc] sm:$0xf]
      %v460 = vld [vmem:[%s1 + $0x200] sm:$0xf]
      %v461 = vld [vmem:[%s1 + $0x204] sm:$0xf]
      %v462 = vld [vmem:[%s1 + $0x208] sm:$0xf]
      %v463 = vld [vmem:[%s1 + $0x20c] sm:$0xf]
      %v464 = vld [vmem:[%s1 + $0x210] sm:$0xf]
      %v465 = vld [vmem:[%s1 + $0x214] sm:$0xf]
      %v466 = vld [vmem:[%s1 + $0x218] sm:$0xf]
      %v467 = vld [vmem:[%s1 + $0x21c] sm:$0xf]
      %v468 = vld [vmem:[%s1 + $0x220] sm:$0xf]
      %v469 = vld [vmem:[%s1 + $0x224] sm:$0xf]
      %v470 = vld [vmem:[%s1 + $0x228] sm:$0xf]
      %v471 = vld [vmem:[%s1 + $0x22c] sm:$0xf]
      %v472 = vld [vmem:[%s1 + $0x230] sm:$0xf]
      %v473 = vld [vmem:[%s1 + $0x234] sm:$0xf]
      %v474 = vld [vmem:[%s1 + $0x238] sm:$0xf]
      %v475 = vld [vmem:[%s1 + $0x23c] sm:$0xf]
      %v476 = vld [vmem:[%s1 + $0x240] sm:$0xf]
      %v477 = vld [vmem:[%s1 + $0x244] sm:$0xf]
      %v478 = vld [vmem:[%s1 + $0x248] sm:$0xf]
      %v479 = vld [vmem:[%s1 + $0x24c] sm:$0xf]
      %v480 = vld [vmem:[%s1 + $0x250] sm:$0xf]
      %v481 = vld [vmem:[%s1 + $0x254] sm:$0xf]
      %v482 = vld [vmem:[%s1 + $0x258] sm:$0xf]
      %v483 = vld [vmem:[%s1 + $0x25c] sm:$0xf]
      %v484 = vld [vmem:[%s1 + $0x260] sm:$0xf]
      %v485 = vld [vmem:[%s1 + $0x264] sm:$0xf]
      %v486 = vld [vmem:[%s1 + $0x268] sm:$0xf]
      %v487 = vld [vmem:[%s1 + $0x26c] sm:$0xf]
      %v488 = vld [vmem:[%s1 + $0x270] sm:$0xf]
      %v489 = vld [vmem:[%s1 + $0x274] sm:$0xf]
      %v490 = vld [vmem:[%s1 + $0x278] sm:$0xf]
      %v491 = vld [vmem:[%s1 + $0x27c] sm:$0xf]
      %v492 = vld [vmem:[%s1 + $0x280] sm:$0xf]
      %v493 = vld [vmem:[%s1 + $0x284] sm:$0xf]
      %v494 = vld [vmem:[%s1 + $0x288] sm:$0xf]
      %v495 = vld [vmem:[%s1 + $0x28c] sm:$0xf]
      %v496 = vld [vmem:[%s1 + $0x290] sm:$0xf]
      %v497 = vld [vmem:[%s1 + $0x294] sm:$0xf]
      %v498 = vld [vmem:[%s1 + $0x298] sm:$0xf]
      %v499 = vld [vmem:[%s1 + $0x29c] sm:$0xf]
      %v500 = vld [vmem:[%s1 + $0x2a0] sm:$0xf]
      %v501 = vld [vmem:[%s1 + $0x2a4] sm:$0xf]
      %v502 = vld [vmem:[%s1 + $0x2a8] sm:$0xf]
      %v503 = vld [vmem:[%s1 + $0x2ac] sm:$0xf]
      %v504 = vld [vmem:[%s1 + $0x2b0] sm:$0xf]
      %v505 = vld [vmem:[%s1 + $0x2b4] sm:$0xf]
      %v506 = vld [vmem:[%s1 + $0x2b8] sm:$0xf]
      %v507 = vld [vmem:[%s1 + $0x2bc] sm:$0xf]
      %v508 = vld [vmem:[%s1 + $0x2c0] sm:$0xf]
      %v509 = vld [vmem:[%s1 + $0x2c4] sm:$0xf]
      %v510 = vld [vmem:[%s1 + $0x2c8] sm:$0xf]
      %v511 = vld [vmem:[%s1 + $0x2cc] sm:$0xf]
      %v512 = vld [vmem:[%s1 + $0x2d0] sm:$0xf]
      %v513 = vld [vmem:[%s1 + $0x2d4] sm:$0xf]
      %v514 = vld [vmem:[%s1 + $0x2d8] sm:$0xf]
      %v515 = vld [vmem:[%s1 + $0x2dc] sm:$0xf]
      %v516 = vld [vmem:[%s1 + $0x2e0] sm:$0xf]
      %v517 = vld [vmem:[%s1 + $0x2e4] sm:$0xf]
      %v518 = vld [vmem:[%s1 + $0x2e8] sm:$0xf]
      %v519 = vld [vmem:[%s1 + $0x2ec] sm:$0xf]
      %v520 = vld [vmem:[%s1 + $0x2f0] sm:$0xf]
      %v521 = vld [vmem:[%s1 + $0x2f4] sm:$0xf]
      %v522 = vld [vmem:[%s1 + $0x2f8] sm:$0xf]
      %v523 = vld [vmem:[%s1 + $0x2fc] sm:$0xf]
      %v524 = vld [vmem:[%s1 + $0x300] sm:$0xf]
      %v525 = vld [vmem:[%s1 + $0x304] sm:$0xf]
      %v526 = vld [vmem:[%s1 + $0x308] sm:$0xf]
      %v527 = vld [vmem:[%s1 + $0x30c] sm:$0xf]
      %v528 = vld [vmem:[%s1 + $0x310] sm:$0xf]
      %v529 = vld [vmem:[%s1 + $0x314] sm:$0xf]
      %v530 = vld [vmem:[%s1 + $0x318] sm:$0xf]
      %v531 = vld [vmem:[%s1 + $0x31c] sm:$0xf]
      %v532 = vld [vmem:[%s1 + $0x320] sm:$0xf]
      %v533 = vld [vmem:[%s1 + $0x324] sm:$0xf]
      %v534 = vld [vmem:[%s1 + $0x328] sm:$0xf]
      %v535 = vld [vmem:[%s1 + $0x32c] sm:$0xf]
      %v536 = vld [vmem:[%s1 + $0x330] sm:$0xf]
      %v537 = vld [vmem:[%s1 + $0x334] sm:$0xf]
      %v538 = vld [vmem:[%s1 + $0x338] sm:$0xf]
      %v539 = vld [vmem:[%s1 + $0x33c] sm:$0xf]
      %v540 = vld [vmem:[%s1 + $0x340] sm:$0xf]
      %v541 = vld [vmem:[%s1 + $0x344] sm:$0xf]
      %v542 = vld [vmem:[%s1 + $0x348] sm:$0xf]
      %v543 = vld [vmem:[%s1 + $0x34c] sm:$0xf]
      %v544 = vld [vmem:[%s1 + $0x350] sm:$0xf]
      %v545 = vld [vmem:[%s1 + $0x354] sm:$0xf]
      %v546 = vld [vmem:[%s1 + $0x358] sm:$0xf]
      %v547 = vld [vmem:[%s1 + $0x35c] sm:$0xf]
      %v548 = vld [vmem:[%s1 + $0x360] sm:$0xf]
      %v549 = vld [vmem:[%s1 + $0x364] sm:$0xf]
      %v550 = vld [vmem:[%s1 + $0x368] sm:$0xf]
      %v551 = vld [vmem:[%s1 + $0x36c] sm:$0xf]
      %v552 = vld [vmem:[%s1 + $0x370] sm:$0xf]
      %v553 = vld [vmem:[%s1 + $0x374] sm:$0xf]
      %v554 = vld [vmem:[%s1 + $0x378] sm:$0xf]
      %v555 = vld [vmem:[%s1 + $0x37c] sm:$0xf]
      %v556 = vld [vmem:[%s1 + $0x380] sm:$0xf]
      %v557 = vld [vmem:[%s1 + $0x384] sm:$0xf]
      %v558 = vld [vmem:[%s1 + $0x388] sm:$0xf]
      %v559 = vld [vmem:[%s1 + $0x38c] sm:$0xf]
      %v560 = vld [vmem:[%s1 + $0x390] sm:$0xf]
      %v561 = vld [vmem:[%s1 + $0x394] sm:$0xf]
      %v562 = vld [vmem:[%s1 + $0x398] sm:$0xf]
      %v563 = vld [vmem:[%s1 + $0x39c] sm:$0xf]
      %v564 = vld [vmem:[%s1 + $0x3a0] sm:$0xf]
      %v565 = vld [vmem:[%s1 + $0x3a4] sm:$0xf]
      %v566 = vld [vmem:[%s1 + $0x3a8] sm:$0xf]
      %v567 = vld [vmem:[%s1 + $0x3ac] sm:$0xf]
      %v568 = vld [vmem:[%s1 + $0x3b0] sm:$0xf]
      %v569 = vld [vmem:[%s1 + $0x3b4] sm:$0xf]
      %v570 = vld [vmem:[%s1 + $0x3b8] sm:$0xf]
      %v571 = vld [vmem:[%s1 + $0x3bc] sm:$0xf]
      %v572 = vld [vmem:[%s1 + $0x3c0] sm:$0xf]
      %v573 = vld [vmem:[%s1 + $0x3c4] sm:$0xf]
      %v574 = vld [vmem:[%s1 + $0x3c8] sm:$0xf]
      %v575 = vld [vmem:[%s1 + $0x3cc] sm:$0xf]
      %v576 = vld [vmem:[%s1 + $0x3d0] sm:$0xf]
      %v577 = vld [vmem:[%s1 + $0x3d4] sm:$0xf]
      %v578 = vld [vmem:[%s1 + $0x3d8] sm:$0xf]
      %v579 = vld [vmem:[%s1 + $0x3dc] sm:$0xf]
      %v580 = vld [vmem:[%s1 + $0x3e0] sm:$0xf]
      %v581 = vld [vmem:[%s1 + $0x3e4] sm:$0xf]
      %v582 = vld [vmem:[%s1 + $0x3e8] sm:$0xf]
      %v583 = vld [vmem:[%s1 + $0x3ec] sm:$0xf]
      %v584 = vld [vmem:[%s1 + $0x3f0] sm:$0xf]
      %v585 = vld [vmem:[%s1 + $0x3f4] sm:$0xf]
      %v586 = vld [vmem:[%s1 + $0x3f8] sm:$0xf]
      %v587 = vld [vmem:[%s1 + $0x3fc] sm:$0xf]
      %v588 = vld [vmem:[%s1 + $0x400] sm:$0xf]
      %v589 = vld [vmem:[%s1 + $0x404] sm:$0xf]
      %v590 = vld [vmem:[%s1 + $0x408] sm:$0xf]
      %v591 = vld [vmem:[%s1 + $0x40c] sm:$0xf]
      %v592 = vld [vmem:[%s1 + $0x410] sm:$0xf]
      %v593 = vld [vmem:[%s1 + $0x414] sm:$0xf]
      %v594 = vld [vmem:[%s1 + $0x418] sm:$0xf]
      %v595 = vld [vmem:[%s1 + $0x41c] sm:$0xf]
      %v596 = vld [vmem:[%s1 + $0x420] sm:$0xf]
      %v597 = vld [vmem:[%s1 + $0x424] sm:$0xf]
      %v598 = vld [vmem:[%s1 + $0x428] sm:$0xf]
      %v599 = vld [vmem:[%s1 + $0x42c] sm:$0xf]
      %v600 = vld [vmem:[%s1 + $0x430] sm:$0xf]
      %v601 = vld [vmem:[%s1 + $0x434] sm:$0xf]
      %v602 = vld [vmem:[%s1 + $0x438] sm:$0xf]
      %v603 = vld [vmem:[%s1 + $0x43c] sm:$0xf]
      %v604 = vld [vmem:[%s1 + $0x440] sm:$0xf]
      %v605 = vld [vmem:[%s1 + $0x444] sm:$0xf]
      %v606 = vld [vmem:[%s1 + $0x448] sm:$0xf]
      %v607 = vld [vmem:[%s1 + $0x44c] sm:$0xf]
      %v608 = vld [vmem:[%s1 + $0x450] sm:$0xf]
      %v609 = vld [vmem:[%s1 + $0x454] sm:$0xf]
      %v610 = vld [vmem:[%s1 + $0x458] sm:$0xf]
      %v611 = vld [vmem:[%s1 + $0x45c] sm:$0xf]
      %v612 = vld [vmem:[%s1 + $0x460] sm:$0xf]
      %v613 = vld [vmem:[%s1 + $0x464] sm:$0xf]
      %v614 = vld [vmem:[%s1 + $0x468] sm:$0xf]
      %v615 = vld [vmem:[%s1 + $0x46c] sm:$0xf]
      %v616 = vld [vmem:[%s1 + $0x470] sm:$0xf]
      %v617 = vld [vmem:[%s1 + $0x474] sm:$0xf]
      %v618 = vld [vmem:[%s1 + $0x478] sm:$0xf]
      %v619 = vld [vmem:[%s1 + $0x47c] sm:$0xf]
      %v620 = vld [vmem:[%s1 + $0x480] sm:$0xf]
      %v621 = vld [vmem:[%s1 + $0x484] sm:$0xf]
      %v622 = vld [vmem:[%s1 + $0x488] sm:$0xf]
      %v623 = vld [vmem:[%s1 + $0x48c] sm:$0xf]
      %v624 = vld [vmem:[%s1 + $0x490] sm:$0xf]
      %v625 = vld [vmem:[%s1 + $0x494] sm:$0xf]
      %v626 = vld [vmem:[%s2] sm:$0x1]
      %v628 = vperm.slane %v626, 0
      %v790 = vunpack.c.l.b16 %v172
      %v791 = vunpack.c.h.b16 %v172
      %v792 = vunpack.c.l.b16 %v173
      %v793 = vunpack.c.h.b16 %v173
      %v794 = vunpack.c.l.b16 %v174
      %v795 = vunpack.c.h.b16 %v174
      %v796 = vunpack.c.l.b16 %v175
      %v797 = vunpack.c.h.b16 %v175
      %v798 = vunpack.c.l.b16 %v176
      %v799 = vunpack.c.h.b16 %v176
      %v800 = vunpack.c.l.b16 %v177
      %v801 = vunpack.c.h.b16 %v177
      %v802 = vunpack.c.l.b16 %v178
      %v803 = vunpack.c.h.b16 %v178
      %v804 = vunpack.c.l.b16 %v179
      %v805 = vunpack.c.h.b16 %v179
      %v806 = vunpack.c.l.b16 %v180
      %v807 = vunpack.c.h.b16 %v180
      %v808 = vunpack.c.l.b16 %v181
      %v809 = vunpack.c.l.b16 %v182
      %v810 = vunpack.c.h.b16 %v182
      %v811 = vunpack.c.l.b16 %v183
      %v812 = vunpack.c.h.b16 %v183
      %v813 = vunpack.c.l.b16 %v184
      %v814 = vunpack.c.h.b16 %v184
      %v815 = vunpack.c.l.b16 %v185
      %v816 = vunpack.c.h.b16 %v185
      %v817 = vunpack.c.l.b16 %v186
      %v818 = vunpack.c.h.b16 %v186
      %v819 = vunpack.c.l.b16 %v187
      %v820 = vunpack.c.h.b16 %v187
      %v821 = vunpack.c.l.b16 %v188
      %v822 = vunpack.c.h.b16 %v188
      %v823 = vunpack.c.l.b16 %v189
      %v824 = vunpack.c.h.b16 %v189
      %v825 = vunpack.c.l.b16 %v190
      %v826 = vunpack.c.h.b16 %v190
      %v827 = vunpack.c.l.b16 %v191
      %v828 = vunpack.c.l.b16 %v192
      %v829 = vunpack.c.h.b16 %v192
      %v830 = vunpack.c.l.b16 %v193
      %v831 = vunpack.c.h.b16 %v193
      %v832 = vunpack.c.l.b16 %v194
      %v833 = vunpack.c.h.b16 %v194
      %v834 = vunpack.c.l.b16 %v195
      %v835 = vunpack.c.h.b16 %v195
      %v836 = vunpack.c.l.b16 %v196
      %v837 = vunpack.c.h.b16 %v196
      %v838 = vunpack.c.l.b16 %v197
      %v839 = vunpack.c.h.b16 %v197
      %v840 = vunpack.c.l.b16 %v198
      %v841 = vunpack.c.h.b16 %v198
      %v842 = vunpack.c.l.b16 %v199
      %v843 = vunpack.c.h.b16 %v199
      %v844 = vunpack.c.l.b16 %v200
      %v845 = vunpack.c.h.b16 %v200
      %v846 = vunpack.c.l.b16 %v201
      %v847 = vunpack.c.l.b16 %v202
      %v848 = vunpack.c.h.b16 %v202
      %v849 = vunpack.c.l.b16 %v203
      %v850 = vunpack.c.h.b16 %v203
      %v851 = vunpack.c.l.b16 %v204
      %v852 = vunpack.c.h.b16 %v204
      %v853 = vunpack.c.l.b16 %v205
      %v854 = vunpack.c.h.b16 %v205
      %v855 = vunpack.c.l.b16 %v206
      %v856 = vunpack.c.h.b16 %v206
      %v857 = vunpack.c.l.b16 %v207
      %v858 = vunpack.c.h.b16 %v207
      %v859 = vunpack.c.l.b16 %v208
      %v860 = vunpack.c.h.b16 %v208
      %v861 = vunpack.c.l.b16 %v209
      %v862 = vunpack.c.h.b16 %v209
      %v863 = vunpack.c.l.b16 %v210
      %v864 = vunpack.c.h.b16 %v210
      %v865 = vunpack.c.l.b16 %v211
      %v866 = vunpack.c.l.b16 %v212
      %v867 = vunpack.c.h.b16 %v212
      %v868 = vunpack.c.l.b16 %v213
      %v869 = vunpack.c.h.b16 %v213
      %v870 = vunpack.c.l.b16 %v214
      %v871 = vunpack.c.h.b16 %v214
      %v872 = vunpack.c.l.b16 %v215
      %v873 = vunpack.c.h.b16 %v215
      %v874 = vunpack.c.l.b16 %v216
      %v875 = vunpack.c.h.b16 %v216
      %v876 = vunpack.c.l.b16 %v217
      %v877 = vunpack.c.h.b16 %v217
      %v878 = vunpack.c.l.b16 %v218
      %v879 = vunpack.c.h.b16 %v218
      %v880 = vunpack.c.l.b16 %v219
      %v881 = vunpack.c.h.b16 %v219
      %v882 = vunpack.c.l.b16 %v220
      %v883 = vunpack.c.h.b16 %v220
      %v884 = vunpack.c.l.b16 %v221
      %v885 = vunpack.c.l.b16 %v222
      %v886 = vunpack.c.h.b16 %v222
      %v887 = vunpack.c.l.b16 %v223
      %v888 = vunpack.c.h.b16 %v223
      %v889 = vunpack.c.l.b16 %v224
      %v890 = vunpack.c.h.b16 %v224
      %v891 = vunpack.c.l.b16 %v225
      %v892 = vunpack.c.h.b16 %v225
      %v893 = vunpack.c.l.b16 %v226
      %v894 = vunpack.c.h.b16 %v226
      %v895 = vunpack.c.l.b16 %v227
      %v896 = vunpack.c.h.b16 %v227
      %v897 = vunpack.c.l.b16 %v228
      %v898 = vunpack.c.h.b16 %v228
      %v899 = vunpack.c.l.b16 %v229
      %v900 = vunpack.c.h.b16 %v229
      %v901 = vunpack.c.l.b16 %v230
      %v902 = vunpack.c.h.b16 %v230
      %v903 = vunpack.c.l.b16 %v231
      %v904 = vunpack.c.l.b16 %v232
      %v905 = vunpack.c.h.b16 %v232
      %v906 = vunpack.c.l.b16 %v233
      %v907 = vunpack.c.h.b16 %v233
      %v908 = vunpack.c.l.b16 %v234
      %v909 = vunpack.c.h.b16 %v234
      %v910 = vunpack.c.l.b16 %v235
      %v911 = vunpack.c.h.b16 %v235
      %v912 = vunpack.c.l.b16 %v236
      %v913 = vunpack.c.h.b16 %v236
      %v914 = vunpack.c.l.b16 %v237
      %v915 = vunpack.c.h.b16 %v237
      %v916 = vunpack.c.l.b16 %v238
      %v917 = vunpack.c.h.b16 %v238
      %v918 = vunpack.c.l.b16 %v239
      %v919 = vunpack.c.h.b16 %v239
      %v920 = vunpack.c.l.b16 %v240
      %v921 = vunpack.c.h.b16 %v240
      %v922 = vunpack.c.l.b16 %v241
      %v923 = vunpack.c.l.b16 %v242
      %v924 = vunpack.c.h.b16 %v242
      %v925 = vunpack.c.l.b16 %v243
      %v926 = vunpack.c.h.b16 %v243
      %v927 = vunpack.c.l.b16 %v244
      %v928 = vunpack.c.h.b16 %v244
      %v929 = vunpack.c.l.b16 %v245
      %v930 = vunpack.c.h.b16 %v245
      %v931 = vunpack.c.l.b16 %v246
      %v932 = vunpack.c.h.b16 %v246
      %v933 = vunpack.c.l.b16 %v247
      %v934 = vunpack.c.h.b16 %v247
      %v935 = vunpack.c.l.b16 %v248
      %v936 = vunpack.c.h.b16 %v248
      %v937 = vunpack.c.l.b16 %v249
      %v938 = vunpack.c.h.b16 %v249
      %v939 = vunpack.c.l.b16 %v250
      %v940 = vunpack.c.h.b16 %v250
      %v941 = vunpack.c.l.b16 %v251
      %v942 = vunpack.c.l.b16 %v252
      %v943 = vunpack.c.h.b16 %v252
      %v944 = vunpack.c.l.b16 %v253
      %v945 = vunpack.c.h.b16 %v253
      %v946 = vunpack.c.l.b16 %v254
      %v947 = vunpack.c.h.b16 %v254
      %v948 = vunpack.c.l.b16 %v255
      %v949 = vunpack.c.h.b16 %v255
      %v950 = vunpack.c.l.b16 %v256
      %v951 = vunpack.c.h.b16 %v256
      %v952 = vunpack.c.l.b16 %v257
      %v953 = vunpack.c.h.b16 %v257
      %v954 = vunpack.c.l.b16 %v258
      %v955 = vunpack.c.h.b16 %v258
      %v956 = vunpack.c.l.b16 %v259
      %v957 = vunpack.c.h.b16 %v259
      %v958 = vunpack.c.l.b16 %v260
      %v959 = vunpack.c.h.b16 %v260
      %v960 = vunpack.c.l.b16 %v261
      %v961 = vunpack.c.l.b16 %v262
      %v962 = vunpack.c.h.b16 %v262
      %v963 = vunpack.c.l.b16 %v263
      %v964 = vunpack.c.h.b16 %v263
      %v965 = vunpack.c.l.b16 %v264
      %v966 = vunpack.c.h.b16 %v264
      %v967 = vunpack.c.l.b16 %v265
      %v968 = vunpack.c.h.b16 %v265
      %v969 = vunpack.c.l.b16 %v266
      %v970 = vunpack.c.h.b16 %v266
      %v971 = vunpack.c.l.b16 %v267
      %v972 = vunpack.c.h.b16 %v267
      %v973 = vunpack.c.l.b16 %v268
      %v974 = vunpack.c.h.b16 %v268
      %v975 = vunpack.c.l.b16 %v269
      %v976 = vunpack.c.h.b16 %v269
      %v977 = vunpack.c.l.b16 %v270
      %v978 = vunpack.c.h.b16 %v270
      %v979 = vunpack.c.l.b16 %v271
      %v980 = vunpack.c.l.b16 %v272
      %v981 = vunpack.c.h.b16 %v272
      %v982 = vunpack.c.l.b16 %v273
      %v983 = vunpack.c.h.b16 %v273
      %v984 = vunpack.c.l.b16 %v274
      %v985 = vunpack.c.h.b16 %v274
      %v986 = vunpack.c.l.b16 %v275
      %v987 = vunpack.c.h.b16 %v275
      %v988 = vunpack.c.l.b16 %v276
      %v989 = vunpack.c.h.b16 %v276
      %v990 = vunpack.c.l.b16 %v277
      %v991 = vunpack.c.h.b16 %v277
      %v992 = vunpack.c.l.b16 %v278
      %v993 = vunpack.c.h.b16 %v278
      %v994 = vunpack.c.l.b16 %v279
      %v995 = vunpack.c.h.b16 %v279
      %v996 = vunpack.c.l.b16 %v280
      %v997 = vunpack.c.h.b16 %v280
      %v998 = vunpack.c.l.b16 %v281
      %v999 = vunpack.c.l.b16 %v282
      %v1000 = vunpack.c.h.b16 %v282
      %v1001 = vunpack.c.l.b16 %v283
      %v1002 = vunpack.c.h.b16 %v283
      %v1003 = vunpack.c.l.b16 %v284
      %v1004 = vunpack.c.h.b16 %v284
      %v1005 = vunpack.c.l.b16 %v285
      %v1006 = vunpack.c.h.b16 %v285
      %v1007 = vunpack.c.l.b16 %v286
      %v1008 = vunpack.c.h.b16 %v286
      %v1009 = vunpack.c.l.b16 %v287
      %v1010 = vunpack.c.h.b16 %v287
      %v1011 = vunpack.c.l.b16 %v288
      %v1012 = vunpack.c.h.b16 %v288
      %v1013 = vunpack.c.l.b16 %v289
      %v1014 = vunpack.c.h.b16 %v289
      %v1015 = vunpack.c.l.b16 %v290
      %v1016 = vunpack.c.h.b16 %v290
      %v1017 = vunpack.c.l.b16 %v291
      %v1018 = vunpack.c.l.b16 %v292
      %v1019 = vunpack.c.h.b16 %v292
      %v1020 = vunpack.c.l.b16 %v293
      %v1021 = vunpack.c.h.b16 %v293
      %v1022 = vunpack.c.l.b16 %v294
      %v1023 = vunpack.c.h.b16 %v294
      %v1024 = vunpack.c.l.b16 %v295
      %v1025 = vunpack.c.h.b16 %v295
      %v1026 = vunpack.c.l.b16 %v296
      %v1027 = vunpack.c.h.b16 %v296
      %v1028 = vunpack.c.l.b16 %v297
      %v1029 = vunpack.c.h.b16 %v297
      %v1030 = vunpack.c.l.b16 %v298
      %v1031 = vunpack.c.h.b16 %v298
      %v1032 = vunpack.c.l.b16 %v299
      %v1033 = vunpack.c.h.b16 %v299
      %v1034 = vunpack.c.l.b16 %v300
      %v1035 = vunpack.c.h.b16 %v300
      %v1036 = vunpack.c.l.b16 %v301
      %v1037 = vunpack.c.l.b16 %v302
      %v1038 = vunpack.c.h.b16 %v302
      %v1039 = vunpack.c.l.b16 %v303
      %v1040 = vunpack.c.h.b16 %v303
      %v1041 = vunpack.c.l.b16 %v304
      %v1042 = vunpack.c.h.b16 %v304
      %v1043 = vunpack.c.l.b16 %v305
      %v1044 = vunpack.c.h.b16 %v305
      %v1045 = vunpack.c.l.b16 %v306
      %v1046 = vunpack.c.h.b16 %v306
      %v1047 = vunpack.c.l.b16 %v307
      %v1048 = vunpack.c.h.b16 %v307
      %v1049 = vunpack.c.l.b16 %v308
      %v1050 = vunpack.c.h.b16 %v308
      %v1051 = vunpack.c.l.b16 %v309
      %v1052 = vunpack.c.h.b16 %v309
      %v1053 = vunpack.c.l.b16 %v310
      %v1054 = vunpack.c.h.b16 %v310
      %v1055 = vunpack.c.l.b16 %v311
      %v1056 = vunpack.c.l.b16 %v312
      %v1057 = vunpack.c.h.b16 %v312
      %v1058 = vunpack.c.l.b16 %v313
      %v1059 = vunpack.c.h.b16 %v313
      %v1060 = vunpack.c.l.b16 %v314
      %v1061 = vunpack.c.h.b16 %v314
      %v1062 = vunpack.c.l.b16 %v315
      %v1063 = vunpack.c.h.b16 %v315
      %v1064 = vunpack.c.l.b16 %v316
      %v1065 = vunpack.c.h.b16 %v316
      %v1066 = vunpack.c.l.b16 %v317
      %v1067 = vunpack.c.h.b16 %v317
      %v1068 = vunpack.c.l.b16 %v318
      %v1069 = vunpack.c.h.b16 %v318
      %v1070 = vunpack.c.l.b16 %v319
      %v1071 = vunpack.c.h.b16 %v319
      %v1072 = vunpack.c.l.b16 %v320
      %v1073 = vunpack.c.h.b16 %v320
      %v1074 = vunpack.c.l.b16 %v321
      %v1075 = vunpack.c.l.b16 %v322
      %v1076 = vunpack.c.h.b16 %v322
      %v1077 = vunpack.c.l.b16 %v323
      %v1078 = vunpack.c.h.b16 %v323
      %v1079 = vunpack.c.l.b16 %v324
      %v1080 = vunpack.c.h.b16 %v324
      %v1081 = vunpack.c.l.b16 %v325
      %v1082 = vunpack.c.h.b16 %v325
      %v1083 = vunpack.c.l.b16 %v326
      %v1084 = vunpack.c.h.b16 %v326
      %v1085 = vunpack.c.l.b16 %v327
      %v1086 = vunpack.c.h.b16 %v327
      %v1087 = vunpack.c.l.b16 %v328
      %v1088 = vunpack.c.h.b16 %v328
      %v1089 = vunpack.c.l.b16 %v329
      %v1090 = vunpack.c.h.b16 %v329
      %v1091 = vunpack.c.l.b16 %v330
      %v1092 = vunpack.c.h.b16 %v330
      %v1093 = vunpack.c.l.b16 %v331
      %v1094 = vpack.c.b16 %v809, %v790
      %v1095 = vpack.c.b16 %v810, %v791
      %v1096 = vpack.c.b16 %v811, %v792
      %v1097 = vpack.c.b16 %v812, %v793
      %v1098 = vpack.c.b16 %v813, %v794
      %v1099 = vpack.c.b16 %v814, %v795
      %v1100 = vpack.c.b16 %v815, %v796
      %v1101 = vpack.c.b16 %v816, %v797
      %v1102 = vpack.c.b16 %v817, %v798
      %v1103 = vpack.c.b16 %v818, %v799
      %v1104 = vpack.c.b16 %v819, %v800
      %v1105 = vpack.c.b16 %v820, %v801
      %v1106 = vpack.c.b16 %v821, %v802
      %v1107 = vpack.c.b16 %v822, %v803
      %v1108 = vpack.c.b16 %v823, %v804
      %v1109 = vpack.c.b16 %v824, %v805
      %v1110 = vpack.c.b16 %v825, %v806
      %v1111 = vpack.c.b16 %v826, %v807
      %v1112 = vpack.c.b16 %v827, %v808
      %v1113 = vpack.c.b16 %v847, %v828
      %v1114 = vpack.c.b16 %v848, %v829
      %v1115 = vpack.c.b16 %v849, %v830
      %v1116 = vpack.c.b16 %v850, %v831
      %v1117 = vpack.c.b16 %v851, %v832
      %v1118 = vpack.c.b16 %v852, %v833
      %v1119 = vpack.c.b16 %v853, %v834
      %v1120 = vpack.c.b16 %v854, %v835
      %v1121 = vpack.c.b16 %v855, %v836
      %v1122 = vpack.c.b16 %v856, %v837
      %v1123 = vpack.c.b16 %v857, %v838
      %v1124 = vpack.c.b16 %v858, %v839
      %v1125 = vpack.c.b16 %v859, %v840
      %v1126 = vpack.c.b16 %v860, %v841
      %v1127 = vpack.c.b16 %v861, %v842
      %v1128 = vpack.c.b16 %v862, %v843
      %v1129 = vpack.c.b16 %v863, %v844
      %v1130 = vpack.c.b16 %v864, %v845
      %v1131 = vpack.c.b16 %v865, %v846
      %v1132 = vpack.c.b16 %v885, %v866
      %v1133 = vpack.c.b16 %v886, %v867
      %v1134 = vpack.c.b16 %v887, %v868
      %v1135 = vpack.c.b16 %v888, %v869
      %v1136 = vpack.c.b16 %v889, %v870
      %v1137 = vpack.c.b16 %v890, %v871
      %v1138 = vpack.c.b16 %v891, %v872
      %v1139 = vpack.c.b16 %v892, %v873
      %v1140 = vpack.c.b16 %v893, %v874
      %v1141 = vpack.c.b16 %v894, %v875
      %v1142 = vpack.c.b16 %v895, %v876
      %v1143 = vpack.c.b16 %v896, %v877
      %v1144 = vpack.c.b16 %v897, %v878
      %v1145 = vpack.c.b16 %v898, %v879
      %v1146 = vpack.c.b16 %v899, %v880
      %v1147 = vpack.c.b16 %v900, %v881
      %v1148 = vpack.c.b16 %v901, %v882
      %v1149 = vpack.c.b16 %v902, %v883
      %v1150 = vpack.c.b16 %v903, %v884
      %v1151 = vpack.c.b16 %v923, %v904
      %v1152 = vpack.c.b16 %v924, %v905
      %v1153 = vpack.c.b16 %v925, %v906
      %v1154 = vpack.c.b16 %v926, %v907
      %v1155 = vpack.c.b16 %v927, %v908
      %v1156 = vpack.c.b16 %v928, %v909
      %v1157 = vpack.c.b16 %v929, %v910
      %v1158 = vpack.c.b16 %v930, %v911
      %v1159 = vpack.c.b16 %v931, %v912
      %v1160 = vpack.c.b16 %v932, %v913
      %v1161 = vpack.c.b16 %v933, %v914
      %v1162 = vpack.c.b16 %v934, %v915
      %v1163 = vpack.c.b16 %v935, %v916
      %v1164 = vpack.c.b16 %v936, %v917
      %v1165 = vpack.c.b16 %v937, %v918
      %v1166 = vpack.c.b16 %v938, %v919
      %v1167 = vpack.c.b16 %v939, %v920
      %v1168 = vpack.c.b16 %v940, %v921
      %v1169 = vpack.c.b16 %v941, %v922
      %v1170 = vpack.c.b16 %v961, %v942
      %v1171 = vpack.c.b16 %v962, %v943
      %v1172 = vpack.c.b16 %v963, %v944
      %v1173 = vpack.c.b16 %v964, %v945
      %v1174 = vpack.c.b16 %v965, %v946
      %v1175 = vpack.c.b16 %v966, %v947
      %v1176 = vpack.c.b16 %v967, %v948
      %v1177 = vpack.c.b16 %v968, %v949
      %v1178 = vpack.c.b16 %v969, %v950
      %v1179 = vpack.c.b16 %v970, %v951
      %v1180 = vpack.c.b16 %v971, %v952
      %v1181 = vpack.c.b16 %v972, %v953
      %v1182 = vpack.c.b16 %v973, %v954
      %v1183 = vpack.c.b16 %v974, %v955
      %v1184 = vpack.c.b16 %v975, %v956
      %v1185 = vpack.c.b16 %v976, %v957
      %v1186 = vpack.c.b16 %v977, %v958
      %v1187 = vpack.c.b16 %v978, %v959
      %v1188 = vpack.c.b16 %v979, %v960
      %v1189 = vpack.c.b16 %v999, %v980
      %v1190 = vpack.c.b16 %v1000, %v981
      %v1191 = vpack.c.b16 %v1001, %v982
      %v1192 = vpack.c.b16 %v1002, %v983
      %v1193 = vpack.c.b16 %v1003, %v984
      %v1194 = vpack.c.b16 %v1004, %v985
      %v1195 = vpack.c.b16 %v1005, %v986
      %v1196 = vpack.c.b16 %v1006, %v987
      %v1197 = vpack.c.b16 %v1007, %v988
      %v1198 = vpack.c.b16 %v1008, %v989
      %v1199 = vpack.c.b16 %v1009, %v990
      %v1200 = vpack.c.b16 %v1010, %v991
      %v1201 = vpack.c.b16 %v1011, %v992
      %v1202 = vpack.c.b16 %v1012, %v993
      %v1203 = vpack.c.b16 %v1013, %v994
      %v1204 = vpack.c.b16 %v1014, %v995
      %v1205 = vpack.c.b16 %v1015, %v996
      %v1206 = vpack.c.b16 %v1016, %v997
      %v1207 = vpack.c.b16 %v1017, %v998
      %v1208 = vpack.c.b16 %v1037, %v1018
      %v1209 = vpack.c.b16 %v1038, %v1019
      %v1210 = vpack.c.b16 %v1039, %v1020
      %v1211 = vpack.c.b16 %v1040, %v1021
      %v1212 = vpack.c.b16 %v1041, %v1022
      %v1213 = vpack.c.b16 %v1042, %v1023
      %v1214 = vpack.c.b16 %v1043, %v1024
      %v1215 = vpack.c.b16 %v1044, %v1025
      %v1216 = vpack.c.b16 %v1045, %v1026
      %v1217 = vpack.c.b16 %v1046, %v1027
      %v1218 = vpack.c.b16 %v1047, %v1028
      %v1219 = vpack.c.b16 %v1048, %v1029
      %v1220 = vpack.c.b16 %v1049, %v1030
      %v1221 = vpack.c.b16 %v1050, %v1031
      %v1222 = vpack.c.b16 %v1051, %v1032
      %v1223 = vpack.c.b16 %v1052, %v1033
      %v1224 = vpack.c.b16 %v1053, %v1034
      %v1225 = vpack.c.b16 %v1054, %v1035
      %v1226 = vpack.c.b16 %v1055, %v1036
      %v1227 = vpack.c.b16 %v1075, %v1056
      %v1228 = vpack.c.b16 %v1076, %v1057
      %v1229 = vpack.c.b16 %v1077, %v1058
      %v1230 = vpack.c.b16 %v1078, %v1059
      %v1231 = vpack.c.b16 %v1079, %v1060
      %v1232 = vpack.c.b16 %v1080, %v1061
      %v1233 = vpack.c.b16 %v1081, %v1062
      %v1234 = vpack.c.b16 %v1082, %v1063
      %v1235 = vpack.c.b16 %v1083, %v1064
      %v1236 = vpack.c.b16 %v1084, %v1065
      %v1237 = vpack.c.b16 %v1085, %v1066
      %v1238 = vpack.c.b16 %v1086, %v1067
      %v1239 = vpack.c.b16 %v1087, %v1068
      %v1240 = vpack.c.b16 %v1088, %v1069
      %v1241 = vpack.c.b16 %v1089, %v1070
      %v1242 = vpack.c.b16 %v1090, %v1071
      %v1243 = vpack.c.b16 %v1091, %v1072
      %v1244 = vpack.c.b16 %v1092, %v1073
      %v1245 = vpack.c.b16 %v1093, %v1074
      %v1684 = vunpack.c.l.b16 %v332
      %v1685 = vunpack.c.l.b16 %v333
      %v1686 = vunpack.c.l.b16 %v334
      %v1687 = vunpack.c.l.b16 %v335
      %v1688 = vunpack.c.l.b16 %v336
      %v1689 = vunpack.c.l.b16 %v337
      %v1690 = vunpack.c.l.b16 %v338
      %v1691 = vunpack.c.l.b16 %v339
      %v1692 = vunpack.c.l.b16 %v340
      %v1693 = vunpack.c.l.b16 %v341
      %v1694 = vunpack.c.l.b16 %v342
      %v1695 = vunpack.c.l.b16 %v343
      %v1696 = vunpack.c.l.b16 %v344
      %v1697 = vunpack.c.l.b16 %v345
      %v1698 = vunpack.c.l.b16 %v346
      %v1699 = vunpack.c.l.b16 %v347
      %v1700 = vunpack.c.l.b16 %v348
      %v1701 = vunpack.c.l.b16 %v349
      %v1702 = vunpack.c.l.b16 %v350
      %v1703 = vunpack.c.l.b16 %v351
      %v1704 = vunpack.c.l.b16 %v352
      %v1705 = vunpack.c.l.b16 %v353
      %v1706 = vunpack.c.l.b16 %v354
      %v1707 = vunpack.c.l.b16 %v355
      %v1708 = vunpack.c.l.b16 %v356
      %v1709 = vunpack.c.l.b16 %v357
      %v1710 = vunpack.c.l.b16 %v358
      %v1711 = vunpack.c.l.b16 %v359
      %v1712 = vunpack.c.l.b16 %v360
      %v1713 = vunpack.c.l.b16 %v361
      %v1714 = vunpack.c.l.b16 %v362
      %v1715 = vunpack.c.l.b16 %v363
      %v1716 = vunpack.c.l.b16 %v364
      %v1717 = vunpack.c.l.b16 %v365
      %v1718 = vunpack.c.l.b16 %v366
      %v1719 = vunpack.c.l.b16 %v367
      %v1720 = vunpack.c.l.b16 %v368
      %v1721 = vunpack.c.l.b16 %v369
      %v1722 = vunpack.c.l.b16 %v370
      %v1723 = vunpack.c.l.b16 %v371
      %v1724 = vunpack.c.l.b16 %v372
      %v1725 = vunpack.c.l.b16 %v373
      %v1726 = vunpack.c.l.b16 %v374
      %v1727 = vunpack.c.l.b16 %v375
      %v1728 = vunpack.c.l.b16 %v376
      %v1729 = vunpack.c.l.b16 %v377
      %v1730 = vunpack.c.l.b16 %v378
      %v1731 = vunpack.c.l.b16 %v379
      %v1732 = vunpack.c.l.b16 %v380
      %v1733 = vunpack.c.l.b16 %v381
      %v1734 = vunpack.c.l.b16 %v382
      %v1735 = vunpack.c.l.b16 %v383
      %v1736 = vunpack.c.l.b16 %v384
      %v1737 = vunpack.c.l.b16 %v385
      %v1738 = vunpack.c.l.b16 %v386
      %v1739 = vunpack.c.l.b16 %v387
      %v1740 = vunpack.c.l.b16 %v388
      %v1741 = vunpack.c.l.b16 %v389
      %v1742 = vunpack.c.l.b16 %v390
      %v1743 = vunpack.c.l.b16 %v391
      %v1744 = vunpack.c.l.b16 %v392
      %v1745 = vunpack.c.l.b16 %v393
      %v1746 = vunpack.c.l.b16 %v394
      %v1747 = vunpack.c.l.b16 %v395
      %v1748 = vunpack.c.l.b16 %v396
      %v1749 = vunpack.c.l.b16 %v397
      %v1750 = vunpack.c.l.b16 %v398
      %v1751 = vunpack.c.l.b16 %v399
      %v1752 = vunpack.c.l.b16 %v400
      %v1753 = vunpack.c.l.b16 %v401
      %v1754 = vunpack.c.l.b16 %v402
      %v1755 = vunpack.c.l.b16 %v403
      %v1756 = vunpack.c.l.b16 %v404
      %v1757 = vunpack.c.l.b16 %v405
      %v1758 = vunpack.c.l.b16 %v406
      %v1759 = vunpack.c.l.b16 %v407
      %v1760 = vunpack.c.l.b16 %v408
      %v1761 = vunpack.c.l.b16 %v409
      %v1762 = vunpack.c.l.b16 %v410
      %v1763 = vunpack.c.l.b16 %v411
      %v1764 = vunpack.c.l.b16 %v412
      %v1765 = vunpack.c.l.b16 %v413
      %v1766 = vunpack.c.l.b16 %v414
      %v1767 = vunpack.c.l.b16 %v415
      %v1768 = vunpack.c.l.b16 %v416
      %v1769 = vunpack.c.l.b16 %v417
      %v1770 = vunpack.c.l.b16 %v418
      %v1771 = vunpack.c.l.b16 %v419
      %v1772 = vunpack.c.l.b16 %v420
      %v1773 = vunpack.c.l.b16 %v421
      %v1774 = vunpack.c.l.b16 %v422
      %v1775 = vunpack.c.l.b16 %v423
      %v1776 = vunpack.c.l.b16 %v424
      %v1777 = vunpack.c.l.b16 %v425
      %v1778 = vunpack.c.l.b16 %v426
      %v1779 = vunpack.c.l.b16 %v427
      %v1780 = vunpack.c.l.b16 %v428
      %v1781 = vunpack.c.l.b16 %v429
      %v1782 = vunpack.c.l.b16 %v430
      %v1783 = vunpack.c.l.b16 %v431
      %v1784 = vunpack.c.l.b16 %v432
      %v1785 = vunpack.c.l.b16 %v433
      %v1786 = vunpack.c.l.b16 %v434
      %v1787 = vunpack.c.l.b16 %v435
      %v1788 = vunpack.c.l.b16 %v436
      %v1789 = vunpack.c.l.b16 %v437
      %v1790 = vunpack.c.l.b16 %v438
      %v1791 = vunpack.c.l.b16 %v439
      %v1792 = vunpack.c.l.b16 %v440
      %v1793 = vunpack.c.l.b16 %v441
      %v1794 = vunpack.c.l.b16 %v442
      %v1795 = vunpack.c.l.b16 %v443
      %v1796 = vunpack.c.l.b16 %v444
      %v1797 = vunpack.c.l.b16 %v445
      %v1798 = vunpack.c.l.b16 %v446
      %v1799 = vunpack.c.l.b16 %v447
      %v1800 = vunpack.c.l.b16 %v448
      %v1801 = vunpack.c.l.b16 %v449
      %v1802 = vunpack.c.l.b16 %v450
      %v1803 = vunpack.c.l.b16 %v451
      %v1804 = vunpack.c.l.b16 %v452
      %v1805 = vunpack.c.l.b16 %v453
      %v1806 = vunpack.c.l.b16 %v454
      %v1807 = vunpack.c.l.b16 %v455
      %v1808 = vunpack.c.l.b16 %v456
      %v1809 = vunpack.c.l.b16 %v457
      %v1810 = vunpack.c.l.b16 %v458
      %v1811 = vunpack.c.l.b16 %v459
      %v1812 = vunpack.c.l.b16 %v460
      %v1813 = vunpack.c.l.b16 %v461
      %v1814 = vunpack.c.l.b16 %v462
      %v1815 = vunpack.c.l.b16 %v463
      %v1816 = vunpack.c.l.b16 %v464
      %v1817 = vunpack.c.l.b16 %v465
      %v1818 = vunpack.c.l.b16 %v466
      %v1819 = vunpack.c.l.b16 %v467
      %v1820 = vunpack.c.l.b16 %v468
      %v1821 = vunpack.c.l.b16 %v469
      %v1822 = vunpack.c.l.b16 %v470
      %v1823 = vunpack.c.l.b16 %v471
      %v1824 = vunpack.c.l.b16 %v472
      %v1825 = vunpack.c.l.b16 %v473
      %v1826 = vunpack.c.l.b16 %v474
      %v1827 = vunpack.c.l.b16 %v475
      %v1828 = vunpack.c.l.b16 %v476
      %v1829 = vunpack.c.l.b16 %v477
      %v1830 = vunpack.c.l.b16 %v478
      %v1831 = vunpack.c.l.b16 %v479
      %v1832 = vunpack.c.l.b16 %v480
      %v1833 = vunpack.c.l.b16 %v481
      %v1834 = vunpack.c.l.b16 %v482
      %v1835 = vunpack.c.l.b16 %v483
      %v1836 = vunpack.c.l.b16 %v484
      %v1837 = vunpack.c.l.b16 %v485
      %v1838 = vunpack.c.l.b16 %v486
      %v1839 = vunpack.c.l.b16 %v487
      %v1840 = vunpack.c.l.b16 %v488
      %v1841 = vunpack.c.l.b16 %v489
      %v1842 = vunpack.c.l.b16 %v490
      %v1843 = vunpack.c.l.b16 %v491
      %v1844 = vunpack.c.l.b16 %v492
      %v1845 = vunpack.c.l.b16 %v493
      %v1846 = vunpack.c.l.b16 %v494
      %v1847 = vunpack.c.l.b16 %v495
      %v1848 = vunpack.c.l.b16 %v496
      %v1849 = vunpack.c.l.b16 %v497
      %v1850 = vunpack.c.l.b16 %v498
      %v1851 = vunpack.c.l.b16 %v499
      %v1852 = vunpack.c.l.b16 %v500
      %v1853 = vunpack.c.l.b16 %v501
      %v1854 = vunpack.c.l.b16 %v502
      %v1855 = vunpack.c.l.b16 %v503
      %v1856 = vunpack.c.l.b16 %v504
      %v1857 = vunpack.c.l.b16 %v505
      %v1858 = vunpack.c.l.b16 %v506
      %v1859 = vunpack.c.l.b16 %v507
      %v1860 = vunpack.c.l.b16 %v508
      %v1861 = vunpack.c.l.b16 %v509
      %v1862 = vunpack.c.l.b16 %v510
      %v1863 = vunpack.c.l.b16 %v511
      %v1864 = vunpack.c.l.b16 %v512
      %v1865 = vunpack.c.l.b16 %v513
      %v1866 = vunpack.c.l.b16 %v514
      %v1867 = vunpack.c.l.b16 %v515
      %v1868 = vunpack.c.l.b16 %v516
      %v1869 = vunpack.c.l.b16 %v517
      %v1870 = vunpack.c.l.b16 %v518
      %v1871 = vunpack.c.l.b16 %v519
      %v1872 = vunpack.c.l.b16 %v520
      %v1873 = vunpack.c.l.b16 %v521
      %v1874 = vunpack.c.l.b16 %v522
      %v1875 = vunpack.c.l.b16 %v523
      %v1876 = vunpack.c.l.b16 %v524
      %v1877 = vunpack.c.l.b16 %v525
      %v1878 = vunpack.c.l.b16 %v526
      %v1879 = vunpack.c.l.b16 %v527
      %v1880 = vunpack.c.l.b16 %v528
      %v1881 = vunpack.c.l.b16 %v529
      %v1882 = vunpack.c.l.b16 %v530
      %v1883 = vunpack.c.l.b16 %v531
      %v1884 = vunpack.c.l.b16 %v532
      %v1885 = vunpack.c.l.b16 %v533
      %v1886 = vunpack.c.l.b16 %v534
      %v1887 = vunpack.c.l.b16 %v535
      %v1888 = vunpack.c.l.b16 %v536
      %v1889 = vunpack.c.l.b16 %v537
      %v1890 = vunpack.c.l.b16 %v538
      %v1891 = vunpack.c.l.b16 %v539
      %v1892 = vunpack.c.l.b16 %v540
      %v1893 = vunpack.c.l.b16 %v541
      %v1894 = vunpack.c.l.b16 %v542
      %v1895 = vunpack.c.l.b16 %v543
      %v1896 = vunpack.c.l.b16 %v544
      %v1897 = vunpack.c.l.b16 %v545
      %v1898 = vunpack.c.l.b16 %v546
      %v1899 = vunpack.c.l.b16 %v547
      %v1900 = vunpack.c.l.b16 %v548
      %v1901 = vunpack.c.l.b16 %v549
      %v1902 = vunpack.c.l.b16 %v550
      %v1903 = vunpack.c.l.b16 %v551
      %v1904 = vunpack.c.l.b16 %v552
      %v1905 = vunpack.c.l.b16 %v553
      %v1906 = vunpack.c.l.b16 %v554
      %v1907 = vunpack.c.l.b16 %v555
      %v1908 = vunpack.c.l.b16 %v556
      %v1909 = vunpack.c.l.b16 %v557
      %v1910 = vunpack.c.l.b16 %v558
      %v1911 = vunpack.c.l.b16 %v559
      %v1912 = vunpack.c.l.b16 %v560
      %v1913 = vunpack.c.l.b16 %v561
      %v1914 = vunpack.c.l.b16 %v562
      %v1915 = vunpack.c.l.b16 %v563
      %v1916 = vunpack.c.l.b16 %v564
      %v1917 = vunpack.c.l.b16 %v565
      %v1918 = vunpack.c.l.b16 %v566
      %v1919 = vunpack.c.l.b16 %v567
      %v1920 = vunpack.c.l.b16 %v568
      %v1921 = vunpack.c.l.b16 %v569
      %v1922 = vunpack.c.l.b16 %v570
      %v1923 = vunpack.c.l.b16 %v571
      %v1924 = vunpack.c.l.b16 %v572
      %v1925 = vunpack.c.l.b16 %v573
      %v1926 = vunpack.c.l.b16 %v574
      %v1927 = vunpack.c.l.b16 %v575
      %v1928 = vunpack.c.l.b16 %v576
      %v1929 = vunpack.c.l.b16 %v577
      %v1930 = vunpack.c.l.b16 %v578
      %v1931 = vunpack.c.l.b16 %v579
      %v1932 = vunpack.c.l.b16 %v580
      %v1933 = vunpack.c.l.b16 %v581
      %v1934 = vunpack.c.l.b16 %v582
      %v1935 = vunpack.c.l.b16 %v583
      %v1936 = vunpack.c.l.b16 %v584
      %v1937 = vunpack.c.l.b16 %v585
      %v1938 = vunpack.c.l.b16 %v586
      %v1939 = vunpack.c.l.b16 %v587
      %v1940 = vunpack.c.l.b16 %v588
      %v1941 = vunpack.c.l.b16 %v589
      %v1942 = vunpack.c.l.b16 %v590
      %v1943 = vunpack.c.l.b16 %v591
      %v1944 = vunpack.c.l.b16 %v592
      %v1945 = vunpack.c.l.b16 %v593
      %v1946 = vunpack.c.l.b16 %v594
      %v1947 = vunpack.c.l.b16 %v595
      %v1948 = vunpack.c.l.b16 %v596
      %v1949 = vunpack.c.l.b16 %v597
      %v1950 = vunpack.c.l.b16 %v598
      %v1951 = vunpack.c.l.b16 %v599
      %v1952 = vunpack.c.l.b16 %v600
      %v1953 = vunpack.c.l.b16 %v601
      %v1954 = vunpack.c.l.b16 %v602
      %v1955 = vunpack.c.l.b16 %v603
      %v1956 = vunpack.c.l.b16 %v604
      %v1957 = vunpack.c.l.b16 %v605
      %v1958 = vunpack.c.l.b16 %v606
      %v1959 = vunpack.c.l.b16 %v607
      %v1960 = vunpack.c.l.b16 %v608
      %v1961 = vunpack.c.l.b16 %v609
      %v1962 = vunpack.c.l.b16 %v610
      %v1963 = vunpack.c.l.b16 %v611
      %v1964 = vunpack.c.l.b16 %v612
      %v1965 = vunpack.c.l.b16 %v613
      %v1966 = vunpack.c.l.b16 %v614
      %v1967 = vunpack.c.l.b16 %v615
      %v1968 = vunpack.c.l.b16 %v616
      %v1969 = vunpack.c.l.b16 %v617
      %v1970 = vunpack.c.l.b16 %v618
      %v1971 = vunpack.c.l.b16 %v619
      %v1972 = vunpack.c.l.b16 %v620
      %v1973 = vunpack.c.l.b16 %v621
      %v1974 = vunpack.c.l.b16 %v622
      %v1975 = vunpack.c.l.b16 %v623
      %v1976 = vunpack.c.l.b16 %v624
      %v1977 = vunpack.c.l.b16 %v625
      %v1978 = vpack.c.b16 %v1685, %v1684
      %v1979 = vpack.c.b16 %v1687, %v1686
      %v1980 = vpack.c.b16 %v1689, %v1688
      %v1981 = vpack.c.b16 %v1691, %v1690
      %v1982 = vpack.c.b16 %v1693, %v1692
      %v1983 = vpack.c.b16 %v1695, %v1694
      %v1984 = vpack.c.b16 %v1697, %v1696
      %v1985 = vpack.c.b16 %v1699, %v1698
      %v1986 = vpack.c.b16 %v1701, %v1700
      %v1987 = vpack.c.b16 %v1703, %v1702
      %v1988 = vpack.c.b16 %v1705, %v1704
      %v1989 = vpack.c.b16 %v1707, %v1706
      %v1990 = vpack.c.b16 %v1709, %v1708
      %v1991 = vpack.c.b16 %v1711, %v1710
      %v1992 = vpack.c.b16 %v1713, %v1712
      %v1993 = vpack.c.b16 %v1715, %v1714
      %v1994 = vpack.c.b16 %v1717, %v1716
      %v1995 = vpack.c.b16 %v1719, %v1718
      %v1996 = vpack.c.b16 %v1721, %v1720
      %v1997 = vpack.c.b16 %v1723, %v1722
      %v1998 = vpack.c.b16 %v1725, %v1724
      %v1999 = vpack.c.b16 %v1727, %v1726
      %v2000 = vpack.c.b16 %v1729, %v1728
      %v2001 = vpack.c.b16 %v1731, %v1730
      %v2002 = vpack.c.b16 %v1733, %v1732
      %v2003 = vpack.c.b16 %v1735, %v1734
      %v2004 = vpack.c.b16 %v1737, %v1736
      %v2005 = vpack.c.b16 %v1739, %v1738
      %v2006 = vpack.c.b16 %v1741, %v1740
      %v2007 = vpack.c.b16 %v1743, %v1742
      %v2008 = vpack.c.b16 %v1745, %v1744
      %v2009 = vpack.c.b16 %v1747, %v1746
      %v2010 = vpack.c.b16 %v1749, %v1748
      %v2011 = vpack.c.b16 %v1751, %v1750
      %v2012 = vpack.c.b16 %v1753, %v1752
      %v2013 = vpack.c.b16 %v1755, %v1754
      %v2014 = vpack.c.b16 %v1757, %v1756
      %v2015 = vpack.c.b16 %v1759, %v1758
      %v2016 = vpack.c.b16 %v1761, %v1760
      %v2017 = vpack.c.b16 %v1763, %v1762
      %v2018 = vpack.c.b16 %v1765, %v1764
      %v2019 = vpack.c.b16 %v1767, %v1766
      %v2020 = vpack.c.b16 %v1769, %v1768
      %v2021 = vpack.c.b16 %v1771, %v1770
      %v2022 = vpack.c.b16 %v1773, %v1772
      %v2023 = vpack.c.b16 %v1775, %v1774
      %v2024 = vpack.c.b16 %v1777, %v1776
      %v2025 = vpack.c.b16 %v1779, %v1778
      %v2026 = vpack.c.b16 %v1781, %v1780
      %v2027 = vpack.c.b16 %v1783, %v1782
      %v2028 = vpack.c.b16 %v1785, %v1784
      %v2029 = vpack.c.b16 %v1787, %v1786
      %v2030 = vpack.c.b16 %v1789, %v1788
      %v2031 = vpack.c.b16 %v1791, %v1790
      %v2032 = vpack.c.b16 %v1793, %v1792
      %v2033 = vpack.c.b16 %v1795, %v1794
      %v2034 = vpack.c.b16 %v1797, %v1796
      %v2035 = vpack.c.b16 %v1799, %v1798
      %v2036 = vpack.c.b16 %v1801, %v1800
      %v2037 = vpack.c.b16 %v1803, %v1802
      %v2038 = vpack.c.b16 %v1805, %v1804
      %v2039 = vpack.c.b16 %v1807, %v1806
      %v2040 = vpack.c.b16 %v1809, %v1808
      %v2041 = vpack.c.b16 %v1811, %v1810
      %v2042 = vpack.c.b16 %v1813, %v1812
      %v2043 = vpack.c.b16 %v1815, %v1814
      %v2044 = vpack.c.b16 %v1817, %v1816
      %v2045 = vpack.c.b16 %v1819, %v1818
      %v2046 = vpack.c.b16 %v1821, %v1820
      %v2047 = vpack.c.b16 %v1823, %v1822
      %v2048 = vpack.c.b16 %v1825, %v1824
      %v2049 = vpack.c.b16 %v1827, %v1826
      %v2050 = vpack.c.b16 %v1829, %v1828
      %v2051 = vpack.c.b16 %v1831, %v1830
      %v2052 = vpack.c.b16 %v1833, %v1832
      %v2053 = vpack.c.b16 %v1835, %v1834
      %v2054 = vpack.c.b16 %v1837, %v1836
      %v2055 = vpack.c.b16 %v1839, %v1838
      %v2056 = vpack.c.b16 %v1841, %v1840
      %v2057 = vpack.c.b16 %v1843, %v1842
      %v2058 = vpack.c.b16 %v1845, %v1844
      %v2059 = vpack.c.b16 %v1847, %v1846
      %v2060 = vpack.c.b16 %v1849, %v1848
      %v2061 = vpack.c.b16 %v1851, %v1850
      %v2062 = vpack.c.b16 %v1853, %v1852
      %v2063 = vpack.c.b16 %v1855, %v1854
      %v2064 = vpack.c.b16 %v1857, %v1856
      %v2065 = vpack.c.b16 %v1859, %v1858
      %v2066 = vpack.c.b16 %v1861, %v1860
      %v2067 = vpack.c.b16 %v1863, %v1862
      %v2068 = vpack.c.b16 %v1865, %v1864
      %v2069 = vpack.c.b16 %v1867, %v1866
      %v2070 = vpack.c.b16 %v1869, %v1868
      %v2071 = vpack.c.b16 %v1871, %v1870
      %v2072 = vpack.c.b16 %v1873, %v1872
      %v2073 = vpack.c.b16 %v1875, %v1874
      %v2074 = vpack.c.b16 %v1877, %v1876
      %v2075 = vpack.c.b16 %v1879, %v1878
      %v2076 = vpack.c.b16 %v1881, %v1880
      %v2077 = vpack.c.b16 %v1883, %v1882
      %v2078 = vpack.c.b16 %v1885, %v1884
      %v2079 = vpack.c.b16 %v1887, %v1886
      %v2080 = vpack.c.b16 %v1889, %v1888
      %v2081 = vpack.c.b16 %v1891, %v1890
      %v2082 = vpack.c.b16 %v1893, %v1892
      %v2083 = vpack.c.b16 %v1895, %v1894
      %v2084 = vpack.c.b16 %v1897, %v1896
      %v2085 = vpack.c.b16 %v1899, %v1898
      %v2086 = vpack.c.b16 %v1901, %v1900
      %v2087 = vpack.c.b16 %v1903, %v1902
      %v2088 = vpack.c.b16 %v1905, %v1904
      %v2089 = vpack.c.b16 %v1907, %v1906
      %v2090 = vpack.c.b16 %v1909, %v1908
      %v2091 = vpack.c.b16 %v1911, %v1910
      %v2092 = vpack.c.b16 %v1913, %v1912
      %v2093 = vpack.c.b16 %v1915, %v1914
      %v2094 = vpack.c.b16 %v1917, %v1916
      %v2095 = vpack.c.b16 %v1919, %v1918
      %v2096 = vpack.c.b16 %v1921, %v1920
      %v2097 = vpack.c.b16 %v1923, %v1922
      %v2098 = vpack.c.b16 %v1925, %v1924
      %v2099 = vpack.c.b16 %v1927, %v1926
      %v2100 = vpack.c.b16 %v1929, %v1928
      %v2101 = vpack.c.b16 %v1931, %v1930
      %v2102 = vpack.c.b16 %v1933, %v1932
      %v2103 = vpack.c.b16 %v1935, %v1934
      %v2104 = vpack.c.b16 %v1937, %v1936
      %v2105 = vpack.c.b16 %v1939, %v1938
      %v2106 = vpack.c.b16 %v1941, %v1940
      %v2107 = vpack.c.b16 %v1943, %v1942
      %v2108 = vpack.c.b16 %v1945, %v1944
      %v2109 = vpack.c.b16 %v1947, %v1946
      %v2110 = vpack.c.b16 %v1949, %v1948
      %v2111 = vpack.c.b16 %v1951, %v1950
      %v2112 = vpack.c.b16 %v1953, %v1952
      %v2113 = vpack.c.b16 %v1955, %v1954
      %v2114 = vpack.c.b16 %v1957, %v1956
      %v2115 = vpack.c.b16 %v1959, %v1958
      %v2116 = vpack.c.b16 %v1961, %v1960
      %v2117 = vpack.c.b16 %v1963, %v1962
      %v2118 = vpack.c.b16 %v1965, %v1964
      %v2119 = vpack.c.b16 %v1967, %v1966
      %v2120 = vpack.c.b16 %v1969, %v1968
      %v2121 = vpack.c.b16 %v1971, %v1970
      %v2122 = vpack.c.b16 %v1973, %v1972
      %v2123 = vpack.c.b16 %v1975, %v1974
      %v2124 = vpack.c.b16 %v1977, %v1976
      %vm2272 = vcmask 392192
      %v2274 = vsel %vm2272, %v1112, 0
      %v2277 = vsel %vm2272, %v1131, 0
      %v2280 = vsel %vm2272, %v1150, 0
      %v2283 = vsel %vm2272, %v1169, 0
      %v2286 = vsel %vm2272, %v1188, 0
      %v2289 = vsel %vm2272, %v1207, 0
      %v2292 = vsel %vm2272, %v1226, 0
      %v2295 = vsel %vm2272, %v1245, 0
      %2297 = vmatpush.bf16.msra.mxu0 %v1985
      %2298 = vmatpush.bf16.msra.mxu0 %v1984
      %2299 = vmatpush.bf16.msra.mxu0 %v1983
      %2300 = vmatpush.bf16.msra.mxu0 %v1982
      %2301 = vmatpush.bf16.msra.mxu0 %v1981
      %2302 = vmatpush.bf16.msra.mxu0 %v1980
      %2303 = vmatpush.bf16.msra.mxu0 %v1979
      %2304 = vmatpush.bf16.msra.mxu0 %v1978
      %2305 = vmatmul.bf16.gmra.mxu0 %v1094
      %v2306 = vpop.f32.mrf.mxu0
      %v2307 = vadd.f32 %v628, %v2306
      %v2308 = vpop.f32.mrf.mxu0
      %v2309 = vadd.f32 %v628, %v2308
      %2310 = vmatmul.bf16.gmra.mxu0 %v1113
      %v2311 = vpop.f32.mrf.mxu0
      %v2312 = vadd.f32 %v628, %v2311
      %v2313 = vpop.f32.mrf.mxu0
      %v2314 = vadd.f32 %v628, %v2313
      %2315 = vmatmul.bf16.gmra.mxu0 %v1132
      %v2316 = vpop.f32.mrf.mxu0
      %v2317 = vadd.f32 %v628, %v2316
      %v2318 = vpop.f32.mrf.mxu0
      %v2319 = vadd.f32 %v628, %v2318
      %2320 = vmatmul.bf16.gmra.mxu0 %v1151
      %v2321 = vpop.f32.mrf.mxu0
      %v2322 = vadd.f32 %v628, %v2321
      %v2323 = vpop.f32.mrf.mxu0
      %v2324 = vadd.f32 %v628, %v2323
      %2325 = vmatmul.bf16.gmra.mxu0 %v1170
      %v2326 = vpop.f32.mrf.mxu0
      %v2327 = vadd.f32 %v628, %v2326
      %v2328 = vpop.f32.mrf.mxu0
      %v2329 = vadd.f32 %v628, %v2328
      %2330 = vmatmul.bf16.gmra.mxu0 %v1189
      %v2331 = vpop.f32.mrf.mxu0
      %v2332 = vadd.f32 %v628, %v2331
      %v2333 = vpop.f32.mrf.mxu0
      %v2334 = vadd.f32 %v628, %v2333
      %2335 = vmatmul.bf16.gmra.mxu0 %v1208
      %v2336 = vpop.f32.mrf.mxu0
      %v2337 = vadd.f32 %v628, %v2336
      %v2338 = vpop.f32.mrf.mxu0
      %v2339 = vadd.f32 %v628, %v2338
      %2340 = vmatmul.bf16.gmra.mxu0 %v1227
      %v2341 = vpop.f32.mrf.mxu0
      %v2342 = vadd.f32 %v628, %v2341
      %v2343 = vpop.f32.mrf.mxu0
      %v2344 = vadd.f32 %v628, %v2343
      %2345 = vdwg.mxu0
      %2346 = vmatpush.bf16.msra.mxu0 %v1993
      %2347 = vmatpush.bf16.msra.mxu0 %v1992
      %2348 = vmatpush.bf16.msra.mxu0 %v1991
      %2349 = vmatpush.bf16.msra.mxu0 %v1990
      %2350 = vmatpush.bf16.msra.mxu0 %v1989
      %2351 = vmatpush.bf16.msra.mxu0 %v1988
      %2352 = vmatpush.bf16.msra.mxu0 %v1987
      %2353 = vmatpush.bf16.msra.mxu0 %v1986
      %2354 = vmatmul.bf16.gmra.mxu0 %v1095
      %v2355 = vpop.f32.mrf.mxu0
      %v2356 = vadd.f32 %v2307, %v2355
      %v2357 = vpop.f32.mrf.mxu0
      %v2358 = vadd.f32 %v2309, %v2357
      %2359 = vmatmul.bf16.gmra.mxu0 %v1114
      %v2360 = vpop.f32.mrf.mxu0
      %v2361 = vadd.f32 %v2312, %v2360
      %v2362 = vpop.f32.mrf.mxu0
      %v2363 = vadd.f32 %v2314, %v2362
      %2364 = vmatmul.bf16.gmra.mxu0 %v1133
      %v2365 = vpop.f32.mrf.mxu0
      %v2366 = vadd.f32 %v2317, %v2365
      %v2367 = vpop.f32.mrf.mxu0
      %v2368 = vadd.f32 %v2319, %v2367
      %2369 = vmatmul.bf16.gmra.mxu0 %v1152
      %v2370 = vpop.f32.mrf.mxu0
      %v2371 = vadd.f32 %v2322, %v2370
      %v2372 = vpop.f32.mrf.mxu0
      %v2373 = vadd.f32 %v2324, %v2372
      %2374 = vmatmul.bf16.gmra.mxu0 %v1171
      %v2375 = vpop.f32.mrf.mxu0
      %v2376 = vadd.f32 %v2327, %v2375
      %v2377 = vpop.f32.mrf.mxu0
      %v2378 = vadd.f32 %v2329, %v2377
      %2379 = vmatmul.bf16.gmra.mxu0 %v1190
      %v2380 = vpop.f32.mrf.mxu0
      %v2381 = vadd.f32 %v2332, %v2380
      %v2382 = vpop.f32.mrf.mxu0
      %v2383 = vadd.f32 %v2334, %v2382
      %2384 = vmatmul.bf16.gmra.mxu0 %v1209
      %v2385 = vpop.f32.mrf.mxu0
      %v2386 = vadd.f32 %v2337, %v2385
      %v2387 = vpop.f32.mrf.mxu0
      %v2388 = vadd.f32 %v2339, %v2387
      %2389 = vmatmul.bf16.gmra.mxu0 %v1228
      %v2390 = vpop.f32.mrf.mxu0
      %v2391 = vadd.f32 %v2342, %v2390
      %v2392 = vpop.f32.mrf.mxu0
      %v2393 = vadd.f32 %v2344, %v2392
      %2394 = vdwg.mxu0
      %2395 = vmatpush.bf16.msra.mxu0 %v2001
      %2396 = vmatpush.bf16.msra.mxu0 %v2000
      %2397 = vmatpush.bf16.msra.mxu0 %v1999
      %2398 = vmatpush.bf16.msra.mxu0 %v1998
      %2399 = vmatpush.bf16.msra.mxu0 %v1997
      %2400 = vmatpush.bf16.msra.mxu0 %v1996
      %2401 = vmatpush.bf16.msra.mxu0 %v1995
      %2402 = vmatpush.bf16.msra.mxu0 %v1994
      %2403 = vmatmul.bf16.gmra.mxu0 %v1096
      %v2404 = vpop.f32.mrf.mxu0
      %v2405 = vadd.f32 %v2356, %v2404
      %v2406 = vpop.f32.mrf.mxu0
      %v2407 = vadd.f32 %v2358, %v2406
      %2408 = vmatmul.bf16.gmra.mxu0 %v1115
      %v2409 = vpop.f32.mrf.mxu0
      %v2410 = vadd.f32 %v2361, %v2409
      %v2411 = vpop.f32.mrf.mxu0
      %v2412 = vadd.f32 %v2363, %v2411
      %2413 = vmatmul.bf16.gmra.mxu0 %v1134
      %v2414 = vpop.f32.mrf.mxu0
      %v2415 = vadd.f32 %v2366, %v2414
      %v2416 = vpop.f32.mrf.mxu0
      %v2417 = vadd.f32 %v2368, %v2416
      %2418 = vmatmul.bf16.gmra.mxu0 %v1153
      %v2419 = vpop.f32.mrf.mxu0
      %v2420 = vadd.f32 %v2371, %v2419
      %v2421 = vpop.f32.mrf.mxu0
      %v2422 = vadd.f32 %v2373, %v2421
      %2423 = vmatmul.bf16.gmra.mxu0 %v1172
      %v2424 = vpop.f32.mrf.mxu0
      %v2425 = vadd.f32 %v2376, %v2424
      %v2426 = vpop.f32.mrf.mxu0
      %v2427 = vadd.f32 %v2378, %v2426
      %2428 = vmatmul.bf16.gmra.mxu0 %v1191
      %v2429 = vpop.f32.mrf.mxu0
      %v2430 = vadd.f32 %v2381, %v2429
      %v2431 = vpop.f32.mrf.mxu0
      %v2432 = vadd.f32 %v2383, %v2431
      %2433 = vmatmul.bf16.gmra.mxu0 %v1210
      %v2434 = vpop.f32.mrf.mxu0
      %v2435 = vadd.f32 %v2386, %v2434
      %v2436 = vpop.f32.mrf.mxu0
      %v2437 = vadd.f32 %v2388, %v2436
      %2438 = vmatmul.bf16.gmra.mxu0 %v1229
      %v2439 = vpop.f32.mrf.mxu0
      %v2440 = vadd.f32 %v2391, %v2439
      %v2441 = vpop.f32.mrf.mxu0
      %v2442 = vadd.f32 %v2393, %v2441
      %2443 = vdwg.mxu0
      %2444 = vmatpush.bf16.msra.mxu0 %v2009
      %2445 = vmatpush.bf16.msra.mxu0 %v2008
      %2446 = vmatpush.bf16.msra.mxu0 %v2007
      %2447 = vmatpush.bf16.msra.mxu0 %v2006
      %2448 = vmatpush.bf16.msra.mxu0 %v2005
      %2449 = vmatpush.bf16.msra.mxu0 %v2004
      %2450 = vmatpush.bf16.msra.mxu0 %v2003
      %2451 = vmatpush.bf16.msra.mxu0 %v2002
      %2452 = vmatmul.bf16.gmra.mxu0 %v1097
      %v2453 = vpop.f32.mrf.mxu0
      %v2454 = vadd.f32 %v2405, %v2453
      %v2455 = vpop.f32.mrf.mxu0
      %v2456 = vadd.f32 %v2407, %v2455
      %2457 = vmatmul.bf16.gmra.mxu0 %v1116
      %v2458 = vpop.f32.mrf.mxu0
      %v2459 = vadd.f32 %v2410, %v2458
      %v2460 = vpop.f32.mrf.mxu0
      %v2461 = vadd.f32 %v2412, %v2460
      %2462 = vmatmul.bf16.gmra.mxu0 %v1135
      %v2463 = vpop.f32.mrf.mxu0
      %v2464 = vadd.f32 %v2415, %v2463
      %v2465 = vpop.f32.mrf.mxu0
      %v2466 = vadd.f32 %v2417, %v2465
      %2467 = vmatmul.bf16.gmra.mxu0 %v1154
      %v2468 = vpop.f32.mrf.mxu0
      %v2469 = vadd.f32 %v2420, %v2468
      %v2470 = vpop.f32.mrf.mxu0
      %v2471 = vadd.f32 %v2422, %v2470
      %2472 = vmatmul.bf16.gmra.mxu0 %v1173
      %v2473 = vpop.f32.mrf.mxu0
      %v2474 = vadd.f32 %v2425, %v2473
      %v2475 = vpop.f32.mrf.mxu0
      %v2476 = vadd.f32 %v2427, %v2475
      %2477 = vmatmul.bf16.gmra.mxu0 %v1192
      %v2478 = vpop.f32.mrf.mxu0
      %v2479 = vadd.f32 %v2430, %v2478
      %v2480 = vpop.f32.mrf.mxu0
      %v2481 = vadd.f32 %v2432, %v2480
      %2482 = vmatmul.bf16.gmra.mxu0 %v1211
      %v2483 = vpop.f32.mrf.mxu0
      %v2484 = vadd.f32 %v2435, %v2483
      %v2485 = vpop.f32.mrf.mxu0
      %v2486 = vadd.f32 %v2437, %v2485
      %2487 = vmatmul.bf16.gmra.mxu0 %v1230
      %v2488 = vpop.f32.mrf.mxu0
      %v2489 = vadd.f32 %v2440, %v2488
      %v2490 = vpop.f32.mrf.mxu0
      %v2491 = vadd.f32 %v2442, %v2490
      %2492 = vdwg.mxu0
      %2493 = vmatpush.bf16.msra.mxu0 %v2017
      %2494 = vmatpush.bf16.msra.mxu0 %v2016
      %2495 = vmatpush.bf16.msra.mxu0 %v2015
      %2496 = vmatpush.bf16.msra.mxu0 %v2014
      %2497 = vmatpush.bf16.msra.mxu0 %v2013
      %2498 = vmatpush.bf16.msra.mxu0 %v2012
      %2499 = vmatpush.bf16.msra.mxu0 %v2011
      %2500 = vmatpush.bf16.msra.mxu0 %v2010
      %2501 = vmatmul.bf16.gmra.mxu0 %v1098
      %v2502 = vpop.f32.mrf.mxu0
      %v2503 = vadd.f32 %v2454, %v2502
      %v2504 = vpop.f32.mrf.mxu0
      %v2505 = vadd.f32 %v2456, %v2504
      %2506 = vmatmul.bf16.gmra.mxu0 %v1117
      %v2507 = vpop.f32.mrf.mxu0
      %v2508 = vadd.f32 %v2459, %v2507
      %v2509 = vpop.f32.mrf.mxu0
      %v2510 = vadd.f32 %v2461, %v2509
      %2511 = vmatmul.bf16.gmra.mxu0 %v1136
      %v2512 = vpop.f32.mrf.mxu0
      %v2513 = vadd.f32 %v2464, %v2512
      %v2514 = vpop.f32.mrf.mxu0
      %v2515 = vadd.f32 %v2466, %v2514
      %2516 = vmatmul.bf16.gmra.mxu0 %v1155
      %v2517 = vpop.f32.mrf.mxu0
      %v2518 = vadd.f32 %v2469, %v2517
      %v2519 = vpop.f32.mrf.mxu0
      %v2520 = vadd.f32 %v2471, %v2519
      %2521 = vmatmul.bf16.gmra.mxu0 %v1174
      %v2522 = vpop.f32.mrf.mxu0
      %v2523 = vadd.f32 %v2474, %v2522
      %v2524 = vpop.f32.mrf.mxu0
      %v2525 = vadd.f32 %v2476, %v2524
      %2526 = vmatmul.bf16.gmra.mxu0 %v1193
      %v2527 = vpop.f32.mrf.mxu0
      %v2528 = vadd.f32 %v2479, %v2527
      %v2529 = vpop.f32.mrf.mxu0
      %v2530 = vadd.f32 %v2481, %v2529
      %2531 = vmatmul.bf16.gmra.mxu0 %v1212
      %v2532 = vpop.f32.mrf.mxu0
      %v2533 = vadd.f32 %v2484, %v2532
      %v2534 = vpop.f32.mrf.mxu0
      %v2535 = vadd.f32 %v2486, %v2534
      %2536 = vmatmul.bf16.gmra.mxu0 %v1231
      %v2537 = vpop.f32.mrf.mxu0
      %v2538 = vadd.f32 %v2489, %v2537
      %v2539 = vpop.f32.mrf.mxu0
      %v2540 = vadd.f32 %v2491, %v2539
      %2541 = vdwg.mxu0
      %2542 = vmatpush.bf16.msra.mxu0 %v2025
      %2543 = vmatpush.bf16.msra.mxu0 %v2024
      %2544 = vmatpush.bf16.msra.mxu0 %v2023
      %2545 = vmatpush.bf16.msra.mxu0 %v2022
      %2546 = vmatpush.bf16.msra.mxu0 %v2021
      %2547 = vmatpush.bf16.msra.mxu0 %v2020
      %2548 = vmatpush.bf16.msra.mxu0 %v2019
      %2549 = vmatpush.bf16.msra.mxu0 %v2018
      %2550 = vmatmul.bf16.gmra.mxu0 %v1099
      %v2551 = vpop.f32.mrf.mxu0
      %v2552 = vadd.f32 %v2503, %v2551
      %v2553 = vpop.f32.mrf.mxu0
      %v2554 = vadd.f32 %v2505, %v2553
      %2555 = vmatmul.bf16.gmra.mxu0 %v1118
      %v2556 = vpop.f32.mrf.mxu0
      %v2557 = vadd.f32 %v2508, %v2556
      %v2558 = vpop.f32.mrf.mxu0
      %v2559 = vadd.f32 %v2510, %v2558
      %2560 = vmatmul.bf16.gmra.mxu0 %v1137
      %v2561 = vpop.f32.mrf.mxu0
      %v2562 = vadd.f32 %v2513, %v2561
      %v2563 = vpop.f32.mrf.mxu0
      %v2564 = vadd.f32 %v2515, %v2563
      %2565 = vmatmul.bf16.gmra.mxu0 %v1156
      %v2566 = vpop.f32.mrf.mxu0
      %v2567 = vadd.f32 %v2518, %v2566
      %v2568 = vpop.f32.mrf.mxu0
      %v2569 = vadd.f32 %v2520, %v2568
      %2570 = vmatmul.bf16.gmra.mxu0 %v1175
      %v2571 = vpop.f32.mrf.mxu0
      %v2572 = vadd.f32 %v2523, %v2571
      %v2573 = vpop.f32.mrf.mxu0
      %v2574 = vadd.f32 %v2525, %v2573
      %2575 = vmatmul.bf16.gmra.mxu0 %v1194
      %v2576 = vpop.f32.mrf.mxu0
      %v2577 = vadd.f32 %v2528, %v2576
      %v2578 = vpop.f32.mrf.mxu0
      %v2579 = vadd.f32 %v2530, %v2578
      %2580 = vmatmul.bf16.gmra.mxu0 %v1213
      %v2581 = vpop.f32.mrf.mxu0
      %v2582 = vadd.f32 %v2533, %v2581
      %v2583 = vpop.f32.mrf.mxu0
      %v2584 = vadd.f32 %v2535, %v2583
      %2585 = vmatmul.bf16.gmra.mxu0 %v1232
      %v2586 = vpop.f32.mrf.mxu0
      %v2587 = vadd.f32 %v2538, %v2586
      %v2588 = vpop.f32.mrf.mxu0
      %v2589 = vadd.f32 %v2540, %v2588
      %2590 = vdwg.mxu0
      %2591 = vmatpush.bf16.msra.mxu0 %v2033
      %2592 = vmatpush.bf16.msra.mxu0 %v2032
      %2593 = vmatpush.bf16.msra.mxu0 %v2031
      %2594 = vmatpush.bf16.msra.mxu0 %v2030
      %2595 = vmatpush.bf16.msra.mxu0 %v2029
      %2596 = vmatpush.bf16.msra.mxu0 %v2028
      %2597 = vmatpush.bf16.msra.mxu0 %v2027
      %2598 = vmatpush.bf16.msra.mxu0 %v2026
      %2599 = vmatmul.bf16.gmra.mxu0 %v1100
      %v2600 = vpop.f32.mrf.mxu0
      %v2601 = vadd.f32 %v2552, %v2600
      %v2602 = vpop.f32.mrf.mxu0
      %v2603 = vadd.f32 %v2554, %v2602
      %2604 = vmatmul.bf16.gmra.mxu0 %v1119
      %v2605 = vpop.f32.mrf.mxu0
      %v2606 = vadd.f32 %v2557, %v2605
      %v2607 = vpop.f32.mrf.mxu0
      %v2608 = vadd.f32 %v2559, %v2607
      %2609 = vmatmul.bf16.gmra.mxu0 %v1138
      %v2610 = vpop.f32.mrf.mxu0
      %v2611 = vadd.f32 %v2562, %v2610
      %v2612 = vpop.f32.mrf.mxu0
      %v2613 = vadd.f32 %v2564, %v2612
      %2614 = vmatmul.bf16.gmra.mxu0 %v1157
      %v2615 = vpop.f32.mrf.mxu0
      %v2616 = vadd.f32 %v2567, %v2615
      %v2617 = vpop.f32.mrf.mxu0
      %v2618 = vadd.f32 %v2569, %v2617
      %2619 = vmatmul.bf16.gmra.mxu0 %v1176
      %v2620 = vpop.f32.mrf.mxu0
      %v2621 = vadd.f32 %v2572, %v2620
      %v2622 = vpop.f32.mrf.mxu0
      %v2623 = vadd.f32 %v2574, %v2622
      %2624 = vmatmul.bf16.gmra.mxu0 %v1195
      %v2625 = vpop.f32.mrf.mxu0
      %v2626 = vadd.f32 %v2577, %v2625
      %v2627 = vpop.f32.mrf.mxu0
      %v2628 = vadd.f32 %v2579, %v2627
      %2629 = vmatmul.bf16.gmra.mxu0 %v1214
      %v2630 = vpop.f32.mrf.mxu0
      %v2631 = vadd.f32 %v2582, %v2630
      %v2632 = vpop.f32.mrf.mxu0
      %v2633 = vadd.f32 %v2584, %v2632
      %2634 = vmatmul.bf16.gmra.mxu0 %v1233
      %v2635 = vpop.f32.mrf.mxu0
      %v2636 = vadd.f32 %v2587, %v2635
      %v2637 = vpop.f32.mrf.mxu0
      %v2638 = vadd.f32 %v2589, %v2637
      %2639 = vdwg.mxu0
      %2640 = vmatpush.bf16.msra.mxu0 %v2041
      %2641 = vmatpush.bf16.msra.mxu0 %v2040
      %2642 = vmatpush.bf16.msra.mxu0 %v2039
      %2643 = vmatpush.bf16.msra.mxu0 %v2038
      %2644 = vmatpush.bf16.msra.mxu0 %v2037
      %2645 = vmatpush.bf16.msra.mxu0 %v2036
      %2646 = vmatpush.bf16.msra.mxu0 %v2035
      %2647 = vmatpush.bf16.msra.mxu0 %v2034
      %2648 = vmatmul.bf16.gmra.mxu0 %v1101
      %v2649 = vpop.f32.mrf.mxu0
      %v2650 = vadd.f32 %v2601, %v2649
      %v2651 = vpop.f32.mrf.mxu0
      %v2652 = vadd.f32 %v2603, %v2651
      %2653 = vmatmul.bf16.gmra.mxu0 %v1120
      %v2654 = vpop.f32.mrf.mxu0
      %v2655 = vadd.f32 %v2606, %v2654
      %v2656 = vpop.f32.mrf.mxu0
      %v2657 = vadd.f32 %v2608, %v2656
      %2658 = vmatmul.bf16.gmra.mxu0 %v1139
      %v2659 = vpop.f32.mrf.mxu0
      %v2660 = vadd.f32 %v2611, %v2659
      %v2661 = vpop.f32.mrf.mxu0
      %v2662 = vadd.f32 %v2613, %v2661
      %2663 = vmatmul.bf16.gmra.mxu0 %v1158
      %v2664 = vpop.f32.mrf.mxu0
      %v2665 = vadd.f32 %v2616, %v2664
      %v2666 = vpop.f32.mrf.mxu0
      %v2667 = vadd.f32 %v2618, %v2666
      %2668 = vmatmul.bf16.gmra.mxu0 %v1177
      %v2669 = vpop.f32.mrf.mxu0
      %v2670 = vadd.f32 %v2621, %v2669
      %v2671 = vpop.f32.mrf.mxu0
      %v2672 = vadd.f32 %v2623, %v2671
      %2673 = vmatmul.bf16.gmra.mxu0 %v1196
      %v2674 = vpop.f32.mrf.mxu0
      %v2675 = vadd.f32 %v2626, %v2674
      %v2676 = vpop.f32.mrf.mxu0
      %v2677 = vadd.f32 %v2628, %v2676
      %2678 = vmatmul.bf16.gmra.mxu0 %v1215
      %v2679 = vpop.f32.mrf.mxu0
      %v2680 = vadd.f32 %v2631, %v2679
      %v2681 = vpop.f32.mrf.mxu0
      %v2682 = vadd.f32 %v2633, %v2681
      %2683 = vmatmul.bf16.gmra.mxu0 %v1234
      %v2684 = vpop.f32.mrf.mxu0
      %v2685 = vadd.f32 %v2636, %v2684
      %v2686 = vpop.f32.mrf.mxu0
      %v2687 = vadd.f32 %v2638, %v2686
      %2688 = vdwg.mxu0
      %2689 = vmatpush.bf16.msra.mxu0 %v2049
      %2690 = vmatpush.bf16.msra.mxu0 %v2048
      %2691 = vmatpush.bf16.msra.mxu0 %v2047
      %2692 = vmatpush.bf16.msra.mxu0 %v2046
      %2693 = vmatpush.bf16.msra.mxu0 %v2045
      %2694 = vmatpush.bf16.msra.mxu0 %v2044
      %2695 = vmatpush.bf16.msra.mxu0 %v2043
      %2696 = vmatpush.bf16.msra.mxu0 %v2042
      %2697 = vmatmul.bf16.gmra.mxu0 %v1102
      %v2698 = vpop.f32.mrf.mxu0
      %v2699 = vadd.f32 %v2650, %v2698
      %v2700 = vpop.f32.mrf.mxu0
      %v2701 = vadd.f32 %v2652, %v2700
      %2702 = vmatmul.bf16.gmra.mxu0 %v1121
      %v2703 = vpop.f32.mrf.mxu0
      %v2704 = vadd.f32 %v2655, %v2703
      %v2705 = vpop.f32.mrf.mxu0
      %v2706 = vadd.f32 %v2657, %v2705
      %2707 = vmatmul.bf16.gmra.mxu0 %v1140
      %v2708 = vpop.f32.mrf.mxu0
      %v2709 = vadd.f32 %v2660, %v2708
      %v2710 = vpop.f32.mrf.mxu0
      %v2711 = vadd.f32 %v2662, %v2710
      %2712 = vmatmul.bf16.gmra.mxu0 %v1159
      %v2713 = vpop.f32.mrf.mxu0
      %v2714 = vadd.f32 %v2665, %v2713
      %v2715 = vpop.f32.mrf.mxu0
      %v2716 = vadd.f32 %v2667, %v2715
      %2717 = vmatmul.bf16.gmra.mxu0 %v1178
      %v2718 = vpop.f32.mrf.mxu0
      %v2719 = vadd.f32 %v2670, %v2718
      %v2720 = vpop.f32.mrf.mxu0
      %v2721 = vadd.f32 %v2672, %v2720
      %2722 = vmatmul.bf16.gmra.mxu0 %v1197
      %v2723 = vpop.f32.mrf.mxu0
      %v2724 = vadd.f32 %v2675, %v2723
      %v2725 = vpop.f32.mrf.mxu0
      %v2726 = vadd.f32 %v2677, %v2725
      %2727 = vmatmul.bf16.gmra.mxu0 %v1216
      %v2728 = vpop.f32.mrf.mxu0
      %v2729 = vadd.f32 %v2680, %v2728
      %v2730 = vpop.f32.mrf.mxu0
      %v2731 = vadd.f32 %v2682, %v2730
      %2732 = vmatmul.bf16.gmra.mxu0 %v1235
      %v2733 = vpop.f32.mrf.mxu0
      %v2734 = vadd.f32 %v2685, %v2733
      %v2735 = vpop.f32.mrf.mxu0
      %v2736 = vadd.f32 %v2687, %v2735
      %2737 = vdwg.mxu0
      %2738 = vmatpush.bf16.msra.mxu0 %v2057
      %2739 = vmatpush.bf16.msra.mxu0 %v2056
      %2740 = vmatpush.bf16.msra.mxu0 %v2055
      %2741 = vmatpush.bf16.msra.mxu0 %v2054
      %2742 = vmatpush.bf16.msra.mxu0 %v2053
      %2743 = vmatpush.bf16.msra.mxu0 %v2052
      %2744 = vmatpush.bf16.msra.mxu0 %v2051
      %2745 = vmatpush.bf16.msra.mxu0 %v2050
      %2746 = vmatmul.bf16.gmra.mxu0 %v1103
      %v2747 = vpop.f32.mrf.mxu0
      %v2748 = vadd.f32 %v2699, %v2747
      %v2749 = vpop.f32.mrf.mxu0
      %v2750 = vadd.f32 %v2701, %v2749
      %2751 = vmatmul.bf16.gmra.mxu0 %v1122
      %v2752 = vpop.f32.mrf.mxu0
      %v2753 = vadd.f32 %v2704, %v2752
      %v2754 = vpop.f32.mrf.mxu0
      %v2755 = vadd.f32 %v2706, %v2754
      %2756 = vmatmul.bf16.gmra.mxu0 %v1141
      %v2757 = vpop.f32.mrf.mxu0
      %v2758 = vadd.f32 %v2709, %v2757
      %v2759 = vpop.f32.mrf.mxu0
      %v2760 = vadd.f32 %v2711, %v2759
      %2761 = vmatmul.bf16.gmra.mxu0 %v1160
      %v2762 = vpop.f32.mrf.mxu0
      %v2763 = vadd.f32 %v2714, %v2762
      %v2764 = vpop.f32.mrf.mxu0
      %v2765 = vadd.f32 %v2716, %v2764
      %2766 = vmatmul.bf16.gmra.mxu0 %v1179
      %v2767 = vpop.f32.mrf.mxu0
      %v2768 = vadd.f32 %v2719, %v2767
      %v2769 = vpop.f32.mrf.mxu0
      %v2770 = vadd.f32 %v2721, %v2769
      %2771 = vmatmul.bf16.gmra.mxu0 %v1198
      %v2772 = vpop.f32.mrf.mxu0
      %v2773 = vadd.f32 %v2724, %v2772
      %v2774 = vpop.f32.mrf.mxu0
      %v2775 = vadd.f32 %v2726, %v2774
      %2776 = vmatmul.bf16.gmra.mxu0 %v1217
      %v2777 = vpop.f32.mrf.mxu0
      %v2778 = vadd.f32 %v2729, %v2777
      %v2779 = vpop.f32.mrf.mxu0
      %v2780 = vadd.f32 %v2731, %v2779
      %2781 = vmatmul.bf16.gmra.mxu0 %v1236
      %v2782 = vpop.f32.mrf.mxu0
      %v2783 = vadd.f32 %v2734, %v2782
      %v2784 = vpop.f32.mrf.mxu0
      %v2785 = vadd.f32 %v2736, %v2784
      %2786 = vdwg.mxu0
      %2787 = vmatpush.bf16.msra.mxu0 %v2065
      %2788 = vmatpush.bf16.msra.mxu0 %v2064
      %2789 = vmatpush.bf16.msra.mxu0 %v2063
      %2790 = vmatpush.bf16.msra.mxu0 %v2062
      %2791 = vmatpush.bf16.msra.mxu0 %v2061
      %2792 = vmatpush.bf16.msra.mxu0 %v2060
      %2793 = vmatpush.bf16.msra.mxu0 %v2059
      %2794 = vmatpush.bf16.msra.mxu0 %v2058
      %2795 = vmatmul.bf16.gmra.mxu0 %v1104
      %v2796 = vpop.f32.mrf.mxu0
      %v2797 = vadd.f32 %v2748, %v2796
      %v2798 = vpop.f32.mrf.mxu0
      %v2799 = vadd.f32 %v2750, %v2798
      %2800 = vmatmul.bf16.gmra.mxu0 %v1123
      %v2801 = vpop.f32.mrf.mxu0
      %v2802 = vadd.f32 %v2753, %v2801
      %v2803 = vpop.f32.mrf.mxu0
      %v2804 = vadd.f32 %v2755, %v2803
      %2805 = vmatmul.bf16.gmra.mxu0 %v1142
      %v2806 = vpop.f32.mrf.mxu0
      %v2807 = vadd.f32 %v2758, %v2806
      %v2808 = vpop.f32.mrf.mxu0
      %v2809 = vadd.f32 %v2760, %v2808
      %2810 = vmatmul.bf16.gmra.mxu0 %v1161
      %v2811 = vpop.f32.mrf.mxu0
      %v2812 = vadd.f32 %v2763, %v2811
      %v2813 = vpop.f32.mrf.mxu0
      %v2814 = vadd.f32 %v2765, %v2813
      %2815 = vmatmul.bf16.gmra.mxu0 %v1180
      %v2816 = vpop.f32.mrf.mxu0
      %v2817 = vadd.f32 %v2768, %v2816
      %v2818 = vpop.f32.mrf.mxu0
      %v2819 = vadd.f32 %v2770, %v2818
      %2820 = vmatmul.bf16.gmra.mxu0 %v1199
      %v2821 = vpop.f32.mrf.mxu0
      %v2822 = vadd.f32 %v2773, %v2821
      %v2823 = vpop.f32.mrf.mxu0
      %v2824 = vadd.f32 %v2775, %v2823
      %2825 = vmatmul.bf16.gmra.mxu0 %v1218
      %v2826 = vpop.f32.mrf.mxu0
      %v2827 = vadd.f32 %v2778, %v2826
      %v2828 = vpop.f32.mrf.mxu0
      %v2829 = vadd.f32 %v2780, %v2828
      %2830 = vmatmul.bf16.gmra.mxu0 %v1237
      %v2831 = vpop.f32.mrf.mxu0
      %v2832 = vadd.f32 %v2783, %v2831
      %v2833 = vpop.f32.mrf.mxu0
      %v2834 = vadd.f32 %v2785, %v2833
      %2835 = vdwg.mxu0
      %2836 = vmatpush.bf16.msra.mxu0 %v2073
      %2837 = vmatpush.bf16.msra.mxu0 %v2072
      %2838 = vmatpush.bf16.msra.mxu0 %v2071
      %2839 = vmatpush.bf16.msra.mxu0 %v2070
      %2840 = vmatpush.bf16.msra.mxu0 %v2069
      %2841 = vmatpush.bf16.msra.mxu0 %v2068
      %2842 = vmatpush.bf16.msra.mxu0 %v2067
      %2843 = vmatpush.bf16.msra.mxu0 %v2066
      %2844 = vmatmul.bf16.gmra.mxu0 %v1105
      %v2845 = vpop.f32.mrf.mxu0
      %v2846 = vadd.f32 %v2797, %v2845
      %v2847 = vpop.f32.mrf.mxu0
      %v2848 = vadd.f32 %v2799, %v2847
      %2849 = vmatmul.bf16.gmra.mxu0 %v1124
      %v2850 = vpop.f32.mrf.mxu0
      %v2851 = vadd.f32 %v2802, %v2850
      %v2852 = vpop.f32.mrf.mxu0
      %v2853 = vadd.f32 %v2804, %v2852
      %2854 = vmatmul.bf16.gmra.mxu0 %v1143
      %v2855 = vpop.f32.mrf.mxu0
      %v2856 = vadd.f32 %v2807, %v2855
      %v2857 = vpop.f32.mrf.mxu0
      %v2858 = vadd.f32 %v2809, %v2857
      %2859 = vmatmul.bf16.gmra.mxu0 %v1162
      %v2860 = vpop.f32.mrf.mxu0
      %v2861 = vadd.f32 %v2812, %v2860
      %v2862 = vpop.f32.mrf.mxu0
      %v2863 = vadd.f32 %v2814, %v2862
      %2864 = vmatmul.bf16.gmra.mxu0 %v1181
      %v2865 = vpop.f32.mrf.mxu0
      %v2866 = vadd.f32 %v2817, %v2865
      %v2867 = vpop.f32.mrf.mxu0
      %v2868 = vadd.f32 %v2819, %v2867
      %2869 = vmatmul.bf16.gmra.mxu0 %v1200
      %v2870 = vpop.f32.mrf.mxu0
      %v2871 = vadd.f32 %v2822, %v2870
      %v2872 = vpop.f32.mrf.mxu0
      %v2873 = vadd.f32 %v2824, %v2872
      %2874 = vmatmul.bf16.gmra.mxu0 %v1219
      %v2875 = vpop.f32.mrf.mxu0
      %v2876 = vadd.f32 %v2827, %v2875
      %v2877 = vpop.f32.mrf.mxu0
      %v2878 = vadd.f32 %v2829, %v2877
      %2879 = vmatmul.bf16.gmra.mxu0 %v1238
      %v2880 = vpop.f32.mrf.mxu0
      %v2881 = vadd.f32 %v2832, %v2880
      %v2882 = vpop.f32.mrf.mxu0
      %v2883 = vadd.f32 %v2834, %v2882
      %2884 = vdwg.mxu0
      %2885 = vmatpush.bf16.msra.mxu0 %v2081
      %2886 = vmatpush.bf16.msra.mxu0 %v2080
      %2887 = vmatpush.bf16.msra.mxu0 %v2079
      %2888 = vmatpush.bf16.msra.mxu0 %v2078
      %2889 = vmatpush.bf16.msra.mxu0 %v2077
      %2890 = vmatpush.bf16.msra.mxu0 %v2076
      %2891 = vmatpush.bf16.msra.mxu0 %v2075
      %2892 = vmatpush.bf16.msra.mxu0 %v2074
      %2893 = vmatmul.bf16.gmra.mxu0 %v1106
      %v2894 = vpop.f32.mrf.mxu0
      %v2895 = vadd.f32 %v2846, %v2894
      %v2896 = vpop.f32.mrf.mxu0
      %v2897 = vadd.f32 %v2848, %v2896
      %2898 = vmatmul.bf16.gmra.mxu0 %v1125
      %v2899 = vpop.f32.mrf.mxu0
      %v2900 = vadd.f32 %v2851, %v2899
      %v2901 = vpop.f32.mrf.mxu0
      %v2902 = vadd.f32 %v2853, %v2901
      %2903 = vmatmul.bf16.gmra.mxu0 %v1144
      %v2904 = vpop.f32.mrf.mxu0
      %v2905 = vadd.f32 %v2856, %v2904
      %v2906 = vpop.f32.mrf.mxu0
      %v2907 = vadd.f32 %v2858, %v2906
      %2908 = vmatmul.bf16.gmra.mxu0 %v1163
      %v2909 = vpop.f32.mrf.mxu0
      %v2910 = vadd.f32 %v2861, %v2909
      %v2911 = vpop.f32.mrf.mxu0
      %v2912 = vadd.f32 %v2863, %v2911
      %2913 = vmatmul.bf16.gmra.mxu0 %v1182
      %v2914 = vpop.f32.mrf.mxu0
      %v2915 = vadd.f32 %v2866, %v2914
      %v2916 = vpop.f32.mrf.mxu0
      %v2917 = vadd.f32 %v2868, %v2916
      %2918 = vmatmul.bf16.gmra.mxu0 %v1201
      %v2919 = vpop.f32.mrf.mxu0
      %v2920 = vadd.f32 %v2871, %v2919
      %v2921 = vpop.f32.mrf.mxu0
      %v2922 = vadd.f32 %v2873, %v2921
      %2923 = vmatmul.bf16.gmra.mxu0 %v1220
      %v2924 = vpop.f32.mrf.mxu0
      %v2925 = vadd.f32 %v2876, %v2924
      %v2926 = vpop.f32.mrf.mxu0
      %v2927 = vadd.f32 %v2878, %v2926
      %2928 = vmatmul.bf16.gmra.mxu0 %v1239
      %v2929 = vpop.f32.mrf.mxu0
      %v2930 = vadd.f32 %v2881, %v2929
      %v2931 = vpop.f32.mrf.mxu0
      %v2932 = vadd.f32 %v2883, %v2931
      %2933 = vdwg.mxu0
      %2934 = vmatpush.bf16.msra.mxu0 %v2089
      %2935 = vmatpush.bf16.msra.mxu0 %v2088
      %2936 = vmatpush.bf16.msra.mxu0 %v2087
      %2937 = vmatpush.bf16.msra.mxu0 %v2086
      %2938 = vmatpush.bf16.msra.mxu0 %v2085
      %2939 = vmatpush.bf16.msra.mxu0 %v2084
      %2940 = vmatpush.bf16.msra.mxu0 %v2083
      %2941 = vmatpush.bf16.msra.mxu0 %v2082
      %2942 = vmatmul.bf16.gmra.mxu0 %v1107
      %v2943 = vpop.f32.mrf.mxu0
      %v2944 = vadd.f32 %v2895, %v2943
      %v2945 = vpop.f32.mrf.mxu0
      %v2946 = vadd.f32 %v2897, %v2945
      %2947 = vmatmul.bf16.gmra.mxu0 %v1126
      %v2948 = vpop.f32.mrf.mxu0
      %v2949 = vadd.f32 %v2900, %v2948
      %v2950 = vpop.f32.mrf.mxu0
      %v2951 = vadd.f32 %v2902, %v2950
      %2952 = vmatmul.bf16.gmra.mxu0 %v1145
      %v2953 = vpop.f32.mrf.mxu0
      %v2954 = vadd.f32 %v2905, %v2953
      %v2955 = vpop.f32.mrf.mxu0
      %v2956 = vadd.f32 %v2907, %v2955
      %2957 = vmatmul.bf16.gmra.mxu0 %v1164
      %v2958 = vpop.f32.mrf.mxu0
      %v2959 = vadd.f32 %v2910, %v2958
      %v2960 = vpop.f32.mrf.mxu0
      %v2961 = vadd.f32 %v2912, %v2960
      %2962 = vmatmul.bf16.gmra.mxu0 %v1183
      %v2963 = vpop.f32.mrf.mxu0
      %v2964 = vadd.f32 %v2915, %v2963
      %v2965 = vpop.f32.mrf.mxu0
      %v2966 = vadd.f32 %v2917, %v2965
      %2967 = vmatmul.bf16.gmra.mxu0 %v1202
      %v2968 = vpop.f32.mrf.mxu0
      %v2969 = vadd.f32 %v2920, %v2968
      %v2970 = vpop.f32.mrf.mxu0
      %v2971 = vadd.f32 %v2922, %v2970
      %2972 = vmatmul.bf16.gmra.mxu0 %v1221
      %v2973 = vpop.f32.mrf.mxu0
      %v2974 = vadd.f32 %v2925, %v2973
      %v2975 = vpop.f32.mrf.mxu0
      %v2976 = vadd.f32 %v2927, %v2975
      %2977 = vmatmul.bf16.gmra.mxu0 %v1240
      %v2978 = vpop.f32.mrf.mxu0
      %v2979 = vadd.f32 %v2930, %v2978
      %v2980 = vpop.f32.mrf.mxu0
      %v2981 = vadd.f32 %v2932, %v2980
      %2982 = vdwg.mxu0
      %2983 = vmatpush.bf16.msra.mxu0 %v2097
      %2984 = vmatpush.bf16.msra.mxu0 %v2096
      %2985 = vmatpush.bf16.msra.mxu0 %v2095
      %2986 = vmatpush.bf16.msra.mxu0 %v2094
      %2987 = vmatpush.bf16.msra.mxu0 %v2093
      %2988 = vmatpush.bf16.msra.mxu0 %v2092
      %2989 = vmatpush.bf16.msra.mxu0 %v2091
      %2990 = vmatpush.bf16.msra.mxu0 %v2090
      %2991 = vmatmul.bf16.gmra.mxu0 %v1108
      %v2992 = vpop.f32.mrf.mxu0
      %v2993 = vadd.f32 %v2944, %v2992
      %v2994 = vpop.f32.mrf.mxu0
      %v2995 = vadd.f32 %v2946, %v2994
      %2996 = vmatmul.bf16.gmra.mxu0 %v1127
      %v2997 = vpop.f32.mrf.mxu0
      %v2998 = vadd.f32 %v2949, %v2997
      %v2999 = vpop.f32.mrf.mxu0
      %v3000 = vadd.f32 %v2951, %v2999
      %3001 = vmatmul.bf16.gmra.mxu0 %v1146
      %v3002 = vpop.f32.mrf.mxu0
      %v3003 = vadd.f32 %v2954, %v3002
      %v3004 = vpop.f32.mrf.mxu0
      %v3005 = vadd.f32 %v2956, %v3004
      %3006 = vmatmul.bf16.gmra.mxu0 %v1165
      %v3007 = vpop.f32.mrf.mxu0
      %v3008 = vadd.f32 %v2959, %v3007
      %v3009 = vpop.f32.mrf.mxu0
      %v3010 = vadd.f32 %v2961, %v3009
      %3011 = vmatmul.bf16.gmra.mxu0 %v1184
      %v3012 = vpop.f32.mrf.mxu0
      %v3013 = vadd.f32 %v2964, %v3012
      %v3014 = vpop.f32.mrf.mxu0
      %v3015 = vadd.f32 %v2966, %v3014
      %3016 = vmatmul.bf16.gmra.mxu0 %v1203
      %v3017 = vpop.f32.mrf.mxu0
      %v3018 = vadd.f32 %v2969, %v3017
      %v3019 = vpop.f32.mrf.mxu0
      %v3020 = vadd.f32 %v2971, %v3019
      %3021 = vmatmul.bf16.gmra.mxu0 %v1222
      %v3022 = vpop.f32.mrf.mxu0
      %v3023 = vadd.f32 %v2974, %v3022
      %v3024 = vpop.f32.mrf.mxu0
      %v3025 = vadd.f32 %v2976, %v3024
      %3026 = vmatmul.bf16.gmra.mxu0 %v1241
      %v3027 = vpop.f32.mrf.mxu0
      %v3028 = vadd.f32 %v2979, %v3027
      %v3029 = vpop.f32.mrf.mxu0
      %v3030 = vadd.f32 %v2981, %v3029
      %3031 = vdwg.mxu0
      %3032 = vmatpush.bf16.msra.mxu0 %v2105
      %3033 = vmatpush.bf16.msra.mxu0 %v2104
      %3034 = vmatpush.bf16.msra.mxu0 %v2103
      %3035 = vmatpush.bf16.msra.mxu0 %v2102
      %3036 = vmatpush.bf16.msra.mxu0 %v2101
      %3037 = vmatpush.bf16.msra.mxu0 %v2100
      %3038 = vmatpush.bf16.msra.mxu0 %v2099
      %3039 = vmatpush.bf16.msra.mxu0 %v2098
      %3040 = vmatmul.bf16.gmra.mxu0 %v1109
      %v3041 = vpop.f32.mrf.mxu0
      %v3042 = vadd.f32 %v2993, %v3041
      %v3043 = vpop.f32.mrf.mxu0
      %v3044 = vadd.f32 %v2995, %v3043
      %3045 = vmatmul.bf16.gmra.mxu0 %v1128
      %v3046 = vpop.f32.mrf.mxu0
      %v3047 = vadd.f32 %v2998, %v3046
      %v3048 = vpop.f32.mrf.mxu0
      %v3049 = vadd.f32 %v3000, %v3048
      %3050 = vmatmul.bf16.gmra.mxu0 %v1147
      %v3051 = vpop.f32.mrf.mxu0
      %v3052 = vadd.f32 %v3003, %v3051
      %v3053 = vpop.f32.mrf.mxu0
      %v3054 = vadd.f32 %v3005, %v3053
      %3055 = vmatmul.bf16.gmra.mxu0 %v1166
      %v3056 = vpop.f32.mrf.mxu0
      %v3057 = vadd.f32 %v3008, %v3056
      %v3058 = vpop.f32.mrf.mxu0
      %v3059 = vadd.f32 %v3010, %v3058
      %3060 = vmatmul.bf16.gmra.mxu0 %v1185
      %v3061 = vpop.f32.mrf.mxu0
      %v3062 = vadd.f32 %v3013, %v3061
      %v3063 = vpop.f32.mrf.mxu0
      %v3064 = vadd.f32 %v3015, %v3063
      %3065 = vmatmul.bf16.gmra.mxu0 %v1204
      %v3066 = vpop.f32.mrf.mxu0
      %v3067 = vadd.f32 %v3018, %v3066
      %v3068 = vpop.f32.mrf.mxu0
      %v3069 = vadd.f32 %v3020, %v3068
      %3070 = vmatmul.bf16.gmra.mxu0 %v1223
      %v3071 = vpop.f32.mrf.mxu0
      %v3072 = vadd.f32 %v3023, %v3071
      %v3073 = vpop.f32.mrf.mxu0
      %v3074 = vadd.f32 %v3025, %v3073
      %3075 = vmatmul.bf16.gmra.mxu0 %v1242
      %v3076 = vpop.f32.mrf.mxu0
      %v3077 = vadd.f32 %v3028, %v3076
      %v3078 = vpop.f32.mrf.mxu0
      %v3079 = vadd.f32 %v3030, %v3078
      %3080 = vdwg.mxu0
      %3081 = vmatpush.bf16.msra.mxu0 %v2113
      %3082 = vmatpush.bf16.msra.mxu0 %v2112
      %3083 = vmatpush.bf16.msra.mxu0 %v2111
      %3084 = vmatpush.bf16.msra.mxu0 %v2110
      %3085 = vmatpush.bf16.msra.mxu0 %v2109
      %3086 = vmatpush.bf16.msra.mxu0 %v2108
      %3087 = vmatpush.bf16.msra.mxu0 %v2107
      %3088 = vmatpush.bf16.msra.mxu0 %v2106
      %3089 = vmatmul.bf16.gmra.mxu0 %v1110
      %v3090 = vpop.f32.mrf.mxu0
      %v3091 = vadd.f32 %v3042, %v3090
      %v3092 = vpop.f32.mrf.mxu0
      %v3093 = vadd.f32 %v3044, %v3092
      %3094 = vmatmul.bf16.gmra.mxu0 %v1129
      %v3095 = vpop.f32.mrf.mxu0
      %v3096 = vadd.f32 %v3047, %v3095
      %v3097 = vpop.f32.mrf.mxu0
      %v3098 = vadd.f32 %v3049, %v3097
      %3099 = vmatmul.bf16.gmra.mxu0 %v1148
      %v3100 = vpop.f32.mrf.mxu0
      %v3101 = vadd.f32 %v3052, %v3100
      %v3102 = vpop.f32.mrf.mxu0
      %v3103 = vadd.f32 %v3054, %v3102
      %3104 = vmatmul.bf16.gmra.mxu0 %v1167
      %v3105 = vpop.f32.mrf.mxu0
      %v3106 = vadd.f32 %v3057, %v3105
      %v3107 = vpop.f32.mrf.mxu0
      %v3108 = vadd.f32 %v3059, %v3107
      %3109 = vmatmul.bf16.gmra.mxu0 %v1186
      %v3110 = vpop.f32.mrf.mxu0
      %v3111 = vadd.f32 %v3062, %v3110
      %v3112 = vpop.f32.mrf.mxu0
      %v3113 = vadd.f32 %v3064, %v3112
      %3114 = vmatmul.bf16.gmra.mxu0 %v1205
      %v3115 = vpop.f32.mrf.mxu0
      %v3116 = vadd.f32 %v3067, %v3115
      %v3117 = vpop.f32.mrf.mxu0
      %v3118 = vadd.f32 %v3069, %v3117
      %3119 = vmatmul.bf16.gmra.mxu0 %v1224
      %v3120 = vpop.f32.mrf.mxu0
      %v3121 = vadd.f32 %v3072, %v3120
      %v3122 = vpop.f32.mrf.mxu0
      %v3123 = vadd.f32 %v3074, %v3122
      %3124 = vmatmul.bf16.gmra.mxu0 %v1243
      %v3125 = vpop.f32.mrf.mxu0
      %v3126 = vadd.f32 %v3077, %v3125
      %v3127 = vpop.f32.mrf.mxu0
      %v3128 = vadd.f32 %v3079, %v3127
      %3129 = vdwg.mxu0
      %3130 = vmatpush.bf16.msra.mxu0 %v2121
      %3131 = vmatpush.bf16.msra.mxu0 %v2120
      %3132 = vmatpush.bf16.msra.mxu0 %v2119
      %3133 = vmatpush.bf16.msra.mxu0 %v2118
      %3134 = vmatpush.bf16.msra.mxu0 %v2117
      %3135 = vmatpush.bf16.msra.mxu0 %v2116
      %3136 = vmatpush.bf16.msra.mxu0 %v2115
      %3137 = vmatpush.bf16.msra.mxu0 %v2114
      %3138 = vmatmul.bf16.gmra.mxu0 %v1111
      %v3139 = vpop.f32.mrf.mxu0
      %v3140 = vadd.f32 %v3091, %v3139
      %v3141 = vpop.f32.mrf.mxu0
      %v3142 = vadd.f32 %v3093, %v3141
      %3143 = vmatmul.bf16.gmra.mxu0 %v1130
      %v3144 = vpop.f32.mrf.mxu0
      %v3145 = vadd.f32 %v3096, %v3144
      %v3146 = vpop.f32.mrf.mxu0
      %v3147 = vadd.f32 %v3098, %v3146
      %3148 = vmatmul.bf16.gmra.mxu0 %v1149
      %v3149 = vpop.f32.mrf.mxu0
      %v3150 = vadd.f32 %v3101, %v3149
      %v3151 = vpop.f32.mrf.mxu0
      %v3152 = vadd.f32 %v3103, %v3151
      %3153 = vmatmul.bf16.gmra.mxu0 %v1168
      %v3154 = vpop.f32.mrf.mxu0
      %v3155 = vadd.f32 %v3106, %v3154
      %v3156 = vpop.f32.mrf.mxu0
      %v3157 = vadd.f32 %v3108, %v3156
      %3158 = vmatmul.bf16.gmra.mxu0 %v1187
      %v3159 = vpop.f32.mrf.mxu0
      %v3160 = vadd.f32 %v3111, %v3159
      %v3161 = vpop.f32.mrf.mxu0
      %v3162 = vadd.f32 %v3113, %v3161
      %3163 = vmatmul.bf16.gmra.mxu0 %v1206
      %v3164 = vpop.f32.mrf.mxu0
      %v3165 = vadd.f32 %v3116, %v3164
      %v3166 = vpop.f32.mrf.mxu0
      %v3167 = vadd.f32 %v3118, %v3166
      %3168 = vmatmul.bf16.gmra.mxu0 %v1225
      %v3169 = vpop.f32.mrf.mxu0
      %v3170 = vadd.f32 %v3121, %v3169
      %v3171 = vpop.f32.mrf.mxu0
      %v3172 = vadd.f32 %v3123, %v3171
      %3173 = vmatmul.bf16.gmra.mxu0 %v1244
      %v3174 = vpop.f32.mrf.mxu0
      %v3175 = vadd.f32 %v3126, %v3174
      %v3176 = vpop.f32.mrf.mxu0
      %v3177 = vadd.f32 %v3128, %v3176
      %3178 = vdwg.mxu0
      %3179 = vmatpush.bf16.msra.mxu0 0
      %3180 = vmatpush.bf16.msra.mxu0 0
      %3181 = vmatpush.bf16.msra.mxu0 0
      %3182 = vmatpush.bf16.msra.mxu0 0
      %3183 = vmatpush.bf16.msra.mxu0 0
      %3184 = vmatpush.bf16.msra.mxu0 %v2124
      %3185 = vmatpush.bf16.msra.mxu0 %v2123
      %3186 = vmatpush.bf16.msra.mxu0 %v2122
      %3187 = vmatmul.bf16.gmra.mxu0 %v2274
      %v3188 = vpop.f32.mrf.mxu0
      %v3189 = vadd.f32 %v3140, %v3188
      %v3190 = vpop.f32.mrf.mxu0
      %v3191 = vadd.f32 %v3142, %v3190
      %3192 = vmatmul.bf16.gmra.mxu0 %v2277
      %v3193 = vpop.f32.mrf.mxu0
      %v3194 = vadd.f32 %v3145, %v3193
      %v3195 = vpop.f32.mrf.mxu0
      %v3196 = vadd.f32 %v3147, %v3195
      %3197 = vmatmul.bf16.gmra.mxu0 %v2280
      %v3198 = vpop.f32.mrf.mxu0
      %v3199 = vadd.f32 %v3150, %v3198
      %v3200 = vpop.f32.mrf.mxu0
      %v3201 = vadd.f32 %v3152, %v3200
      %3202 = vmatmul.bf16.gmra.mxu0 %v2283
      %v3203 = vpop.f32.mrf.mxu0
      %v3204 = vadd.f32 %v3155, %v3203
      %v3205 = vpop.f32.mrf.mxu0
      %v3206 = vadd.f32 %v3157, %v3205
      %3207 = vmatmul.bf16.gmra.mxu0 %v2286
      %v3208 = vpop.f32.mrf.mxu0
      %v3209 = vadd.f32 %v3160, %v3208
      %v3210 = vpop.f32.mrf.mxu0
      %v3211 = vadd.f32 %v3162, %v3210
      %3212 = vmatmul.bf16.gmra.mxu0 %v2289
      %v3213 = vpop.f32.mrf.mxu0
      %v3214 = vadd.f32 %v3165, %v3213
      %v3215 = vpop.f32.mrf.mxu0
      %v3216 = vadd.f32 %v3167, %v3215
      %3217 = vmatmul.bf16.gmra.mxu0 %v2292
      %v3218 = vpop.f32.mrf.mxu0
      %v3219 = vadd.f32 %v3170, %v3218
      %v3220 = vpop.f32.mrf.mxu0
      %v3221 = vadd.f32 %v3172, %v3220
      %3222 = vmatmul.bf16.gmra.mxu0 %v2295
      %v3223 = vpop.f32.mrf.mxu0
      %v3224 = vadd.f32 %v3175, %v3223
      %v3225 = vpop.f32.mrf.mxu0
      %v3226 = vadd.f32 %v3177, %v3225
      %3227 = vdwg.mxu0
      %3244 = vrot.lane.b32.xlu0 %v3189, 80
      %v3245 = vpop.permute.xlu0 %3244
      %3246 = vrot.lane.b32.xlu0 %v3191, 80
      %v3247 = vpop.permute.xlu0 %3246
      %3248 = vrot.lane.b32.xlu0 %v3194, 80
      %v3249 = vpop.permute.xlu0 %3248
      %3250 = vrot.lane.b32.xlu0 %v3196, 80
      %v3251 = vpop.permute.xlu0 %3250
      %3252 = vrot.lane.b32.xlu0 %v3199, 80
      %v3253 = vpop.permute.xlu0 %3252
      %3254 = vrot.lane.b32.xlu0 %v3201, 80
      %v3255 = vpop.permute.xlu0 %3254
      %3256 = vrot.lane.b32.xlu0 %v3204, 80
      %v3257 = vpop.permute.xlu0 %3256
      %3258 = vrot.lane.b32.xlu0 %v3206, 80
      %v3259 = vpop.permute.xlu0 %3258
      %3260 = vrot.lane.b32.xlu0 %v3209, 80
      %v3261 = vpop.permute.xlu0 %3260
      %3262 = vrot.lane.b32.xlu0 %v3211, 80
      %v3263 = vpop.permute.xlu0 %3262
      %3264 = vrot.lane.b32.xlu0 %v3214, 80
      %v3265 = vpop.permute.xlu0 %3264
      %3266 = vrot.lane.b32.xlu0 %v3216, 80
      %v3267 = vpop.permute.xlu0 %3266
      %3268 = vrot.lane.b32.xlu0 %v3219, 80
      %v3269 = vpop.permute.xlu0 %3268
      %3270 = vrot.lane.b32.xlu0 %v3221, 80
      %v3271 = vpop.permute.xlu0 %3270
      %3272 = vrot.lane.b32.xlu0 %v3224, 80
      %v3273 = vpop.permute.xlu0 %3272
      %3274 = vrot.lane.b32.xlu0 %v3226, 80
      %v3275 = vpop.permute.xlu0 %3274
      %v3292 = vmax.f32 %v3189, %v3245
      %v3293 = vmax.f32 %v3191, %v3247
      %v3294 = vmax.f32 %v3194, %v3249
      %v3295 = vmax.f32 %v3196, %v3251
      %v3296 = vmax.f32 %v3199, %v3253
      %v3297 = vmax.f32 %v3201, %v3255
      %v3298 = vmax.f32 %v3204, %v3257
      %v3299 = vmax.f32 %v3206, %v3259
      %v3300 = vmax.f32 %v3209, %v3261
      %v3301 = vmax.f32 %v3211, %v3263
      %v3302 = vmax.f32 %v3214, %v3265
      %v3303 = vmax.f32 %v3216, %v3267
      %v3304 = vmax.f32 %v3219, %v3269
      %v3305 = vmax.f32 %v3221, %v3271
      %v3306 = vmax.f32 %v3224, %v3273
      %v3307 = vmax.f32 %v3226, %v3275
      %vm3323 = vcmask 1044480
      %v3324 = vrot.slane %v3293, 3
      %v3325 = vrot.slane %v3294, 3
      %v3326 = vsel %vm3323, %v3324, %v3325
      %v3327 = vrot.slane %v3295, 3
      %v3328 = vsel %vm3323, %v3325, %v3327
      %v3329 = vrot.slane %v3296, 3
      %v3330 = vsel %vm3323, %v3327, %v3329
      %v3331 = vrot.slane %v3297, 3
      %v3332 = vsel %vm3323, %v3329, %v3331
      %v3333 = vrot.slane %v3298, 3
      %v3334 = vsel %vm3323, %v3331, %v3333
      %v3335 = vrot.slane %v3299, 3
      %v3336 = vsel %vm3323, %v3333, %v3335
      %v3337 = vrot.slane %v3300, 3
      %v3338 = vsel %vm3323, %v3335, %v3337
      %v3339 = vrot.slane %v3301, 3
      %v3340 = vsel %vm3323, %v3337, %v3339
      %v3341 = vrot.slane %v3302, 3
      %v3342 = vsel %vm3323, %v3339, %v3341
      %v3343 = vrot.slane %v3303, 3
      %v3344 = vsel %vm3323, %v3341, %v3343
      %v3345 = vrot.slane %v3304, 3
      %v3346 = vsel %vm3323, %v3343, %v3345
      %v3347 = vrot.slane %v3305, 3
      %v3348 = vsel %vm3323, %v3345, %v3347
      %v3349 = vrot.slane %v3306, 3
      %v3350 = vsel %vm3323, %v3347, %v3349
      %v3351 = vrot.slane %v3307, 3
      %v3352 = vsel %vm3323, %v3349, %v3351
      %v3367 = vmax.f32 %v3292, %v3326
      %v3368 = vmax.f32 %v3293, %v3328
      %v3369 = vmax.f32 %v3294, %v3330
      %v3370 = vmax.f32 %v3295, %v3332
      %v3371 = vmax.f32 %v3296, %v3334
      %v3372 = vmax.f32 %v3297, %v3336
      %v3373 = vmax.f32 %v3298, %v3338
      %v3374 = vmax.f32 %v3299, %v3340
      %v3375 = vmax.f32 %v3300, %v3342
      %v3376 = vmax.f32 %v3301, %v3344
      %v3377 = vmax.f32 %v3302, %v3346
      %v3378 = vmax.f32 %v3303, %v3348
      %v3379 = vmax.f32 %v3304, %v3350
      %v3380 = vmax.f32 %v3305, %v3352
      %v3394 = vrot.slane %v3368, 3
      %v3395 = vrot.slane %v3369, 3
      %v3396 = vsel %vm3323, %v3394, %v3395
      %v3397 = vrot.slane %v3370, 3
      %v3398 = vsel %vm3323, %v3395, %v3397
      %v3399 = vrot.slane %v3371, 3
      %v3400 = vsel %vm3323, %v3397, %v3399
      %v3401 = vrot.slane %v3372, 3
      %v3402 = vsel %vm3323, %v3399, %v3401
      %v3403 = vrot.slane %v3373, 3
      %v3404 = vsel %vm3323, %v3401, %v3403
      %v3405 = vrot.slane %v3374, 3
      %v3406 = vsel %vm3323, %v3403, %v3405
      %v3407 = vrot.slane %v3375, 3
      %v3408 = vsel %vm3323, %v3405, %v3407
      %v3409 = vrot.slane %v3376, 3
      %v3410 = vsel %vm3323, %v3407, %v3409
      %v3411 = vrot.slane %v3377, 3
      %v3412 = vsel %vm3323, %v3409, %v3411
      %v3413 = vrot.slane %v3378, 3
      %v3414 = vsel %vm3323, %v3411, %v3413
      %v3415 = vrot.slane %v3379, 3
      %v3416 = vsel %vm3323, %v3413, %v3415
      %v3417 = vrot.slane %v3380, 3
      %v3418 = vsel %vm3323, %v3415, %v3417
      %v3432 = vmax.f32 %v3367, %v3396
      %v3433 = vmax.f32 %v3368, %v3398
      %v3434 = vmax.f32 %v3369, %v3400
      %v3435 = vmax.f32 %v3370, %v3402
      %v3436 = vmax.f32 %v3371, %v3404
      %v3437 = vmax.f32 %v3372, %v3406
      %v3438 = vmax.f32 %v3373, %v3408
      %v3439 = vmax.f32 %v3374, %v3410
      %v3440 = vmax.f32 %v3375, %v3412
      %v3441 = vmax.f32 %v3376, %v3414
      %v3442 = vmax.f32 %v3377, %v3416
      %v3443 = vmax.f32 %v3378, %v3418
      %v3444 = vmax.f32 %v3379, %v3417
      %v3457 = vrot.slane %v3433, 3
      %v3458 = vrot.slane %v3434, 3
      %v3459 = vsel %vm3323, %v3457, %v3458
      %v3460 = vrot.slane %v3435, 3
      %v3461 = vsel %vm3323, %v3458, %v3460
      %v3462 = vrot.slane %v3436, 3
      %v3463 = vsel %vm3323, %v3460, %v3462
      %v3464 = vrot.slane %v3437, 3
      %v3465 = vsel %vm3323, %v3462, %v3464
      %v3466 = vrot.slane %v3438, 3
      %v3467 = vsel %vm3323, %v3464, %v3466
      %v3468 = vrot.slane %v3439, 3
      %v3469 = vsel %vm3323, %v3466, %v3468
      %v3470 = vrot.slane %v3440, 3
      %v3471 = vsel %vm3323, %v3468, %v3470
      %v3472 = vrot.slane %v3441, 3
      %v3473 = vsel %vm3323, %v3470, %v3472
      %v3474 = vrot.slane %v3442, 3
      %v3475 = vsel %vm3323, %v3472, %v3474
      %v3476 = vrot.slane %v3443, 3
      %v3477 = vsel %vm3323, %v3474, %v3476
      %v3478 = vrot.slane %v3444, 3
      %v3479 = vsel %vm3323, %v3476, %v3478
      %v3491 = vmax.f32 %v3432, %v3459
      %v3492 = vmax.f32 %v3433, %v3461
      %v3493 = vmax.f32 %v3434, %v3463
      %v3494 = vmax.f32 %v3435, %v3465
      %v3495 = vmax.f32 %v3436, %v3467
      %v3496 = vmax.f32 %v3437, %v3469
      %v3497 = vmax.f32 %v3438, %v3471
      %v3498 = vmax.f32 %v3439, %v3473
      %v3499 = vmax.f32 %v3440, %v3475
      %v3500 = vmax.f32 %v3441, %v3477
      %v3501 = vmax.f32 %v3442, %v3479
      %vm3513 = vcmask 1046528
      %v3514 = vrot.slane %v3491, 1
      %v3515 = vrot.slane %v3492, 1
      %v3516 = vsel %vm3513, %v3514, %v3515
      %v3517 = vrot.slane %v3493, 1
      %v3518 = vsel %vm3513, %v3515, %v3517
      %v3519 = vrot.slane %v3494, 1
      %v3520 = vsel %vm3513, %v3517, %v3519
      %v3521 = vrot.slane %v3495, 1
      %v3522 = vsel %vm3513, %v3519, %v3521
      %v3523 = vrot.slane %v3496, 1
      %v3524 = vsel %vm3513, %v3521, %v3523
      %v3525 = vrot.slane %v3497, 1
      %v3526 = vsel %vm3513, %v3523, %v3525
      %v3527 = vrot.slane %v3498, 1
      %v3528 = vsel %vm3513, %v3525, %v3527
      %v3529 = vrot.slane %v3499, 1
      %v3530 = vsel %vm3513, %v3527, %v3529
      %v3531 = vrot.slane %v3500, 1
      %v3532 = vsel %vm3513, %v3529, %v3531
      %v3533 = vrot.slane %v3501, 1
      %v3534 = vsel %vm3513, %v3531, %v3533
      %v3546 = vmax.f32 %v3491, %v3516
      %v3547 = vmax.f32 %v3492, %v3518
      %v3548 = vmax.f32 %v3493, %v3520
      %v3549 = vmax.f32 %v3494, %v3522
      %v3550 = vmax.f32 %v3495, %v3524
      %v3551 = vmax.f32 %v3496, %v3526
      %v3552 = vmax.f32 %v3497, %v3528
      %v3553 = vmax.f32 %v3498, %v3530
      %v3554 = vmax.f32 %v3499, %v3532
      %v3555 = vmax.f32 %v3500, %v3534
      %v3556 = vmax.f32 %v3501, %v3533
      %v3568 = vrot.slane %v3546, 1
      %v3569 = vrot.slane %v3547, 1
      %v3570 = vsel %vm3513, %v3568, %v3569
      %v3571 = vrot.slane %v3548, 1
      %v3572 = vsel %vm3513, %v3569, %v3571
      %v3573 = vrot.slane %v3549, 1
      %v3574 = vsel %vm3513, %v3571, %v3573
      %v3575 = vrot.slane %v3550, 1
      %v3576 = vsel %vm3513, %v3573, %v3575
      %v3577 = vrot.slane %v3551, 1
      %v3578 = vsel %vm3513, %v3575, %v3577
      %v3579 = vrot.slane %v3552, 1
      %v3580 = vsel %vm3513, %v3577, %v3579
      %v3581 = vrot.slane %v3553, 1
      %v3582 = vsel %vm3513, %v3579, %v3581
      %v3583 = vrot.slane %v3554, 1
      %v3584 = vsel %vm3513, %v3581, %v3583
      %v3585 = vrot.slane %v3555, 1
      %v3586 = vsel %vm3513, %v3583, %v3585
      %v3587 = vrot.slane %v3556, 1
      %v3588 = vsel %vm3513, %v3585, %v3587
      %v3600 = vmax.f32 %v3546, %v3570
      %v3601 = vmax.f32 %v3547, %v3572
      %v3602 = vmax.f32 %v3548, %v3574
      %v3603 = vmax.f32 %v3549, %v3576
      %v3604 = vmax.f32 %v3550, %v3578
      %v3605 = vmax.f32 %v3551, %v3580
      %v3606 = vmax.f32 %v3552, %v3582
      %v3607 = vmax.f32 %v3553, %v3584
      %v3608 = vmax.f32 %v3554, %v3586
      %v3609 = vmax.f32 %v3555, %v3588
      %v3610 = vmax.f32 %v3556, %v3587
      %v3622 = vrot.slane %v3600, 1
      %v3623 = vrot.slane %v3601, 1
      %v3624 = vsel %vm3513, %v3622, %v3623
      %v3625 = vrot.slane %v3602, 1
      %v3626 = vsel %vm3513, %v3623, %v3625
      %v3627 = vrot.slane %v3603, 1
      %v3628 = vsel %vm3513, %v3625, %v3627
      %v3629 = vrot.slane %v3604, 1
      %v3630 = vsel %vm3513, %v3627, %v3629
      %v3631 = vrot.slane %v3605, 1
      %v3632 = vsel %vm3513, %v3629, %v3631
      %v3633 = vrot.slane %v3606, 1
      %v3634 = vsel %vm3513, %v3631, %v3633
      %v3635 = vrot.slane %v3607, 1
      %v3636 = vsel %vm3513, %v3633, %v3635
      %v3637 = vrot.slane %v3608, 1
      %v3638 = vsel %vm3513, %v3635, %v3637
      %v3639 = vrot.slane %v3609, 1
      %v3640 = vsel %vm3513, %v3637, %v3639
      %v3641 = vrot.slane %v3610, 1
      %v3642 = vsel %vm3513, %v3639, %v3641
      %v3654 = vmax.f32 %v3600, %v3624
      %v3655 = vmax.f32 %v3601, %v3626
      %v3656 = vmax.f32 %v3602, %v3628
      %v3657 = vmax.f32 %v3603, %v3630
      %v3658 = vmax.f32 %v3604, %v3632
      %v3659 = vmax.f32 %v3605, %v3634
      %v3660 = vmax.f32 %v3606, %v3636
      %v3661 = vmax.f32 %v3607, %v3638
      %v3662 = vmax.f32 %v3608, %v3640
      %v3663 = vmax.f32 %v3609, %v3642
      %v3664 = vmax.f32 %v3610, %v3641
      %v3665 = vpack.c.bf16 %v3654, %v3654
      %v3666 = vpack.c.bf16 %v3655, %v3655
      %v3667 = vpack.c.bf16 %v3656, %v3656
      %v3668 = vpack.c.bf16 %v3657, %v3657
      %v3669 = vpack.c.bf16 %v3658, %v3658
      %v3670 = vpack.c.bf16 %v3659, %v3659
      %v3671 = vpack.c.bf16 %v3660, %v3660
      %v3672 = vpack.c.bf16 %v3661, %v3661
      %v3673 = vpack.c.bf16 %v3662, %v3662
      %v3674 = vpack.c.bf16 %v3663, %v3663
      %v3675 = vpack.c.bf16 %v3664, %v3664
      %vm3676 = vcmask 388096
      %3677 = vst.msk [vmem:[%s170] sm:$0xf] %vm3676, %v3665
      %3678 = vst.msk [vmem:[%s170 + $0x4] sm:$0xf] %vm3676, %v3666
      %3679 = vst.msk [vmem:[%s170 + $0x8] sm:$0xf] %vm3676, %v3667
      %3680 = vst.msk [vmem:[%s170 + $0xc] sm:$0xf] %vm3676, %v3668
      %3681 = vst.msk [vmem:[%s170 + $0x10] sm:$0xf] %vm3676, %v3669
      %3682 = vst.msk [vmem:[%s170 + $0x14] sm:$0xf] %vm3676, %v3670
      %3683 = vst.msk [vmem:[%s170 + $0x18] sm:$0xf] %vm3676, %v3671
      %3684 = vst.msk [vmem:[%s170 + $0x1c] sm:$0xf] %vm3676, %v3672
      %3685 = vst.msk [vmem:[%s170 + $0x20] sm:$0xf] %vm3676, %v3673
      %3686 = vst.msk [vmem:[%s170 + $0x24] sm:$0xf] %vm3676, %v3674
      %vm3687 = vcmask 387072
      %vm3688 = vsmask.f32 2304
      %vm3689 = vmand %vm3687, %vm3688
      %v3690 = vld [vmem:[%s170 + $0x28] sm:$0x7]
      %v3691 = vsel %vm3689, %v3675, %v3690
      %3692 = vst [vmem:[%s170 + $0x28] sm:$0x7] %v3691
      %p3693 = scmp.lt.s32.totalorder %s14, 1
      %s3694 = scalar_select %p3693, %s14, 1
      %s3695 = smul.addr %s3694, 11
      %s3696 = smul.addr %s3695, 4
      %s3697 = scalar_lea.vmem %s3, %s3696
      // Predicated region
      $region33: #{maxout_conv_mnist_forward.4} parent=31 // pred_check
        %p3698 = pneg %p100
      $region34: #{maxout_conv_mnist_forward.4} parent=31 // pred_check_branch
        %3700 = sbr.rel (%p3698) target = $region36
      $region35: #{maxout_conv_mnist_forward.4} parent=31 // pred_region
        _
      $region36: #{maxout_conv_mnist_forward.4} parent=31 // pred_fallthru
        _
    $region32: #{maxout_conv_mnist_forward.4} parent=5 // pred_fallthru
      _
    %p3701 = scmp.le.s32.totalorder 2, %s9
    // Predicated region
    $region37: #{maxout_conv_mnist_forward.4} parent=5 // pred_check
      %p3702 = pneg %p3701
    $region38: #{maxout_conv_mnist_forward.4} parent=5 // pred_check_branch
      %3704 = sbr.rel (%p3702) target = $region40
    $region39: #{maxout_conv_mnist_forward.4} parent=5 // pred_region
      %s3705 = ssub.s32 %s9, 2
      // Predicated region
      $region41: #{maxout_conv_mnist_forward.4} parent=39 // pred_check
        %p3706 = pneg %p106
      $region42: #{maxout_conv_mnist_forward.4} parent=39 // pred_check_branch
        %3708 = sbr.rel (%p3706) target = $region44
      $region43: #{maxout_conv_mnist_forward.4} parent=39 // pred_region
        %p3709 = scmp.lt.s32.totalorder %s15, 1
        %s3710 = scalar_select %p3709, %s15, 1
        %s3711 = smul.addr %s3710, 11
        %s3712 = smul.addr %s3711, 4
        %s3713 = scalar_lea.vmem %s3, %s3712
      $region44: #{maxout_conv_mnist_forward.4} parent=39 // pred_fallthru
        _
    $region40: #{maxout_conv_mnist_forward.4} parent=5 // pred_fallthru
      _
  $region6: #{maxout_conv_mnist_forward.4} parent=0 // loop_footer
    %s13 = sadd.s32 1, %s9
  $region7: #{maxout_conv_mnist_forward.4} parent=0 // loop_footer_branch
    %8 = sbr.rel target = $region3
  $region8: #{maxout_conv_mnist_forward.4} parent=0 // loop_exit
    _

// kernel: maxout_conv_mnist_forward.5
$region0: #{maxout_conv_mnist_forward.5}
  #allocation0 [shape = 'u32[]', space=smem, size = 0x4, offset = 0x4, fixed_abs, tag = 'smem constant byte address 0x4 - core index']
  #allocation1 [shape = 'u32[72,128]{1,0:T(1,128)}', space=vmem, size = 0x9000, scoped, tag = 'internal scratch']
  %s0 = inlined_call_operand.vmem [shape: bf16[2,16,1200], index: 0, kind: input, shape index: {}]
  %s1 = inlined_call_operand.vmem [shape: bf16[1200,48], index: 1, kind: input, shape index: {}]
  %s2 = inlined_call_operand.vmem [shape: f32[1,48], index: 2, kind: input, shape index: {}]
  %s3 = inlined_call_operand.vmem [shape: f32[96,10], index: 3, kind: input, shape index: {}]
  %s4 = inlined_call_operand.vmem [shape: f32[1,10], index: 4, kind: input, shape index: {}]
  %s5 = inlined_call_operand.hbm [shape: f32[2,1,10], index: 5, kind: output, shape index: {}]
  %s6 = sld [smem:[#allocation0]]
  $region53: #{maxout_conv_mnist_forward.5} parent=0
    _
  %s8 = ssub.s32 1, %s6
  %s9 = scalar_select 0, %s8, %s6
  $region1: #{maxout_conv_mnist_forward.5} parent=0
    #allocation2 [shape = 'u8[1024]{0}', space=vmem, size = 0x400, scoped, tag = 'output window, operand 0']
    #allocation3 [shape = 's32[2]{0}', space=sflag, size = 0x8, scoped, tag = 'scoped memory for maxout_conv_mnist_forward.5']
    %10 = vsyncpa [#allocation3], 0
    %s11 = scalar_lea.sflag [#allocation3], 1
    %12 = vsyncpa %s11, 0
    loop: start=0, step=1, limit=4
    $region2: #{maxout_conv_mnist_forward.5} parent=1 // loop_pre_header
      _
    $region3: #{maxout_conv_mnist_forward.5} parent=1 // loop_header
      %s14 = sphi 0, %s18
      %p15 = scmp.ge.s32.totalorder %s14, 4
      %s24 = sphi 0, %s26
      %s27 = sphi 0, %s24
      %s28 = sphi 0, %s27
      %s44 = sphi 0, %s28
      %s48 = sphi 0, %s48
      %s50 = sphi 0, %s48
      %s51 = sphi 0, %s50
      %s65 = sphi 0, %s51
      %s69 = sphi 0, %s69
      %s71 = sphi 0, %s69
      %s72 = sphi 0, %s71
      %s86 = sphi 0, %s72
      %s90 = sphi 0, %s90
      %s92 = sphi 0, %s90
      %s93 = sphi 0, %s92
      %s107 = sphi 0, %s93
      %s111 = sphi 0, %s111
      %s113 = sphi 0, %s111
      %s114 = sphi 0, %s113
      %s128 = sphi 0, %s114
      %s134 = sphi 0, %s136
      %s137 = sphi 0, %s134
      %s138 = sphi 0, %s137
      %s154 = sphi 0, %s138
    $region4: #{maxout_conv_mnist_forward.5} parent=1 // loop_header_branch
      %17 = sbr.rel (%p15) target = $region8
    $region5: #{maxout_conv_mnist_forward.5} parent=1 // loop_body
      %s19 = ssub.s32 %s14, 1
      %s20 = ssub.s32 %s14, 2
      %s21 = sadd.s32 %s14, 1
      %s22 = ssub.s32 %s14, %s21
      %p23 = scmp.eq.s32.totalorder %s22, 0
      %s25 = sadd.s32 %s24, 1
      %s26 = scalar_select %p23, %s24, %s25
      %p29 = pneg %p23
      %p30 = scmp.eq.s32.totalorder %s14, 1
      %p31 = por %p29, %p30
      %p32 = scmp.ne.s32.totalorder %s24, %s27
      %p33 = scmp.eq.s32.totalorder %s14, 0
      %p34 = por %p32, %p33
      %p35 = scmp.ne.s32.totalorder %s24, %s27
      %p36 = scmp.eq.s32.totalorder %s19, 1
      %p37 = por %p35, %p36
      %p38 = scmp.ne.s32.totalorder %s27, %s28
      %p39 = scmp.eq.s32.totalorder %s19, 0
      %p40 = por %p38, %p39
      %p41 = scmp.ne.s32.totalorder %s27, %s28
      %p42 = scmp.eq.s32.totalorder %s20, 1
      %p43 = por %p41, %p42
      %p45 = scmp.ne.s32.totalorder %s28, %s44
      %p46 = scmp.eq.s32.totalorder %s20, 0
      %p47 = por %p45, %p46
      %s49 = sadd.s32 %s48, 1
      %p52 = scmp.eq.s32.totalorder %s14, 1
      %p53 = scmp.ne.s32.totalorder %s48, %s50
      %p54 = scmp.eq.s32.totalorder %s14, 0
      %p55 = por %p53, %p54
      %p56 = scmp.ne.s32.totalorder %s48, %s50
      %p57 = scmp.eq.s32.totalorder %s19, 1
      %p58 = por %p56, %p57
      %p59 = scmp.ne.s32.totalorder %s50, %s51
      %p60 = scmp.eq.s32.totalorder %s19, 0
      %p61 = por %p59, %p60
      %p62 = scmp.ne.s32.totalorder %s50, %s51
      %p63 = scmp.eq.s32.totalorder %s20, 1
      %p64 = por %p62, %p63
      %p66 = scmp.ne.s32.totalorder %s51, %s65
      %p67 = scmp.eq.s32.totalorder %s20, 0
      %p68 = por %p66, %p67
      %s70 = sadd.s32 %s69, 1
      %p73 = scmp.eq.s32.totalorder %s14, 1
      %p74 = scmp.ne.s32.totalorder %s69, %s71
      %p75 = scmp.eq.s32.totalorder %s14, 0
      %p76 = por %p74, %p75
      %p77 = scmp.ne.s32.totalorder %s69, %s71
      %p78 = scmp.eq.s32.totalorder %s19, 1
      %p79 = por %p77, %p78
      %p80 = scmp.ne.s32.totalorder %s71, %s72
      %p81 = scmp.eq.s32.totalorder %s19, 0
      %p82 = por %p80, %p81
      %p83 = scmp.ne.s32.totalorder %s71, %s72
      %p84 = scmp.eq.s32.totalorder %s20, 1
      %p85 = por %p83, %p84
      %p87 = scmp.ne.s32.totalorder %s72, %s86
      %p88 = scmp.eq.s32.totalorder %s20, 0
      %p89 = por %p87, %p88
      %s91 = sadd.s32 %s90, 1
      %p94 = scmp.eq.s32.totalorder %s14, 1
      %p95 = scmp.ne.s32.totalorder %s90, %s92
      %p96 = scmp.eq.s32.totalorder %s14, 0
      %p97 = por %p95, %p96
      %p98 = scmp.ne.s32.totalorder %s90, %s92
      %p99 = scmp.eq.s32.totalorder %s19, 1
      %p100 = por %p98, %p99
      %p101 = scmp.ne.s32.totalorder %s92, %s93
      %p102 = scmp.eq.s32.totalorder %s19, 0
      %p103 = por %p101, %p102
      %p104 = scmp.ne.s32.totalorder %s92, %s93
      %p105 = scmp.eq.s32.totalorder %s20, 1
      %p106 = por %p104, %p105
      %p108 = scmp.ne.s32.totalorder %s93, %s107
      %p109 = scmp.eq.s32.totalorder %s20, 0
      %p110 = por %p108, %p109
      %s112 = sadd.s32 %s111, 1
      %p115 = scmp.eq.s32.totalorder %s14, 1
      %p116 = scmp.ne.s32.totalorder %s111, %s113
      %p117 = scmp.eq.s32.totalorder %s14, 0
      %p118 = por %p116, %p117
      %p119 = scmp.ne.s32.totalorder %s111, %s113
      %p120 = scmp.eq.s32.totalorder %s19, 1
      %p121 = por %p119, %p120
      %p122 = scmp.ne.s32.totalorder %s113, %s114
      %p123 = scmp.eq.s32.totalorder %s19, 0
      %p124 = por %p122, %p123
      %p125 = scmp.ne.s32.totalorder %s113, %s114
      %p126 = scmp.eq.s32.totalorder %s20, 1
      %p127 = por %p125, %p126
      %p129 = scmp.ne.s32.totalorder %s114, %s128
      %p130 = scmp.eq.s32.totalorder %s20, 0
      %p131 = por %p129, %p130
      %s132 = ssub.s32 %s14, %s21
      %p133 = scmp.eq.s32.totalorder %s132, 0
      %s135 = sadd.s32 %s134, 1
      %s136 = scalar_select %p133, %s134, %s135
      %p139 = pneg %p133
      %p140 = scmp.eq.s32.totalorder %s14, 1
      %p141 = por %p139, %p140
      %p142 = scmp.ne.s32.totalorder %s134, %s137
      %p143 = scmp.eq.s32.totalorder %s14, 0
      %p144 = por %p142, %p143
      %p145 = scmp.ne.s32.totalorder %s134, %s137
      %p146 = scmp.eq.s32.totalorder %s19, 1
      %p147 = por %p145, %p146
      %p148 = scmp.ne.s32.totalorder %s137, %s138
      %p149 = scmp.eq.s32.totalorder %s19, 0
      %p150 = por %p148, %p149
      %p151 = scmp.ne.s32.totalorder %s137, %s138
      %p152 = scmp.eq.s32.totalorder %s20, 1
      %p153 = por %p151, %p152
      %p155 = scmp.ne.s32.totalorder %s138, %s154
      %p156 = scmp.eq.s32.totalorder %s20, 0
      %p157 = por %p155, %p156
      %p158 = scmp.le.s32.totalorder 1, %s14
      %p159 = scmp.lt.s32.totalorder %s14, 3
      %p160 = pnand %p158, %p159
      %p161 = pneg %p160
      // Predicated region
      $region9: #{maxout_conv_mnist_forward.5} parent=5 // pred_check
        _
      $region10: #{maxout_conv_mnist_forward.5} parent=5 // pred_check_branch
        %163 = sbr.rel (%p160) target = $region12
      $region11: #{maxout_conv_mnist_forward.5} parent=5 // pred_region
        %s164 = ssub.s32 %s14, 1
        // Predicated region
        $region13: #{maxout_conv_mnist_forward.5} parent=11 // pred_check
          %p165 = pneg %p61
        $region14: #{maxout_conv_mnist_forward.5} parent=11 // pred_check_branch
          %167 = sbr.rel (%p165) target = $region16
        $region15: #{maxout_conv_mnist_forward.5} parent=11 // pred_region
          _
        $region16: #{maxout_conv_mnist_forward.5} parent=11 // pred_fallthru
          _
        // Predicated region
        $region17: #{maxout_conv_mnist_forward.5} parent=11 // pred_check
          %p168 = pneg %p82
        $region18: #{maxout_conv_mnist_forward.5} parent=11 // pred_check_branch
          %170 = sbr.rel (%p168) target = $region20
        $region19: #{maxout_conv_mnist_forward.5} parent=11 // pred_region
          _
        $region20: #{maxout_conv_mnist_forward.5} parent=11 // pred_fallthru
          _
        // Predicated region
        $region21: #{maxout_conv_mnist_forward.5} parent=11 // pred_check
          %p171 = pneg %p103
        $region22: #{maxout_conv_mnist_forward.5} parent=11 // pred_check_branch
          %173 = sbr.rel (%p171) target = $region24
        $region23: #{maxout_conv_mnist_forward.5} parent=11 // pred_region
          _
        $region24: #{maxout_conv_mnist_forward.5} parent=11 // pred_fallthru
          _
        // Predicated region
        $region25: #{maxout_conv_mnist_forward.5} parent=11 // pred_check
          %p174 = pneg %p124
        $region26: #{maxout_conv_mnist_forward.5} parent=11 // pred_check_branch
          %176 = sbr.rel (%p174) target = $region28
        $region27: #{maxout_conv_mnist_forward.5} parent=11 // pred_region
          _
        $region28: #{maxout_conv_mnist_forward.5} parent=11 // pred_fallthru
          _
      $region12: #{maxout_conv_mnist_forward.5} parent=5 // pred_fallthru
        _
      %p177 = scmp.lt.s32.totalorder %s14, 2
      // Predicated region
      $region29: #{maxout_conv_mnist_forward.5} parent=5 // pred_check
        %p178 = pneg %p177
      $region30: #{maxout_conv_mnist_forward.5} parent=5 // pred_check_branch
        %180 = sbr.rel (%p178) target = $region32
      $region31: #{maxout_conv_mnist_forward.5} parent=5 // pred_region
        // Predicated region
        $region33: #{maxout_conv_mnist_forward.5} parent=31 // pred_check
          %p181 = pneg %p34
        $region34: #{maxout_conv_mnist_forward.5} parent=31 // pred_check_branch
          %183 = sbr.rel (%p181) target = $region36
        $region35: #{maxout_conv_mnist_forward.5} parent=31 // pred_region
          %p184 = scmp.lt.s32.totalorder %s14, 1
          %s185 = scalar_select %p184, %s14, 1
          %s186 = smul.addr %s185, 20
          %s187 = smul.addr %s186, 4
          %s188 = scalar_lea.vmem %s0, %s187
        $region36: #{maxout_conv_mnist_forward.5} parent=31 // pred_fallthru
          _
      $region32: #{maxout_conv_mnist_forward.5} parent=5 // pred_fallthru
        _
      %p189 = scmp.le.s32.totalorder 1, %s14
      %p190 = scmp.lt.s32.totalorder %s14, 3
      %p191 = pnand %p189, %p190
      %p192 = pneg %p191
      // Predicated region
      $region37: #{maxout_conv_mnist_forward.5} parent=5 // pred_check
        _
      $region38: #{maxout_conv_mnist_forward.5} parent=5 // pred_check_branch
        %194 = sbr.rel (%p191) target = $region40
      $region39: #{maxout_conv_mnist_forward.5} parent=5 // pred_region
        %s195 = ssub.s32 %s14, 1
        %p196 = scmp.lt.s32.totalorder %s19, 1
        %s197 = scalar_select %p196, %s19, 1
        %s198 = smul.addr %s197, 20
        %s199 = smul.addr %s198, 4
        %s200 = scalar_lea.vmem %s0, %s199
        %p201 = pneg %p40
        %p202 = pneg %p37
        %p203 = pneg %p61
        %p204 = pneg %p58
        %p205 = pneg %p82
        %p206 = pneg %p79
        %p207 = pneg %p103
        %p208 = pneg %p100
        %p209 = pneg %p124
        %p210 = pneg %p121
        %p211 = pneg %p150
        %p212 = pneg %p147
        %s213 = sand.u32 %s137, 1
        %s214 = scalar_lea.sflag [#allocation3], %s213
        %s215 = sand.u32 %s137, 1
        %s216 = scalar_lea.vmem [#allocation2], %s215
        %p217 = scmp.lt.s32.totalorder %s19, 1
        %s218 = scalar_select %p217, %s19, 1
        %s219 = smul.addr %s218, 20
        %s220 = smul.addr %s219, 4
        %s221 = scalar_lea.vmem %s0, %s220
        %v223 = vld [vmem:[%s221] sm:$0xff]
        %v224 = vld [vmem:[%s221 + $0x8] sm:$0xff]
        %v225 = vld [vmem:[%s221 + $0x10] sm:$0xff]
        %v226 = vld [vmem:[%s221 + $0x18] sm:$0xff]
        %v227 = vld [vmem:[%s221 + $0x20] sm:$0xff]
        %v228 = vld [vmem:[%s221 + $0x28] sm:$0xff]
        %v229 = vld [vmem:[%s221 + $0x30] sm:$0xff]
        %v230 = vld [vmem:[%s221 + $0x38] sm:$0xff]
        %v231 = vld [vmem:[%s221 + $0x40] sm:$0xff]
        %v232 = vld [vmem:[%s221 + $0x48] sm:$0xff]
        %v233 = vld [vmem:[%s1] sm:$0xf]
        %v234 = vld [vmem:[%s1 + $0x4] sm:$0xf]
        %v235 = vld [vmem:[%s1 + $0x8] sm:$0xf]
        %v236 = vld [vmem:[%s1 + $0xc] sm:$0xf]
        %v237 = vld [vmem:[%s1 + $0x10] sm:$0xf]
        %v238 = vld [vmem:[%s1 + $0x14] sm:$0xf]
        %v239 = vld [vmem:[%s1 + $0x18] sm:$0xf]
        %v240 = vld [vmem:[%s1 + $0x1c] sm:$0xf]
        %v241 = vld [vmem:[%s1 + $0x20] sm:$0xf]
        %v242 = vld [vmem:[%s1 + $0x24] sm:$0xf]
        %v243 = vld [vmem:[%s1 + $0x28] sm:$0xf]
        %v244 = vld [vmem:[%s1 + $0x2c] sm:$0xf]
        %v245 = vld [vmem:[%s1 + $0x30] sm:$0xf]
        %v246 = vld [vmem:[%s1 + $0x34] sm:$0xf]
        %v247 = vld [vmem:[%s1 + $0x38] sm:$0xf]
        %v248 = vld [vmem:[%s1 + $0x3c] sm:$0xf]
        %v249 = vld [vmem:[%s1 + $0x40] sm:$0xf]
        %v250 = vld [vmem:[%s1 + $0x44] sm:$0xf]
        %v251 = vld [vmem:[%s1 + $0x48] sm:$0xf]
        %v252 = vld [vmem:[%s1 + $0x4c] sm:$0xf]
        %v253 = vld [vmem:[%s1 + $0x50] sm:$0xf]
        %v254 = vld [vmem:[%s1 + $0x54] sm:$0xf]
        %v255 = vld [vmem:[%s1 + $0x58] sm:$0xf]
        %v256 = vld [vmem:[%s1 + $0x5c] sm:$0xf]
        %v257 = vld [vmem:[%s1 + $0x60] sm:$0xf]
        %v258 = vld [vmem:[%s1 + $0x64] sm:$0xf]
        %v259 = vld [vmem:[%s1 + $0x68] sm:$0xf]
        %v260 = vld [vmem:[%s1 + $0x6c] sm:$0xf]
        %v261 = vld [vmem:[%s1 + $0x70] sm:$0xf]
        %v262 = vld [vmem:[%s1 + $0x74] sm:$0xf]
        %v263 = vld [vmem:[%s1 + $0x78] sm:$0xf]
        %v264 = vld [vmem:[%s1 + $0x7c] sm:$0xf]
        %v265 = vld [vmem:[%s1 + $0x80] sm:$0xf]
        %v266 = vld [vmem:[%s1 + $0x84] sm:$0xf]
        %v267 = vld [vmem:[%s1 + $0x88] sm:$0xf]
        %v268 = vld [vmem:[%s1 + $0x8c] sm:$0xf]
        %v269 = vld [vmem:[%s1 + $0x90] sm:$0xf]
        %v270 = vld [vmem:[%s1 + $0x94] sm:$0xf]
        %v271 = vld [vmem:[%s1 + $0x98] sm:$0xf]
        %v272 = vld [vmem:[%s1 + $0x9c] sm:$0xf]
        %v273 = vld [vmem:[%s1 + $0xa0] sm:$0xf]
        %v274 = vld [vmem:[%s1 + $0xa4] sm:$0xf]
        %v275 = vld [vmem:[%s1 + $0xa8] sm:$0xf]
        %v276 = vld [vmem:[%s1 + $0xac] sm:$0xf]
        %v277 = vld [vmem:[%s1 + $0xb0] sm:$0xf]
        %v278 = vld [vmem:[%s1 + $0xb4] sm:$0xf]
        %v279 = vld [vmem:[%s1 + $0xb8] sm:$0xf]
        %v280 = vld [vmem:[%s1 + $0xbc] sm:$0xf]
        %v281 = vld [vmem:[%s1 + $0xc0] sm:$0xf]
        %v282 = vld [vmem:[%s1 + $0xc4] sm:$0xf]
        %v283 = vld [vmem:[%s1 + $0xc8] sm:$0xf]
        %v284 = vld [vmem:[%s1 + $0xcc] sm:$0xf]
        %v285 = vld [vmem:[%s1 + $0xd0] sm:$0xf]
        %v286 = vld [vmem:[%s1 + $0xd4] sm:$0xf]
        %v287 = vld [vmem:[%s1 + $0xd8] sm:$0xf]
        %v288 = vld [vmem:[%s1 + $0xdc] sm:$0xf]
        %v289 = vld [vmem:[%s1 + $0xe0] sm:$0xf]
        %v290 = vld [vmem:[%s1 + $0xe4] sm:$0xf]
        %v291 = vld [vmem:[%s1 + $0xe8] sm:$0xf]
        %v292 = vld [vmem:[%s1 + $0xec] sm:$0xf]
        %v293 = vld [vmem:[%s1 + $0xf0] sm:$0xf]
        %v294 = vld [vmem:[%s1 + $0xf4] sm:$0xf]
        %v295 = vld [vmem:[%s1 + $0xf8] sm:$0xf]
        %v296 = vld [vmem:[%s1 + $0xfc] sm:$0xf]
        %v297 = vld [vmem:[%s1 + $0x100] sm:$0xf]
        %v298 = vld [vmem:[%s1 + $0x104] sm:$0xf]
        %v299 = vld [vmem:[%s1 + $0x108] sm:$0xf]
        %v300 = vld [vmem:[%s1 + $0x10c] sm:$0xf]
        %v301 = vld [vmem:[%s1 + $0x110] sm:$0xf]
        %v302 = vld [vmem:[%s1 + $0x114] sm:$0xf]
        %v303 = vld [vmem:[%s1 + $0x118] sm:$0xf]
        %v304 = vld [vmem:[%s1 + $0x11c] sm:$0xf]
        %v305 = vld [vmem:[%s1 + $0x120] sm:$0xf]
        %v306 = vld [vmem:[%s1 + $0x124] sm:$0xf]
        %v307 = vld [vmem:[%s1 + $0x128] sm:$0xf]
        %v308 = vld [vmem:[%s1 + $0x12c] sm:$0xf]
        %v309 = vld [vmem:[%s1 + $0x130] sm:$0xf]
        %v310 = vld [vmem:[%s1 + $0x134] sm:$0xf]
        %v311 = vld [vmem:[%s1 + $0x138] sm:$0xf]
        %v312 = vld [vmem:[%s1 + $0x13c] sm:$0xf]
        %v313 = vld [vmem:[%s1 + $0x140] sm:$0xf]
        %v314 = vld [vmem:[%s1 + $0x144] sm:$0xf]
        %v315 = vld [vmem:[%s1 + $0x148] sm:$0xf]
        %v316 = vld [vmem:[%s1 + $0x14c] sm:$0xf]
        %v317 = vld [vmem:[%s1 + $0x150] sm:$0xf]
        %v318 = vld [vmem:[%s1 + $0x154] sm:$0xf]
        %v319 = vld [vmem:[%s1 + $0x158] sm:$0xf]
        %v320 = vld [vmem:[%s1 + $0x15c] sm:$0xf]
        %v321 = vld [vmem:[%s1 + $0x160] sm:$0xf]
        %v322 = vld [vmem:[%s1 + $0x164] sm:$0xf]
        %v323 = vld [vmem:[%s1 + $0x168] sm:$0xf]
        %v324 = vld [vmem:[%s1 + $0x16c] sm:$0xf]
        %v325 = vld [vmem:[%s1 + $0x170] sm:$0xf]
        %v326 = vld [vmem:[%s1 + $0x174] sm:$0xf]
        %v327 = vld [vmem:[%s1 + $0x178] sm:$0xf]
        %v328 = vld [vmem:[%s1 + $0x17c] sm:$0xf]
        %v329 = vld [vmem:[%s1 + $0x180] sm:$0xf]
        %v330 = vld [vmem:[%s1 + $0x184] sm:$0xf]
        %v331 = vld [vmem:[%s1 + $0x188] sm:$0xf]
        %v332 = vld [vmem:[%s1 + $0x18c] sm:$0xf]
        %v333 = vld [vmem:[%s1 + $0x190] sm:$0xf]
        %v334 = vld [vmem:[%s1 + $0x194] sm:$0xf]
        %v335 = vld [vmem:[%s1 + $0x198] sm:$0xf]
        %v336 = vld [vmem:[%s1 + $0x19c] sm:$0xf]
        %v337 = vld [vmem:[%s1 + $0x1a0] sm:$0xf]
        %v338 = vld [vmem:[%s1 + $0x1a4] sm:$0xf]
        %v339 = vld [vmem:[%s1 + $0x1a8] sm:$0xf]
        %v340 = vld [vmem:[%s1 + $0x1ac] sm:$0xf]
        %v341 = vld [vmem:[%s1 + $0x1b0] sm:$0xf]
        %v342 = vld [vmem:[%s1 + $0x1b4] sm:$0xf]
        %v343 = vld [vmem:[%s1 + $0x1b8] sm:$0xf]
        %v344 = vld [vmem:[%s1 + $0x1bc] sm:$0xf]
        %v345 = vld [vmem:[%s1 + $0x1c0] sm:$0xf]
        %v346 = vld [vmem:[%s1 + $0x1c4] sm:$0xf]
        %v347 = vld [vmem:[%s1 + $0x1c8] sm:$0xf]
        %v348 = vld [vmem:[%s1 + $0x1cc] sm:$0xf]
        %v349 = vld [vmem:[%s1 + $0x1d0] sm:$0xf]
        %v350 = vld [vmem:[%s1 + $0x1d4] sm:$0xf]
        %v351 = vld [vmem:[%s1 + $0x1d8] sm:$0xf]
        %v352 = vld [vmem:[%s1 + $0x1dc] sm:$0xf]
        %v353 = vld [vmem:[%s1 + $0x1e0] sm:$0xf]
        %v354 = vld [vmem:[%s1 + $0x1e4] sm:$0xf]
        %v355 = vld [vmem:[%s1 + $0x1e8] sm:$0xf]
        %v356 = vld [vmem:[%s1 + $0x1ec] sm:$0xf]
        %v357 = vld [vmem:[%s1 + $0x1f0] sm:$0xf]
        %v358 = vld [vmem:[%s1 + $0x1f4] sm:$0xf]
        %v359 = vld [vmem:[%s1 + $0x1f8] sm:$0xf]
        %v360 = vld [vmem:[%s1 + $0x1fc] sm:$0xf]
        %v361 = vld [vmem:[%s1 + $0x200] sm:$0xf]
        %v362 = vld [vmem:[%s1 + $0x204] sm:$0xf]
        %v363 = vld [vmem:[%s1 + $0x208] sm:$0xf]
        %v364 = vld [vmem:[%s1 + $0x20c] sm:$0xf]
        %v365 = vld [vmem:[%s1 + $0x210] sm:$0xf]
        %v366 = vld [vmem:[%s1 + $0x214] sm:$0xf]
        %v367 = vld [vmem:[%s1 + $0x218] sm:$0xf]
        %v368 = vld [vmem:[%s1 + $0x21c] sm:$0xf]
        %v369 = vld [vmem:[%s1 + $0x220] sm:$0xf]
        %v370 = vld [vmem:[%s1 + $0x224] sm:$0xf]
        %v371 = vld [vmem:[%s1 + $0x228] sm:$0xf]
        %v372 = vld [vmem:[%s1 + $0x22c] sm:$0xf]
        %v373 = vld [vmem:[%s1 + $0x230] sm:$0xf]
        %v374 = vld [vmem:[%s1 + $0x234] sm:$0xf]
        %v375 = vld [vmem:[%s1 + $0x238] sm:$0xf]
        %v376 = vld [vmem:[%s1 + $0x23c] sm:$0xf]
        %v377 = vld [vmem:[%s1 + $0x240] sm:$0xf]
        %v378 = vld [vmem:[%s1 + $0x244] sm:$0xf]
        %v379 = vld [vmem:[%s1 + $0x248] sm:$0xf]
        %v380 = vld [vmem:[%s1 + $0x24c] sm:$0xf]
        %v381 = vld [vmem:[%s1 + $0x250] sm:$0xf]
        %v382 = vld [vmem:[%s1 + $0x254] sm:$0xf]
        %v383 = vld [vmem:[%s2] sm:$0x1]
        %v385 = vperm.slane %v383, 0
        %v397 = vunpack.c.l.b16 %v223
        %v398 = vunpack.c.h.b16 %v223
        %v399 = vunpack.c.l.b16 %v224
        %v400 = vunpack.c.h.b16 %v224
        %v401 = vunpack.c.l.b16 %v225
        %v402 = vunpack.c.h.b16 %v225
        %v403 = vunpack.c.l.b16 %v226
        %v404 = vunpack.c.h.b16 %v226
        %v405 = vunpack.c.l.b16 %v227
        %v406 = vunpack.c.h.b16 %v227
        %v407 = vunpack.c.l.b16 %v228
        %v408 = vunpack.c.h.b16 %v228
        %v409 = vunpack.c.l.b16 %v229
        %v410 = vunpack.c.h.b16 %v229
        %v411 = vunpack.c.l.b16 %v230
        %v412 = vunpack.c.h.b16 %v230
        %v413 = vunpack.c.l.b16 %v231
        %v414 = vunpack.c.h.b16 %v231
        %v415 = vunpack.c.l.b16 %v232
        %v416 = vunpack.c.h.b16 %v232
        %v417 = vpack.c.b16 %v407, %v397
        %v418 = vpack.c.b16 %v408, %v398
        %v419 = vpack.c.b16 %v409, %v399
        %v420 = vpack.c.b16 %v410, %v400
        %v421 = vpack.c.b16 %v411, %v401
        %v422 = vpack.c.b16 %v412, %v402
        %v423 = vpack.c.b16 %v413, %v403
        %v424 = vpack.c.b16 %v414, %v404
        %v425 = vpack.c.b16 %v415, %v405
        %v426 = vpack.c.b16 %v416, %v406
        %v586 = vunpack.c.l.b16 %v233
        %v587 = vunpack.c.l.b16 %v234
        %v588 = vunpack.c.l.b16 %v235
        %v589 = vunpack.c.l.b16 %v236
        %v590 = vunpack.c.l.b16 %v237
        %v591 = vunpack.c.l.b16 %v238
        %v592 = vunpack.c.l.b16 %v239
        %v593 = vunpack.c.l.b16 %v240
        %v594 = vunpack.c.l.b16 %v241
        %v595 = vunpack.c.l.b16 %v242
        %v596 = vunpack.c.l.b16 %v243
        %v597 = vunpack.c.l.b16 %v244
        %v598 = vunpack.c.l.b16 %v245
        %v599 = vunpack.c.l.b16 %v246
        %v600 = vunpack.c.l.b16 %v247
        %v601 = vunpack.c.l.b16 %v248
        %v602 = vunpack.c.l.b16 %v249
        %v603 = vunpack.c.l.b16 %v250
        %v604 = vunpack.c.l.b16 %v251
        %v605 = vunpack.c.l.b16 %v252
        %v606 = vunpack.c.l.b16 %v253
        %v607 = vunpack.c.l.b16 %v254
        %v608 = vunpack.c.l.b16 %v255
        %v609 = vunpack.c.l.b16 %v256
        %v610 = vunpack.c.l.b16 %v257
        %v611 = vunpack.c.l.b16 %v258
        %v612 = vunpack.c.l.b16 %v259
        %v613 = vunpack.c.l.b16 %v260
        %v614 = vunpack.c.l.b16 %v261
        %v615 = vunpack.c.l.b16 %v262
        %v616 = vunpack.c.l.b16 %v263
        %v617 = vunpack.c.l.b16 %v264
        %v618 = vunpack.c.l.b16 %v265
        %v619 = vunpack.c.l.b16 %v266
        %v620 = vunpack.c.l.b16 %v267
        %v621 = vunpack.c.l.b16 %v268
        %v622 = vunpack.c.l.b16 %v269
        %v623 = vunpack.c.l.b16 %v270
        %v624 = vunpack.c.l.b16 %v271
        %v625 = vunpack.c.l.b16 %v272
        %v626 = vunpack.c.l.b16 %v273
        %v627 = vunpack.c.l.b16 %v274
        %v628 = vunpack.c.l.b16 %v275
        %v629 = vunpack.c.l.b16 %v276
        %v630 = vunpack.c.l.b16 %v277
        %v631 = vunpack.c.l.b16 %v278
        %v632 = vunpack.c.l.b16 %v279
        %v633 = vunpack.c.l.b16 %v280
        %v634 = vunpack.c.l.b16 %v281
        %v635 = vunpack.c.l.b16 %v282
        %v636 = vunpack.c.l.b16 %v283
        %v637 = vunpack.c.l.b16 %v284
        %v638 = vunpack.c.l.b16 %v285
        %v639 = vunpack.c.l.b16 %v286
        %v640 = vunpack.c.l.b16 %v287
        %v641 = vunpack.c.l.b16 %v288
        %v642 = vunpack.c.l.b16 %v289
        %v643 = vunpack.c.l.b16 %v290
        %v644 = vunpack.c.l.b16 %v291
        %v645 = vunpack.c.l.b16 %v292
        %v646 = vunpack.c.l.b16 %v293
        %v647 = vunpack.c.l.b16 %v294
        %v648 = vunpack.c.l.b16 %v295
        %v649 = vunpack.c.l.b16 %v296
        %v650 = vunpack.c.l.b16 %v297
        %v651 = vunpack.c.l.b16 %v298
        %v652 = vunpack.c.l.b16 %v299
        %v653 = vunpack.c.l.b16 %v300
        %v654 = vunpack.c.l.b16 %v301
        %v655 = vunpack.c.l.b16 %v302
        %v656 = vunpack.c.l.b16 %v303
        %v657 = vunpack.c.l.b16 %v304
        %v658 = vunpack.c.l.b16 %v305
        %v659 = vunpack.c.l.b16 %v306
        %v660 = vunpack.c.l.b16 %v307
        %v661 = vunpack.c.l.b16 %v308
        %v662 = vunpack.c.l.b16 %v309
        %v663 = vunpack.c.l.b16 %v310
        %v664 = vunpack.c.l.b16 %v311
        %v665 = vunpack.c.l.b16 %v312
        %v666 = vunpack.c.l.b16 %v313
        %v667 = vunpack.c.l.b16 %v314
        %v668 = vunpack.c.l.b16 %v315
        %v669 = vunpack.c.l.b16 %v316
        %v670 = vunpack.c.l.b16 %v317
        %v671 = vunpack.c.l.b16 %v318
        %v672 = vunpack.c.l.b16 %v319
        %v673 = vunpack.c.l.b16 %v320
        %v674 = vunpack.c.l.b16 %v321
        %v675 = vunpack.c.l.b16 %v322
        %v676 = vunpack.c.l.b16 %v323
        %v677 = vunpack.c.l.b16 %v324
        %v678 = vunpack.c.l.b16 %v325
        %v679 = vunpack.c.l.b16 %v326
        %v680 = vunpack.c.l.b16 %v327
        %v681 = vunpack.c.l.b16 %v328
        %v682 = vunpack.c.l.b16 %v329
        %v683 = vunpack.c.l.b16 %v330
        %v684 = vunpack.c.l.b16 %v331
        %v685 = vunpack.c.l.b16 %v332
        %v686 = vunpack.c.l.b16 %v333
        %v687 = vunpack.c.l.b16 %v334
        %v688 = vunpack.c.l.b16 %v335
        %v689 = vunpack.c.l.b16 %v336
        %v690 = vunpack.c.l.b16 %v337
        %v691 = vunpack.c.l.b16 %v338
        %v692 = vunpack.c.l.b16 %v339
        %v693 = vunpack.c.l.b16 %v340
        %v694 = vunpack.c.l.b16 %v341
        %v695 = vunpack.c.l.b16 %v342
        %v696 = vunpack.c.l.b16 %v343
        %v697 = vunpack.c.l.b16 %v344
        %v698 = vunpack.c.l.b16 %v345
        %v699 = vunpack.c.l.b16 %v346
        %v700 = vunpack.c.l.b16 %v347
        %v701 = vunpack.c.l.b16 %v348
        %v702 = vunpack.c.l.b16 %v349
        %v703 = vunpack.c.l.b16 %v350
        %v704 = vunpack.c.l.b16 %v351
        %v705 = vunpack.c.l.b16 %v352
        %v706 = vunpack.c.l.b16 %v353
        %v707 = vunpack.c.l.b16 %v354
        %v708 = vunpack.c.l.b16 %v355
        %v709 = vunpack.c.l.b16 %v356
        %v710 = vunpack.c.l.b16 %v357
        %v711 = vunpack.c.l.b16 %v358
        %v712 = vunpack.c.l.b16 %v359
        %v713 = vunpack.c.l.b16 %v360
        %v714 = vunpack.c.l.b16 %v361
        %v715 = vunpack.c.l.b16 %v362
        %v716 = vunpack.c.l.b16 %v363
        %v717 = vunpack.c.l.b16 %v364
        %v718 = vunpack.c.l.b16 %v365
        %v719 = vunpack.c.l.b16 %v366
        %v720 = vunpack.c.l.b16 %v367
        %v721 = vunpack.c.l.b16 %v368
        %v722 = vunpack.c.l.b16 %v369
        %v723 = vunpack.c.l.b16 %v370
        %v724 = vunpack.c.l.b16 %v371
        %v725 = vunpack.c.l.b16 %v372
        %v726 = vunpack.c.l.b16 %v373
        %v727 = vunpack.c.l.b16 %v374
        %v728 = vunpack.c.l.b16 %v375
        %v729 = vunpack.c.l.b16 %v376
        %v730 = vunpack.c.l.b16 %v377
        %v731 = vunpack.c.l.b16 %v378
        %v732 = vunpack.c.l.b16 %v379
        %v733 = vunpack.c.l.b16 %v380
        %v734 = vunpack.c.l.b16 %v381
        %v735 = vunpack.c.l.b16 %v382
        %v736 = vpack.c.b16 %v587, %v586
        %v737 = vpack.c.b16 %v589, %v588
        %v738 = vpack.c.b16 %v591, %v590
        %v739 = vpack.c.b16 %v593, %v592
        %v740 = vpack.c.b16 %v595, %v594
        %v741 = vpack.c.b16 %v597, %v596
        %v742 = vpack.c.b16 %v599, %v598
        %v743 = vpack.c.b16 %v601, %v600
        %v744 = vpack.c.b16 %v603, %v602
        %v745 = vpack.c.b16 %v605, %v604
        %v746 = vpack.c.b16 %v607, %v606
        %v747 = vpack.c.b16 %v609, %v608
        %v748 = vpack.c.b16 %v611, %v610
        %v749 = vpack.c.b16 %v613, %v612
        %v750 = vpack.c.b16 %v615, %v614
        %v751 = vpack.c.b16 %v617, %v616
        %v752 = vpack.c.b16 %v619, %v618
        %v753 = vpack.c.b16 %v621, %v620
        %v754 = vpack.c.b16 %v623, %v622
        %v755 = vpack.c.b16 %v625, %v624
        %v756 = vpack.c.b16 %v627, %v626
        %v757 = vpack.c.b16 %v629, %v628
        %v758 = vpack.c.b16 %v631, %v630
        %v759 = vpack.c.b16 %v633, %v632
        %v760 = vpack.c.b16 %v635, %v634
        %v761 = vpack.c.b16 %v637, %v636
        %v762 = vpack.c.b16 %v639, %v638
        %v763 = vpack.c.b16 %v641, %v640
        %v764 = vpack.c.b16 %v643, %v642
        %v765 = vpack.c.b16 %v645, %v644
        %v766 = vpack.c.b16 %v647, %v646
        %v767 = vpack.c.b16 %v649, %v648
        %v768 = vpack.c.b16 %v651, %v650
        %v769 = vpack.c.b16 %v653, %v652
        %v770 = vpack.c.b16 %v655, %v654
        %v771 = vpack.c.b16 %v657, %v656
        %v772 = vpack.c.b16 %v659, %v658
        %v773 = vpack.c.b16 %v661, %v660
        %v774 = vpack.c.b16 %v663, %v662
        %v775 = vpack.c.b16 %v665, %v664
        %v776 = vpack.c.b16 %v667, %v666
        %v777 = vpack.c.b16 %v669, %v668
        %v778 = vpack.c.b16 %v671, %v670
        %v779 = vpack.c.b16 %v673, %v672
        %v780 = vpack.c.b16 %v675, %v674
        %v781 = vpack.c.b16 %v677, %v676
        %v782 = vpack.c.b16 %v679, %v678
        %v783 = vpack.c.b16 %v681, %v680
        %v784 = vpack.c.b16 %v683, %v682
        %v785 = vpack.c.b16 %v685, %v684
        %v786 = vpack.c.b16 %v687, %v686
        %v787 = vpack.c.b16 %v689, %v688
        %v788 = vpack.c.b16 %v691, %v690
        %v789 = vpack.c.b16 %v693, %v692
        %v790 = vpack.c.b16 %v695, %v694
        %v791 = vpack.c.b16 %v697, %v696
        %v792 = vpack.c.b16 %v699, %v698
        %v793 = vpack.c.b16 %v701, %v700
        %v794 = vpack.c.b16 %v703, %v702
        %v795 = vpack.c.b16 %v705, %v704
        %v796 = vpack.c.b16 %v707, %v706
        %v797 = vpack.c.b16 %v709, %v708
        %v798 = vpack.c.b16 %v711, %v710
        %v799 = vpack.c.b16 %v713, %v712
        %v800 = vpack.c.b16 %v715, %v714
        %v801 = vpack.c.b16 %v717, %v716
        %v802 = vpack.c.b16 %v719, %v718
        %v803 = vpack.c.b16 %v721, %v720
        %v804 = vpack.c.b16 %v723, %v722
        %v805 = vpack.c.b16 %v725, %v724
        %v806 = vpack.c.b16 %v727, %v726
        %v807 = vpack.c.b16 %v729, %v728
        %v808 = vpack.c.b16 %v731, %v730
        %v809 = vpack.c.b16 %v733, %v732
        %v810 = vpack.c.b16 %v735, %v734
        %vm886 = vcmask 392192
        %v888 = vsel %vm886, %v426, 0
        %890 = vmatpush.bf16.msra.mxu0 %v743
        %891 = vmatpush.bf16.msra.mxu0 %v742
        %892 = vmatpush.bf16.msra.mxu0 %v741
        %893 = vmatpush.bf16.msra.mxu0 %v740
        %894 = vmatpush.bf16.msra.mxu0 %v739
        %895 = vmatpush.bf16.msra.mxu0 %v738
        %896 = vmatpush.bf16.msra.mxu0 %v737
        %897 = vmatpush.bf16.msra.mxu0 %v736
        %898 = vmatmul.bf16.gmra.mxu0 %v417
        %v899 = vpop.f32.mrf.mxu0
        %v900 = vadd.f32 %v385, %v899
        %v901 = vpop.f32.mrf.mxu0
        %v902 = vadd.f32 %v385, %v901
        %903 = vdwg.mxu0
        %904 = vmatpush.bf16.msra.mxu0 %v751
        %905 = vmatpush.bf16.msra.mxu0 %v750
        %906 = vmatpush.bf16.msra.mxu0 %v749
        %907 = vmatpush.bf16.msra.mxu0 %v748
        %908 = vmatpush.bf16.msra.mxu0 %v747
        %909 = vmatpush.bf16.msra.mxu0 %v746
        %910 = vmatpush.bf16.msra.mxu0 %v745
        %911 = vmatpush.bf16.msra.mxu0 %v744
        %912 = vmatmul.bf16.gmra.mxu0 %v418
        %v913 = vpop.f32.mrf.mxu0
        %v914 = vadd.f32 %v900, %v913
        %v915 = vpop.f32.mrf.mxu0
        %v916 = vadd.f32 %v902, %v915
        %917 = vdwg.mxu0
        %918 = vmatpush.bf16.msra.mxu0 %v759
        %919 = vmatpush.bf16.msra.mxu0 %v758
        %920 = vmatpush.bf16.msra.mxu0 %v757
        %921 = vmatpush.bf16.msra.mxu0 %v756
        %922 = vmatpush.bf16.msra.mxu0 %v755
        %923 = vmatpush.bf16.msra.mxu0 %v754
        %924 = vmatpush.bf16.msra.mxu0 %v753
        %925 = vmatpush.bf16.msra.mxu0 %v752
        %926 = vmatmul.bf16.gmra.mxu0 %v419
        %v927 = vpop.f32.mrf.mxu0
        %v928 = vadd.f32 %v914, %v927
        %v929 = vpop.f32.mrf.mxu0
        %v930 = vadd.f32 %v916, %v929
        %931 = vdwg.mxu0
        %932 = vmatpush.bf16.msra.mxu0 %v767
        %933 = vmatpush.bf16.msra.mxu0 %v766
        %934 = vmatpush.bf16.msra.mxu0 %v765
        %935 = vmatpush.bf16.msra.mxu0 %v764
        %936 = vmatpush.bf16.msra.mxu0 %v763
        %937 = vmatpush.bf16.msra.mxu0 %v762
        %938 = vmatpush.bf16.msra.mxu0 %v761
        %939 = vmatpush.bf16.msra.mxu0 %v760
        %940 = vmatmul.bf16.gmra.mxu0 %v420
        %v941 = vpop.f32.mrf.mxu0
        %v942 = vadd.f32 %v928, %v941
        %v943 = vpop.f32.mrf.mxu0
        %v944 = vadd.f32 %v930, %v943
        %945 = vdwg.mxu0
        %946 = vmatpush.bf16.msra.mxu0 %v775
        %947 = vmatpush.bf16.msra.mxu0 %v774
        %948 = vmatpush.bf16.msra.mxu0 %v773
        %949 = vmatpush.bf16.msra.mxu0 %v772
        %950 = vmatpush.bf16.msra.mxu0 %v771
        %951 = vmatpush.bf16.msra.mxu0 %v770
        %952 = vmatpush.bf16.msra.mxu0 %v769
        %953 = vmatpush.bf16.msra.mxu0 %v768
        %954 = vmatmul.bf16.gmra.mxu0 %v421
        %v955 = vpop.f32.mrf.mxu0
        %v956 = vadd.f32 %v942, %v955
        %v957 = vpop.f32.mrf.mxu0
        %v958 = vadd.f32 %v944, %v957
        %959 = vdwg.mxu0
        %960 = vmatpush.bf16.msra.mxu0 %v783
        %961 = vmatpush.bf16.msra.mxu0 %v782
        %962 = vmatpush.bf16.msra.mxu0 %v781
        %963 = vmatpush.bf16.msra.mxu0 %v780
        %964 = vmatpush.bf16.msra.mxu0 %v779
        %965 = vmatpush.bf16.msra.mxu0 %v778
        %966 = vmatpush.bf16.msra.mxu0 %v777
        %967 = vmatpush.bf16.msra.mxu0 %v776
        %968 = vmatmul.bf16.gmra.mxu0 %v422
        %v969 = vpop.f32.mrf.mxu0
        %v970 = vadd.f32 %v956, %v969
        %v971 = vpop.f32.mrf.mxu0
        %v972 = vadd.f32 %v958, %v971
        %973 = vdwg.mxu0
        %974 = vmatpush.bf16.msra.mxu0 %v791
        %975 = vmatpush.bf16.msra.mxu0 %v790
        %976 = vmatpush.bf16.msra.mxu0 %v789
        %977 = vmatpush.bf16.msra.mxu0 %v788
        %978 = vmatpush.bf16.msra.mxu0 %v787
        %979 = vmatpush.bf16.msra.mxu0 %v786
        %980 = vmatpush.bf16.msra.mxu0 %v785
        %981 = vmatpush.bf16.msra.mxu0 %v784
        %982 = vmatmul.bf16.gmra.mxu0 %v423
        %v983 = vpop.f32.mrf.mxu0
        %v984 = vadd.f32 %v970, %v983
        %v985 = vpop.f32.mrf.mxu0
        %v986 = vadd.f32 %v972, %v985
        %987 = vdwg.mxu0
        %988 = vmatpush.bf16.msra.mxu0 %v799
        %989 = vmatpush.bf16.msra.mxu0 %v798
        %990 = vmatpush.bf16.msra.mxu0 %v797
        %991 = vmatpush.bf16.msra.mxu0 %v796
        %992 = vmatpush.bf16.msra.mxu0 %v795
        %993 = vmatpush.bf16.msra.mxu0 %v794
        %994 = vmatpush.bf16.msra.mxu0 %v793
        %995 = vmatpush.bf16.msra.mxu0 %v792
        %996 = vmatmul.bf16.gmra.mxu0 %v424
        %v997 = vpop.f32.mrf.mxu0
        %v998 = vadd.f32 %v984, %v997
        %v999 = vpop.f32.mrf.mxu0
        %v1000 = vadd.f32 %v986, %v999
        %1001 = vdwg.mxu0
        %1002 = vmatpush.bf16.msra.mxu0 %v807
        %1003 = vmatpush.bf16.msra.mxu0 %v806
        %1004 = vmatpush.bf16.msra.mxu0 %v805
        %1005 = vmatpush.bf16.msra.mxu0 %v804
        %1006 = vmatpush.bf16.msra.mxu0 %v803
        %1007 = vmatpush.bf16.msra.mxu0 %v802
        %1008 = vmatpush.bf16.msra.mxu0 %v801
        %1009 = vmatpush.bf16.msra.mxu0 %v800
        %1010 = vmatmul.bf16.gmra.mxu0 %v425
        %v1011 = vpop.f32.mrf.mxu0
        %v1012 = vadd.f32 %v998, %v1011
        %v1013 = vpop.f32.mrf.mxu0
        %v1014 = vadd.f32 %v1000, %v1013
        %1015 = vdwg.mxu0
        %1016 = vmatpush.bf16.msra.mxu0 0
        %1017 = vmatpush.bf16.msra.mxu0 0
        %1018 = vmatpush.bf16.msra.mxu0 0
        %1019 = vmatpush.bf16.msra.mxu0 0
        %1020 = vmatpush.bf16.msra.mxu0 0
        %1021 = vmatpush.bf16.msra.mxu0 %v810
        %1022 = vmatpush.bf16.msra.mxu0 %v809
        %1023 = vmatpush.bf16.msra.mxu0 %v808
        %1024 = vmatmul.bf16.gmra.mxu0 %v888
        %v1025 = vpop.f32.mrf.mxu0
        %v1026 = vadd.f32 %v1012, %v1025
        %v1027 = vpop.f32.mrf.mxu0
        %v1028 = vadd.f32 %v1014, %v1027
        %1029 = vdwg.mxu0
        %1032 = vrot.lane.b32.xlu0 %v1026, 104
        %v1033 = vpop.permute.xlu0 %1032
        %1034 = vrot.lane.b32.xlu0 %v1028, 104
        %v1035 = vpop.permute.xlu0 %1034
        %v1038 = vmax.f32 %v1026, %v1033
        %v1039 = vmax.f32 %v1028, %v1035
        %vm1042 = vcmask 1043456
        %v1043 = vrot.slane %v1038, 4
        %v1044 = vrot.slane %v1039, 4
        %v1045 = vsel %vm1042, %v1043, %v1044
        %v1048 = vmax.f32 %v1038, %v1045
        %v1049 = vmax.f32 %v1039, %v1044
        %vm1052 = vcmask 1046528
        %v1053 = vrot.slane %v1048, 1
        %v1054 = vrot.slane %v1049, 1
        %v1055 = vsel %vm1052, %v1053, %v1054
        %v1058 = vmax.f32 %v1048, %v1055
        %v1059 = vmax.f32 %v1049, %v1054
        %v1061 = vrot.slane %v1058, 2
        %1062 = vrot.lane.b32.xlu0 %v1061, 24
        %v1063 = vpop.permute.xlu0 %1062
        %1066 = vrot.lane.b32.xlu0 %v1059, 48
        %v1067 = vpop.permute.xlu0 %1066
        %v1069 = vrot.slane %v1059, 2
        %1070 = vrot.lane.b32.xlu0 %v1069, 72
        %v1071 = vpop.permute.xlu0 %1070
        %vm1073 = vcmask 195584
        %v1074 = vsel %vm1073, %v1058, %v1063
        %v1075 = vsel %vm886, %v1074, %v1067
        %vm1076 = vcmask 588800
        %v1077 = vsel %vm1076, %v1075, %v1071
        %v1078 = vld [vmem:[%s3] sm:$0xff]
        %v1079 = vld [vmem:[%s3 + $0x8] sm:$0xff]
        %v1080 = vld [vmem:[%s3 + $0x10] sm:$0xff]
        %v1081 = vld [vmem:[%s3 + $0x18] sm:$0xff]
        %v1082 = vld [vmem:[%s3 + $0x20] sm:$0xff]
        %v1083 = vld [vmem:[%s3 + $0x28] sm:$0xff]
        %v1084 = vld [vmem:[%s3 + $0x30] sm:$0xff]
        %v1085 = vld [vmem:[%s3 + $0x38] sm:$0xff]
        %v1086 = vld [vmem:[%s3 + $0x40] sm:$0xff]
        %v1087 = vld [vmem:[%s3 + $0x48] sm:$0xff]
        %v1088 = vld [vmem:[%s3 + $0x50] sm:$0xff]
        %v1089 = vld [vmem:[%s3 + $0x58] sm:$0xff]
        %v1090 = vld [vmem:[%s4] sm:$0x1]
        %vm1091 = vcmask 785408
        %v1093 = vsel %vm1091, %v1077, 0
        %1095 = vmatpush.msra.mxu0 0.0
        %1096 = vmatpush.msra.mxu0 0.0
        %1097 = vmatpush.msra.mxu0 0.0
        %1098 = vmatpush.msra.mxu0 0.0
        %1099 = vmatpush.msra.mxu0 %v1089
        %1100 = vmatpush.msra.mxu0 %v1088
        %1101 = vmatpush.msra.mxu0 %v1087
        %1102 = vmatpush.msra.mxu0 %v1086
        %1103 = vmatpush.msra.mxu0 %v1085
        %1104 = vmatpush.msra.mxu0 %v1084
        %1105 = vmatpush.msra.mxu0 %v1083
        %1106 = vmatpush.msra.mxu0 %v1082
        %1107 = vmatpush.msra.mxu0 %v1081
        %1108 = vmatpush.msra.mxu0 %v1080
        %1109 = vmatpush.msra.mxu0 %v1079
        %1110 = vmatpush.msra.mxu0 %v1078
        %1111 = vmatmul.f32.gmra.mxu0 %v1093
        %v1112 = vpop.f32.mrf.mxu0
        %v1113 = vadd.f32 %v1090, %v1112
        %1114 = vdwg.mxu0
        %vm1115 = vcmask 73728
        %1116 = vst.msk [vmem:[%s216] sm:$0x1] %vm1115, %v1113
        %s1117 = sand.u32 %s137, 1
        %s1118 = scalar_lea.sflag [#allocation3], %s1117
        %s1119 = sand.u32 %s137, 1
        %s1120 = scalar_lea.vmem [#allocation2], %s1119
        // Predicated region
        $region41: #{maxout_conv_mnist_forward.5} parent=39 // pred_check
          %p1121 = pneg %p147
        $region42: #{maxout_conv_mnist_forward.5} parent=39 // pred_check_branch
          %1123 = sbr.rel (%p1121) target = $region44
        $region43: #{maxout_conv_mnist_forward.5} parent=39 // pred_region
          %1125 = vsyncadd %s1118, 0
          %s1126 = scalar_lea.hbm %s5, %s19
          %s1128 = sshll.u32 %s1120, 4
          %s1129 = int_to_ptr.vmem [resolvable:$true] %s1128
          %s1130 = sshll.u32 %s1126, 4
          %s1131 = int_to_ptr.hbm [resolvable:$true] %s1130
          %1133 = dma.vmem_to_hbm [thread:$0]  %s1129, 16, %s1131, %s1118
        $region44: #{maxout_conv_mnist_forward.5} parent=39 // pred_fallthru
          _
      $region40: #{maxout_conv_mnist_forward.5} parent=5 // pred_fallthru
        _
      %p1134 = scmp.le.s32.totalorder 2, %s14
      // Predicated region
      $region45: #{maxout_conv_mnist_forward.5} parent=5 // pred_check
        %p1135 = pneg %p1134
      $region46: #{maxout_conv_mnist_forward.5} parent=5 // pred_check_branch
        %1137 = sbr.rel (%p1135) target = $region48
      $region47: #{maxout_conv_mnist_forward.5} parent=5 // pred_region
        %s1138 = ssub.s32 %s14, 2
        // Predicated region
        $region49: #{maxout_conv_mnist_forward.5} parent=47 // pred_check
          %p1139 = pneg %p153
        $region50: #{maxout_conv_mnist_forward.5} parent=47 // pred_check_branch
          %1141 = sbr.rel (%p1139) target = $region52
        $region51: #{maxout_conv_mnist_forward.5} parent=47 // pred_region
          %s1142 = sand.u32 %s138, 1
          %s1143 = scalar_lea.sflag [#allocation3], %s1142
          %s1144 = sand.u32 %s138, 1
          %s1145 = scalar_lea.vmem [#allocation2], %s1144
          %1147 = dma.done %s1143, 16
        $region52: #{maxout_conv_mnist_forward.5} parent=47 // pred_fallthru
          _
      $region48: #{maxout_conv_mnist_forward.5} parent=5 // pred_fallthru
        _
    $region6: #{maxout_conv_mnist_forward.5} parent=1 // loop_footer
      %s18 = sadd.s32 1, %s14
    $region7: #{maxout_conv_mnist_forward.5} parent=1 // loop_footer_branch
      %13 = sbr.rel target = $region3
    $region8: #{maxout_conv_mnist_forward.5} parent=1 // loop_exit
      _
    %1148 = vsyncpa [#allocation3], 1
    %s1149 = scalar_lea.sflag [#allocation3], 1
    %1150 = vsyncpa %s1149, 1

</llo_original>
